<compile_context>
chip_gen: v7x
topology: tpu7x:2x2x1
jax: 0.10.0
libtpu: 0.0.40
codegen_flags: <defaults>
</compile_context>

<pallas_src>
import functools

import jax
import jax.numpy as jnp
from jax import lax
from jax.experimental import pallas as pl
from jax.experimental.pallas import tpu as pltpu


_DIMS = [8 * 8 * 6 * 2, 384, 192, 48, 24, 6, 2, 1]  # 768 -> ... -> 1
_N_LAYERS = len(_DIMS) - 1                          # 7 linear layers
_IN_FEATURES = _DIMS[0]


def _mlp_kernel(x_ref,
                w1_ref, b1_ref, w2_ref, b2_ref, w3_ref, b3_ref,
                w4t_ref, b4t_ref, w5_ref, b5t_ref, w6_ref, b6t_ref,
                w7_ref, b7t_ref,
                out_ref):
    f32 = jnp.float32

    # ---- head: (TILE_B, features) layout, MXU, bf16 operands, f32 accum ----
    x = x_ref[...]                                               # (TB, 768) bf16
    h = jnp.dot(x, w1_ref[...], preferred_element_type=f32) + b1_ref[...]
    h = jnp.maximum(h, 0.0)                                      # (TB, 384) f32
    h = jnp.dot(h.astype(jnp.bfloat16), w2_ref[...],
                preferred_element_type=f32) + b2_ref[...]
    h = jnp.maximum(h, 0.0)                                      # (TB, 192) f32
    h = jnp.dot(h, w3_ref[...], preferred_element_type=f32) + b3_ref[...]
    h = jnp.maximum(h, 0.0)                                      # (TB, 48)  f32

    # ---- tail: lane-dense (features, TILE_B) layout ----
    # 48 -> 24 on the MXU, contracting the feature axis of both operands
    # (same shape pattern as q @ k^T); result (24, TB) is lane-dense in batch.
    ht = lax.dot_general(w4t_ref[...], h, (((1,), (1,)), ((), ())),
                         preferred_element_type=f32) + b4t_ref[...]
    ht = jnp.maximum(ht, 0.0)                                    # (24, TB)

    # 24 -> 6 on the VPU + sublane (XLU) reduction; MXU would be ~all padding.
    w5 = w5_ref[...]                                             # (24, 6)
    rows = [jnp.sum(ht * w5[:, j:j + 1], axis=0, keepdims=True)  # (1, TB)
            for j in range(6)]
    ht = jnp.concatenate(rows, axis=0) + b5t_ref[...]            # (6, TB)
    ht = jnp.maximum(ht, 0.0)

    # 6 -> 2 on the VPU.
    w6 = w6_ref[...]                                             # (6, 2)
    rows = [jnp.sum(ht * w6[:, j:j + 1], axis=0, keepdims=True)
            for j in range(2)]
    ht = jnp.concatenate(rows, axis=0) + b6t_ref[...]            # (2, TB)
    ht = jnp.maximum(ht, 0.0)

    # 2 -> 1 + sigmoid (exp on EUP + approximate reciprocal -> EUP slot).
    z = jnp.sum(ht * w7_ref[...], axis=0, keepdims=True) + b7t_ref[...]  # (1, TB)
    probs = pl.reciprocal(1.0 + jnp.exp(-z), approx=True)
    out_ref[...] = probs.reshape(out_ref.shape).astype(out_ref.dtype)


@functools.partial(jax.jit, static_argnames=("tile_b",))
def neural_network2_forward(x, params, *, tile_b=512):
    """x: (B, 8, 8, 6, 2). params: list of 7 (W, b) with W stored (in, out)."""
    batch = x.shape[0]
    x_flat = x.reshape(batch, -1)                                # nn.Flatten()
    assert x_flat.shape[1] == _IN_FEATURES

    padded = pl.cdiv(batch, tile_b) * tile_b
    num_tiles = padded // tile_b
    if padded != batch:
        x_flat = jnp.pad(x_flat, ((0, padded - batch), (0, 0)))
    x_bf16 = x_flat.astype(jnp.bfloat16)     # halves the input-tile DMA bytes

    (w1, b1), (w2, b2), (w3, b3), (w4, b4), (w5, b5), (w6, b6), (w7, b7) = params
    f32 = jnp.float32
    operands = [
        w1.astype(jnp.bfloat16), b1.reshape(1, -1).astype(f32),
        w2.astype(jnp.bfloat16), b2.reshape(1, -1).astype(f32),
        w3.astype(f32),          b3.reshape(1, -1).astype(f32),
        w4.T.astype(f32),        b4.reshape(-1, 1).astype(f32),  # (24,48),(24,1)
        w5.astype(f32),          b5.reshape(-1, 1).astype(f32),  # (24,6), (6,1)
        w6.astype(f32),          b6.reshape(-1, 1).astype(f32),  # (6,2),  (2,1)
        w7.astype(f32),          b7.reshape(-1, 1).astype(f32),  # (2,1),  (1,1)
    ]

    # Weights/biases: full-array blocks with a constant block index -> fetched
    # into VMEM once and kept resident across the batch grid.
    param_specs = [pl.BlockSpec(p.shape, lambda i: (0, 0)) for p in operands]
    x_spec = pl.BlockSpec((tile_b, _IN_FEATURES), lambda i: (i, 0))
    out_spec = pl.BlockSpec((1, 1, tile_b), lambda i: (i, 0, 0))

    out = pl.pallas_call(
        _mlp_kernel,
        grid=(num_tiles,),
        out_shape=jax.ShapeDtypeStruct((num_tiles, 1, tile_b), jnp.float32),
        in_specs=[x_spec] + param_specs,
        out_specs=out_spec,
        compiler_params=pltpu.CompilerParams(
            dimension_semantics=("parallel",)),
    )(x_bf16, *operands)

    return out.reshape(padded, 1)[:batch]


def init_params(key):
    """Deterministic init matching PyTorch Linear shapes (stored (in, out))."""
    params = []
    for i in range(_N_LAYERS):
        fan_in, fan_out = _DIMS[i], _DIMS[i + 1]
        key, kw, kb = jax.random.split(key, 3)
        bound = 1.0 / jnp.sqrt(fan_in)
        w = jax.random.uniform(kw, (fan_in, fan_out), jnp.float32, -bound, bound)
        b = jax.random.uniform(kb, (fan_out,), jnp.float32, -bound, bound)
        params.append((w, b))
    return params


def _reference_forward(x, params):
    h = x.reshape(x.shape[0], -1).astype(jnp.float32)
    for i, (w, b) in enumerate(params):
        z = h @ w + b
        h = jnp.maximum(z, 0.0) if i < _N_LAYERS - 1 else jax.nn.sigmoid(z)
    return h


if __name__ == "__main__":
    key = jax.random.PRNGKey(0)
    kx, kp = jax.random.split(key)

    batch = 2
    x = jax.random.normal(kx, (batch, 8, 8, 6, 2), dtype=jnp.float32)
    params = init_params(kp)

    out = neural_network2_forward(x, params)
    out = jax.block_until_ready(out)

    ref = _reference_forward(x, params)
    assert out.shape == (batch, 1)
    # bf16 MXU operands + approximate reciprocal -> loosened tolerance.
    assert jnp.allclose(out, ref, atol=2e-2, rtol=2e-2), (out, ref)

    print("KERNEL_OK")
</pallas_src>

<mosaic_0001>
module attributes {stable_mosaic.version = 11 : i64} {
  func.func @_mlp_kernel(%arg0: i32, %arg1: memref<512x768xbf16, #tpu.memory_space<vmem>>, %arg2: memref<768x384xbf16, #tpu.memory_space<vmem>>, %arg3: memref<1x384xf32, #tpu.memory_space<vmem>>, %arg4: memref<384x192xbf16, #tpu.memory_space<vmem>>, %arg5: memref<1x192xf32, #tpu.memory_space<vmem>>, %arg6: memref<192x48xf32, #tpu.memory_space<vmem>>, %arg7: memref<1x48xf32, #tpu.memory_space<vmem>>, %arg8: memref<24x48xf32, #tpu.memory_space<vmem>>, %arg9: memref<24x1xf32, #tpu.memory_space<vmem>>, %arg10: memref<24x6xf32, #tpu.memory_space<vmem>>, %arg11: memref<6x1xf32, #tpu.memory_space<vmem>>, %arg12: memref<6x2xf32, #tpu.memory_space<vmem>>, %arg13: memref<2x1xf32, #tpu.memory_space<vmem>>, %arg14: memref<2x1xf32, #tpu.memory_space<vmem>>, %arg15: memref<1x1xf32, #tpu.memory_space<vmem>>, %arg16: memref<1x1x512xf32, #tpu.memory_space<vmem>>) attributes {dimension_semantics = [#tpu.dimension_semantics<parallel>], iteration_bounds = array<i64: 1>, scalar_prefetch = 0 : i64, scratch_operands = 0 : i64, tpu.core_type = #tpu.core_type<tc>, window_params = [{transform_indices = @transform_0, window_bounds = array<i64: 512, 768>}, {pipeline_mode = #tpu.pipeline_mode<synchronous>, transform_indices = @transform_1, window_bounds = array<i64: 768, 384>}, {pipeline_mode = #tpu.pipeline_mode<synchronous>, transform_indices = @transform_2, window_bounds = array<i64: 1, 384>}, {pipeline_mode = #tpu.pipeline_mode<synchronous>, transform_indices = @transform_3, window_bounds = array<i64: 384, 192>}, {pipeline_mode = #tpu.pipeline_mode<synchronous>, transform_indices = @transform_4, window_bounds = array<i64: 1, 192>}, {pipeline_mode = #tpu.pipeline_mode<synchronous>, transform_indices = @transform_5, window_bounds = array<i64: 192, 48>}, {pipeline_mode = #tpu.pipeline_mode<synchronous>, transform_indices = @transform_6, window_bounds = array<i64: 1, 48>}, {pipeline_mode = #tpu.pipeline_mode<synchronous>, transform_indices = @transform_7, window_bounds = array<i64: 24, 48>}, {pipeline_mode = #tpu.pipeline_mode<synchronous>, transform_indices = @transform_8, window_bounds = array<i64: 24, 1>}, {pipeline_mode = #tpu.pipeline_mode<synchronous>, transform_indices = @transform_9, window_bounds = array<i64: 24, 6>}, {pipeline_mode = #tpu.pipeline_mode<synchronous>, transform_indices = @transform_10, window_bounds = array<i64: 6, 1>}, {pipeline_mode = #tpu.pipeline_mode<synchronous>, transform_indices = @transform_11, window_bounds = array<i64: 6, 2>}, {pipeline_mode = #tpu.pipeline_mode<synchronous>, transform_indices = @transform_12, window_bounds = array<i64: 2, 1>}, {pipeline_mode = #tpu.pipeline_mode<synchronous>, transform_indices = @transform_13, window_bounds = array<i64: 2, 1>}, {pipeline_mode = #tpu.pipeline_mode<synchronous>, transform_indices = @transform_14, window_bounds = array<i64: 1, 1>}, {transform_indices = @transform_15, window_bounds = array<i64: 1, 1, 512>}]} {
    %c0 = arith.constant 0 : index
    %c0_0 = arith.constant 0 : index
    %0 = vector.load %arg1[%c0, %c0_0] : memref<512x768xbf16, #tpu.memory_space<vmem>>, vector<512x768xbf16>
    %c0_1 = arith.constant 0 : index
    %c0_2 = arith.constant 0 : index
    %1 = vector.load %arg2[%c0_1, %c0_2] : memref<768x384xbf16, #tpu.memory_space<vmem>>, vector<768x384xbf16>
    %cst = arith.constant dense<0.000000e+00> : vector<512x384xf32>
    %2 = tpu.matmul %0, %1, %cst {dimension_numbers = #tpu.dot_dimension_numbers<[1], [0], [0], [1], [0, 0, 1, 1], [], []>} : vector<512x768xbf16>, vector<768x384xbf16>, vector<512x384xf32> -> vector<512x384xf32>
    %c0_3 = arith.constant 0 : index
    %c0_4 = arith.constant 0 : index
    %3 = vector.load %arg3[%c0_3, %c0_4] : memref<1x384xf32, #tpu.memory_space<vmem>>, vector<1x384xf32>
    %4 = vector.broadcast %3 : vector<1x384xf32> to vector<512x384xf32>
    %5 = arith.addf %2, %4 : vector<512x384xf32>
    %cst_5 = arith.constant 0.000000e+00 : f32
    %6 = vector.broadcast %cst_5 : f32 to vector<512x384xf32>
    %7 = arith.maximumf %5, %6 : vector<512x384xf32>
    %8 = arith.truncf %7 : vector<512x384xf32> to vector<512x384xbf16>
    %c0_6 = arith.constant 0 : index
    %c0_7 = arith.constant 0 : index
    %9 = vector.load %arg4[%c0_6, %c0_7] : memref<384x192xbf16, #tpu.memory_space<vmem>>, vector<384x192xbf16>
    %cst_8 = arith.constant dense<0.000000e+00> : vector<512x192xf32>
    %10 = tpu.matmul %8, %9, %cst_8 {dimension_numbers = #tpu.dot_dimension_numbers<[1], [0], [0], [1], [0, 0, 1, 1], [], []>} : vector<512x384xbf16>, vector<384x192xbf16>, vector<512x192xf32> -> vector<512x192xf32>
    %c0_9 = arith.constant 0 : index
    %c0_10 = arith.constant 0 : index
    %11 = vector.load %arg5[%c0_9, %c0_10] : memref<1x192xf32, #tpu.memory_space<vmem>>, vector<1x192xf32>
    %12 = vector.broadcast %11 : vector<1x192xf32> to vector<512x192xf32>
    %13 = arith.addf %10, %12 : vector<512x192xf32>
    %cst_11 = arith.constant 0.000000e+00 : f32
    %14 = vector.broadcast %cst_11 : f32 to vector<512x192xf32>
    %15 = arith.maximumf %13, %14 : vector<512x192xf32>
    %c0_12 = arith.constant 0 : index
    %c0_13 = arith.constant 0 : index
    %16 = vector.load %arg6[%c0_12, %c0_13] : memref<192x48xf32, #tpu.memory_space<vmem>>, vector<192x48xf32>
    %cst_14 = arith.constant dense<0.000000e+00> : vector<512x48xf32>
    %17 = tpu.matmul %15, %16, %cst_14 {dimension_numbers = #tpu.dot_dimension_numbers<[1], [0], [0], [1], [0, 0, 1, 1], [], []>} : vector<512x192xf32>, vector<192x48xf32>, vector<512x48xf32> -> vector<512x48xf32>
    %c0_15 = arith.constant 0 : index
    %c0_16 = arith.constant 0 : index
    %18 = vector.load %arg7[%c0_15, %c0_16] : memref<1x48xf32, #tpu.memory_space<vmem>>, vector<1x48xf32>
    %19 = vector.broadcast %18 : vector<1x48xf32> to vector<512x48xf32>
    %20 = arith.addf %17, %19 : vector<512x48xf32>
    %cst_17 = arith.constant 0.000000e+00 : f32
    %21 = vector.broadcast %cst_17 : f32 to vector<512x48xf32>
    %22 = arith.maximumf %20, %21 : vector<512x48xf32>
    %c0_18 = arith.constant 0 : index
    %c0_19 = arith.constant 0 : index
    %23 = vector.load %arg8[%c0_18, %c0_19] : memref<24x48xf32, #tpu.memory_space<vmem>>, vector<24x48xf32>
    %cst_20 = arith.constant dense<0.000000e+00> : vector<24x512xf32>
    %24 = tpu.matmul %23, %22, %cst_20 {dimension_numbers = #tpu.dot_dimension_numbers<[1], [1], [0], [0], [0, 0, 1, 0], [], []>} : vector<24x48xf32>, vector<512x48xf32>, vector<24x512xf32> -> vector<24x512xf32>
    %c0_21 = arith.constant 0 : index
    %c0_22 = arith.constant 0 : index
    %25 = vector.load %arg9[%c0_21, %c0_22] : memref<24x1xf32, #tpu.memory_space<vmem>>, vector<24x1xf32>
    %26 = vector.broadcast %25 : vector<24x1xf32> to vector<24x512xf32>
    %27 = arith.addf %24, %26 : vector<24x512xf32>
    %cst_23 = arith.constant 0.000000e+00 : f32
    %28 = vector.broadcast %cst_23 : f32 to vector<24x512xf32>
    %29 = arith.maximumf %27, %28 : vector<24x512xf32>
    %c0_24 = arith.constant 0 : index
    %c0_25 = arith.constant 0 : index
    %30 = vector.load %arg10[%c0_24, %c0_25] : memref<24x6xf32, #tpu.memory_space<vmem>>, vector<24x6xf32>
    %31 = vector.extract_strided_slice %30 {offsets = [0, 0], sizes = [24, 1], strides = [1, 1]} : vector<24x6xf32> to vector<24x1xf32>
    %32 = vector.broadcast %31 : vector<24x1xf32> to vector<24x512xf32>
    %33 = arith.mulf %29, %32 : vector<24x512xf32>
    %cst_26 = arith.constant dense<0.000000e+00> : vector<512xf32>
    %34 = vector.multi_reduction <add>, %33, %cst_26 [0] : vector<24x512xf32> to vector<512xf32>
    %35 = vector.shape_cast %34 : vector<512xf32> to vector<1x512xf32>
    %36 = vector.extract_strided_slice %30 {offsets = [0, 1], sizes = [24, 1], strides = [1, 1]} : vector<24x6xf32> to vector<24x1xf32>
    %37 = vector.broadcast %36 : vector<24x1xf32> to vector<24x512xf32>
    %38 = arith.mulf %29, %37 : vector<24x512xf32>
    %cst_27 = arith.constant dense<0.000000e+00> : vector<512xf32>
    %39 = vector.multi_reduction <add>, %38, %cst_27 [0] : vector<24x512xf32> to vector<512xf32>
    %40 = vector.shape_cast %39 : vector<512xf32> to vector<1x512xf32>
    %41 = vector.extract_strided_slice %30 {offsets = [0, 2], sizes = [24, 1], strides = [1, 1]} : vector<24x6xf32> to vector<24x1xf32>
    %42 = vector.broadcast %41 : vector<24x1xf32> to vector<24x512xf32>
    %43 = arith.mulf %29, %42 : vector<24x512xf32>
    %cst_28 = arith.constant dense<0.000000e+00> : vector<512xf32>
    %44 = vector.multi_reduction <add>, %43, %cst_28 [0] : vector<24x512xf32> to vector<512xf32>
    %45 = vector.shape_cast %44 : vector<512xf32> to vector<1x512xf32>
    %46 = vector.extract_strided_slice %30 {offsets = [0, 3], sizes = [24, 1], strides = [1, 1]} : vector<24x6xf32> to vector<24x1xf32>
    %47 = vector.broadcast %46 : vector<24x1xf32> to vector<24x512xf32>
    %48 = arith.mulf %29, %47 : vector<24x512xf32>
    %cst_29 = arith.constant dense<0.000000e+00> : vector<512xf32>
    %49 = vector.multi_reduction <add>, %48, %cst_29 [0] : vector<24x512xf32> to vector<512xf32>
    %50 = vector.shape_cast %49 : vector<512xf32> to vector<1x512xf32>
    %51 = vector.extract_strided_slice %30 {offsets = [0, 4], sizes = [24, 1], strides = [1, 1]} : vector<24x6xf32> to vector<24x1xf32>
    %52 = vector.broadcast %51 : vector<24x1xf32> to vector<24x512xf32>
    %53 = arith.mulf %29, %52 : vector<24x512xf32>
    %cst_30 = arith.constant dense<0.000000e+00> : vector<512xf32>
    %54 = vector.multi_reduction <add>, %53, %cst_30 [0] : vector<24x512xf32> to vector<512xf32>
    %55 = vector.shape_cast %54 : vector<512xf32> to vector<1x512xf32>
    %56 = vector.extract_strided_slice %30 {offsets = [0, 5], sizes = [24, 1], strides = [1, 1]} : vector<24x6xf32> to vector<24x1xf32>
    %57 = vector.broadcast %56 : vector<24x1xf32> to vector<24x512xf32>
    %58 = arith.mulf %29, %57 : vector<24x512xf32>
    %cst_31 = arith.constant dense<0.000000e+00> : vector<512xf32>
    %59 = vector.multi_reduction <add>, %58, %cst_31 [0] : vector<24x512xf32> to vector<512xf32>
    %60 = vector.shape_cast %59 : vector<512xf32> to vector<1x512xf32>
    %61 = tpu.concatenate %35, %40, %45, %50, %55, %60 in 0 : vector<1x512xf32>, vector<1x512xf32>, vector<1x512xf32>, vector<1x512xf32>, vector<1x512xf32>, vector<1x512xf32> -> vector<6x512xf32>
    %c0_32 = arith.constant 0 : index
    %c0_33 = arith.constant 0 : index
    %62 = vector.load %arg11[%c0_32, %c0_33] : memref<6x1xf32, #tpu.memory_space<vmem>>, vector<6x1xf32>
    %63 = vector.broadcast %62 : vector<6x1xf32> to vector<6x512xf32>
    %64 = arith.addf %61, %63 : vector<6x512xf32>
    %cst_34 = arith.constant 0.000000e+00 : f32
    %65 = vector.broadcast %cst_34 : f32 to vector<6x512xf32>
    %66 = arith.maximumf %64, %65 : vector<6x512xf32>
    %c0_35 = arith.constant 0 : index
    %c0_36 = arith.constant 0 : index
    %67 = vector.load %arg12[%c0_35, %c0_36] : memref<6x2xf32, #tpu.memory_space<vmem>>, vector<6x2xf32>
    %68 = vector.extract_strided_slice %67 {offsets = [0, 0], sizes = [6, 1], strides = [1, 1]} : vector<6x2xf32> to vector<6x1xf32>
    %69 = vector.broadcast %68 : vector<6x1xf32> to vector<6x512xf32>
    %70 = arith.mulf %66, %69 : vector<6x512xf32>
    %cst_37 = arith.constant dense<0.000000e+00> : vector<512xf32>
    %71 = vector.multi_reduction <add>, %70, %cst_37 [0] : vector<6x512xf32> to vector<512xf32>
    %72 = vector.shape_cast %71 : vector<512xf32> to vector<1x512xf32>
    %73 = vector.extract_strided_slice %67 {offsets = [0, 1], sizes = [6, 1], strides = [1, 1]} : vector<6x2xf32> to vector<6x1xf32>
    %74 = vector.broadcast %73 : vector<6x1xf32> to vector<6x512xf32>
    %75 = arith.mulf %66, %74 : vector<6x512xf32>
    %cst_38 = arith.constant dense<0.000000e+00> : vector<512xf32>
    %76 = vector.multi_reduction <add>, %75, %cst_38 [0] : vector<6x512xf32> to vector<512xf32>
    %77 = vector.shape_cast %76 : vector<512xf32> to vector<1x512xf32>
    %78 = tpu.concatenate %72, %77 in 0 : vector<1x512xf32>, vector<1x512xf32> -> vector<2x512xf32>
    %c0_39 = arith.constant 0 : index
    %c0_40 = arith.constant 0 : index
    %79 = vector.load %arg13[%c0_39, %c0_40] : memref<2x1xf32, #tpu.memory_space<vmem>>, vector<2x1xf32>
    %80 = vector.broadcast %79 : vector<2x1xf32> to vector<2x512xf32>
    %81 = arith.addf %78, %80 : vector<2x512xf32>
    %cst_41 = arith.constant 0.000000e+00 : f32
    %82 = vector.broadcast %cst_41 : f32 to vector<2x512xf32>
    %83 = arith.maximumf %81, %82 : vector<2x512xf32>
    %c0_42 = arith.constant 0 : index
    %c0_43 = arith.constant 0 : index
    %84 = vector.load %arg14[%c0_42, %c0_43] : memref<2x1xf32, #tpu.memory_space<vmem>>, vector<2x1xf32>
    %85 = vector.broadcast %84 : vector<2x1xf32> to vector<2x512xf32>
    %86 = arith.mulf %83, %85 : vector<2x512xf32>
    %cst_44 = arith.constant dense<0.000000e+00> : vector<512xf32>
    %87 = vector.multi_reduction <add>, %86, %cst_44 [0] : vector<2x512xf32> to vector<512xf32>
    %88 = vector.shape_cast %87 : vector<512xf32> to vector<1x512xf32>
    %c0_45 = arith.constant 0 : index
    %c0_46 = arith.constant 0 : index
    %89 = vector.load %arg15[%c0_45, %c0_46] : memref<1x1xf32, #tpu.memory_space<vmem>>, vector<1x1xf32>
    %90 = vector.broadcast %89 : vector<1x1xf32> to vector<1x512xf32>
    %91 = arith.addf %88, %90 : vector<1x512xf32>
    %cst_47 = arith.constant 0.000000e+00 : f32
    %92 = vector.broadcast %cst_47 : f32 to vector<1x512xf32>
    %93 = arith.subf %92, %91 : vector<1x512xf32>
    %94 = math.exp %93 : vector<1x512xf32>
    %cst_48 = arith.constant 1.000000e+00 : f32
    %95 = vector.broadcast %cst_48 : f32 to vector<1x512xf32>
    %96 = arith.addf %95, %94 : vector<1x512xf32>
    %97 = tpu.reciprocal %96 {approx = true} : vector<1x512xf32> -> vector<1x512xf32>
    %98 = vector.shape_cast %97 : vector<1x512xf32> to vector<1x1x512xf32>
    %c0_49 = arith.constant 0 : index
    %c0_50 = arith.constant 0 : index
    %c0_51 = arith.constant 0 : index
    %99 = vector.load %arg16[%c0_49, %c0_50, %c0_51] : memref<1x1x512xf32, #tpu.memory_space<vmem>>, vector<1x1x512xf32>
    tpu.vector_store %arg16[%c0_49, %c0_50, %c0_51], %98 {strides = array<i32>} : memref<1x1x512xf32, #tpu.memory_space<vmem>>, vector<1x1x512xf32>,
    return
  }
  func.func @transform_0(%arg0: i32) -> (i32, i32) {
    %c0_i32 = arith.constant 0 : i32
    %c0_i32_0 = arith.constant 0 : i32
    return %arg0, %c0_i32 : i32, i32
  }
  func.func @transform_1(%arg0: i32) -> (i32, i32) {
    %c0_i32 = arith.constant 0 : i32
    %c0_i32_0 = arith.constant 0 : i32
    %c0_i32_1 = arith.constant 0 : i32
    return %c0_i32, %c0_i32_0 : i32, i32
  }
  func.func @transform_2(%arg0: i32) -> (i32, i32) {
    %c0_i32 = arith.constant 0 : i32
    %c0_i32_0 = arith.constant 0 : i32
    %c0_i32_1 = arith.constant 0 : i32
    return %c0_i32, %c0_i32_0 : i32, i32
  }
  func.func @transform_3(%arg0: i32) -> (i32, i32) {
    %c0_i32 = arith.constant 0 : i32
    %c0_i32_0 = arith.constant 0 : i32
    %c0_i32_1 = arith.constant 0 : i32
    return %c0_i32, %c0_i32_0 : i32, i32
  }
  func.func @transform_4(%arg0: i32) -> (i32, i32) {
    %c0_i32 = arith.constant 0 : i32
    %c0_i32_0 = arith.constant 0 : i32
    %c0_i32_1 = arith.constant 0 : i32
    return %c0_i32, %c0_i32_0 : i32, i32
  }
  func.func @transform_5(%arg0: i32) -> (i32, i32) {
    %c0_i32 = arith.constant 0 : i32
    %c0_i32_0 = arith.constant 0 : i32
    %c0_i32_1 = arith.constant 0 : i32
    return %c0_i32, %c0_i32_0 : i32, i32
  }
  func.func @transform_6(%arg0: i32) -> (i32, i32) {
    %c0_i32 = arith.constant 0 : i32
    %c0_i32_0 = arith.constant 0 : i32
    %c0_i32_1 = arith.constant 0 : i32
    return %c0_i32, %c0_i32_0 : i32, i32
  }
  func.func @transform_7(%arg0: i32) -> (i32, i32) {
    %c0_i32 = arith.constant 0 : i32
    %c0_i32_0 = arith.constant 0 : i32
    %c0_i32_1 = arith.constant 0 : i32
    return %c0_i32, %c0_i32_0 : i32, i32
  }
  func.func @transform_8(%arg0: i32) -> (i32, i32) {
    %c0_i32 = arith.constant 0 : i32
    %c0_i32_0 = arith.constant 0 : i32
    %c0_i32_1 = arith.constant 0 : i32
    return %c0_i32, %c0_i32_0 : i32, i32
  }
  func.func @transform_9(%arg0: i32) -> (i32, i32) {
    %c0_i32 = arith.constant 0 : i32
    %c0_i32_0 = arith.constant 0 : i32
    %c0_i32_1 = arith.constant 0 : i32
    return %c0_i32, %c0_i32_0 : i32, i32
  }
  func.func @transform_10(%arg0: i32) -> (i32, i32) {
    %c0_i32 = arith.constant 0 : i32
    %c0_i32_0 = arith.constant 0 : i32
    %c0_i32_1 = arith.constant 0 : i32
    return %c0_i32, %c0_i32_0 : i32, i32
  }
  func.func @transform_11(%arg0: i32) -> (i32, i32) {
    %c0_i32 = arith.constant 0 : i32
    %c0_i32_0 = arith.constant 0 : i32
    %c0_i32_1 = arith.constant 0 : i32
    return %c0_i32, %c0_i32_0 : i32, i32
  }
  func.func @transform_12(%arg0: i32) -> (i32, i32) {
    %c0_i32 = arith.constant 0 : i32
    %c0_i32_0 = arith.constant 0 : i32
    %c0_i32_1 = arith.constant 0 : i32
    return %c0_i32, %c0_i32_0 : i32, i32
  }
  func.func @transform_13(%arg0: i32) -> (i32, i32) {
    %c0_i32 = arith.constant 0 : i32
    %c0_i32_0 = arith.constant 0 : i32
    %c0_i32_1 = arith.constant 0 : i32
    return %c0_i32, %c0_i32_0 : i32, i32
  }
  func.func @transform_14(%arg0: i32) -> (i32, i32) {
    %c0_i32 = arith.constant 0 : i32
    %c0_i32_0 = arith.constant 0 : i32
    %c0_i32_1 = arith.constant 0 : i32
    return %c0_i32, %c0_i32_0 : i32, i32
  }
  func.func @transform_15(%arg0: i32) -> (i32, i32, i32) {
    %c0_i32 = arith.constant 0 : i32
    %c0_i32_0 = arith.constant 0 : i32
    %c0_i32_1 = arith.constant 0 : i32
    return %arg0, %c0_i32, %c0_i32_0 : i32, i32, i32
  }
}

</mosaic_0001>

<llo_original>
// kernel: neural_network2_forward.1
$region0: #{neural_network2_forward.1}
  #allocation0 [shape = 'u32[]', space=smem, size = 0x4, offset = 0x4, fixed_abs, tag = 'smem constant byte address 0x4 - core index']
  #allocation1 [shape = 'u32[144,128]{1,0:T(1,128)}', space=vmem, size = 0x12000, scoped, tag = 'internal scratch']
  #allocation2 [shape = 'f32[1,1]{1,0:T(1,128)S(1)}', space=vmem, size = 0x200, scoped, tag = 'scoped memory for neural_network2_forward.1']
  %s0 = inlined_call_operand.vmem [shape: bf16[512,768], index: 0, kind: input, shape index: {}]
  %s1 = inlined_call_operand.vmem [shape: bf16[768,384], index: 1, kind: input, shape index: {}]
  %s2 = inlined_call_operand.vmem [shape: f32[1,384], index: 2, kind: input, shape index: {}]
  %s3 = inlined_call_operand.vmem [shape: bf16[384,192], index: 3, kind: input, shape index: {}]
  %s4 = inlined_call_operand.vmem [shape: f32[1,192], index: 4, kind: input, shape index: {}]
  %s5 = inlined_call_operand.vmem [shape: f32[192,48], index: 5, kind: input, shape index: {}]
  %s6 = inlined_call_operand.vmem [shape: f32[1,48], index: 6, kind: input, shape index: {}]
  %s7 = inlined_call_operand.vmem [shape: f32[24,48], index: 7, kind: input, shape index: {}]
  %s8 = inlined_call_operand.vmem [shape: f32[24,1], index: 8, kind: input, shape index: {}]
  %s9 = inlined_call_operand.vmem [shape: f32[24,6], index: 9, kind: input, shape index: {}]
  %s10 = inlined_call_operand.vmem [shape: f32[6,1], index: 10, kind: input, shape index: {}]
  %s11 = inlined_call_operand.vmem [shape: f32[6,2], index: 11, kind: input, shape index: {}]
  %s12 = inlined_call_operand.vmem [shape: f32[2,1], index: 12, kind: input, shape index: {}]
  %s13 = inlined_call_operand.vmem [shape: f32[2,1], index: 13, kind: input, shape index: {}]
  %s14 = inlined_call_operand.<no memory space> [shape: f32[1,1], index: 14, kind: input, shape index: {}]
  %s15 = inlined_call_operand.vmem [shape: f32[1,1,512], index: 15, kind: output, shape index: {}]
  %s16 = sld [smem:[#allocation0]]
  $region70: #{neural_network2_forward.1} parent=0
    _
  %s18 = ssub.s32 1, %s16
  %s19 = scalar_select 0, %s18, %s16
  %v20 = vstv %s14
  %21 = vst [vmem:[#allocation2] sm:$0x1] %v20
  // Predicated region
  $region2: #{neural_network2_forward.1} parent=0 // pred_check
    _
  $region3: #{neural_network2_forward.1} parent=0 // pred_check_branch
    %23 = sbr.rel (0) target = $region5
  $region4: #{neural_network2_forward.1} parent=0 // pred_region
    _
  $region5: #{neural_network2_forward.1} parent=0 // pred_fallthru
    _
  // Predicated region
  $region6: #{neural_network2_forward.1} parent=0 // pred_check
    _
  $region7: #{neural_network2_forward.1} parent=0 // pred_check_branch
    %25 = sbr.rel (0) target = $region9
  $region8: #{neural_network2_forward.1} parent=0 // pred_region
    _
  $region9: #{neural_network2_forward.1} parent=0 // pred_fallthru
    _
  // Predicated region
  $region10: #{neural_network2_forward.1} parent=0 // pred_check
    _
  $region11: #{neural_network2_forward.1} parent=0 // pred_check_branch
    %27 = sbr.rel (0) target = $region13
  $region12: #{neural_network2_forward.1} parent=0 // pred_region
    _
  $region13: #{neural_network2_forward.1} parent=0 // pred_fallthru
    _
  // Predicated region
  $region14: #{neural_network2_forward.1} parent=0 // pred_check
    _
  $region15: #{neural_network2_forward.1} parent=0 // pred_check_branch
    %29 = sbr.rel (0) target = $region17
  $region16: #{neural_network2_forward.1} parent=0 // pred_region
    _
  $region17: #{neural_network2_forward.1} parent=0 // pred_fallthru
    _
  // Predicated region
  $region18: #{neural_network2_forward.1} parent=0 // pred_check
    _
  $region19: #{neural_network2_forward.1} parent=0 // pred_check_branch
    %31 = sbr.rel (0) target = $region21
  $region20: #{neural_network2_forward.1} parent=0 // pred_region
    _
  $region21: #{neural_network2_forward.1} parent=0 // pred_fallthru
    _
  // Predicated region
  $region22: #{neural_network2_forward.1} parent=0 // pred_check
    _
  $region23: #{neural_network2_forward.1} parent=0 // pred_check_branch
    %33 = sbr.rel (0) target = $region25
  $region24: #{neural_network2_forward.1} parent=0 // pred_region
    _
  $region25: #{neural_network2_forward.1} parent=0 // pred_fallthru
    _
  // Predicated region
  $region26: #{neural_network2_forward.1} parent=0 // pred_check
    _
  $region27: #{neural_network2_forward.1} parent=0 // pred_check_branch
    %35 = sbr.rel (0) target = $region29
  $region28: #{neural_network2_forward.1} parent=0 // pred_region
    _
  $region29: #{neural_network2_forward.1} parent=0 // pred_fallthru
    _
  // Predicated region
  $region30: #{neural_network2_forward.1} parent=0 // pred_check
    _
  $region31: #{neural_network2_forward.1} parent=0 // pred_check_branch
    %37 = sbr.rel (0) target = $region33
  $region32: #{neural_network2_forward.1} parent=0 // pred_region
    _
  $region33: #{neural_network2_forward.1} parent=0 // pred_fallthru
    _
  // Predicated region
  $region34: #{neural_network2_forward.1} parent=0 // pred_check
    _
  $region35: #{neural_network2_forward.1} parent=0 // pred_check_branch
    %39 = sbr.rel (0) target = $region37
  $region36: #{neural_network2_forward.1} parent=0 // pred_region
    _
  $region37: #{neural_network2_forward.1} parent=0 // pred_fallthru
    _
  // Predicated region
  $region38: #{neural_network2_forward.1} parent=0 // pred_check
    _
  $region39: #{neural_network2_forward.1} parent=0 // pred_check_branch
    %41 = sbr.rel (0) target = $region41
  $region40: #{neural_network2_forward.1} parent=0 // pred_region
    _
  $region41: #{neural_network2_forward.1} parent=0 // pred_fallthru
    _
  // Predicated region
  $region42: #{neural_network2_forward.1} parent=0 // pred_check
    _
  $region43: #{neural_network2_forward.1} parent=0 // pred_check_branch
    %43 = sbr.rel (0) target = $region45
  $region44: #{neural_network2_forward.1} parent=0 // pred_region
    _
  $region45: #{neural_network2_forward.1} parent=0 // pred_fallthru
    _
  // Predicated region
  $region46: #{neural_network2_forward.1} parent=0 // pred_check
    _
  $region47: #{neural_network2_forward.1} parent=0 // pred_check_branch
    %45 = sbr.rel (0) target = $region49
  $region48: #{neural_network2_forward.1} parent=0 // pred_region
    _
  $region49: #{neural_network2_forward.1} parent=0 // pred_fallthru
    _
  // Predicated region
  $region50: #{neural_network2_forward.1} parent=0 // pred_check
    _
  $region51: #{neural_network2_forward.1} parent=0 // pred_check_branch
    %47 = sbr.rel (0) target = $region53
  $region52: #{neural_network2_forward.1} parent=0 // pred_region
    _
  $region53: #{neural_network2_forward.1} parent=0 // pred_fallthru
    _
  // Predicated region
  $region54: #{neural_network2_forward.1} parent=0 // pred_check
    _
  $region55: #{neural_network2_forward.1} parent=0 // pred_check_branch
    %49 = sbr.rel (0) target = $region57
  $region56: #{neural_network2_forward.1} parent=0 // pred_region
    _
  $region57: #{neural_network2_forward.1} parent=0 // pred_fallthru
    _
  // Predicated region
  $region58: #{neural_network2_forward.1} parent=0 // pred_check
    _
  $region59: #{neural_network2_forward.1} parent=0 // pred_check_branch
    %51 = sbr.rel (0) target = $region61
  $region60: #{neural_network2_forward.1} parent=0 // pred_region
    _
  $region61: #{neural_network2_forward.1} parent=0 // pred_fallthru
    _
  %v53 = vld [vmem:[%s0] sm:$0xff]
  %v54 = vld [vmem:[%s0 + $0x8] sm:$0xff]
  %v55 = vld [vmem:[%s0 + $0x10] sm:$0xff]
  %v56 = vld [vmem:[%s0 + $0x18] sm:$0xff]
  %v57 = vld [vmem:[%s0 + $0x20] sm:$0xff]
  %v58 = vld [vmem:[%s0 + $0x28] sm:$0xff]
  %v59 = vld [vmem:[%s0 + $0x30] sm:$0xff]
  %v60 = vld [vmem:[%s0 + $0x38] sm:$0xff]
  %v61 = vld [vmem:[%s0 + $0x40] sm:$0xff]
  %v62 = vld [vmem:[%s0 + $0x48] sm:$0xff]
  %v63 = vld [vmem:[%s0 + $0x50] sm:$0xff]
  %v64 = vld [vmem:[%s0 + $0x58] sm:$0xff]
  %v65 = vld [vmem:[%s0 + $0x60] sm:$0xff]
  %v66 = vld [vmem:[%s0 + $0x68] sm:$0xff]
  %v67 = vld [vmem:[%s0 + $0x70] sm:$0xff]
  %v68 = vld [vmem:[%s0 + $0x78] sm:$0xff]
  %v69 = vld [vmem:[%s0 + $0x80] sm:$0xff]
  %v70 = vld [vmem:[%s0 + $0x88] sm:$0xff]
  %v71 = vld [vmem:[%s0 + $0x90] sm:$0xff]
  %v72 = vld [vmem:[%s0 + $0x98] sm:$0xff]
  %v73 = vld [vmem:[%s0 + $0xa0] sm:$0xff]
  %v74 = vld [vmem:[%s0 + $0xa8] sm:$0xff]
  %v75 = vld [vmem:[%s0 + $0xb0] sm:$0xff]
  %v76 = vld [vmem:[%s0 + $0xb8] sm:$0xff]
  %v77 = vld [vmem:[%s0 + $0xc0] sm:$0xff]
  %v78 = vld [vmem:[%s0 + $0xc8] sm:$0xff]
  %v79 = vld [vmem:[%s0 + $0xd0] sm:$0xff]
  %v80 = vld [vmem:[%s0 + $0xd8] sm:$0xff]
  %v81 = vld [vmem:[%s0 + $0xe0] sm:$0xff]
  %v82 = vld [vmem:[%s0 + $0xe8] sm:$0xff]
  %v83 = vld [vmem:[%s0 + $0xf0] sm:$0xff]
  %v84 = vld [vmem:[%s0 + $0xf8] sm:$0xff]
  %v85 = vld [vmem:[%s0 + $0x100] sm:$0xff]
  %v86 = vld [vmem:[%s0 + $0x108] sm:$0xff]
  %v87 = vld [vmem:[%s0 + $0x110] sm:$0xff]
  %v88 = vld [vmem:[%s0 + $0x118] sm:$0xff]
  %v89 = vld [vmem:[%s0 + $0x120] sm:$0xff]
  %v90 = vld [vmem:[%s0 + $0x128] sm:$0xff]
  %v91 = vld [vmem:[%s0 + $0x130] sm:$0xff]
  %v92 = vld [vmem:[%s0 + $0x138] sm:$0xff]
  %v93 = vld [vmem:[%s0 + $0x140] sm:$0xff]
  %v94 = vld [vmem:[%s0 + $0x148] sm:$0xff]
  %v95 = vld [vmem:[%s0 + $0x150] sm:$0xff]
  %v96 = vld [vmem:[%s0 + $0x158] sm:$0xff]
  %v97 = vld [vmem:[%s0 + $0x160] sm:$0xff]
  %v98 = vld [vmem:[%s0 + $0x168] sm:$0xff]
  %v99 = vld [vmem:[%s0 + $0x170] sm:$0xff]
  %v100 = vld [vmem:[%s0 + $0x178] sm:$0xff]
  %v101 = vld [vmem:[%s0 + $0x180] sm:$0xff]
  %v102 = vld [vmem:[%s0 + $0x188] sm:$0xff]
  %v103 = vld [vmem:[%s0 + $0x190] sm:$0xff]
  %v104 = vld [vmem:[%s0 + $0x198] sm:$0xff]
  %v105 = vld [vmem:[%s0 + $0x1a0] sm:$0xff]
  %v106 = vld [vmem:[%s0 + $0x1a8] sm:$0xff]
  %v107 = vld [vmem:[%s0 + $0x1b0] sm:$0xff]
  %v108 = vld [vmem:[%s0 + $0x1b8] sm:$0xff]
  %v109 = vld [vmem:[%s0 + $0x1c0] sm:$0xff]
  %v110 = vld [vmem:[%s0 + $0x1c8] sm:$0xff]
  %v111 = vld [vmem:[%s0 + $0x1d0] sm:$0xff]
  %v112 = vld [vmem:[%s0 + $0x1d8] sm:$0xff]
  %v113 = vld [vmem:[%s0 + $0x1e0] sm:$0xff]
  %v114 = vld [vmem:[%s0 + $0x1e8] sm:$0xff]
  %v115 = vld [vmem:[%s0 + $0x1f0] sm:$0xff]
  %v116 = vld [vmem:[%s0 + $0x1f8] sm:$0xff]
  %v117 = vld [vmem:[%s0 + $0x200] sm:$0xff]
  %v118 = vld [vmem:[%s0 + $0x208] sm:$0xff]
  %v119 = vld [vmem:[%s0 + $0x210] sm:$0xff]
  %v120 = vld [vmem:[%s0 + $0x218] sm:$0xff]
  %v121 = vld [vmem:[%s0 + $0x220] sm:$0xff]
  %v122 = vld [vmem:[%s0 + $0x228] sm:$0xff]
  %v123 = vld [vmem:[%s0 + $0x230] sm:$0xff]
  %v124 = vld [vmem:[%s0 + $0x238] sm:$0xff]
  %v125 = vld [vmem:[%s0 + $0x240] sm:$0xff]
  %v126 = vld [vmem:[%s0 + $0x248] sm:$0xff]
  %v127 = vld [vmem:[%s0 + $0x250] sm:$0xff]
  %v128 = vld [vmem:[%s0 + $0x258] sm:$0xff]
  %v129 = vld [vmem:[%s0 + $0x260] sm:$0xff]
  %v130 = vld [vmem:[%s0 + $0x268] sm:$0xff]
  %v131 = vld [vmem:[%s0 + $0x270] sm:$0xff]
  %v132 = vld [vmem:[%s0 + $0x278] sm:$0xff]
  %v133 = vld [vmem:[%s0 + $0x280] sm:$0xff]
  %v134 = vld [vmem:[%s0 + $0x288] sm:$0xff]
  %v135 = vld [vmem:[%s0 + $0x290] sm:$0xff]
  %v136 = vld [vmem:[%s0 + $0x298] sm:$0xff]
  %v137 = vld [vmem:[%s0 + $0x2a0] sm:$0xff]
  %v138 = vld [vmem:[%s0 + $0x2a8] sm:$0xff]
  %v139 = vld [vmem:[%s0 + $0x2b0] sm:$0xff]
  %v140 = vld [vmem:[%s0 + $0x2b8] sm:$0xff]
  %v141 = vld [vmem:[%s0 + $0x2c0] sm:$0xff]
  %v142 = vld [vmem:[%s0 + $0x2c8] sm:$0xff]
  %v143 = vld [vmem:[%s0 + $0x2d0] sm:$0xff]
  %v144 = vld [vmem:[%s0 + $0x2d8] sm:$0xff]
  %v145 = vld [vmem:[%s0 + $0x2e0] sm:$0xff]
  %v146 = vld [vmem:[%s0 + $0x2e8] sm:$0xff]
  %v147 = vld [vmem:[%s0 + $0x2f0] sm:$0xff]
  %v148 = vld [vmem:[%s0 + $0x2f8] sm:$0xff]
  %v149 = vld [vmem:[%s0 + $0x300] sm:$0xff]
  %v150 = vld [vmem:[%s0 + $0x308] sm:$0xff]
  %v151 = vld [vmem:[%s0 + $0x310] sm:$0xff]
  %v152 = vld [vmem:[%s0 + $0x318] sm:$0xff]
  %v153 = vld [vmem:[%s0 + $0x320] sm:$0xff]
  %v154 = vld [vmem:[%s0 + $0x328] sm:$0xff]
  %v155 = vld [vmem:[%s0 + $0x330] sm:$0xff]
  %v156 = vld [vmem:[%s0 + $0x338] sm:$0xff]
  %v157 = vld [vmem:[%s0 + $0x340] sm:$0xff]
  %v158 = vld [vmem:[%s0 + $0x348] sm:$0xff]
  %v159 = vld [vmem:[%s0 + $0x350] sm:$0xff]
  %v160 = vld [vmem:[%s0 + $0x358] sm:$0xff]
  %v161 = vld [vmem:[%s0 + $0x360] sm:$0xff]
  %v162 = vld [vmem:[%s0 + $0x368] sm:$0xff]
  %v163 = vld [vmem:[%s0 + $0x370] sm:$0xff]
  %v164 = vld [vmem:[%s0 + $0x378] sm:$0xff]
  %v165 = vld [vmem:[%s0 + $0x380] sm:$0xff]
  %v166 = vld [vmem:[%s0 + $0x388] sm:$0xff]
  %v167 = vld [vmem:[%s0 + $0x390] sm:$0xff]
  %v168 = vld [vmem:[%s0 + $0x398] sm:$0xff]
  %v169 = vld [vmem:[%s0 + $0x3a0] sm:$0xff]
  %v170 = vld [vmem:[%s0 + $0x3a8] sm:$0xff]
  %v171 = vld [vmem:[%s0 + $0x3b0] sm:$0xff]
  %v172 = vld [vmem:[%s0 + $0x3b8] sm:$0xff]
  %v173 = vld [vmem:[%s0 + $0x3c0] sm:$0xff]
  %v174 = vld [vmem:[%s0 + $0x3c8] sm:$0xff]
  %v175 = vld [vmem:[%s0 + $0x3d0] sm:$0xff]
  %v176 = vld [vmem:[%s0 + $0x3d8] sm:$0xff]
  %v177 = vld [vmem:[%s0 + $0x3e0] sm:$0xff]
  %v178 = vld [vmem:[%s0 + $0x3e8] sm:$0xff]
  %v179 = vld [vmem:[%s0 + $0x3f0] sm:$0xff]
  %v180 = vld [vmem:[%s0 + $0x3f8] sm:$0xff]
  %v181 = vld [vmem:[%s0 + $0x400] sm:$0xff]
  %v182 = vld [vmem:[%s0 + $0x408] sm:$0xff]
  %v183 = vld [vmem:[%s0 + $0x410] sm:$0xff]
  %v184 = vld [vmem:[%s0 + $0x418] sm:$0xff]
  %v185 = vld [vmem:[%s0 + $0x420] sm:$0xff]
  %v186 = vld [vmem:[%s0 + $0x428] sm:$0xff]
  %v187 = vld [vmem:[%s0 + $0x430] sm:$0xff]
  %v188 = vld [vmem:[%s0 + $0x438] sm:$0xff]
  %v189 = vld [vmem:[%s0 + $0x440] sm:$0xff]
  %v190 = vld [vmem:[%s0 + $0x448] sm:$0xff]
  %v191 = vld [vmem:[%s0 + $0x450] sm:$0xff]
  %v192 = vld [vmem:[%s0 + $0x458] sm:$0xff]
  %v193 = vld [vmem:[%s0 + $0x460] sm:$0xff]
  %v194 = vld [vmem:[%s0 + $0x468] sm:$0xff]
  %v195 = vld [vmem:[%s0 + $0x470] sm:$0xff]
  %v196 = vld [vmem:[%s0 + $0x478] sm:$0xff]
  %v197 = vld [vmem:[%s0 + $0x480] sm:$0xff]
  %v198 = vld [vmem:[%s0 + $0x488] sm:$0xff]
  %v199 = vld [vmem:[%s0 + $0x490] sm:$0xff]
  %v200 = vld [vmem:[%s0 + $0x498] sm:$0xff]
  %v201 = vld [vmem:[%s0 + $0x4a0] sm:$0xff]
  %v202 = vld [vmem:[%s0 + $0x4a8] sm:$0xff]
  %v203 = vld [vmem:[%s0 + $0x4b0] sm:$0xff]
  %v204 = vld [vmem:[%s0 + $0x4b8] sm:$0xff]
  %v205 = vld [vmem:[%s0 + $0x4c0] sm:$0xff]
  %v206 = vld [vmem:[%s0 + $0x4c8] sm:$0xff]
  %v207 = vld [vmem:[%s0 + $0x4d0] sm:$0xff]
  %v208 = vld [vmem:[%s0 + $0x4d8] sm:$0xff]
  %v209 = vld [vmem:[%s0 + $0x4e0] sm:$0xff]
  %v210 = vld [vmem:[%s0 + $0x4e8] sm:$0xff]
  %v211 = vld [vmem:[%s0 + $0x4f0] sm:$0xff]
  %v212 = vld [vmem:[%s0 + $0x4f8] sm:$0xff]
  %v213 = vld [vmem:[%s0 + $0x500] sm:$0xff]
  %v214 = vld [vmem:[%s0 + $0x508] sm:$0xff]
  %v215 = vld [vmem:[%s0 + $0x510] sm:$0xff]
  %v216 = vld [vmem:[%s0 + $0x518] sm:$0xff]
  %v217 = vld [vmem:[%s0 + $0x520] sm:$0xff]
  %v218 = vld [vmem:[%s0 + $0x528] sm:$0xff]
  %v219 = vld [vmem:[%s0 + $0x530] sm:$0xff]
  %v220 = vld [vmem:[%s0 + $0x538] sm:$0xff]
  %v221 = vld [vmem:[%s0 + $0x540] sm:$0xff]
  %v222 = vld [vmem:[%s0 + $0x548] sm:$0xff]
  %v223 = vld [vmem:[%s0 + $0x550] sm:$0xff]
  %v224 = vld [vmem:[%s0 + $0x558] sm:$0xff]
  %v225 = vld [vmem:[%s0 + $0x560] sm:$0xff]
  %v226 = vld [vmem:[%s0 + $0x568] sm:$0xff]
  %v227 = vld [vmem:[%s0 + $0x570] sm:$0xff]
  %v228 = vld [vmem:[%s0 + $0x578] sm:$0xff]
  %v229 = vld [vmem:[%s0 + $0x580] sm:$0xff]
  %v230 = vld [vmem:[%s0 + $0x588] sm:$0xff]
  %v231 = vld [vmem:[%s0 + $0x590] sm:$0xff]
  %v232 = vld [vmem:[%s0 + $0x598] sm:$0xff]
  %v233 = vld [vmem:[%s0 + $0x5a0] sm:$0xff]
  %v234 = vld [vmem:[%s0 + $0x5a8] sm:$0xff]
  %v235 = vld [vmem:[%s0 + $0x5b0] sm:$0xff]
  %v236 = vld [vmem:[%s0 + $0x5b8] sm:$0xff]
  %v237 = vld [vmem:[%s0 + $0x5c0] sm:$0xff]
  %v238 = vld [vmem:[%s0 + $0x5c8] sm:$0xff]
  %v239 = vld [vmem:[%s0 + $0x5d0] sm:$0xff]
  %v240 = vld [vmem:[%s0 + $0x5d8] sm:$0xff]
  %v241 = vld [vmem:[%s0 + $0x5e0] sm:$0xff]
  %v242 = vld [vmem:[%s0 + $0x5e8] sm:$0xff]
  %v243 = vld [vmem:[%s0 + $0x5f0] sm:$0xff]
  %v244 = vld [vmem:[%s0 + $0x5f8] sm:$0xff]
  %v245 = vld [vmem:[%s1] sm:$0xff]
  %v246 = vld [vmem:[%s1 + $0x8] sm:$0xf]
  %v247 = vld [vmem:[%s1 + $0xc] sm:$0xff]
  %v248 = vld [vmem:[%s1 + $0x14] sm:$0xf]
  %v249 = vld [vmem:[%s1 + $0x18] sm:$0xff]
  %v250 = vld [vmem:[%s1 + $0x20] sm:$0xf]
  %v251 = vld [vmem:[%s1 + $0x24] sm:$0xff]
  %v252 = vld [vmem:[%s1 + $0x2c] sm:$0xf]
  %v253 = vld [vmem:[%s1 + $0x30] sm:$0xff]
  %v254 = vld [vmem:[%s1 + $0x38] sm:$0xf]
  %v255 = vld [vmem:[%s1 + $0x3c] sm:$0xff]
  %v256 = vld [vmem:[%s1 + $0x44] sm:$0xf]
  %v257 = vld [vmem:[%s1 + $0x48] sm:$0xff]
  %v258 = vld [vmem:[%s1 + $0x50] sm:$0xf]
  %v259 = vld [vmem:[%s1 + $0x54] sm:$0xff]
  %v260 = vld [vmem:[%s1 + $0x5c] sm:$0xf]
  %v261 = vld [vmem:[%s1 + $0x60] sm:$0xff]
  %v262 = vld [vmem:[%s1 + $0x68] sm:$0xf]
  %v263 = vld [vmem:[%s1 + $0x6c] sm:$0xff]
  %v264 = vld [vmem:[%s1 + $0x74] sm:$0xf]
  %v265 = vld [vmem:[%s1 + $0x78] sm:$0xff]
  %v266 = vld [vmem:[%s1 + $0x80] sm:$0xf]
  %v267 = vld [vmem:[%s1 + $0x84] sm:$0xff]
  %v268 = vld [vmem:[%s1 + $0x8c] sm:$0xf]
  %v269 = vld [vmem:[%s1 + $0x90] sm:$0xff]
  %v270 = vld [vmem:[%s1 + $0x98] sm:$0xf]
  %v271 = vld [vmem:[%s1 + $0x9c] sm:$0xff]
  %v272 = vld [vmem:[%s1 + $0xa4] sm:$0xf]
  %v273 = vld [vmem:[%s1 + $0xa8] sm:$0xff]
  %v274 = vld [vmem:[%s1 + $0xb0] sm:$0xf]
  %v275 = vld [vmem:[%s1 + $0xb4] sm:$0xff]
  %v276 = vld [vmem:[%s1 + $0xbc] sm:$0xf]
  %v277 = vld [vmem:[%s1 + $0xc0] sm:$0xff]
  %v278 = vld [vmem:[%s1 + $0xc8] sm:$0xf]
  %v279 = vld [vmem:[%s1 + $0xcc] sm:$0xff]
  %v280 = vld [vmem:[%s1 + $0xd4] sm:$0xf]
  %v281 = vld [vmem:[%s1 + $0xd8] sm:$0xff]
  %v282 = vld [vmem:[%s1 + $0xe0] sm:$0xf]
  %v283 = vld [vmem:[%s1 + $0xe4] sm:$0xff]
  %v284 = vld [vmem:[%s1 + $0xec] sm:$0xf]
  %v285 = vld [vmem:[%s1 + $0xf0] sm:$0xff]
  %v286 = vld [vmem:[%s1 + $0xf8] sm:$0xf]
  %v287 = vld [vmem:[%s1 + $0xfc] sm:$0xff]
  %v288 = vld [vmem:[%s1 + $0x104] sm:$0xf]
  %v289 = vld [vmem:[%s1 + $0x108] sm:$0xff]
  %v290 = vld [vmem:[%s1 + $0x110] sm:$0xf]
  %v291 = vld [vmem:[%s1 + $0x114] sm:$0xff]
  %v292 = vld [vmem:[%s1 + $0x11c] sm:$0xf]
  %v293 = vld [vmem:[%s1 + $0x120] sm:$0xff]
  %v294 = vld [vmem:[%s1 + $0x128] sm:$0xf]
  %v295 = vld [vmem:[%s1 + $0x12c] sm:$0xff]
  %v296 = vld [vmem:[%s1 + $0x134] sm:$0xf]
  %v297 = vld [vmem:[%s1 + $0x138] sm:$0xff]
  %v298 = vld [vmem:[%s1 + $0x140] sm:$0xf]
  %v299 = vld [vmem:[%s1 + $0x144] sm:$0xff]
  %v300 = vld [vmem:[%s1 + $0x14c] sm:$0xf]
  %v301 = vld [vmem:[%s1 + $0x150] sm:$0xff]
  %v302 = vld [vmem:[%s1 + $0x158] sm:$0xf]
  %v303 = vld [vmem:[%s1 + $0x15c] sm:$0xff]
  %v304 = vld [vmem:[%s1 + $0x164] sm:$0xf]
  %v305 = vld [vmem:[%s1 + $0x168] sm:$0xff]
  %v306 = vld [vmem:[%s1 + $0x170] sm:$0xf]
  %v307 = vld [vmem:[%s1 + $0x174] sm:$0xff]
  %v308 = vld [vmem:[%s1 + $0x17c] sm:$0xf]
  %v309 = vld [vmem:[%s1 + $0x180] sm:$0xff]
  %v310 = vld [vmem:[%s1 + $0x188] sm:$0xf]
  %v311 = vld [vmem:[%s1 + $0x18c] sm:$0xff]
  %v312 = vld [vmem:[%s1 + $0x194] sm:$0xf]
  %v313 = vld [vmem:[%s1 + $0x198] sm:$0xff]
  %v314 = vld [vmem:[%s1 + $0x1a0] sm:$0xf]
  %v315 = vld [vmem:[%s1 + $0x1a4] sm:$0xff]
  %v316 = vld [vmem:[%s1 + $0x1ac] sm:$0xf]
  %v317 = vld [vmem:[%s1 + $0x1b0] sm:$0xff]
  %v318 = vld [vmem:[%s1 + $0x1b8] sm:$0xf]
  %v319 = vld [vmem:[%s1 + $0x1bc] sm:$0xff]
  %v320 = vld [vmem:[%s1 + $0x1c4] sm:$0xf]
  %v321 = vld [vmem:[%s1 + $0x1c8] sm:$0xff]
  %v322 = vld [vmem:[%s1 + $0x1d0] sm:$0xf]
  %v323 = vld [vmem:[%s1 + $0x1d4] sm:$0xff]
  %v324 = vld [vmem:[%s1 + $0x1dc] sm:$0xf]
  %v325 = vld [vmem:[%s1 + $0x1e0] sm:$0xff]
  %v326 = vld [vmem:[%s1 + $0x1e8] sm:$0xf]
  %v327 = vld [vmem:[%s1 + $0x1ec] sm:$0xff]
  %v328 = vld [vmem:[%s1 + $0x1f4] sm:$0xf]
  %v329 = vld [vmem:[%s1 + $0x1f8] sm:$0xff]
  %v330 = vld [vmem:[%s1 + $0x200] sm:$0xf]
  %v331 = vld [vmem:[%s1 + $0x204] sm:$0xff]
  %v332 = vld [vmem:[%s1 + $0x20c] sm:$0xf]
  %v333 = vld [vmem:[%s1 + $0x210] sm:$0xff]
  %v334 = vld [vmem:[%s1 + $0x218] sm:$0xf]
  %v335 = vld [vmem:[%s1 + $0x21c] sm:$0xff]
  %v336 = vld [vmem:[%s1 + $0x224] sm:$0xf]
  %v337 = vld [vmem:[%s1 + $0x228] sm:$0xff]
  %v338 = vld [vmem:[%s1 + $0x230] sm:$0xf]
  %v339 = vld [vmem:[%s1 + $0x234] sm:$0xff]
  %v340 = vld [vmem:[%s1 + $0x23c] sm:$0xf]
  %v341 = vld [vmem:[%s1 + $0x240] sm:$0xff]
  %v342 = vld [vmem:[%s1 + $0x248] sm:$0xf]
  %v343 = vld [vmem:[%s1 + $0x24c] sm:$0xff]
  %v344 = vld [vmem:[%s1 + $0x254] sm:$0xf]
  %v345 = vld [vmem:[%s1 + $0x258] sm:$0xff]
  %v346 = vld [vmem:[%s1 + $0x260] sm:$0xf]
  %v347 = vld [vmem:[%s1 + $0x264] sm:$0xff]
  %v348 = vld [vmem:[%s1 + $0x26c] sm:$0xf]
  %v349 = vld [vmem:[%s1 + $0x270] sm:$0xff]
  %v350 = vld [vmem:[%s1 + $0x278] sm:$0xf]
  %v351 = vld [vmem:[%s1 + $0x27c] sm:$0xff]
  %v352 = vld [vmem:[%s1 + $0x284] sm:$0xf]
  %v353 = vld [vmem:[%s1 + $0x288] sm:$0xff]
  %v354 = vld [vmem:[%s1 + $0x290] sm:$0xf]
  %v355 = vld [vmem:[%s1 + $0x294] sm:$0xff]
  %v356 = vld [vmem:[%s1 + $0x29c] sm:$0xf]
  %v357 = vld [vmem:[%s1 + $0x2a0] sm:$0xff]
  %v358 = vld [vmem:[%s1 + $0x2a8] sm:$0xf]
  %v359 = vld [vmem:[%s1 + $0x2ac] sm:$0xff]
  %v360 = vld [vmem:[%s1 + $0x2b4] sm:$0xf]
  %v361 = vld [vmem:[%s1 + $0x2b8] sm:$0xff]
  %v362 = vld [vmem:[%s1 + $0x2c0] sm:$0xf]
  %v363 = vld [vmem:[%s1 + $0x2c4] sm:$0xff]
  %v364 = vld [vmem:[%s1 + $0x2cc] sm:$0xf]
  %v365 = vld [vmem:[%s1 + $0x2d0] sm:$0xff]
  %v366 = vld [vmem:[%s1 + $0x2d8] sm:$0xf]
  %v367 = vld [vmem:[%s1 + $0x2dc] sm:$0xff]
  %v368 = vld [vmem:[%s1 + $0x2e4] sm:$0xf]
  %v369 = vld [vmem:[%s1 + $0x2e8] sm:$0xff]
  %v370 = vld [vmem:[%s1 + $0x2f0] sm:$0xf]
  %v371 = vld [vmem:[%s1 + $0x2f4] sm:$0xff]
  %v372 = vld [vmem:[%s1 + $0x2fc] sm:$0xf]
  %v373 = vld [vmem:[%s1 + $0x300] sm:$0xff]
  %v374 = vld [vmem:[%s1 + $0x308] sm:$0xf]
  %v375 = vld [vmem:[%s1 + $0x30c] sm:$0xff]
  %v376 = vld [vmem:[%s1 + $0x314] sm:$0xf]
  %v377 = vld [vmem:[%s1 + $0x318] sm:$0xff]
  %v378 = vld [vmem:[%s1 + $0x320] sm:$0xf]
  %v379 = vld [vmem:[%s1 + $0x324] sm:$0xff]
  %v380 = vld [vmem:[%s1 + $0x32c] sm:$0xf]
  %v381 = vld [vmem:[%s1 + $0x330] sm:$0xff]
  %v382 = vld [vmem:[%s1 + $0x338] sm:$0xf]
  %v383 = vld [vmem:[%s1 + $0x33c] sm:$0xff]
  %v384 = vld [vmem:[%s1 + $0x344] sm:$0xf]
  %v385 = vld [vmem:[%s1 + $0x348] sm:$0xff]
  %v386 = vld [vmem:[%s1 + $0x350] sm:$0xf]
  %v387 = vld [vmem:[%s1 + $0x354] sm:$0xff]
  %v388 = vld [vmem:[%s1 + $0x35c] sm:$0xf]
  %v389 = vld [vmem:[%s1 + $0x360] sm:$0xff]
  %v390 = vld [vmem:[%s1 + $0x368] sm:$0xf]
  %v391 = vld [vmem:[%s1 + $0x36c] sm:$0xff]
  %v392 = vld [vmem:[%s1 + $0x374] sm:$0xf]
  %v393 = vld [vmem:[%s1 + $0x378] sm:$0xff]
  %v394 = vld [vmem:[%s1 + $0x380] sm:$0xf]
  %v395 = vld [vmem:[%s1 + $0x384] sm:$0xff]
  %v396 = vld [vmem:[%s1 + $0x38c] sm:$0xf]
  %v397 = vld [vmem:[%s1 + $0x390] sm:$0xff]
  %v398 = vld [vmem:[%s1 + $0x398] sm:$0xf]
  %v399 = vld [vmem:[%s1 + $0x39c] sm:$0xff]
  %v400 = vld [vmem:[%s1 + $0x3a4] sm:$0xf]
  %v401 = vld [vmem:[%s1 + $0x3a8] sm:$0xff]
  %v402 = vld [vmem:[%s1 + $0x3b0] sm:$0xf]
  %v403 = vld [vmem:[%s1 + $0x3b4] sm:$0xff]
  %v404 = vld [vmem:[%s1 + $0x3bc] sm:$0xf]
  %v405 = vld [vmem:[%s1 + $0x3c0] sm:$0xff]
  %v406 = vld [vmem:[%s1 + $0x3c8] sm:$0xf]
  %v407 = vld [vmem:[%s1 + $0x3cc] sm:$0xff]
  %v408 = vld [vmem:[%s1 + $0x3d4] sm:$0xf]
  %v409 = vld [vmem:[%s1 + $0x3d8] sm:$0xff]
  %v410 = vld [vmem:[%s1 + $0x3e0] sm:$0xf]
  %v411 = vld [vmem:[%s1 + $0x3e4] sm:$0xff]
  %v412 = vld [vmem:[%s1 + $0x3ec] sm:$0xf]
  %v413 = vld [vmem:[%s1 + $0x3f0] sm:$0xff]
  %v414 = vld [vmem:[%s1 + $0x3f8] sm:$0xf]
  %v415 = vld [vmem:[%s1 + $0x3fc] sm:$0xff]
  %v416 = vld [vmem:[%s1 + $0x404] sm:$0xf]
  %v417 = vld [vmem:[%s1 + $0x408] sm:$0xff]
  %v418 = vld [vmem:[%s1 + $0x410] sm:$0xf]
  %v419 = vld [vmem:[%s1 + $0x414] sm:$0xff]
  %v420 = vld [vmem:[%s1 + $0x41c] sm:$0xf]
  %v421 = vld [vmem:[%s1 + $0x420] sm:$0xff]
  %v422 = vld [vmem:[%s1 + $0x428] sm:$0xf]
  %v423 = vld [vmem:[%s1 + $0x42c] sm:$0xff]
  %v424 = vld [vmem:[%s1 + $0x434] sm:$0xf]
  %v425 = vld [vmem:[%s1 + $0x438] sm:$0xff]
  %v426 = vld [vmem:[%s1 + $0x440] sm:$0xf]
  %v427 = vld [vmem:[%s1 + $0x444] sm:$0xff]
  %v428 = vld [vmem:[%s1 + $0x44c] sm:$0xf]
  %v429 = vld [vmem:[%s1 + $0x450] sm:$0xff]
  %v430 = vld [vmem:[%s1 + $0x458] sm:$0xf]
  %v431 = vld [vmem:[%s1 + $0x45c] sm:$0xff]
  %v432 = vld [vmem:[%s1 + $0x464] sm:$0xf]
  %v433 = vld [vmem:[%s1 + $0x468] sm:$0xff]
  %v434 = vld [vmem:[%s1 + $0x470] sm:$0xf]
  %v435 = vld [vmem:[%s1 + $0x474] sm:$0xff]
  %v436 = vld [vmem:[%s1 + $0x47c] sm:$0xf]
  %v437 = vld [vmem:[%s2] sm:$0x7]
  %v439 = vlaneseq
  %v440 = vshrl.u32 %v439, 7
  %v441 = vsub.s32 0, %v440
  %v442 = vrot.slane %v437, %v441
  %v443 = vlaneseq
  %v444 = vshrl.u32 %v443, 7
  %v445 = vsub.s32 1, %v444
  %v446 = vrot.slane %v437, %v445
  %v447 = vlaneseq
  %v448 = vshrl.u32 %v447, 7
  %v449 = vsub.s32 2, %v448
  %v450 = vrot.slane %v437, %v449
  %v646 = vunpack.c.l.b16 %v53
  %v647 = vunpack.c.h.b16 %v53
  %v648 = vunpack.c.l.b16 %v54
  %v649 = vunpack.c.h.b16 %v54
  %v650 = vunpack.c.l.b16 %v55
  %v651 = vunpack.c.h.b16 %v55
  %v652 = vunpack.c.l.b16 %v56
  %v653 = vunpack.c.h.b16 %v56
  %v654 = vunpack.c.l.b16 %v57
  %v655 = vunpack.c.h.b16 %v57
  %v656 = vunpack.c.l.b16 %v58
  %v657 = vunpack.c.h.b16 %v58
  %v658 = vunpack.c.l.b16 %v59
  %v659 = vunpack.c.h.b16 %v59
  %v660 = vunpack.c.l.b16 %v60
  %v661 = vunpack.c.h.b16 %v60
  %v662 = vunpack.c.l.b16 %v61
  %v663 = vunpack.c.h.b16 %v61
  %v664 = vunpack.c.l.b16 %v62
  %v665 = vunpack.c.h.b16 %v62
  %v666 = vunpack.c.l.b16 %v63
  %v667 = vunpack.c.h.b16 %v63
  %v668 = vunpack.c.l.b16 %v64
  %v669 = vunpack.c.h.b16 %v64
  %v670 = vunpack.c.l.b16 %v65
  %v671 = vunpack.c.h.b16 %v65
  %v672 = vunpack.c.l.b16 %v66
  %v673 = vunpack.c.h.b16 %v66
  %v674 = vunpack.c.l.b16 %v67
  %v675 = vunpack.c.h.b16 %v67
  %v676 = vunpack.c.l.b16 %v68
  %v677 = vunpack.c.h.b16 %v68
  %v678 = vunpack.c.l.b16 %v69
  %v679 = vunpack.c.h.b16 %v69
  %v680 = vunpack.c.l.b16 %v70
  %v681 = vunpack.c.h.b16 %v70
  %v682 = vunpack.c.l.b16 %v71
  %v683 = vunpack.c.h.b16 %v71
  %v684 = vunpack.c.l.b16 %v72
  %v685 = vunpack.c.h.b16 %v72
  %v686 = vunpack.c.l.b16 %v73
  %v687 = vunpack.c.h.b16 %v73
  %v688 = vunpack.c.l.b16 %v74
  %v689 = vunpack.c.h.b16 %v74
  %v690 = vunpack.c.l.b16 %v75
  %v691 = vunpack.c.h.b16 %v75
  %v692 = vunpack.c.l.b16 %v76
  %v693 = vunpack.c.h.b16 %v76
  %v694 = vunpack.c.l.b16 %v77
  %v695 = vunpack.c.h.b16 %v77
  %v696 = vunpack.c.l.b16 %v78
  %v697 = vunpack.c.h.b16 %v78
  %v698 = vunpack.c.l.b16 %v79
  %v699 = vunpack.c.h.b16 %v79
  %v700 = vunpack.c.l.b16 %v80
  %v701 = vunpack.c.h.b16 %v80
  %v702 = vunpack.c.l.b16 %v81
  %v703 = vunpack.c.h.b16 %v81
  %v704 = vunpack.c.l.b16 %v82
  %v705 = vunpack.c.h.b16 %v82
  %v706 = vunpack.c.l.b16 %v83
  %v707 = vunpack.c.h.b16 %v83
  %v708 = vunpack.c.l.b16 %v84
  %v709 = vunpack.c.h.b16 %v84
  %v710 = vunpack.c.l.b16 %v85
  %v711 = vunpack.c.h.b16 %v85
  %v712 = vunpack.c.l.b16 %v86
  %v713 = vunpack.c.h.b16 %v86
  %v714 = vunpack.c.l.b16 %v87
  %v715 = vunpack.c.h.b16 %v87
  %v716 = vunpack.c.l.b16 %v88
  %v717 = vunpack.c.h.b16 %v88
  %v718 = vunpack.c.l.b16 %v89
  %v719 = vunpack.c.h.b16 %v89
  %v720 = vunpack.c.l.b16 %v90
  %v721 = vunpack.c.h.b16 %v90
  %v722 = vunpack.c.l.b16 %v91
  %v723 = vunpack.c.h.b16 %v91
  %v724 = vunpack.c.l.b16 %v92
  %v725 = vunpack.c.h.b16 %v92
  %v726 = vunpack.c.l.b16 %v93
  %v727 = vunpack.c.h.b16 %v93
  %v728 = vunpack.c.l.b16 %v94
  %v729 = vunpack.c.h.b16 %v94
  %v730 = vunpack.c.l.b16 %v95
  %v731 = vunpack.c.h.b16 %v95
  %v732 = vunpack.c.l.b16 %v96
  %v733 = vunpack.c.h.b16 %v96
  %v734 = vunpack.c.l.b16 %v97
  %v735 = vunpack.c.h.b16 %v97
  %v736 = vunpack.c.l.b16 %v98
  %v737 = vunpack.c.h.b16 %v98
  %v738 = vunpack.c.l.b16 %v99
  %v739 = vunpack.c.h.b16 %v99
  %v740 = vunpack.c.l.b16 %v100
  %v741 = vunpack.c.h.b16 %v100
  %v742 = vunpack.c.l.b16 %v101
  %v743 = vunpack.c.h.b16 %v101
  %v744 = vunpack.c.l.b16 %v102
  %v745 = vunpack.c.h.b16 %v102
  %v746 = vunpack.c.l.b16 %v103
  %v747 = vunpack.c.h.b16 %v103
  %v748 = vunpack.c.l.b16 %v104
  %v749 = vunpack.c.h.b16 %v104
  %v750 = vunpack.c.l.b16 %v105
  %v751 = vunpack.c.h.b16 %v105
  %v752 = vunpack.c.l.b16 %v106
  %v753 = vunpack.c.h.b16 %v106
  %v754 = vunpack.c.l.b16 %v107
  %v755 = vunpack.c.h.b16 %v107
  %v756 = vunpack.c.l.b16 %v108
  %v757 = vunpack.c.h.b16 %v108
  %v758 = vunpack.c.l.b16 %v109
  %v759 = vunpack.c.h.b16 %v109
  %v760 = vunpack.c.l.b16 %v110
  %v761 = vunpack.c.h.b16 %v110
  %v762 = vunpack.c.l.b16 %v111
  %v763 = vunpack.c.h.b16 %v111
  %v764 = vunpack.c.l.b16 %v112
  %v765 = vunpack.c.h.b16 %v112
  %v766 = vunpack.c.l.b16 %v113
  %v767 = vunpack.c.h.b16 %v113
  %v768 = vunpack.c.l.b16 %v114
  %v769 = vunpack.c.h.b16 %v114
  %v770 = vunpack.c.l.b16 %v115
  %v771 = vunpack.c.h.b16 %v115
  %v772 = vunpack.c.l.b16 %v116
  %v773 = vunpack.c.h.b16 %v116
  %v774 = vunpack.c.l.b16 %v117
  %v775 = vunpack.c.h.b16 %v117
  %v776 = vunpack.c.l.b16 %v118
  %v777 = vunpack.c.h.b16 %v118
  %v778 = vunpack.c.l.b16 %v119
  %v779 = vunpack.c.h.b16 %v119
  %v780 = vunpack.c.l.b16 %v120
  %v781 = vunpack.c.h.b16 %v120
  %v782 = vunpack.c.l.b16 %v121
  %v783 = vunpack.c.h.b16 %v121
  %v784 = vunpack.c.l.b16 %v122
  %v785 = vunpack.c.h.b16 %v122
  %v786 = vunpack.c.l.b16 %v123
  %v787 = vunpack.c.h.b16 %v123
  %v788 = vunpack.c.l.b16 %v124
  %v789 = vunpack.c.h.b16 %v124
  %v790 = vunpack.c.l.b16 %v125
  %v791 = vunpack.c.h.b16 %v125
  %v792 = vunpack.c.l.b16 %v126
  %v793 = vunpack.c.h.b16 %v126
  %v794 = vunpack.c.l.b16 %v127
  %v795 = vunpack.c.h.b16 %v127
  %v796 = vunpack.c.l.b16 %v128
  %v797 = vunpack.c.h.b16 %v128
  %v798 = vunpack.c.l.b16 %v129
  %v799 = vunpack.c.h.b16 %v129
  %v800 = vunpack.c.l.b16 %v130
  %v801 = vunpack.c.h.b16 %v130
  %v802 = vunpack.c.l.b16 %v131
  %v803 = vunpack.c.h.b16 %v131
  %v804 = vunpack.c.l.b16 %v132
  %v805 = vunpack.c.h.b16 %v132
  %v806 = vunpack.c.l.b16 %v133
  %v807 = vunpack.c.h.b16 %v133
  %v808 = vunpack.c.l.b16 %v134
  %v809 = vunpack.c.h.b16 %v134
  %v810 = vunpack.c.l.b16 %v135
  %v811 = vunpack.c.h.b16 %v135
  %v812 = vunpack.c.l.b16 %v136
  %v813 = vunpack.c.h.b16 %v136
  %v814 = vunpack.c.l.b16 %v137
  %v815 = vunpack.c.h.b16 %v137
  %v816 = vunpack.c.l.b16 %v138
  %v817 = vunpack.c.h.b16 %v138
  %v818 = vunpack.c.l.b16 %v139
  %v819 = vunpack.c.h.b16 %v139
  %v820 = vunpack.c.l.b16 %v140
  %v821 = vunpack.c.h.b16 %v140
  %v822 = vunpack.c.l.b16 %v141
  %v823 = vunpack.c.h.b16 %v141
  %v824 = vunpack.c.l.b16 %v142
  %v825 = vunpack.c.h.b16 %v142
  %v826 = vunpack.c.l.b16 %v143
  %v827 = vunpack.c.h.b16 %v143
  %v828 = vunpack.c.l.b16 %v144
  %v829 = vunpack.c.h.b16 %v144
  %v830 = vunpack.c.l.b16 %v145
  %v831 = vunpack.c.h.b16 %v145
  %v832 = vunpack.c.l.b16 %v146
  %v833 = vunpack.c.h.b16 %v146
  %v834 = vunpack.c.l.b16 %v147
  %v835 = vunpack.c.h.b16 %v147
  %v836 = vunpack.c.l.b16 %v148
  %v837 = vunpack.c.h.b16 %v148
  %v838 = vunpack.c.l.b16 %v149
  %v839 = vunpack.c.h.b16 %v149
  %v840 = vunpack.c.l.b16 %v150
  %v841 = vunpack.c.h.b16 %v150
  %v842 = vunpack.c.l.b16 %v151
  %v843 = vunpack.c.h.b16 %v151
  %v844 = vunpack.c.l.b16 %v152
  %v845 = vunpack.c.h.b16 %v152
  %v846 = vunpack.c.l.b16 %v153
  %v847 = vunpack.c.h.b16 %v153
  %v848 = vunpack.c.l.b16 %v154
  %v849 = vunpack.c.h.b16 %v154
  %v850 = vunpack.c.l.b16 %v155
  %v851 = vunpack.c.h.b16 %v155
  %v852 = vunpack.c.l.b16 %v156
  %v853 = vunpack.c.h.b16 %v156
  %v854 = vunpack.c.l.b16 %v157
  %v855 = vunpack.c.h.b16 %v157
  %v856 = vunpack.c.l.b16 %v158
  %v857 = vunpack.c.h.b16 %v158
  %v858 = vunpack.c.l.b16 %v159
  %v859 = vunpack.c.h.b16 %v159
  %v860 = vunpack.c.l.b16 %v160
  %v861 = vunpack.c.h.b16 %v160
  %v862 = vunpack.c.l.b16 %v161
  %v863 = vunpack.c.h.b16 %v161
  %v864 = vunpack.c.l.b16 %v162
  %v865 = vunpack.c.h.b16 %v162
  %v866 = vunpack.c.l.b16 %v163
  %v867 = vunpack.c.h.b16 %v163
  %v868 = vunpack.c.l.b16 %v164
  %v869 = vunpack.c.h.b16 %v164
  %v870 = vunpack.c.l.b16 %v165
  %v871 = vunpack.c.h.b16 %v165
  %v872 = vunpack.c.l.b16 %v166
  %v873 = vunpack.c.h.b16 %v166
  %v874 = vunpack.c.l.b16 %v167
  %v875 = vunpack.c.h.b16 %v167
  %v876 = vunpack.c.l.b16 %v168
  %v877 = vunpack.c.h.b16 %v168
  %v878 = vunpack.c.l.b16 %v169
  %v879 = vunpack.c.h.b16 %v169
  %v880 = vunpack.c.l.b16 %v170
  %v881 = vunpack.c.h.b16 %v170
  %v882 = vunpack.c.l.b16 %v171
  %v883 = vunpack.c.h.b16 %v171
  %v884 = vunpack.c.l.b16 %v172
  %v885 = vunpack.c.h.b16 %v172
  %v886 = vunpack.c.l.b16 %v173
  %v887 = vunpack.c.h.b16 %v173
  %v888 = vunpack.c.l.b16 %v174
  %v889 = vunpack.c.h.b16 %v174
  %v890 = vunpack.c.l.b16 %v175
  %v891 = vunpack.c.h.b16 %v175
  %v892 = vunpack.c.l.b16 %v176
  %v893 = vunpack.c.h.b16 %v176
  %v894 = vunpack.c.l.b16 %v177
  %v895 = vunpack.c.h.b16 %v177
  %v896 = vunpack.c.l.b16 %v178
  %v897 = vunpack.c.h.b16 %v178
  %v898 = vunpack.c.l.b16 %v179
  %v899 = vunpack.c.h.b16 %v179
  %v900 = vunpack.c.l.b16 %v180
  %v901 = vunpack.c.h.b16 %v180
  %v902 = vunpack.c.l.b16 %v181
  %v903 = vunpack.c.h.b16 %v181
  %v904 = vunpack.c.l.b16 %v182
  %v905 = vunpack.c.h.b16 %v182
  %v906 = vunpack.c.l.b16 %v183
  %v907 = vunpack.c.h.b16 %v183
  %v908 = vunpack.c.l.b16 %v184
  %v909 = vunpack.c.h.b16 %v184
  %v910 = vunpack.c.l.b16 %v185
  %v911 = vunpack.c.h.b16 %v185
  %v912 = vunpack.c.l.b16 %v186
  %v913 = vunpack.c.h.b16 %v186
  %v914 = vunpack.c.l.b16 %v187
  %v915 = vunpack.c.h.b16 %v187
  %v916 = vunpack.c.l.b16 %v188
  %v917 = vunpack.c.h.b16 %v188
  %v918 = vunpack.c.l.b16 %v189
  %v919 = vunpack.c.h.b16 %v189
  %v920 = vunpack.c.l.b16 %v190
  %v921 = vunpack.c.h.b16 %v190
  %v922 = vunpack.c.l.b16 %v191
  %v923 = vunpack.c.h.b16 %v191
  %v924 = vunpack.c.l.b16 %v192
  %v925 = vunpack.c.h.b16 %v192
  %v926 = vunpack.c.l.b16 %v193
  %v927 = vunpack.c.h.b16 %v193
  %v928 = vunpack.c.l.b16 %v194
  %v929 = vunpack.c.h.b16 %v194
  %v930 = vunpack.c.l.b16 %v195
  %v931 = vunpack.c.h.b16 %v195
  %v932 = vunpack.c.l.b16 %v196
  %v933 = vunpack.c.h.b16 %v196
  %v934 = vunpack.c.l.b16 %v197
  %v935 = vunpack.c.h.b16 %v197
  %v936 = vunpack.c.l.b16 %v198
  %v937 = vunpack.c.h.b16 %v198
  %v938 = vunpack.c.l.b16 %v199
  %v939 = vunpack.c.h.b16 %v199
  %v940 = vunpack.c.l.b16 %v200
  %v941 = vunpack.c.h.b16 %v200
  %v942 = vunpack.c.l.b16 %v201
  %v943 = vunpack.c.h.b16 %v201
  %v944 = vunpack.c.l.b16 %v202
  %v945 = vunpack.c.h.b16 %v202
  %v946 = vunpack.c.l.b16 %v203
  %v947 = vunpack.c.h.b16 %v203
  %v948 = vunpack.c.l.b16 %v204
  %v949 = vunpack.c.h.b16 %v204
  %v950 = vunpack.c.l.b16 %v205
  %v951 = vunpack.c.h.b16 %v205
  %v952 = vunpack.c.l.b16 %v206
  %v953 = vunpack.c.h.b16 %v206
  %v954 = vunpack.c.l.b16 %v207
  %v955 = vunpack.c.h.b16 %v207
  %v956 = vunpack.c.l.b16 %v208
  %v957 = vunpack.c.h.b16 %v208
  %v958 = vunpack.c.l.b16 %v209
  %v959 = vunpack.c.h.b16 %v209
  %v960 = vunpack.c.l.b16 %v210
  %v961 = vunpack.c.h.b16 %v210
  %v962 = vunpack.c.l.b16 %v211
  %v963 = vunpack.c.h.b16 %v211
  %v964 = vunpack.c.l.b16 %v212
  %v965 = vunpack.c.h.b16 %v212
  %v966 = vunpack.c.l.b16 %v213
  %v967 = vunpack.c.h.b16 %v213
  %v968 = vunpack.c.l.b16 %v214
  %v969 = vunpack.c.h.b16 %v214
  %v970 = vunpack.c.l.b16 %v215
  %v971 = vunpack.c.h.b16 %v215
  %v972 = vunpack.c.l.b16 %v216
  %v973 = vunpack.c.h.b16 %v216
  %v974 = vunpack.c.l.b16 %v217
  %v975 = vunpack.c.h.b16 %v217
  %v976 = vunpack.c.l.b16 %v218
  %v977 = vunpack.c.h.b16 %v218
  %v978 = vunpack.c.l.b16 %v219
  %v979 = vunpack.c.h.b16 %v219
  %v980 = vunpack.c.l.b16 %v220
  %v981 = vunpack.c.h.b16 %v220
  %v982 = vunpack.c.l.b16 %v221
  %v983 = vunpack.c.h.b16 %v221
  %v984 = vunpack.c.l.b16 %v222
  %v985 = vunpack.c.h.b16 %v222
  %v986 = vunpack.c.l.b16 %v223
  %v987 = vunpack.c.h.b16 %v223
  %v988 = vunpack.c.l.b16 %v224
  %v989 = vunpack.c.h.b16 %v224
  %v990 = vunpack.c.l.b16 %v225
  %v991 = vunpack.c.h.b16 %v225
  %v992 = vunpack.c.l.b16 %v226
  %v993 = vunpack.c.h.b16 %v226
  %v994 = vunpack.c.l.b16 %v227
  %v995 = vunpack.c.h.b16 %v227
  %v996 = vunpack.c.l.b16 %v228
  %v997 = vunpack.c.h.b16 %v228
  %v998 = vunpack.c.l.b16 %v229
  %v999 = vunpack.c.h.b16 %v229
  %v1000 = vunpack.c.l.b16 %v230
  %v1001 = vunpack.c.h.b16 %v230
  %v1002 = vunpack.c.l.b16 %v231
  %v1003 = vunpack.c.h.b16 %v231
  %v1004 = vunpack.c.l.b16 %v232
  %v1005 = vunpack.c.h.b16 %v232
  %v1006 = vunpack.c.l.b16 %v233
  %v1007 = vunpack.c.h.b16 %v233
  %v1008 = vunpack.c.l.b16 %v234
  %v1009 = vunpack.c.h.b16 %v234
  %v1010 = vunpack.c.l.b16 %v235
  %v1011 = vunpack.c.h.b16 %v235
  %v1012 = vunpack.c.l.b16 %v236
  %v1013 = vunpack.c.h.b16 %v236
  %v1014 = vunpack.c.l.b16 %v237
  %v1015 = vunpack.c.h.b16 %v237
  %v1016 = vunpack.c.l.b16 %v238
  %v1017 = vunpack.c.h.b16 %v238
  %v1018 = vunpack.c.l.b16 %v239
  %v1019 = vunpack.c.h.b16 %v239
  %v1020 = vunpack.c.l.b16 %v240
  %v1021 = vunpack.c.h.b16 %v240
  %v1022 = vunpack.c.l.b16 %v241
  %v1023 = vunpack.c.h.b16 %v241
  %v1024 = vunpack.c.l.b16 %v242
  %v1025 = vunpack.c.h.b16 %v242
  %v1026 = vunpack.c.l.b16 %v243
  %v1027 = vunpack.c.h.b16 %v243
  %v1028 = vunpack.c.l.b16 %v244
  %v1029 = vunpack.c.h.b16 %v244
  %v1030 = vpack.c.b16 %v652, %v646
  %v1031 = vpack.c.b16 %v653, %v647
  %v1032 = vpack.c.b16 %v654, %v648
  %v1033 = vpack.c.b16 %v655, %v649
  %v1034 = vpack.c.b16 %v656, %v650
  %v1035 = vpack.c.b16 %v657, %v651
  %v1036 = vpack.c.b16 %v664, %v658
  %v1037 = vpack.c.b16 %v665, %v659
  %v1038 = vpack.c.b16 %v666, %v660
  %v1039 = vpack.c.b16 %v667, %v661
  %v1040 = vpack.c.b16 %v668, %v662
  %v1041 = vpack.c.b16 %v669, %v663
  %v1042 = vpack.c.b16 %v676, %v670
  %v1043 = vpack.c.b16 %v677, %v671
  %v1044 = vpack.c.b16 %v678, %v672
  %v1045 = vpack.c.b16 %v679, %v673
  %v1046 = vpack.c.b16 %v680, %v674
  %v1047 = vpack.c.b16 %v681, %v675
  %v1048 = vpack.c.b16 %v688, %v682
  %v1049 = vpack.c.b16 %v689, %v683
  %v1050 = vpack.c.b16 %v690, %v684
  %v1051 = vpack.c.b16 %v691, %v685
  %v1052 = vpack.c.b16 %v692, %v686
  %v1053 = vpack.c.b16 %v693, %v687
  %v1054 = vpack.c.b16 %v700, %v694
  %v1055 = vpack.c.b16 %v701, %v695
  %v1056 = vpack.c.b16 %v702, %v696
  %v1057 = vpack.c.b16 %v703, %v697
  %v1058 = vpack.c.b16 %v704, %v698
  %v1059 = vpack.c.b16 %v705, %v699
  %v1060 = vpack.c.b16 %v712, %v706
  %v1061 = vpack.c.b16 %v713, %v707
  %v1062 = vpack.c.b16 %v714, %v708
  %v1063 = vpack.c.b16 %v715, %v709
  %v1064 = vpack.c.b16 %v716, %v710
  %v1065 = vpack.c.b16 %v717, %v711
  %v1066 = vpack.c.b16 %v724, %v718
  %v1067 = vpack.c.b16 %v725, %v719
  %v1068 = vpack.c.b16 %v726, %v720
  %v1069 = vpack.c.b16 %v727, %v721
  %v1070 = vpack.c.b16 %v728, %v722
  %v1071 = vpack.c.b16 %v729, %v723
  %v1072 = vpack.c.b16 %v736, %v730
  %v1073 = vpack.c.b16 %v737, %v731
  %v1074 = vpack.c.b16 %v738, %v732
  %v1075 = vpack.c.b16 %v739, %v733
  %v1076 = vpack.c.b16 %v740, %v734
  %v1077 = vpack.c.b16 %v741, %v735
  %v1078 = vpack.c.b16 %v748, %v742
  %v1079 = vpack.c.b16 %v749, %v743
  %v1080 = vpack.c.b16 %v750, %v744
  %v1081 = vpack.c.b16 %v751, %v745
  %v1082 = vpack.c.b16 %v752, %v746
  %v1083 = vpack.c.b16 %v753, %v747
  %v1084 = vpack.c.b16 %v760, %v754
  %v1085 = vpack.c.b16 %v761, %v755
  %v1086 = vpack.c.b16 %v762, %v756
  %v1087 = vpack.c.b16 %v763, %v757
  %v1088 = vpack.c.b16 %v764, %v758
  %v1089 = vpack.c.b16 %v765, %v759
  %v1090 = vpack.c.b16 %v772, %v766
  %v1091 = vpack.c.b16 %v773, %v767
  %v1092 = vpack.c.b16 %v774, %v768
  %v1093 = vpack.c.b16 %v775, %v769
  %v1094 = vpack.c.b16 %v776, %v770
  %v1095 = vpack.c.b16 %v777, %v771
  %v1096 = vpack.c.b16 %v784, %v778
  %v1097 = vpack.c.b16 %v785, %v779
  %v1098 = vpack.c.b16 %v786, %v780
  %v1099 = vpack.c.b16 %v787, %v781
  %v1100 = vpack.c.b16 %v788, %v782
  %v1101 = vpack.c.b16 %v789, %v783
  %v1102 = vpack.c.b16 %v796, %v790
  %v1103 = vpack.c.b16 %v797, %v791
  %v1104 = vpack.c.b16 %v798, %v792
  %v1105 = vpack.c.b16 %v799, %v793
  %v1106 = vpack.c.b16 %v800, %v794
  %v1107 = vpack.c.b16 %v801, %v795
  %v1108 = vpack.c.b16 %v808, %v802
  %v1109 = vpack.c.b16 %v809, %v803
  %v1110 = vpack.c.b16 %v810, %v804
  %v1111 = vpack.c.b16 %v811, %v805
  %v1112 = vpack.c.b16 %v812, %v806
  %v1113 = vpack.c.b16 %v813, %v807
  %v1114 = vpack.c.b16 %v820, %v814
  %v1115 = vpack.c.b16 %v821, %v815
  %v1116 = vpack.c.b16 %v822, %v816
  %v1117 = vpack.c.b16 %v823, %v817
  %v1118 = vpack.c.b16 %v824, %v818
  %v1119 = vpack.c.b16 %v825, %v819
  %v1120 = vpack.c.b16 %v832, %v826
  %v1121 = vpack.c.b16 %v833, %v827
  %v1122 = vpack.c.b16 %v834, %v828
  %v1123 = vpack.c.b16 %v835, %v829
  %v1124 = vpack.c.b16 %v836, %v830
  %v1125 = vpack.c.b16 %v837, %v831
  %v1126 = vpack.c.b16 %v844, %v838
  %v1127 = vpack.c.b16 %v845, %v839
  %v1128 = vpack.c.b16 %v846, %v840
  %v1129 = vpack.c.b16 %v847, %v841
  %v1130 = vpack.c.b16 %v848, %v842
  %v1131 = vpack.c.b16 %v849, %v843
  %v1132 = vpack.c.b16 %v856, %v850
  %v1133 = vpack.c.b16 %v857, %v851
  %v1134 = vpack.c.b16 %v858, %v852
  %v1135 = vpack.c.b16 %v859, %v853
  %v1136 = vpack.c.b16 %v860, %v854
  %v1137 = vpack.c.b16 %v861, %v855
  %v1138 = vpack.c.b16 %v868, %v862
  %v1139 = vpack.c.b16 %v869, %v863
  %v1140 = vpack.c.b16 %v870, %v864
  %v1141 = vpack.c.b16 %v871, %v865
  %v1142 = vpack.c.b16 %v872, %v866
  %v1143 = vpack.c.b16 %v873, %v867
  %v1144 = vpack.c.b16 %v880, %v874
  %v1145 = vpack.c.b16 %v881, %v875
  %v1146 = vpack.c.b16 %v882, %v876
  %v1147 = vpack.c.b16 %v883, %v877
  %v1148 = vpack.c.b16 %v884, %v878
  %v1149 = vpack.c.b16 %v885, %v879
  %v1150 = vpack.c.b16 %v892, %v886
  %v1151 = vpack.c.b16 %v893, %v887
  %v1152 = vpack.c.b16 %v894, %v888
  %v1153 = vpack.c.b16 %v895, %v889
  %v1154 = vpack.c.b16 %v896, %v890
  %v1155 = vpack.c.b16 %v897, %v891
  %v1156 = vpack.c.b16 %v904, %v898
  %v1157 = vpack.c.b16 %v905, %v899
  %v1158 = vpack.c.b16 %v906, %v900
  %v1159 = vpack.c.b16 %v907, %v901
  %v1160 = vpack.c.b16 %v908, %v902
  %v1161 = vpack.c.b16 %v909, %v903
  %v1162 = vpack.c.b16 %v916, %v910
  %v1163 = vpack.c.b16 %v917, %v911
  %v1164 = vpack.c.b16 %v918, %v912
  %v1165 = vpack.c.b16 %v919, %v913
  %v1166 = vpack.c.b16 %v920, %v914
  %v1167 = vpack.c.b16 %v921, %v915
  %v1168 = vpack.c.b16 %v928, %v922
  %v1169 = vpack.c.b16 %v929, %v923
  %v1170 = vpack.c.b16 %v930, %v924
  %v1171 = vpack.c.b16 %v931, %v925
  %v1172 = vpack.c.b16 %v932, %v926
  %v1173 = vpack.c.b16 %v933, %v927
  %v1174 = vpack.c.b16 %v940, %v934
  %v1175 = vpack.c.b16 %v941, %v935
  %v1176 = vpack.c.b16 %v942, %v936
  %v1177 = vpack.c.b16 %v943, %v937
  %v1178 = vpack.c.b16 %v944, %v938
  %v1179 = vpack.c.b16 %v945, %v939
  %v1180 = vpack.c.b16 %v952, %v946
  %v1181 = vpack.c.b16 %v953, %v947
  %v1182 = vpack.c.b16 %v954, %v948
  %v1183 = vpack.c.b16 %v955, %v949
  %v1184 = vpack.c.b16 %v956, %v950
  %v1185 = vpack.c.b16 %v957, %v951
  %v1186 = vpack.c.b16 %v964, %v958
  %v1187 = vpack.c.b16 %v965, %v959
  %v1188 = vpack.c.b16 %v966, %v960
  %v1189 = vpack.c.b16 %v967, %v961
  %v1190 = vpack.c.b16 %v968, %v962
  %v1191 = vpack.c.b16 %v969, %v963
  %v1192 = vpack.c.b16 %v976, %v970
  %v1193 = vpack.c.b16 %v977, %v971
  %v1194 = vpack.c.b16 %v978, %v972
  %v1195 = vpack.c.b16 %v979, %v973
  %v1196 = vpack.c.b16 %v980, %v974
  %v1197 = vpack.c.b16 %v981, %v975
  %v1198 = vpack.c.b16 %v988, %v982
  %v1199 = vpack.c.b16 %v989, %v983
  %v1200 = vpack.c.b16 %v990, %v984
  %v1201 = vpack.c.b16 %v991, %v985
  %v1202 = vpack.c.b16 %v992, %v986
  %v1203 = vpack.c.b16 %v993, %v987
  %v1204 = vpack.c.b16 %v1000, %v994
  %v1205 = vpack.c.b16 %v1001, %v995
  %v1206 = vpack.c.b16 %v1002, %v996
  %v1207 = vpack.c.b16 %v1003, %v997
  %v1208 = vpack.c.b16 %v1004, %v998
  %v1209 = vpack.c.b16 %v1005, %v999
  %v1210 = vpack.c.b16 %v1012, %v1006
  %v1211 = vpack.c.b16 %v1013, %v1007
  %v1212 = vpack.c.b16 %v1014, %v1008
  %v1213 = vpack.c.b16 %v1015, %v1009
  %v1214 = vpack.c.b16 %v1016, %v1010
  %v1215 = vpack.c.b16 %v1017, %v1011
  %v1216 = vpack.c.b16 %v1024, %v1018
  %v1217 = vpack.c.b16 %v1025, %v1019
  %v1218 = vpack.c.b16 %v1026, %v1020
  %v1219 = vpack.c.b16 %v1027, %v1021
  %v1220 = vpack.c.b16 %v1028, %v1022
  %v1221 = vpack.c.b16 %v1029, %v1023
  %v1606 = vunpack.c.l.b16 %v245
  %v1607 = vunpack.c.h.b16 %v245
  %v1608 = vunpack.c.l.b16 %v246
  %v1609 = vunpack.c.l.b16 %v247
  %v1610 = vunpack.c.h.b16 %v247
  %v1611 = vunpack.c.l.b16 %v248
  %v1612 = vunpack.c.l.b16 %v249
  %v1613 = vunpack.c.h.b16 %v249
  %v1614 = vunpack.c.l.b16 %v250
  %v1615 = vunpack.c.l.b16 %v251
  %v1616 = vunpack.c.h.b16 %v251
  %v1617 = vunpack.c.l.b16 %v252
  %v1618 = vunpack.c.l.b16 %v253
  %v1619 = vunpack.c.h.b16 %v253
  %v1620 = vunpack.c.l.b16 %v254
  %v1621 = vunpack.c.l.b16 %v255
  %v1622 = vunpack.c.h.b16 %v255
  %v1623 = vunpack.c.l.b16 %v256
  %v1624 = vunpack.c.l.b16 %v257
  %v1625 = vunpack.c.h.b16 %v257
  %v1626 = vunpack.c.l.b16 %v258
  %v1627 = vunpack.c.l.b16 %v259
  %v1628 = vunpack.c.h.b16 %v259
  %v1629 = vunpack.c.l.b16 %v260
  %v1630 = vunpack.c.l.b16 %v261
  %v1631 = vunpack.c.h.b16 %v261
  %v1632 = vunpack.c.l.b16 %v262
  %v1633 = vunpack.c.l.b16 %v263
  %v1634 = vunpack.c.h.b16 %v263
  %v1635 = vunpack.c.l.b16 %v264
  %v1636 = vunpack.c.l.b16 %v265
  %v1637 = vunpack.c.h.b16 %v265
  %v1638 = vunpack.c.l.b16 %v266
  %v1639 = vunpack.c.l.b16 %v267
  %v1640 = vunpack.c.h.b16 %v267
  %v1641 = vunpack.c.l.b16 %v268
  %v1642 = vunpack.c.l.b16 %v269
  %v1643 = vunpack.c.h.b16 %v269
  %v1644 = vunpack.c.l.b16 %v270
  %v1645 = vunpack.c.l.b16 %v271
  %v1646 = vunpack.c.h.b16 %v271
  %v1647 = vunpack.c.l.b16 %v272
  %v1648 = vunpack.c.l.b16 %v273
  %v1649 = vunpack.c.h.b16 %v273
  %v1650 = vunpack.c.l.b16 %v274
  %v1651 = vunpack.c.l.b16 %v275
  %v1652 = vunpack.c.h.b16 %v275
  %v1653 = vunpack.c.l.b16 %v276
  %v1654 = vunpack.c.l.b16 %v277
  %v1655 = vunpack.c.h.b16 %v277
  %v1656 = vunpack.c.l.b16 %v278
  %v1657 = vunpack.c.l.b16 %v279
  %v1658 = vunpack.c.h.b16 %v279
  %v1659 = vunpack.c.l.b16 %v280
  %v1660 = vunpack.c.l.b16 %v281
  %v1661 = vunpack.c.h.b16 %v281
  %v1662 = vunpack.c.l.b16 %v282
  %v1663 = vunpack.c.l.b16 %v283
  %v1664 = vunpack.c.h.b16 %v283
  %v1665 = vunpack.c.l.b16 %v284
  %v1666 = vunpack.c.l.b16 %v285
  %v1667 = vunpack.c.h.b16 %v285
  %v1668 = vunpack.c.l.b16 %v286
  %v1669 = vunpack.c.l.b16 %v287
  %v1670 = vunpack.c.h.b16 %v287
  %v1671 = vunpack.c.l.b16 %v288
  %v1672 = vunpack.c.l.b16 %v289
  %v1673 = vunpack.c.h.b16 %v289
  %v1674 = vunpack.c.l.b16 %v290
  %v1675 = vunpack.c.l.b16 %v291
  %v1676 = vunpack.c.h.b16 %v291
  %v1677 = vunpack.c.l.b16 %v292
  %v1678 = vunpack.c.l.b16 %v293
  %v1679 = vunpack.c.h.b16 %v293
  %v1680 = vunpack.c.l.b16 %v294
  %v1681 = vunpack.c.l.b16 %v295
  %v1682 = vunpack.c.h.b16 %v295
  %v1683 = vunpack.c.l.b16 %v296
  %v1684 = vunpack.c.l.b16 %v297
  %v1685 = vunpack.c.h.b16 %v297
  %v1686 = vunpack.c.l.b16 %v298
  %v1687 = vunpack.c.l.b16 %v299
  %v1688 = vunpack.c.h.b16 %v299
  %v1689 = vunpack.c.l.b16 %v300
  %v1690 = vunpack.c.l.b16 %v301
  %v1691 = vunpack.c.h.b16 %v301
  %v1692 = vunpack.c.l.b16 %v302
  %v1693 = vunpack.c.l.b16 %v303
  %v1694 = vunpack.c.h.b16 %v303
  %v1695 = vunpack.c.l.b16 %v304
  %v1696 = vunpack.c.l.b16 %v305
  %v1697 = vunpack.c.h.b16 %v305
  %v1698 = vunpack.c.l.b16 %v306
  %v1699 = vunpack.c.l.b16 %v307
  %v1700 = vunpack.c.h.b16 %v307
  %v1701 = vunpack.c.l.b16 %v308
  %v1702 = vunpack.c.l.b16 %v309
  %v1703 = vunpack.c.h.b16 %v309
  %v1704 = vunpack.c.l.b16 %v310
  %v1705 = vunpack.c.l.b16 %v311
  %v1706 = vunpack.c.h.b16 %v311
  %v1707 = vunpack.c.l.b16 %v312
  %v1708 = vunpack.c.l.b16 %v313
  %v1709 = vunpack.c.h.b16 %v313
  %v1710 = vunpack.c.l.b16 %v314
  %v1711 = vunpack.c.l.b16 %v315
  %v1712 = vunpack.c.h.b16 %v315
  %v1713 = vunpack.c.l.b16 %v316
  %v1714 = vunpack.c.l.b16 %v317
  %v1715 = vunpack.c.h.b16 %v317
  %v1716 = vunpack.c.l.b16 %v318
  %v1717 = vunpack.c.l.b16 %v319
  %v1718 = vunpack.c.h.b16 %v319
  %v1719 = vunpack.c.l.b16 %v320
  %v1720 = vunpack.c.l.b16 %v321
  %v1721 = vunpack.c.h.b16 %v321
  %v1722 = vunpack.c.l.b16 %v322
  %v1723 = vunpack.c.l.b16 %v323
  %v1724 = vunpack.c.h.b16 %v323
  %v1725 = vunpack.c.l.b16 %v324
  %v1726 = vunpack.c.l.b16 %v325
  %v1727 = vunpack.c.h.b16 %v325
  %v1728 = vunpack.c.l.b16 %v326
  %v1729 = vunpack.c.l.b16 %v327
  %v1730 = vunpack.c.h.b16 %v327
  %v1731 = vunpack.c.l.b16 %v328
  %v1732 = vunpack.c.l.b16 %v329
  %v1733 = vunpack.c.h.b16 %v329
  %v1734 = vunpack.c.l.b16 %v330
  %v1735 = vunpack.c.l.b16 %v331
  %v1736 = vunpack.c.h.b16 %v331
  %v1737 = vunpack.c.l.b16 %v332
  %v1738 = vunpack.c.l.b16 %v333
  %v1739 = vunpack.c.h.b16 %v333
  %v1740 = vunpack.c.l.b16 %v334
  %v1741 = vunpack.c.l.b16 %v335
  %v1742 = vunpack.c.h.b16 %v335
  %v1743 = vunpack.c.l.b16 %v336
  %v1744 = vunpack.c.l.b16 %v337
  %v1745 = vunpack.c.h.b16 %v337
  %v1746 = vunpack.c.l.b16 %v338
  %v1747 = vunpack.c.l.b16 %v339
  %v1748 = vunpack.c.h.b16 %v339
  %v1749 = vunpack.c.l.b16 %v340
  %v1750 = vunpack.c.l.b16 %v341
  %v1751 = vunpack.c.h.b16 %v341
  %v1752 = vunpack.c.l.b16 %v342
  %v1753 = vunpack.c.l.b16 %v343
  %v1754 = vunpack.c.h.b16 %v343
  %v1755 = vunpack.c.l.b16 %v344
  %v1756 = vunpack.c.l.b16 %v345
  %v1757 = vunpack.c.h.b16 %v345
  %v1758 = vunpack.c.l.b16 %v346
  %v1759 = vunpack.c.l.b16 %v347
  %v1760 = vunpack.c.h.b16 %v347
  %v1761 = vunpack.c.l.b16 %v348
  %v1762 = vunpack.c.l.b16 %v349
  %v1763 = vunpack.c.h.b16 %v349
  %v1764 = vunpack.c.l.b16 %v350
  %v1765 = vunpack.c.l.b16 %v351
  %v1766 = vunpack.c.h.b16 %v351
  %v1767 = vunpack.c.l.b16 %v352
  %v1768 = vunpack.c.l.b16 %v353
  %v1769 = vunpack.c.h.b16 %v353
  %v1770 = vunpack.c.l.b16 %v354
  %v1771 = vunpack.c.l.b16 %v355
  %v1772 = vunpack.c.h.b16 %v355
  %v1773 = vunpack.c.l.b16 %v356
  %v1774 = vunpack.c.l.b16 %v357
  %v1775 = vunpack.c.h.b16 %v357
  %v1776 = vunpack.c.l.b16 %v358
  %v1777 = vunpack.c.l.b16 %v359
  %v1778 = vunpack.c.h.b16 %v359
  %v1779 = vunpack.c.l.b16 %v360
  %v1780 = vunpack.c.l.b16 %v361
  %v1781 = vunpack.c.h.b16 %v361
  %v1782 = vunpack.c.l.b16 %v362
  %v1783 = vunpack.c.l.b16 %v363
  %v1784 = vunpack.c.h.b16 %v363
  %v1785 = vunpack.c.l.b16 %v364
  %v1786 = vunpack.c.l.b16 %v365
  %v1787 = vunpack.c.h.b16 %v365
  %v1788 = vunpack.c.l.b16 %v366
  %v1789 = vunpack.c.l.b16 %v367
  %v1790 = vunpack.c.h.b16 %v367
  %v1791 = vunpack.c.l.b16 %v368
  %v1792 = vunpack.c.l.b16 %v369
  %v1793 = vunpack.c.h.b16 %v369
  %v1794 = vunpack.c.l.b16 %v370
  %v1795 = vunpack.c.l.b16 %v371
  %v1796 = vunpack.c.h.b16 %v371
  %v1797 = vunpack.c.l.b16 %v372
  %v1798 = vunpack.c.l.b16 %v373
  %v1799 = vunpack.c.h.b16 %v373
  %v1800 = vunpack.c.l.b16 %v374
  %v1801 = vunpack.c.l.b16 %v375
  %v1802 = vunpack.c.h.b16 %v375
  %v1803 = vunpack.c.l.b16 %v376
  %v1804 = vunpack.c.l.b16 %v377
  %v1805 = vunpack.c.h.b16 %v377
  %v1806 = vunpack.c.l.b16 %v378
  %v1807 = vunpack.c.l.b16 %v379
  %v1808 = vunpack.c.h.b16 %v379
  %v1809 = vunpack.c.l.b16 %v380
  %v1810 = vunpack.c.l.b16 %v381
  %v1811 = vunpack.c.h.b16 %v381
  %v1812 = vunpack.c.l.b16 %v382
  %v1813 = vunpack.c.l.b16 %v383
  %v1814 = vunpack.c.h.b16 %v383
  %v1815 = vunpack.c.l.b16 %v384
  %v1816 = vunpack.c.l.b16 %v385
  %v1817 = vunpack.c.h.b16 %v385
  %v1818 = vunpack.c.l.b16 %v386
  %v1819 = vunpack.c.l.b16 %v387
  %v1820 = vunpack.c.h.b16 %v387
  %v1821 = vunpack.c.l.b16 %v388
  %v1822 = vunpack.c.l.b16 %v389
  %v1823 = vunpack.c.h.b16 %v389
  %v1824 = vunpack.c.l.b16 %v390
  %v1825 = vunpack.c.l.b16 %v391
  %v1826 = vunpack.c.h.b16 %v391
  %v1827 = vunpack.c.l.b16 %v392
  %v1828 = vunpack.c.l.b16 %v393
  %v1829 = vunpack.c.h.b16 %v393
  %v1830 = vunpack.c.l.b16 %v394
  %v1831 = vunpack.c.l.b16 %v395
  %v1832 = vunpack.c.h.b16 %v395
  %v1833 = vunpack.c.l.b16 %v396
  %v1834 = vunpack.c.l.b16 %v397
  %v1835 = vunpack.c.h.b16 %v397
  %v1836 = vunpack.c.l.b16 %v398
  %v1837 = vunpack.c.l.b16 %v399
  %v1838 = vunpack.c.h.b16 %v399
  %v1839 = vunpack.c.l.b16 %v400
  %v1840 = vunpack.c.l.b16 %v401
  %v1841 = vunpack.c.h.b16 %v401
  %v1842 = vunpack.c.l.b16 %v402
  %v1843 = vunpack.c.l.b16 %v403
  %v1844 = vunpack.c.h.b16 %v403
  %v1845 = vunpack.c.l.b16 %v404
  %v1846 = vunpack.c.l.b16 %v405
  %v1847 = vunpack.c.h.b16 %v405
  %v1848 = vunpack.c.l.b16 %v406
  %v1849 = vunpack.c.l.b16 %v407
  %v1850 = vunpack.c.h.b16 %v407
  %v1851 = vunpack.c.l.b16 %v408
  %v1852 = vunpack.c.l.b16 %v409
  %v1853 = vunpack.c.h.b16 %v409
  %v1854 = vunpack.c.l.b16 %v410
  %v1855 = vunpack.c.l.b16 %v411
  %v1856 = vunpack.c.h.b16 %v411
  %v1857 = vunpack.c.l.b16 %v412
  %v1858 = vunpack.c.l.b16 %v413
  %v1859 = vunpack.c.h.b16 %v413
  %v1860 = vunpack.c.l.b16 %v414
  %v1861 = vunpack.c.l.b16 %v415
  %v1862 = vunpack.c.h.b16 %v415
  %v1863 = vunpack.c.l.b16 %v416
  %v1864 = vunpack.c.l.b16 %v417
  %v1865 = vunpack.c.h.b16 %v417
  %v1866 = vunpack.c.l.b16 %v418
  %v1867 = vunpack.c.l.b16 %v419
  %v1868 = vunpack.c.h.b16 %v419
  %v1869 = vunpack.c.l.b16 %v420
  %v1870 = vunpack.c.l.b16 %v421
  %v1871 = vunpack.c.h.b16 %v421
  %v1872 = vunpack.c.l.b16 %v422
  %v1873 = vunpack.c.l.b16 %v423
  %v1874 = vunpack.c.h.b16 %v423
  %v1875 = vunpack.c.l.b16 %v424
  %v1876 = vunpack.c.l.b16 %v425
  %v1877 = vunpack.c.h.b16 %v425
  %v1878 = vunpack.c.l.b16 %v426
  %v1879 = vunpack.c.l.b16 %v427
  %v1880 = vunpack.c.h.b16 %v427
  %v1881 = vunpack.c.l.b16 %v428
  %v1882 = vunpack.c.l.b16 %v429
  %v1883 = vunpack.c.h.b16 %v429
  %v1884 = vunpack.c.l.b16 %v430
  %v1885 = vunpack.c.l.b16 %v431
  %v1886 = vunpack.c.h.b16 %v431
  %v1887 = vunpack.c.l.b16 %v432
  %v1888 = vunpack.c.l.b16 %v433
  %v1889 = vunpack.c.h.b16 %v433
  %v1890 = vunpack.c.l.b16 %v434
  %v1891 = vunpack.c.l.b16 %v435
  %v1892 = vunpack.c.h.b16 %v435
  %v1893 = vunpack.c.l.b16 %v436
  %v1894 = vpack.c.b16 %v1609, %v1606
  %v1895 = vpack.c.b16 %v1610, %v1607
  %v1896 = vpack.c.b16 %v1611, %v1608
  %v1897 = vpack.c.b16 %v1615, %v1612
  %v1898 = vpack.c.b16 %v1616, %v1613
  %v1899 = vpack.c.b16 %v1617, %v1614
  %v1900 = vpack.c.b16 %v1621, %v1618
  %v1901 = vpack.c.b16 %v1622, %v1619
  %v1902 = vpack.c.b16 %v1623, %v1620
  %v1903 = vpack.c.b16 %v1627, %v1624
  %v1904 = vpack.c.b16 %v1628, %v1625
  %v1905 = vpack.c.b16 %v1629, %v1626
  %v1906 = vpack.c.b16 %v1633, %v1630
  %v1907 = vpack.c.b16 %v1634, %v1631
  %v1908 = vpack.c.b16 %v1635, %v1632
  %v1909 = vpack.c.b16 %v1639, %v1636
  %v1910 = vpack.c.b16 %v1640, %v1637
  %v1911 = vpack.c.b16 %v1641, %v1638
  %v1912 = vpack.c.b16 %v1645, %v1642
  %v1913 = vpack.c.b16 %v1646, %v1643
  %v1914 = vpack.c.b16 %v1647, %v1644
  %v1915 = vpack.c.b16 %v1651, %v1648
  %v1916 = vpack.c.b16 %v1652, %v1649
  %v1917 = vpack.c.b16 %v1653, %v1650
  %v1918 = vpack.c.b16 %v1657, %v1654
  %v1919 = vpack.c.b16 %v1658, %v1655
  %v1920 = vpack.c.b16 %v1659, %v1656
  %v1921 = vpack.c.b16 %v1663, %v1660
  %v1922 = vpack.c.b16 %v1664, %v1661
  %v1923 = vpack.c.b16 %v1665, %v1662
  %v1924 = vpack.c.b16 %v1669, %v1666
  %v1925 = vpack.c.b16 %v1670, %v1667
  %v1926 = vpack.c.b16 %v1671, %v1668
  %v1927 = vpack.c.b16 %v1675, %v1672
  %v1928 = vpack.c.b16 %v1676, %v1673
  %v1929 = vpack.c.b16 %v1677, %v1674
  %v1930 = vpack.c.b16 %v1681, %v1678
  %v1931 = vpack.c.b16 %v1682, %v1679
  %v1932 = vpack.c.b16 %v1683, %v1680
  %v1933 = vpack.c.b16 %v1687, %v1684
  %v1934 = vpack.c.b16 %v1688, %v1685
  %v1935 = vpack.c.b16 %v1689, %v1686
  %v1936 = vpack.c.b16 %v1693, %v1690
  %v1937 = vpack.c.b16 %v1694, %v1691
  %v1938 = vpack.c.b16 %v1695, %v1692
  %v1939 = vpack.c.b16 %v1699, %v1696
  %v1940 = vpack.c.b16 %v1700, %v1697
  %v1941 = vpack.c.b16 %v1701, %v1698
  %v1942 = vpack.c.b16 %v1705, %v1702
  %v1943 = vpack.c.b16 %v1706, %v1703
  %v1944 = vpack.c.b16 %v1707, %v1704
  %v1945 = vpack.c.b16 %v1711, %v1708
  %v1946 = vpack.c.b16 %v1712, %v1709
  %v1947 = vpack.c.b16 %v1713, %v1710
  %v1948 = vpack.c.b16 %v1717, %v1714
  %v1949 = vpack.c.b16 %v1718, %v1715
  %v1950 = vpack.c.b16 %v1719, %v1716
  %v1951 = vpack.c.b16 %v1723, %v1720
  %v1952 = vpack.c.b16 %v1724, %v1721
  %v1953 = vpack.c.b16 %v1725, %v1722
  %v1954 = vpack.c.b16 %v1729, %v1726
  %v1955 = vpack.c.b16 %v1730, %v1727
  %v1956 = vpack.c.b16 %v1731, %v1728
  %v1957 = vpack.c.b16 %v1735, %v1732
  %v1958 = vpack.c.b16 %v1736, %v1733
  %v1959 = vpack.c.b16 %v1737, %v1734
  %v1960 = vpack.c.b16 %v1741, %v1738
  %v1961 = vpack.c.b16 %v1742, %v1739
  %v1962 = vpack.c.b16 %v1743, %v1740
  %v1963 = vpack.c.b16 %v1747, %v1744
  %v1964 = vpack.c.b16 %v1748, %v1745
  %v1965 = vpack.c.b16 %v1749, %v1746
  %v1966 = vpack.c.b16 %v1753, %v1750
  %v1967 = vpack.c.b16 %v1754, %v1751
  %v1968 = vpack.c.b16 %v1755, %v1752
  %v1969 = vpack.c.b16 %v1759, %v1756
  %v1970 = vpack.c.b16 %v1760, %v1757
  %v1971 = vpack.c.b16 %v1761, %v1758
  %v1972 = vpack.c.b16 %v1765, %v1762
  %v1973 = vpack.c.b16 %v1766, %v1763
  %v1974 = vpack.c.b16 %v1767, %v1764
  %v1975 = vpack.c.b16 %v1771, %v1768
  %v1976 = vpack.c.b16 %v1772, %v1769
  %v1977 = vpack.c.b16 %v1773, %v1770
  %v1978 = vpack.c.b16 %v1777, %v1774
  %v1979 = vpack.c.b16 %v1778, %v1775
  %v1980 = vpack.c.b16 %v1779, %v1776
  %v1981 = vpack.c.b16 %v1783, %v1780
  %v1982 = vpack.c.b16 %v1784, %v1781
  %v1983 = vpack.c.b16 %v1785, %v1782
  %v1984 = vpack.c.b16 %v1789, %v1786
  %v1985 = vpack.c.b16 %v1790, %v1787
  %v1986 = vpack.c.b16 %v1791, %v1788
  %v1987 = vpack.c.b16 %v1795, %v1792
  %v1988 = vpack.c.b16 %v1796, %v1793
  %v1989 = vpack.c.b16 %v1797, %v1794
  %v1990 = vpack.c.b16 %v1801, %v1798
  %v1991 = vpack.c.b16 %v1802, %v1799
  %v1992 = vpack.c.b16 %v1803, %v1800
  %v1993 = vpack.c.b16 %v1807, %v1804
  %v1994 = vpack.c.b16 %v1808, %v1805
  %v1995 = vpack.c.b16 %v1809, %v1806
  %v1996 = vpack.c.b16 %v1813, %v1810
  %v1997 = vpack.c.b16 %v1814, %v1811
  %v1998 = vpack.c.b16 %v1815, %v1812
  %v1999 = vpack.c.b16 %v1819, %v1816
  %v2000 = vpack.c.b16 %v1820, %v1817
  %v2001 = vpack.c.b16 %v1821, %v1818
  %v2002 = vpack.c.b16 %v1825, %v1822
  %v2003 = vpack.c.b16 %v1826, %v1823
  %v2004 = vpack.c.b16 %v1827, %v1824
  %v2005 = vpack.c.b16 %v1831, %v1828
  %v2006 = vpack.c.b16 %v1832, %v1829
  %v2007 = vpack.c.b16 %v1833, %v1830
  %v2008 = vpack.c.b16 %v1837, %v1834
  %v2009 = vpack.c.b16 %v1838, %v1835
  %v2010 = vpack.c.b16 %v1839, %v1836
  %v2011 = vpack.c.b16 %v1843, %v1840
  %v2012 = vpack.c.b16 %v1844, %v1841
  %v2013 = vpack.c.b16 %v1845, %v1842
  %v2014 = vpack.c.b16 %v1849, %v1846
  %v2015 = vpack.c.b16 %v1850, %v1847
  %v2016 = vpack.c.b16 %v1851, %v1848
  %v2017 = vpack.c.b16 %v1855, %v1852
  %v2018 = vpack.c.b16 %v1856, %v1853
  %v2019 = vpack.c.b16 %v1857, %v1854
  %v2020 = vpack.c.b16 %v1861, %v1858
  %v2021 = vpack.c.b16 %v1862, %v1859
  %v2022 = vpack.c.b16 %v1863, %v1860
  %v2023 = vpack.c.b16 %v1867, %v1864
  %v2024 = vpack.c.b16 %v1868, %v1865
  %v2025 = vpack.c.b16 %v1869, %v1866
  %v2026 = vpack.c.b16 %v1873, %v1870
  %v2027 = vpack.c.b16 %v1874, %v1871
  %v2028 = vpack.c.b16 %v1875, %v1872
  %v2029 = vpack.c.b16 %v1879, %v1876
  %v2030 = vpack.c.b16 %v1880, %v1877
  %v2031 = vpack.c.b16 %v1881, %v1878
  %v2032 = vpack.c.b16 %v1885, %v1882
  %v2033 = vpack.c.b16 %v1886, %v1883
  %v2034 = vpack.c.b16 %v1887, %v1884
  %v2035 = vpack.c.b16 %v1891, %v1888
  %v2036 = vpack.c.b16 %v1892, %v1889
  %v2037 = vpack.c.b16 %v1893, %v1890
  %2182 = vmatprep.subr.bf16.mxu0 %v1895
  %2183 = vmatpush1.bf16.msra.mxu0 %v1894
  %2184 = vmatprep.subr.bf16.mxu0 %v1898
  %2185 = vmatpush1.bf16.msra.mxu0 %v1897
  %2186 = vmatprep.subr.bf16.mxu0 %v1901
  %2187 = vmatpush1.bf16.msra.mxu0 %v1900
  %2188 = vmatprep.subr.bf16.mxu0 %v1904
  %2189 = vmatpush1.bf16.msra.mxu0 %v1903
  %2190 = vmatprep.subr.bf16.mxu0 %v1907
  %2191 = vmatpush1.bf16.msra.mxu0 %v1906
  %2192 = vmatprep.subr.bf16.mxu0 %v1910
  %2193 = vmatpush1.bf16.msra.mxu0 %v1909
  %2194 = vmatprep.subr.bf16.mxu0 %v1913
  %2195 = vmatpush1.bf16.msra.mxu0 %v1912
  %2196 = vmatprep.subr.bf16.mxu0 %v1916
  %2197 = vmatpush1.bf16.msra.mxu0 %v1915
  %2198 = vmatprep.subr.bf16.mxu0 %v1919
  %2199 = vmatpush1.bf16.msra.mxu0 %v1918
  %2200 = vmatprep.subr.bf16.mxu0 %v1922
  %2201 = vmatpush1.bf16.msra.mxu0 %v1921
  %2202 = vmatprep.subr.bf16.mxu0 %v1925
  %2203 = vmatpush1.bf16.msra.mxu0 %v1924
  %2204 = vmatprep.subr.bf16.mxu0 %v1928
  %2205 = vmatpush1.bf16.msra.mxu0 %v1927
  %2206 = vmatprep.subr.bf16.mxu0 %v1931
  %2207 = vmatpush1.bf16.msra.mxu0 %v1930
  %2208 = vmatprep.subr.bf16.mxu0 %v1934
  %2209 = vmatpush1.bf16.msra.mxu0 %v1933
  %2210 = vmatprep.subr.bf16.mxu0 %v1937
  %2211 = vmatpush1.bf16.msra.mxu0 %v1936
  %2212 = vmatprep.subr.bf16.mxu0 %v1940
  %2213 = vmatpush1.bf16.msra.mxu0 %v1939
  %2214 = vmatprep.mubr.bf16.mxu0 %v1031
  %2215 = vmatmul.mubr.bf16.gmra.mrb[0].mxu0 %v1030
  %v2216 = vpop.f32.mrb[0].mxu0
  %v2217 = vadd.f32 %v442, %v2216
  %v2218 = vpop.f32.mrb[0].mxu0
  %v2219 = vadd.f32 %v446, %v2218
  %v2220 = vpop.f32.mrb[0].mxu0
  %v2221 = vadd.f32 %v442, %v2220
  %v2222 = vpop.f32.mrb[0].mxu0
  %v2223 = vadd.f32 %v446, %v2222
  %2224 = vmatprep.mubr.bf16.mxu0 %v1037
  %2225 = vmatmul.mubr.bf16.gmra.mrb[0].mxu0 %v1036
  %v2226 = vpop.f32.mrb[0].mxu0
  %v2227 = vadd.f32 %v442, %v2226
  %v2228 = vpop.f32.mrb[0].mxu0
  %v2229 = vadd.f32 %v446, %v2228
  %v2230 = vpop.f32.mrb[0].mxu0
  %v2231 = vadd.f32 %v442, %v2230
  %v2232 = vpop.f32.mrb[0].mxu0
  %v2233 = vadd.f32 %v446, %v2232
  %2234 = vmatprep.mubr.bf16.mxu0 %v1043
  %2235 = vmatmul.mubr.bf16.gmra.mrb[0].mxu0 %v1042
  %v2236 = vpop.f32.mrb[0].mxu0
  %v2237 = vadd.f32 %v442, %v2236
  %v2238 = vpop.f32.mrb[0].mxu0
  %v2239 = vadd.f32 %v446, %v2238
  %v2240 = vpop.f32.mrb[0].mxu0
  %v2241 = vadd.f32 %v442, %v2240
  %v2242 = vpop.f32.mrb[0].mxu0
  %v2243 = vadd.f32 %v446, %v2242
  %2244 = vmatprep.mubr.bf16.mxu0 %v1049
  %2245 = vmatmul.mubr.bf16.gmra.mrb[0].mxu0 %v1048
  %v2246 = vpop.f32.mrb[0].mxu0
  %v2247 = vadd.f32 %v442, %v2246
  %v2248 = vpop.f32.mrb[0].mxu0
  %v2249 = vadd.f32 %v446, %v2248
  %v2250 = vpop.f32.mrb[0].mxu0
  %v2251 = vadd.f32 %v442, %v2250
  %v2252 = vpop.f32.mrb[0].mxu0
  %v2253 = vadd.f32 %v446, %v2252
  %2254 = vmatprep.mubr.bf16.mxu0 %v1055
  %2255 = vmatmul.mubr.bf16.gmra.mrb[0].mxu0 %v1054
  %v2256 = vpop.f32.mrb[0].mxu0
  %v2257 = vadd.f32 %v442, %v2256
  %v2258 = vpop.f32.mrb[0].mxu0
  %v2259 = vadd.f32 %v446, %v2258
  %v2260 = vpop.f32.mrb[0].mxu0
  %v2261 = vadd.f32 %v442, %v2260
  %v2262 = vpop.f32.mrb[0].mxu0
  %v2263 = vadd.f32 %v446, %v2262
  %2264 = vmatprep.mubr.bf16.mxu0 %v1061
  %2265 = vmatmul.mubr.bf16.gmra.mrb[0].mxu0 %v1060
  %v2266 = vpop.f32.mrb[0].mxu0
  %v2267 = vadd.f32 %v442, %v2266
  %v2268 = vpop.f32.mrb[0].mxu0
  %v2269 = vadd.f32 %v446, %v2268
  %v2270 = vpop.f32.mrb[0].mxu0
  %v2271 = vadd.f32 %v442, %v2270
  %v2272 = vpop.f32.mrb[0].mxu0
  %v2273 = vadd.f32 %v446, %v2272
  %2274 = vmatprep.mubr.bf16.mxu0 %v1067
  %2275 = vmatmul.mubr.bf16.gmra.mrb[0].mxu0 %v1066
  %v2276 = vpop.f32.mrb[0].mxu0
  %v2277 = vadd.f32 %v442, %v2276
  %v2278 = vpop.f32.mrb[0].mxu0
  %v2279 = vadd.f32 %v446, %v2278
  %v2280 = vpop.f32.mrb[0].mxu0
  %v2281 = vadd.f32 %v442, %v2280
  %v2282 = vpop.f32.mrb[0].mxu0
  %v2283 = vadd.f32 %v446, %v2282
  %2284 = vmatprep.mubr.bf16.mxu0 %v1073
  %2285 = vmatmul.mubr.bf16.gmra.mrb[0].mxu0 %v1072
  %v2286 = vpop.f32.mrb[0].mxu0
  %v2287 = vadd.f32 %v442, %v2286
  %v2288 = vpop.f32.mrb[0].mxu0
  %v2289 = vadd.f32 %v446, %v2288
  %v2290 = vpop.f32.mrb[0].mxu0
  %v2291 = vadd.f32 %v442, %v2290
  %v2292 = vpop.f32.mrb[0].mxu0
  %v2293 = vadd.f32 %v446, %v2292
  %2294 = vmatprep.mubr.bf16.mxu0 %v1079
  %2295 = vmatmul.mubr.bf16.gmra.mrb[0].mxu0 %v1078
  %v2296 = vpop.f32.mrb[0].mxu0
  %v2297 = vadd.f32 %v442, %v2296
  %v2298 = vpop.f32.mrb[0].mxu0
  %v2299 = vadd.f32 %v446, %v2298
  %v2300 = vpop.f32.mrb[0].mxu0
  %v2301 = vadd.f32 %v442, %v2300
  %v2302 = vpop.f32.mrb[0].mxu0
  %v2303 = vadd.f32 %v446, %v2302
  %2304 = vmatprep.mubr.bf16.mxu0 %v1085
  %2305 = vmatmul.mubr.bf16.gmra.mrb[0].mxu0 %v1084
  %v2306 = vpop.f32.mrb[0].mxu0
  %v2307 = vadd.f32 %v442, %v2306
  %v2308 = vpop.f32.mrb[0].mxu0
  %v2309 = vadd.f32 %v446, %v2308
  %v2310 = vpop.f32.mrb[0].mxu0
  %v2311 = vadd.f32 %v442, %v2310
  %v2312 = vpop.f32.mrb[0].mxu0
  %v2313 = vadd.f32 %v446, %v2312
  %2314 = vmatprep.mubr.bf16.mxu0 %v1091
  %2315 = vmatmul.mubr.bf16.gmra.mrb[0].mxu0 %v1090
  %v2316 = vpop.f32.mrb[0].mxu0
  %v2317 = vadd.f32 %v442, %v2316
  %v2318 = vpop.f32.mrb[0].mxu0
  %v2319 = vadd.f32 %v446, %v2318
  %v2320 = vpop.f32.mrb[0].mxu0
  %v2321 = vadd.f32 %v442, %v2320
  %v2322 = vpop.f32.mrb[0].mxu0
  %v2323 = vadd.f32 %v446, %v2322
  %2324 = vmatprep.mubr.bf16.mxu0 %v1097
  %2325 = vmatmul.mubr.bf16.gmra.mrb[0].mxu0 %v1096
  %v2326 = vpop.f32.mrb[0].mxu0
  %v2327 = vadd.f32 %v442, %v2326
  %v2328 = vpop.f32.mrb[0].mxu0
  %v2329 = vadd.f32 %v446, %v2328
  %v2330 = vpop.f32.mrb[0].mxu0
  %v2331 = vadd.f32 %v442, %v2330
  %v2332 = vpop.f32.mrb[0].mxu0
  %v2333 = vadd.f32 %v446, %v2332
  %2334 = vmatprep.mubr.bf16.mxu0 %v1103
  %2335 = vmatmul.mubr.bf16.gmra.mrb[0].mxu0 %v1102
  %v2336 = vpop.f32.mrb[0].mxu0
  %v2337 = vadd.f32 %v442, %v2336
  %v2338 = vpop.f32.mrb[0].mxu0
  %v2339 = vadd.f32 %v446, %v2338
  %v2340 = vpop.f32.mrb[0].mxu0
  %v2341 = vadd.f32 %v442, %v2340
  %v2342 = vpop.f32.mrb[0].mxu0
  %v2343 = vadd.f32 %v446, %v2342
  %2344 = vmatprep.mubr.bf16.mxu0 %v1109
  %2345 = vmatmul.mubr.bf16.gmra.mrb[0].mxu0 %v1108
  %v2346 = vpop.f32.mrb[0].mxu0
  %v2347 = vadd.f32 %v442, %v2346
  %v2348 = vpop.f32.mrb[0].mxu0
  %v2349 = vadd.f32 %v446, %v2348
  %v2350 = vpop.f32.mrb[0].mxu0
  %v2351 = vadd.f32 %v442, %v2350
  %v2352 = vpop.f32.mrb[0].mxu0
  %v2353 = vadd.f32 %v446, %v2352
  %2354 = vmatprep.mubr.bf16.mxu0 %v1115
  %2355 = vmatmul.mubr.bf16.gmra.mrb[0].mxu0 %v1114
  %v2356 = vpop.f32.mrb[0].mxu0
  %v2357 = vadd.f32 %v442, %v2356
  %v2358 = vpop.f32.mrb[0].mxu0
  %v2359 = vadd.f32 %v446, %v2358
  %v2360 = vpop.f32.mrb[0].mxu0
  %v2361 = vadd.f32 %v442, %v2360
  %v2362 = vpop.f32.mrb[0].mxu0
  %v2363 = vadd.f32 %v446, %v2362
  %2364 = vmatprep.mubr.bf16.mxu0 %v1121
  %2365 = vmatmul.mubr.bf16.gmra.mrb[0].mxu0 %v1120
  %v2366 = vpop.f32.mrb[0].mxu0
  %v2367 = vadd.f32 %v442, %v2366
  %v2368 = vpop.f32.mrb[0].mxu0
  %v2369 = vadd.f32 %v446, %v2368
  %v2370 = vpop.f32.mrb[0].mxu0
  %v2371 = vadd.f32 %v442, %v2370
  %v2372 = vpop.f32.mrb[0].mxu0
  %v2373 = vadd.f32 %v446, %v2372
  %2374 = vmatprep.mubr.bf16.mxu0 %v1127
  %2375 = vmatmul.mubr.bf16.gmra.mrb[0].mxu0 %v1126
  %v2376 = vpop.f32.mrb[0].mxu0
  %v2377 = vadd.f32 %v442, %v2376
  %v2378 = vpop.f32.mrb[0].mxu0
  %v2379 = vadd.f32 %v446, %v2378
  %v2380 = vpop.f32.mrb[0].mxu0
  %v2381 = vadd.f32 %v442, %v2380
  %v2382 = vpop.f32.mrb[0].mxu0
  %v2383 = vadd.f32 %v446, %v2382
  %2384 = vmatprep.mubr.bf16.mxu0 %v1133
  %2385 = vmatmul.mubr.bf16.gmra.mrb[0].mxu0 %v1132
  %v2386 = vpop.f32.mrb[0].mxu0
  %v2387 = vadd.f32 %v442, %v2386
  %v2388 = vpop.f32.mrb[0].mxu0
  %v2389 = vadd.f32 %v446, %v2388
  %v2390 = vpop.f32.mrb[0].mxu0
  %v2391 = vadd.f32 %v442, %v2390
  %v2392 = vpop.f32.mrb[0].mxu0
  %v2393 = vadd.f32 %v446, %v2392
  %2394 = vmatprep.mubr.bf16.mxu0 %v1139
  %2395 = vmatmul.mubr.bf16.gmra.mrb[0].mxu0 %v1138
  %v2396 = vpop.f32.mrb[0].mxu0
  %v2397 = vadd.f32 %v442, %v2396
  %v2398 = vpop.f32.mrb[0].mxu0
  %v2399 = vadd.f32 %v446, %v2398
  %v2400 = vpop.f32.mrb[0].mxu0
  %v2401 = vadd.f32 %v442, %v2400
  %v2402 = vpop.f32.mrb[0].mxu0
  %v2403 = vadd.f32 %v446, %v2402
  %2404 = vmatprep.mubr.bf16.mxu0 %v1145
  %2405 = vmatmul.mubr.bf16.gmra.mrb[0].mxu0 %v1144
  %v2406 = vpop.f32.mrb[0].mxu0
  %v2407 = vadd.f32 %v442, %v2406
  %v2408 = vpop.f32.mrb[0].mxu0
  %v2409 = vadd.f32 %v446, %v2408
  %v2410 = vpop.f32.mrb[0].mxu0
  %v2411 = vadd.f32 %v442, %v2410
  %v2412 = vpop.f32.mrb[0].mxu0
  %v2413 = vadd.f32 %v446, %v2412
  %2414 = vmatprep.mubr.bf16.mxu0 %v1151
  %2415 = vmatmul.mubr.bf16.gmra.mrb[0].mxu0 %v1150
  %v2416 = vpop.f32.mrb[0].mxu0
  %v2417 = vadd.f32 %v442, %v2416
  %v2418 = vpop.f32.mrb[0].mxu0
  %v2419 = vadd.f32 %v446, %v2418
  %v2420 = vpop.f32.mrb[0].mxu0
  %v2421 = vadd.f32 %v442, %v2420
  %v2422 = vpop.f32.mrb[0].mxu0
  %v2423 = vadd.f32 %v446, %v2422
  %2424 = vmatprep.mubr.bf16.mxu0 %v1157
  %2425 = vmatmul.mubr.bf16.gmra.mrb[0].mxu0 %v1156
  %v2426 = vpop.f32.mrb[0].mxu0
  %v2427 = vadd.f32 %v442, %v2426
  %v2428 = vpop.f32.mrb[0].mxu0
  %v2429 = vadd.f32 %v446, %v2428
  %v2430 = vpop.f32.mrb[0].mxu0
  %v2431 = vadd.f32 %v442, %v2430
  %v2432 = vpop.f32.mrb[0].mxu0
  %v2433 = vadd.f32 %v446, %v2432
  %2434 = vmatprep.mubr.bf16.mxu0 %v1163
  %2435 = vmatmul.mubr.bf16.gmra.mrb[0].mxu0 %v1162
  %v2436 = vpop.f32.mrb[0].mxu0
  %v2437 = vadd.f32 %v442, %v2436
  %v2438 = vpop.f32.mrb[0].mxu0
  %v2439 = vadd.f32 %v446, %v2438
  %v2440 = vpop.f32.mrb[0].mxu0
  %v2441 = vadd.f32 %v442, %v2440
  %v2442 = vpop.f32.mrb[0].mxu0
  %v2443 = vadd.f32 %v446, %v2442
  %2444 = vmatprep.mubr.bf16.mxu0 %v1169
  %2445 = vmatmul.mubr.bf16.gmra.mrb[0].mxu0 %v1168
  %v2446 = vpop.f32.mrb[0].mxu0
  %v2447 = vadd.f32 %v442, %v2446
  %v2448 = vpop.f32.mrb[0].mxu0
  %v2449 = vadd.f32 %v446, %v2448
  %v2450 = vpop.f32.mrb[0].mxu0
  %v2451 = vadd.f32 %v442, %v2450
  %v2452 = vpop.f32.mrb[0].mxu0
  %v2453 = vadd.f32 %v446, %v2452
  %2454 = vmatprep.mubr.bf16.mxu0 %v1175
  %2455 = vmatmul.mubr.bf16.gmra.mrb[0].mxu0 %v1174
  %v2456 = vpop.f32.mrb[0].mxu0
  %v2457 = vadd.f32 %v442, %v2456
  %v2458 = vpop.f32.mrb[0].mxu0
  %v2459 = vadd.f32 %v446, %v2458
  %v2460 = vpop.f32.mrb[0].mxu0
  %v2461 = vadd.f32 %v442, %v2460
  %v2462 = vpop.f32.mrb[0].mxu0
  %v2463 = vadd.f32 %v446, %v2462
  %2464 = vmatprep.mubr.bf16.mxu0 %v1181
  %2465 = vmatmul.mubr.bf16.gmra.mrb[0].mxu0 %v1180
  %v2466 = vpop.f32.mrb[0].mxu0
  %v2467 = vadd.f32 %v442, %v2466
  %v2468 = vpop.f32.mrb[0].mxu0
  %v2469 = vadd.f32 %v446, %v2468
  %v2470 = vpop.f32.mrb[0].mxu0
  %v2471 = vadd.f32 %v442, %v2470
  %v2472 = vpop.f32.mrb[0].mxu0
  %v2473 = vadd.f32 %v446, %v2472
  %2474 = vmatprep.mubr.bf16.mxu0 %v1187
  %2475 = vmatmul.mubr.bf16.gmra.mrb[0].mxu0 %v1186
  %v2476 = vpop.f32.mrb[0].mxu0
  %v2477 = vadd.f32 %v442, %v2476
  %v2478 = vpop.f32.mrb[0].mxu0
  %v2479 = vadd.f32 %v446, %v2478
  %v2480 = vpop.f32.mrb[0].mxu0
  %v2481 = vadd.f32 %v442, %v2480
  %v2482 = vpop.f32.mrb[0].mxu0
  %v2483 = vadd.f32 %v446, %v2482
  %2484 = vmatprep.mubr.bf16.mxu0 %v1193
  %2485 = vmatmul.mubr.bf16.gmra.mrb[0].mxu0 %v1192
  %v2486 = vpop.f32.mrb[0].mxu0
  %v2487 = vadd.f32 %v442, %v2486
  %v2488 = vpop.f32.mrb[0].mxu0
  %v2489 = vadd.f32 %v446, %v2488
  %v2490 = vpop.f32.mrb[0].mxu0
  %v2491 = vadd.f32 %v442, %v2490
  %v2492 = vpop.f32.mrb[0].mxu0
  %v2493 = vadd.f32 %v446, %v2492
  %2494 = vmatprep.mubr.bf16.mxu0 %v1199
  %2495 = vmatmul.mubr.bf16.gmra.mrb[0].mxu0 %v1198
  %v2496 = vpop.f32.mrb[0].mxu0
  %v2497 = vadd.f32 %v442, %v2496
  %v2498 = vpop.f32.mrb[0].mxu0
  %v2499 = vadd.f32 %v446, %v2498
  %v2500 = vpop.f32.mrb[0].mxu0
  %v2501 = vadd.f32 %v442, %v2500
  %v2502 = vpop.f32.mrb[0].mxu0
  %v2503 = vadd.f32 %v446, %v2502
  %2504 = vmatprep.mubr.bf16.mxu0 %v1205
  %2505 = vmatmul.mubr.bf16.gmra.mrb[0].mxu0 %v1204
  %v2506 = vpop.f32.mrb[0].mxu0
  %v2507 = vadd.f32 %v442, %v2506
  %v2508 = vpop.f32.mrb[0].mxu0
  %v2509 = vadd.f32 %v446, %v2508
  %v2510 = vpop.f32.mrb[0].mxu0
  %v2511 = vadd.f32 %v442, %v2510
  %v2512 = vpop.f32.mrb[0].mxu0
  %v2513 = vadd.f32 %v446, %v2512
  %2514 = vmatprep.mubr.bf16.mxu0 %v1211
  %2515 = vmatmul.mubr.bf16.gmra.mrb[0].mxu0 %v1210
  %v2516 = vpop.f32.mrb[0].mxu0
  %v2517 = vadd.f32 %v442, %v2516
  %v2518 = vpop.f32.mrb[0].mxu0
  %v2519 = vadd.f32 %v446, %v2518
  %v2520 = vpop.f32.mrb[0].mxu0
  %v2521 = vadd.f32 %v442, %v2520
  %v2522 = vpop.f32.mrb[0].mxu0
  %v2523 = vadd.f32 %v446, %v2522
  %2524 = vmatprep.mubr.bf16.mxu0 %v1217
  %2525 = vmatmul.mubr.bf16.gmra.mrb[0].mxu0 %v1216
  %v2526 = vpop.f32.mrb[0].mxu0
  %v2527 = vadd.f32 %v442, %v2526
  %v2528 = vpop.f32.mrb[0].mxu0
  %v2529 = vadd.f32 %v446, %v2528
  %v2530 = vpop.f32.mrb[0].mxu0
  %v2531 = vadd.f32 %v442, %v2530
  %v2532 = vpop.f32.mrb[0].mxu0
  %v2533 = vadd.f32 %v446, %v2532
  %2534 = vdwg.mxu0
  %2535 = vmatprep.subr.bf16.mxu0 %v1943
  %2536 = vmatpush1.bf16.msra.mxu0 %v1942
  %2537 = vmatprep.subr.bf16.mxu0 %v1946
  %2538 = vmatpush1.bf16.msra.mxu0 %v1945
  %2539 = vmatprep.subr.bf16.mxu0 %v1949
  %2540 = vmatpush1.bf16.msra.mxu0 %v1948
  %2541 = vmatprep.subr.bf16.mxu0 %v1952
  %2542 = vmatpush1.bf16.msra.mxu0 %v1951
  %2543 = vmatprep.subr.bf16.mxu0 %v1955
  %2544 = vmatpush1.bf16.msra.mxu0 %v1954
  %2545 = vmatprep.subr.bf16.mxu0 %v1958
  %2546 = vmatpush1.bf16.msra.mxu0 %v1957
  %2547 = vmatprep.subr.bf16.mxu0 %v1961
  %2548 = vmatpush1.bf16.msra.mxu0 %v1960
  %2549 = vmatprep.subr.bf16.mxu0 %v1964
  %2550 = vmatpush1.bf16.msra.mxu0 %v1963
  %2551 = vmatprep.subr.bf16.mxu0 %v1967
  %2552 = vmatpush1.bf16.msra.mxu0 %v1966
  %2553 = vmatprep.subr.bf16.mxu0 %v1970
  %2554 = vmatpush1.bf16.msra.mxu0 %v1969
  %2555 = vmatprep.subr.bf16.mxu0 %v1973
  %2556 = vmatpush1.bf16.msra.mxu0 %v1972
  %2557 = vmatprep.subr.bf16.mxu0 %v1976
  %2558 = vmatpush1.bf16.msra.mxu0 %v1975
  %2559 = vmatprep.subr.bf16.mxu0 %v1979
  %2560 = vmatpush1.bf16.msra.mxu0 %v1978
  %2561 = vmatprep.subr.bf16.mxu0 %v1982
  %2562 = vmatpush1.bf16.msra.mxu0 %v1981
  %2563 = vmatprep.subr.bf16.mxu0 %v1985
  %2564 = vmatpush1.bf16.msra.mxu0 %v1984
  %2565 = vmatprep.subr.bf16.mxu0 %v1988
  %2566 = vmatpush1.bf16.msra.mxu0 %v1987
  %2567 = vmatprep.mubr.bf16.mxu0 %v1033
  %2568 = vmatmul.mubr.bf16.gmra.mrb[0].mxu0 %v1032
  %v2569 = vpop.f32.mrb[0].mxu0
  %v2570 = vadd.f32 %v2217, %v2569
  %v2571 = vpop.f32.mrb[0].mxu0
  %v2572 = vadd.f32 %v2219, %v2571
  %v2573 = vpop.f32.mrb[0].mxu0
  %v2574 = vadd.f32 %v2221, %v2573
  %v2575 = vpop.f32.mrb[0].mxu0
  %v2576 = vadd.f32 %v2223, %v2575
  %2577 = vmatprep.mubr.bf16.mxu0 %v1039
  %2578 = vmatmul.mubr.bf16.gmra.mrb[0].mxu0 %v1038
  %v2579 = vpop.f32.mrb[0].mxu0
  %v2580 = vadd.f32 %v2227, %v2579
  %v2581 = vpop.f32.mrb[0].mxu0
  %v2582 = vadd.f32 %v2229, %v2581
  %v2583 = vpop.f32.mrb[0].mxu0
  %v2584 = vadd.f32 %v2231, %v2583
  %v2585 = vpop.f32.mrb[0].mxu0
  %v2586 = vadd.f32 %v2233, %v2585
  %2587 = vmatprep.mubr.bf16.mxu0 %v1045
  %2588 = vmatmul.mubr.bf16.gmra.mrb[0].mxu0 %v1044
  %v2589 = vpop.f32.mrb[0].mxu0
  %v2590 = vadd.f32 %v2237, %v2589
  %v2591 = vpop.f32.mrb[0].mxu0
  %v2592 = vadd.f32 %v2239, %v2591
  %v2593 = vpop.f32.mrb[0].mxu0
  %v2594 = vadd.f32 %v2241, %v2593
  %v2595 = vpop.f32.mrb[0].mxu0
  %v2596 = vadd.f32 %v2243, %v2595
  %2597 = vmatprep.mubr.bf16.mxu0 %v1051
  %2598 = vmatmul.mubr.bf16.gmra.mrb[0].mxu0 %v1050
  %v2599 = vpop.f32.mrb[0].mxu0
  %v2600 = vadd.f32 %v2247, %v2599
  %v2601 = vpop.f32.mrb[0].mxu0
  %v2602 = vadd.f32 %v2249, %v2601
  %v2603 = vpop.f32.mrb[0].mxu0
  %v2604 = vadd.f32 %v2251, %v2603
  %v2605 = vpop.f32.mrb[0].mxu0
  %v2606 = vadd.f32 %v2253, %v2605
  %2607 = vmatprep.mubr.bf16.mxu0 %v1057
  %2608 = vmatmul.mubr.bf16.gmra.mrb[0].mxu0 %v1056
  %v2609 = vpop.f32.mrb[0].mxu0
  %v2610 = vadd.f32 %v2257, %v2609
  %v2611 = vpop.f32.mrb[0].mxu0
  %v2612 = vadd.f32 %v2259, %v2611
  %v2613 = vpop.f32.mrb[0].mxu0
  %v2614 = vadd.f32 %v2261, %v2613
  %v2615 = vpop.f32.mrb[0].mxu0
  %v2616 = vadd.f32 %v2263, %v2615
  %2617 = vmatprep.mubr.bf16.mxu0 %v1063
  %2618 = vmatmul.mubr.bf16.gmra.mrb[0].mxu0 %v1062
  %v2619 = vpop.f32.mrb[0].mxu0
  %v2620 = vadd.f32 %v2267, %v2619
  %v2621 = vpop.f32.mrb[0].mxu0
  %v2622 = vadd.f32 %v2269, %v2621
  %v2623 = vpop.f32.mrb[0].mxu0
  %v2624 = vadd.f32 %v2271, %v2623
  %v2625 = vpop.f32.mrb[0].mxu0
  %v2626 = vadd.f32 %v2273, %v2625
  %2627 = vmatprep.mubr.bf16.mxu0 %v1069
  %2628 = vmatmul.mubr.bf16.gmra.mrb[0].mxu0 %v1068
  %v2629 = vpop.f32.mrb[0].mxu0
  %v2630 = vadd.f32 %v2277, %v2629
  %v2631 = vpop.f32.mrb[0].mxu0
  %v2632 = vadd.f32 %v2279, %v2631
  %v2633 = vpop.f32.mrb[0].mxu0
  %v2634 = vadd.f32 %v2281, %v2633
  %v2635 = vpop.f32.mrb[0].mxu0
  %v2636 = vadd.f32 %v2283, %v2635
  %2637 = vmatprep.mubr.bf16.mxu0 %v1075
  %2638 = vmatmul.mubr.bf16.gmra.mrb[0].mxu0 %v1074
  %v2639 = vpop.f32.mrb[0].mxu0
  %v2640 = vadd.f32 %v2287, %v2639
  %v2641 = vpop.f32.mrb[0].mxu0
  %v2642 = vadd.f32 %v2289, %v2641
  %v2643 = vpop.f32.mrb[0].mxu0
  %v2644 = vadd.f32 %v2291, %v2643
  %v2645 = vpop.f32.mrb[0].mxu0
  %v2646 = vadd.f32 %v2293, %v2645
  %2647 = vmatprep.mubr.bf16.mxu0 %v1081
  %2648 = vmatmul.mubr.bf16.gmra.mrb[0].mxu0 %v1080
  %v2649 = vpop.f32.mrb[0].mxu0
  %v2650 = vadd.f32 %v2297, %v2649
  %v2651 = vpop.f32.mrb[0].mxu0
  %v2652 = vadd.f32 %v2299, %v2651
  %v2653 = vpop.f32.mrb[0].mxu0
  %v2654 = vadd.f32 %v2301, %v2653
  %v2655 = vpop.f32.mrb[0].mxu0
  %v2656 = vadd.f32 %v2303, %v2655
  %2657 = vmatprep.mubr.bf16.mxu0 %v1087
  %2658 = vmatmul.mubr.bf16.gmra.mrb[0].mxu0 %v1086
  %v2659 = vpop.f32.mrb[0].mxu0
  %v2660 = vadd.f32 %v2307, %v2659
  %v2661 = vpop.f32.mrb[0].mxu0
  %v2662 = vadd.f32 %v2309, %v2661
  %v2663 = vpop.f32.mrb[0].mxu0
  %v2664 = vadd.f32 %v2311, %v2663
  %v2665 = vpop.f32.mrb[0].mxu0
  %v2666 = vadd.f32 %v2313, %v2665
  %2667 = vmatprep.mubr.bf16.mxu0 %v1093
  %2668 = vmatmul.mubr.bf16.gmra.mrb[0].mxu0 %v1092
  %v2669 = vpop.f32.mrb[0].mxu0
  %v2670 = vadd.f32 %v2317, %v2669
  %v2671 = vpop.f32.mrb[0].mxu0
  %v2672 = vadd.f32 %v2319, %v2671
  %v2673 = vpop.f32.mrb[0].mxu0
  %v2674 = vadd.f32 %v2321, %v2673
  %v2675 = vpop.f32.mrb[0].mxu0
  %v2676 = vadd.f32 %v2323, %v2675
  %2677 = vmatprep.mubr.bf16.mxu0 %v1099
  %2678 = vmatmul.mubr.bf16.gmra.mrb[0].mxu0 %v1098
  %v2679 = vpop.f32.mrb[0].mxu0
  %v2680 = vadd.f32 %v2327, %v2679
  %v2681 = vpop.f32.mrb[0].mxu0
  %v2682 = vadd.f32 %v2329, %v2681
  %v2683 = vpop.f32.mrb[0].mxu0
  %v2684 = vadd.f32 %v2331, %v2683
  %v2685 = vpop.f32.mrb[0].mxu0
  %v2686 = vadd.f32 %v2333, %v2685
  %2687 = vmatprep.mubr.bf16.mxu0 %v1105
  %2688 = vmatmul.mubr.bf16.gmra.mrb[0].mxu0 %v1104
  %v2689 = vpop.f32.mrb[0].mxu0
  %v2690 = vadd.f32 %v2337, %v2689
  %v2691 = vpop.f32.mrb[0].mxu0
  %v2692 = vadd.f32 %v2339, %v2691
  %v2693 = vpop.f32.mrb[0].mxu0
  %v2694 = vadd.f32 %v2341, %v2693
  %v2695 = vpop.f32.mrb[0].mxu0
  %v2696 = vadd.f32 %v2343, %v2695
  %2697 = vmatprep.mubr.bf16.mxu0 %v1111
  %2698 = vmatmul.mubr.bf16.gmra.mrb[0].mxu0 %v1110
  %v2699 = vpop.f32.mrb[0].mxu0
  %v2700 = vadd.f32 %v2347, %v2699
  %v2701 = vpop.f32.mrb[0].mxu0
  %v2702 = vadd.f32 %v2349, %v2701
  %v2703 = vpop.f32.mrb[0].mxu0
  %v2704 = vadd.f32 %v2351, %v2703
  %v2705 = vpop.f32.mrb[0].mxu0
  %v2706 = vadd.f32 %v2353, %v2705
  %2707 = vmatprep.mubr.bf16.mxu0 %v1117
  %2708 = vmatmul.mubr.bf16.gmra.mrb[0].mxu0 %v1116
  %v2709 = vpop.f32.mrb[0].mxu0
  %v2710 = vadd.f32 %v2357, %v2709
  %v2711 = vpop.f32.mrb[0].mxu0
  %v2712 = vadd.f32 %v2359, %v2711
  %v2713 = vpop.f32.mrb[0].mxu0
  %v2714 = vadd.f32 %v2361, %v2713
  %v2715 = vpop.f32.mrb[0].mxu0
  %v2716 = vadd.f32 %v2363, %v2715
  %2717 = vmatprep.mubr.bf16.mxu0 %v1123
  %2718 = vmatmul.mubr.bf16.gmra.mrb[0].mxu0 %v1122
  %v2719 = vpop.f32.mrb[0].mxu0
  %v2720 = vadd.f32 %v2367, %v2719
  %v2721 = vpop.f32.mrb[0].mxu0
  %v2722 = vadd.f32 %v2369, %v2721
  %v2723 = vpop.f32.mrb[0].mxu0
  %v2724 = vadd.f32 %v2371, %v2723
  %v2725 = vpop.f32.mrb[0].mxu0
  %v2726 = vadd.f32 %v2373, %v2725
  %2727 = vmatprep.mubr.bf16.mxu0 %v1129
  %2728 = vmatmul.mubr.bf16.gmra.mrb[0].mxu0 %v1128
  %v2729 = vpop.f32.mrb[0].mxu0
  %v2730 = vadd.f32 %v2377, %v2729
  %v2731 = vpop.f32.mrb[0].mxu0
  %v2732 = vadd.f32 %v2379, %v2731
  %v2733 = vpop.f32.mrb[0].mxu0
  %v2734 = vadd.f32 %v2381, %v2733
  %v2735 = vpop.f32.mrb[0].mxu0
  %v2736 = vadd.f32 %v2383, %v2735
  %2737 = vmatprep.mubr.bf16.mxu0 %v1135
  %2738 = vmatmul.mubr.bf16.gmra.mrb[0].mxu0 %v1134
  %v2739 = vpop.f32.mrb[0].mxu0
  %v2740 = vadd.f32 %v2387, %v2739
  %v2741 = vpop.f32.mrb[0].mxu0
  %v2742 = vadd.f32 %v2389, %v2741
  %v2743 = vpop.f32.mrb[0].mxu0
  %v2744 = vadd.f32 %v2391, %v2743
  %v2745 = vpop.f32.mrb[0].mxu0
  %v2746 = vadd.f32 %v2393, %v2745
  %2747 = vmatprep.mubr.bf16.mxu0 %v1141
  %2748 = vmatmul.mubr.bf16.gmra.mrb[0].mxu0 %v1140
  %v2749 = vpop.f32.mrb[0].mxu0
  %v2750 = vadd.f32 %v2397, %v2749
  %v2751 = vpop.f32.mrb[0].mxu0
  %v2752 = vadd.f32 %v2399, %v2751
  %v2753 = vpop.f32.mrb[0].mxu0
  %v2754 = vadd.f32 %v2401, %v2753
  %v2755 = vpop.f32.mrb[0].mxu0
  %v2756 = vadd.f32 %v2403, %v2755
  %2757 = vmatprep.mubr.bf16.mxu0 %v1147
  %2758 = vmatmul.mubr.bf16.gmra.mrb[0].mxu0 %v1146
  %v2759 = vpop.f32.mrb[0].mxu0
  %v2760 = vadd.f32 %v2407, %v2759
  %v2761 = vpop.f32.mrb[0].mxu0
  %v2762 = vadd.f32 %v2409, %v2761
  %v2763 = vpop.f32.mrb[0].mxu0
  %v2764 = vadd.f32 %v2411, %v2763
  %v2765 = vpop.f32.mrb[0].mxu0
  %v2766 = vadd.f32 %v2413, %v2765
  %2767 = vmatprep.mubr.bf16.mxu0 %v1153
  %2768 = vmatmul.mubr.bf16.gmra.mrb[0].mxu0 %v1152
  %v2769 = vpop.f32.mrb[0].mxu0
  %v2770 = vadd.f32 %v2417, %v2769
  %v2771 = vpop.f32.mrb[0].mxu0
  %v2772 = vadd.f32 %v2419, %v2771
  %v2773 = vpop.f32.mrb[0].mxu0
  %v2774 = vadd.f32 %v2421, %v2773
  %v2775 = vpop.f32.mrb[0].mxu0
  %v2776 = vadd.f32 %v2423, %v2775
  %2777 = vmatprep.mubr.bf16.mxu0 %v1159
  %2778 = vmatmul.mubr.bf16.gmra.mrb[0].mxu0 %v1158
  %v2779 = vpop.f32.mrb[0].mxu0
  %v2780 = vadd.f32 %v2427, %v2779
  %v2781 = vpop.f32.mrb[0].mxu0
  %v2782 = vadd.f32 %v2429, %v2781
  %v2783 = vpop.f32.mrb[0].mxu0
  %v2784 = vadd.f32 %v2431, %v2783
  %v2785 = vpop.f32.mrb[0].mxu0
  %v2786 = vadd.f32 %v2433, %v2785
  %2787 = vmatprep.mubr.bf16.mxu0 %v1165
  %2788 = vmatmul.mubr.bf16.gmra.mrb[0].mxu0 %v1164
  %v2789 = vpop.f32.mrb[0].mxu0
  %v2790 = vadd.f32 %v2437, %v2789
  %v2791 = vpop.f32.mrb[0].mxu0
  %v2792 = vadd.f32 %v2439, %v2791
  %v2793 = vpop.f32.mrb[0].mxu0
  %v2794 = vadd.f32 %v2441, %v2793
  %v2795 = vpop.f32.mrb[0].mxu0
  %v2796 = vadd.f32 %v2443, %v2795
  %2797 = vmatprep.mubr.bf16.mxu0 %v1171
  %2798 = vmatmul.mubr.bf16.gmra.mrb[0].mxu0 %v1170
  %v2799 = vpop.f32.mrb[0].mxu0
  %v2800 = vadd.f32 %v2447, %v2799
  %v2801 = vpop.f32.mrb[0].mxu0
  %v2802 = vadd.f32 %v2449, %v2801
  %v2803 = vpop.f32.mrb[0].mxu0
  %v2804 = vadd.f32 %v2451, %v2803
  %v2805 = vpop.f32.mrb[0].mxu0
  %v2806 = vadd.f32 %v2453, %v2805
  %2807 = vmatprep.mubr.bf16.mxu0 %v1177
  %2808 = vmatmul.mubr.bf16.gmra.mrb[0].mxu0 %v1176
  %v2809 = vpop.f32.mrb[0].mxu0
  %v2810 = vadd.f32 %v2457, %v2809
  %v2811 = vpop.f32.mrb[0].mxu0
  %v2812 = vadd.f32 %v2459, %v2811
  %v2813 = vpop.f32.mrb[0].mxu0
  %v2814 = vadd.f32 %v2461, %v2813
  %v2815 = vpop.f32.mrb[0].mxu0
  %v2816 = vadd.f32 %v2463, %v2815
  %2817 = vmatprep.mubr.bf16.mxu0 %v1183
  %2818 = vmatmul.mubr.bf16.gmra.mrb[0].mxu0 %v1182
  %v2819 = vpop.f32.mrb[0].mxu0
  %v2820 = vadd.f32 %v2467, %v2819
  %v2821 = vpop.f32.mrb[0].mxu0
  %v2822 = vadd.f32 %v2469, %v2821
  %v2823 = vpop.f32.mrb[0].mxu0
  %v2824 = vadd.f32 %v2471, %v2823
  %v2825 = vpop.f32.mrb[0].mxu0
  %v2826 = vadd.f32 %v2473, %v2825
  %2827 = vmatprep.mubr.bf16.mxu0 %v1189
  %2828 = vmatmul.mubr.bf16.gmra.mrb[0].mxu0 %v1188
  %v2829 = vpop.f32.mrb[0].mxu0
  %v2830 = vadd.f32 %v2477, %v2829
  %v2831 = vpop.f32.mrb[0].mxu0
  %v2832 = vadd.f32 %v2479, %v2831
  %v2833 = vpop.f32.mrb[0].mxu0
  %v2834 = vadd.f32 %v2481, %v2833
  %v2835 = vpop.f32.mrb[0].mxu0
  %v2836 = vadd.f32 %v2483, %v2835
  %2837 = vmatprep.mubr.bf16.mxu0 %v1195
  %2838 = vmatmul.mubr.bf16.gmra.mrb[0].mxu0 %v1194
  %v2839 = vpop.f32.mrb[0].mxu0
  %v2840 = vadd.f32 %v2487, %v2839
  %v2841 = vpop.f32.mrb[0].mxu0
  %v2842 = vadd.f32 %v2489, %v2841
  %v2843 = vpop.f32.mrb[0].mxu0
  %v2844 = vadd.f32 %v2491, %v2843
  %v2845 = vpop.f32.mrb[0].mxu0
  %v2846 = vadd.f32 %v2493, %v2845
  %2847 = vmatprep.mubr.bf16.mxu0 %v1201
  %2848 = vmatmul.mubr.bf16.gmra.mrb[0].mxu0 %v1200
  %v2849 = vpop.f32.mrb[0].mxu0
  %v2850 = vadd.f32 %v2497, %v2849
  %v2851 = vpop.f32.mrb[0].mxu0
  %v2852 = vadd.f32 %v2499, %v2851
  %v2853 = vpop.f32.mrb[0].mxu0
  %v2854 = vadd.f32 %v2501, %v2853
  %v2855 = vpop.f32.mrb[0].mxu0
  %v2856 = vadd.f32 %v2503, %v2855
  %2857 = vmatprep.mubr.bf16.mxu0 %v1207
  %2858 = vmatmul.mubr.bf16.gmra.mrb[0].mxu0 %v1206
  %v2859 = vpop.f32.mrb[0].mxu0
  %v2860 = vadd.f32 %v2507, %v2859
  %v2861 = vpop.f32.mrb[0].mxu0
  %v2862 = vadd.f32 %v2509, %v2861
  %v2863 = vpop.f32.mrb[0].mxu0
  %v2864 = vadd.f32 %v2511, %v2863
  %v2865 = vpop.f32.mrb[0].mxu0
  %v2866 = vadd.f32 %v2513, %v2865
  %2867 = vmatprep.mubr.bf16.mxu0 %v1213
  %2868 = vmatmul.mubr.bf16.gmra.mrb[0].mxu0 %v1212
  %v2869 = vpop.f32.mrb[0].mxu0
  %v2870 = vadd.f32 %v2517, %v2869
  %v2871 = vpop.f32.mrb[0].mxu0
  %v2872 = vadd.f32 %v2519, %v2871
  %v2873 = vpop.f32.mrb[0].mxu0
  %v2874 = vadd.f32 %v2521, %v2873
  %v2875 = vpop.f32.mrb[0].mxu0
  %v2876 = vadd.f32 %v2523, %v2875
  %2877 = vmatprep.mubr.bf16.mxu0 %v1219
  %2878 = vmatmul.mubr.bf16.gmra.mrb[0].mxu0 %v1218
  %v2879 = vpop.f32.mrb[0].mxu0
  %v2880 = vadd.f32 %v2527, %v2879
  %v2881 = vpop.f32.mrb[0].mxu0
  %v2882 = vadd.f32 %v2529, %v2881
  %v2883 = vpop.f32.mrb[0].mxu0
  %v2884 = vadd.f32 %v2531, %v2883
  %v2885 = vpop.f32.mrb[0].mxu0
  %v2886 = vadd.f32 %v2533, %v2885
  %2887 = vdwg.mxu0
  %2888 = vmatprep.subr.bf16.mxu0 %v1991
  %2889 = vmatpush1.bf16.msra.mxu0 %v1990
  %2890 = vmatprep.subr.bf16.mxu0 %v1994
  %2891 = vmatpush1.bf16.msra.mxu0 %v1993
  %2892 = vmatprep.subr.bf16.mxu0 %v1997
  %2893 = vmatpush1.bf16.msra.mxu0 %v1996
  %2894 = vmatprep.subr.bf16.mxu0 %v2000
  %2895 = vmatpush1.bf16.msra.mxu0 %v1999
  %2896 = vmatprep.subr.bf16.mxu0 %v2003
  %2897 = vmatpush1.bf16.msra.mxu0 %v2002
  %2898 = vmatprep.subr.bf16.mxu0 %v2006
  %2899 = vmatpush1.bf16.msra.mxu0 %v2005
  %2900 = vmatprep.subr.bf16.mxu0 %v2009
  %2901 = vmatpush1.bf16.msra.mxu0 %v2008
  %2902 = vmatprep.subr.bf16.mxu0 %v2012
  %2903 = vmatpush1.bf16.msra.mxu0 %v2011
  %2904 = vmatprep.subr.bf16.mxu0 %v2015
  %2905 = vmatpush1.bf16.msra.mxu0 %v2014
  %2906 = vmatprep.subr.bf16.mxu0 %v2018
  %2907 = vmatpush1.bf16.msra.mxu0 %v2017
  %2908 = vmatprep.subr.bf16.mxu0 %v2021
  %2909 = vmatpush1.bf16.msra.mxu0 %v2020
  %2910 = vmatprep.subr.bf16.mxu0 %v2024
  %2911 = vmatpush1.bf16.msra.mxu0 %v2023
  %2912 = vmatprep.subr.bf16.mxu0 %v2027
  %2913 = vmatpush1.bf16.msra.mxu0 %v2026
  %2914 = vmatprep.subr.bf16.mxu0 %v2030
  %2915 = vmatpush1.bf16.msra.mxu0 %v2029
  %2916 = vmatprep.subr.bf16.mxu0 %v2033
  %2917 = vmatpush1.bf16.msra.mxu0 %v2032
  %2918 = vmatprep.subr.bf16.mxu0 %v2036
  %2919 = vmatpush1.bf16.msra.mxu0 %v2035
  %2920 = vmatprep.mubr.bf16.mxu0 %v1035
  %2921 = vmatmul.mubr.bf16.gmra.mrb[0].mxu0 %v1034
  %v2922 = vpop.f32.mrb[0].mxu0
  %v2923 = vadd.f32 %v2570, %v2922
  %v2924 = vpop.f32.mrb[0].mxu0
  %v2925 = vadd.f32 %v2572, %v2924
  %v2926 = vpop.f32.mrb[0].mxu0
  %v2927 = vadd.f32 %v2574, %v2926
  %v2928 = vpop.f32.mrb[0].mxu0
  %v2929 = vadd.f32 %v2576, %v2928
  %2930 = vmatprep.mubr.bf16.mxu0 %v1041
  %2931 = vmatmul.mubr.bf16.gmra.mrb[0].mxu0 %v1040
  %v2932 = vpop.f32.mrb[0].mxu0
  %v2933 = vadd.f32 %v2580, %v2932
  %v2934 = vpop.f32.mrb[0].mxu0
  %v2935 = vadd.f32 %v2582, %v2934
  %v2936 = vpop.f32.mrb[0].mxu0
  %v2937 = vadd.f32 %v2584, %v2936
  %v2938 = vpop.f32.mrb[0].mxu0
  %v2939 = vadd.f32 %v2586, %v2938
  %2940 = vmatprep.mubr.bf16.mxu0 %v1047
  %2941 = vmatmul.mubr.bf16.gmra.mrb[0].mxu0 %v1046
  %v2942 = vpop.f32.mrb[0].mxu0
  %v2943 = vadd.f32 %v2590, %v2942
  %v2944 = vpop.f32.mrb[0].mxu0
  %v2945 = vadd.f32 %v2592, %v2944
  %v2946 = vpop.f32.mrb[0].mxu0
  %v2947 = vadd.f32 %v2594, %v2946
  %v2948 = vpop.f32.mrb[0].mxu0
  %v2949 = vadd.f32 %v2596, %v2948
  %2950 = vmatprep.mubr.bf16.mxu0 %v1053
  %2951 = vmatmul.mubr.bf16.gmra.mrb[0].mxu0 %v1052
  %v2952 = vpop.f32.mrb[0].mxu0
  %v2953 = vadd.f32 %v2600, %v2952
  %v2954 = vpop.f32.mrb[0].mxu0
  %v2955 = vadd.f32 %v2602, %v2954
  %v2956 = vpop.f32.mrb[0].mxu0
  %v2957 = vadd.f32 %v2604, %v2956
  %v2958 = vpop.f32.mrb[0].mxu0
  %v2959 = vadd.f32 %v2606, %v2958
  %2960 = vmatprep.mubr.bf16.mxu0 %v1059
  %2961 = vmatmul.mubr.bf16.gmra.mrb[0].mxu0 %v1058
  %v2962 = vpop.f32.mrb[0].mxu0
  %v2963 = vadd.f32 %v2610, %v2962
  %v2964 = vpop.f32.mrb[0].mxu0
  %v2965 = vadd.f32 %v2612, %v2964
  %v2966 = vpop.f32.mrb[0].mxu0
  %v2967 = vadd.f32 %v2614, %v2966
  %v2968 = vpop.f32.mrb[0].mxu0
  %v2969 = vadd.f32 %v2616, %v2968
  %2970 = vmatprep.mubr.bf16.mxu0 %v1065
  %2971 = vmatmul.mubr.bf16.gmra.mrb[0].mxu0 %v1064
  %v2972 = vpop.f32.mrb[0].mxu0
  %v2973 = vadd.f32 %v2620, %v2972
  %v2974 = vpop.f32.mrb[0].mxu0
  %v2975 = vadd.f32 %v2622, %v2974
  %v2976 = vpop.f32.mrb[0].mxu0
  %v2977 = vadd.f32 %v2624, %v2976
  %v2978 = vpop.f32.mrb[0].mxu0
  %v2979 = vadd.f32 %v2626, %v2978
  %2980 = vmatprep.mubr.bf16.mxu0 %v1071
  %2981 = vmatmul.mubr.bf16.gmra.mrb[0].mxu0 %v1070
  %v2982 = vpop.f32.mrb[0].mxu0
  %v2983 = vadd.f32 %v2630, %v2982
  %v2984 = vpop.f32.mrb[0].mxu0
  %v2985 = vadd.f32 %v2632, %v2984
  %v2986 = vpop.f32.mrb[0].mxu0
  %v2987 = vadd.f32 %v2634, %v2986
  %v2988 = vpop.f32.mrb[0].mxu0
  %v2989 = vadd.f32 %v2636, %v2988
  %2990 = vmatprep.mubr.bf16.mxu0 %v1077
  %2991 = vmatmul.mubr.bf16.gmra.mrb[0].mxu0 %v1076
  %v2992 = vpop.f32.mrb[0].mxu0
  %v2993 = vadd.f32 %v2640, %v2992
  %v2994 = vpop.f32.mrb[0].mxu0
  %v2995 = vadd.f32 %v2642, %v2994
  %v2996 = vpop.f32.mrb[0].mxu0
  %v2997 = vadd.f32 %v2644, %v2996
  %v2998 = vpop.f32.mrb[0].mxu0
  %v2999 = vadd.f32 %v2646, %v2998
  %3000 = vmatprep.mubr.bf16.mxu0 %v1083
  %3001 = vmatmul.mubr.bf16.gmra.mrb[0].mxu0 %v1082
  %v3002 = vpop.f32.mrb[0].mxu0
  %v3003 = vadd.f32 %v2650, %v3002
  %v3004 = vpop.f32.mrb[0].mxu0
  %v3005 = vadd.f32 %v2652, %v3004
  %v3006 = vpop.f32.mrb[0].mxu0
  %v3007 = vadd.f32 %v2654, %v3006
  %v3008 = vpop.f32.mrb[0].mxu0
  %v3009 = vadd.f32 %v2656, %v3008
  %3010 = vmatprep.mubr.bf16.mxu0 %v1089
  %3011 = vmatmul.mubr.bf16.gmra.mrb[0].mxu0 %v1088
  %v3012 = vpop.f32.mrb[0].mxu0
  %v3013 = vadd.f32 %v2660, %v3012
  %v3014 = vpop.f32.mrb[0].mxu0
  %v3015 = vadd.f32 %v2662, %v3014
  %v3016 = vpop.f32.mrb[0].mxu0
  %v3017 = vadd.f32 %v2664, %v3016
  %v3018 = vpop.f32.mrb[0].mxu0
  %v3019 = vadd.f32 %v2666, %v3018
  %3020 = vmatprep.mubr.bf16.mxu0 %v1095
  %3021 = vmatmul.mubr.bf16.gmra.mrb[0].mxu0 %v1094
  %v3022 = vpop.f32.mrb[0].mxu0
  %v3023 = vadd.f32 %v2670, %v3022
  %v3024 = vpop.f32.mrb[0].mxu0
  %v3025 = vadd.f32 %v2672, %v3024
  %v3026 = vpop.f32.mrb[0].mxu0
  %v3027 = vadd.f32 %v2674, %v3026
  %v3028 = vpop.f32.mrb[0].mxu0
  %v3029 = vadd.f32 %v2676, %v3028
  %3030 = vmatprep.mubr.bf16.mxu0 %v1101
  %3031 = vmatmul.mubr.bf16.gmra.mrb[0].mxu0 %v1100
  %v3032 = vpop.f32.mrb[0].mxu0
  %v3033 = vadd.f32 %v2680, %v3032
  %v3034 = vpop.f32.mrb[0].mxu0
  %v3035 = vadd.f32 %v2682, %v3034
  %v3036 = vpop.f32.mrb[0].mxu0
  %v3037 = vadd.f32 %v2684, %v3036
  %v3038 = vpop.f32.mrb[0].mxu0
  %v3039 = vadd.f32 %v2686, %v3038
  %3040 = vmatprep.mubr.bf16.mxu0 %v1107
  %3041 = vmatmul.mubr.bf16.gmra.mrb[0].mxu0 %v1106
  %v3042 = vpop.f32.mrb[0].mxu0
  %v3043 = vadd.f32 %v2690, %v3042
  %v3044 = vpop.f32.mrb[0].mxu0
  %v3045 = vadd.f32 %v2692, %v3044
  %v3046 = vpop.f32.mrb[0].mxu0
  %v3047 = vadd.f32 %v2694, %v3046
  %v3048 = vpop.f32.mrb[0].mxu0
  %v3049 = vadd.f32 %v2696, %v3048
  %3050 = vmatprep.mubr.bf16.mxu0 %v1113
  %3051 = vmatmul.mubr.bf16.gmra.mrb[0].mxu0 %v1112
  %v3052 = vpop.f32.mrb[0].mxu0
  %v3053 = vadd.f32 %v2700, %v3052
  %v3054 = vpop.f32.mrb[0].mxu0
  %v3055 = vadd.f32 %v2702, %v3054
  %v3056 = vpop.f32.mrb[0].mxu0
  %v3057 = vadd.f32 %v2704, %v3056
  %v3058 = vpop.f32.mrb[0].mxu0
  %v3059 = vadd.f32 %v2706, %v3058
  %3060 = vmatprep.mubr.bf16.mxu0 %v1119
  %3061 = vmatmul.mubr.bf16.gmra.mrb[0].mxu0 %v1118
  %v3062 = vpop.f32.mrb[0].mxu0
  %v3063 = vadd.f32 %v2710, %v3062
  %v3064 = vpop.f32.mrb[0].mxu0
  %v3065 = vadd.f32 %v2712, %v3064
  %v3066 = vpop.f32.mrb[0].mxu0
  %v3067 = vadd.f32 %v2714, %v3066
  %v3068 = vpop.f32.mrb[0].mxu0
  %v3069 = vadd.f32 %v2716, %v3068
  %3070 = vmatprep.mubr.bf16.mxu0 %v1125
  %3071 = vmatmul.mubr.bf16.gmra.mrb[0].mxu0 %v1124
  %v3072 = vpop.f32.mrb[0].mxu0
  %v3073 = vadd.f32 %v2720, %v3072
  %v3074 = vpop.f32.mrb[0].mxu0
  %v3075 = vadd.f32 %v2722, %v3074
  %v3076 = vpop.f32.mrb[0].mxu0
  %v3077 = vadd.f32 %v2724, %v3076
  %v3078 = vpop.f32.mrb[0].mxu0
  %v3079 = vadd.f32 %v2726, %v3078
  %3080 = vmatprep.mubr.bf16.mxu0 %v1131
  %3081 = vmatmul.mubr.bf16.gmra.mrb[0].mxu0 %v1130
  %v3082 = vpop.f32.mrb[0].mxu0
  %v3083 = vadd.f32 %v2730, %v3082
  %v3084 = vpop.f32.mrb[0].mxu0
  %v3085 = vadd.f32 %v2732, %v3084
  %v3086 = vpop.f32.mrb[0].mxu0
  %v3087 = vadd.f32 %v2734, %v3086
  %v3088 = vpop.f32.mrb[0].mxu0
  %v3089 = vadd.f32 %v2736, %v3088
  %3090 = vmatprep.mubr.bf16.mxu0 %v1137
  %3091 = vmatmul.mubr.bf16.gmra.mrb[0].mxu0 %v1136
  %v3092 = vpop.f32.mrb[0].mxu0
  %v3093 = vadd.f32 %v2740, %v3092
  %v3094 = vpop.f32.mrb[0].mxu0
  %v3095 = vadd.f32 %v2742, %v3094
  %v3096 = vpop.f32.mrb[0].mxu0
  %v3097 = vadd.f32 %v2744, %v3096
  %v3098 = vpop.f32.mrb[0].mxu0
  %v3099 = vadd.f32 %v2746, %v3098
  %3100 = vmatprep.mubr.bf16.mxu0 %v1143
  %3101 = vmatmul.mubr.bf16.gmra.mrb[0].mxu0 %v1142
  %v3102 = vpop.f32.mrb[0].mxu0
  %v3103 = vadd.f32 %v2750, %v3102
  %v3104 = vpop.f32.mrb[0].mxu0
  %v3105 = vadd.f32 %v2752, %v3104
  %v3106 = vpop.f32.mrb[0].mxu0
  %v3107 = vadd.f32 %v2754, %v3106
  %v3108 = vpop.f32.mrb[0].mxu0
  %v3109 = vadd.f32 %v2756, %v3108
  %3110 = vmatprep.mubr.bf16.mxu0 %v1149
  %3111 = vmatmul.mubr.bf16.gmra.mrb[0].mxu0 %v1148
  %v3112 = vpop.f32.mrb[0].mxu0
  %v3113 = vadd.f32 %v2760, %v3112
  %v3114 = vpop.f32.mrb[0].mxu0
  %v3115 = vadd.f32 %v2762, %v3114
  %v3116 = vpop.f32.mrb[0].mxu0
  %v3117 = vadd.f32 %v2764, %v3116
  %v3118 = vpop.f32.mrb[0].mxu0
  %v3119 = vadd.f32 %v2766, %v3118
  %3120 = vmatprep.mubr.bf16.mxu0 %v1155
  %3121 = vmatmul.mubr.bf16.gmra.mrb[0].mxu0 %v1154
  %v3122 = vpop.f32.mrb[0].mxu0
  %v3123 = vadd.f32 %v2770, %v3122
  %v3124 = vpop.f32.mrb[0].mxu0
  %v3125 = vadd.f32 %v2772, %v3124
  %v3126 = vpop.f32.mrb[0].mxu0
  %v3127 = vadd.f32 %v2774, %v3126
  %v3128 = vpop.f32.mrb[0].mxu0
  %v3129 = vadd.f32 %v2776, %v3128
  %3130 = vmatprep.mubr.bf16.mxu0 %v1161
  %3131 = vmatmul.mubr.bf16.gmra.mrb[0].mxu0 %v1160
  %v3132 = vpop.f32.mrb[0].mxu0
  %v3133 = vadd.f32 %v2780, %v3132
  %v3134 = vpop.f32.mrb[0].mxu0
  %v3135 = vadd.f32 %v2782, %v3134
  %v3136 = vpop.f32.mrb[0].mxu0
  %v3137 = vadd.f32 %v2784, %v3136
  %v3138 = vpop.f32.mrb[0].mxu0
  %v3139 = vadd.f32 %v2786, %v3138
  %3140 = vmatprep.mubr.bf16.mxu0 %v1167
  %3141 = vmatmul.mubr.bf16.gmra.mrb[0].mxu0 %v1166
  %v3142 = vpop.f32.mrb[0].mxu0
  %v3143 = vadd.f32 %v2790, %v3142
  %v3144 = vpop.f32.mrb[0].mxu0
  %v3145 = vadd.f32 %v2792, %v3144
  %v3146 = vpop.f32.mrb[0].mxu0
  %v3147 = vadd.f32 %v2794, %v3146
  %v3148 = vpop.f32.mrb[0].mxu0
  %v3149 = vadd.f32 %v2796, %v3148
  %3150 = vmatprep.mubr.bf16.mxu0 %v1173
  %3151 = vmatmul.mubr.bf16.gmra.mrb[0].mxu0 %v1172
  %v3152 = vpop.f32.mrb[0].mxu0
  %v3153 = vadd.f32 %v2800, %v3152
  %v3154 = vpop.f32.mrb[0].mxu0
  %v3155 = vadd.f32 %v2802, %v3154
  %v3156 = vpop.f32.mrb[0].mxu0
  %v3157 = vadd.f32 %v2804, %v3156
  %v3158 = vpop.f32.mrb[0].mxu0
  %v3159 = vadd.f32 %v2806, %v3158
  %3160 = vmatprep.mubr.bf16.mxu0 %v1179
  %3161 = vmatmul.mubr.bf16.gmra.mrb[0].mxu0 %v1178
  %v3162 = vpop.f32.mrb[0].mxu0
  %v3163 = vadd.f32 %v2810, %v3162
  %v3164 = vpop.f32.mrb[0].mxu0
  %v3165 = vadd.f32 %v2812, %v3164
  %v3166 = vpop.f32.mrb[0].mxu0
  %v3167 = vadd.f32 %v2814, %v3166
  %v3168 = vpop.f32.mrb[0].mxu0
  %v3169 = vadd.f32 %v2816, %v3168
  %3170 = vmatprep.mubr.bf16.mxu0 %v1185
  %3171 = vmatmul.mubr.bf16.gmra.mrb[0].mxu0 %v1184
  %v3172 = vpop.f32.mrb[0].mxu0
  %v3173 = vadd.f32 %v2820, %v3172
  %v3174 = vpop.f32.mrb[0].mxu0
  %v3175 = vadd.f32 %v2822, %v3174
  %v3176 = vpop.f32.mrb[0].mxu0
  %v3177 = vadd.f32 %v2824, %v3176
  %v3178 = vpop.f32.mrb[0].mxu0
  %v3179 = vadd.f32 %v2826, %v3178
  %3180 = vmatprep.mubr.bf16.mxu0 %v1191
  %3181 = vmatmul.mubr.bf16.gmra.mrb[0].mxu0 %v1190
  %v3182 = vpop.f32.mrb[0].mxu0
  %v3183 = vadd.f32 %v2830, %v3182
  %v3184 = vpop.f32.mrb[0].mxu0
  %v3185 = vadd.f32 %v2832, %v3184
  %v3186 = vpop.f32.mrb[0].mxu0
  %v3187 = vadd.f32 %v2834, %v3186
  %v3188 = vpop.f32.mrb[0].mxu0
  %v3189 = vadd.f32 %v2836, %v3188
  %3190 = vmatprep.mubr.bf16.mxu0 %v1197
  %3191 = vmatmul.mubr.bf16.gmra.mrb[0].mxu0 %v1196
  %v3192 = vpop.f32.mrb[0].mxu0
  %v3193 = vadd.f32 %v2840, %v3192
  %v3194 = vpop.f32.mrb[0].mxu0
  %v3195 = vadd.f32 %v2842, %v3194
  %v3196 = vpop.f32.mrb[0].mxu0
  %v3197 = vadd.f32 %v2844, %v3196
  %v3198 = vpop.f32.mrb[0].mxu0
  %v3199 = vadd.f32 %v2846, %v3198
  %3200 = vmatprep.mubr.bf16.mxu0 %v1203
  %3201 = vmatmul.mubr.bf16.gmra.mrb[0].mxu0 %v1202
  %v3202 = vpop.f32.mrb[0].mxu0
  %v3203 = vadd.f32 %v2850, %v3202
  %v3204 = vpop.f32.mrb[0].mxu0
  %v3205 = vadd.f32 %v2852, %v3204
  %v3206 = vpop.f32.mrb[0].mxu0
  %v3207 = vadd.f32 %v2854, %v3206
  %v3208 = vpop.f32.mrb[0].mxu0
  %v3209 = vadd.f32 %v2856, %v3208
  %3210 = vmatprep.mubr.bf16.mxu0 %v1209
  %3211 = vmatmul.mubr.bf16.gmra.mrb[0].mxu0 %v1208
  %v3212 = vpop.f32.mrb[0].mxu0
  %v3213 = vadd.f32 %v2860, %v3212
  %v3214 = vpop.f32.mrb[0].mxu0
  %v3215 = vadd.f32 %v2862, %v3214
  %v3216 = vpop.f32.mrb[0].mxu0
  %v3217 = vadd.f32 %v2864, %v3216
  %v3218 = vpop.f32.mrb[0].mxu0
  %v3219 = vadd.f32 %v2866, %v3218
  %3220 = vmatprep.mubr.bf16.mxu0 %v1215
  %3221 = vmatmul.mubr.bf16.gmra.mrb[0].mxu0 %v1214
  %v3222 = vpop.f32.mrb[0].mxu0
  %v3223 = vadd.f32 %v2870, %v3222
  %v3224 = vpop.f32.mrb[0].mxu0
  %v3225 = vadd.f32 %v2872, %v3224
  %v3226 = vpop.f32.mrb[0].mxu0
  %v3227 = vadd.f32 %v2874, %v3226
  %v3228 = vpop.f32.mrb[0].mxu0
  %v3229 = vadd.f32 %v2876, %v3228
  %3230 = vmatprep.mubr.bf16.mxu0 %v1221
  %3231 = vmatmul.mubr.bf16.gmra.mrb[0].mxu0 %v1220
  %v3232 = vpop.f32.mrb[0].mxu0
  %v3233 = vadd.f32 %v2880, %v3232
  %v3234 = vpop.f32.mrb[0].mxu0
  %v3235 = vadd.f32 %v2882, %v3234
  %v3236 = vpop.f32.mrb[0].mxu0
  %v3237 = vadd.f32 %v2884, %v3236
  %v3238 = vpop.f32.mrb[0].mxu0
  %v3239 = vadd.f32 %v2886, %v3238
  %3240 = vdwg.mxu0
  %3241 = vmatprep.subr.bf16.mxu0 0
  %3242 = vmatpush1.bf16.msra.mxu0 %v1896
  %3243 = vmatprep.subr.bf16.mxu0 0
  %3244 = vmatpush1.bf16.msra.mxu0 %v1899
  %3245 = vmatprep.subr.bf16.mxu0 0
  %3246 = vmatpush1.bf16.msra.mxu0 %v1902
  %3247 = vmatprep.subr.bf16.mxu0 0
  %3248 = vmatpush1.bf16.msra.mxu0 %v1905
  %3249 = vmatprep.subr.bf16.mxu0 0
  %3250 = vmatpush1.bf16.msra.mxu0 %v1908
  %3251 = vmatprep.subr.bf16.mxu0 0
  %3252 = vmatpush1.bf16.msra.mxu0 %v1911
  %3253 = vmatprep.subr.bf16.mxu0 0
  %3254 = vmatpush1.bf16.msra.mxu0 %v1914
  %3255 = vmatprep.subr.bf16.mxu0 0
  %3256 = vmatpush1.bf16.msra.mxu0 %v1917
  %3257 = vmatprep.subr.bf16.mxu0 0
  %3258 = vmatpush1.bf16.msra.mxu0 %v1920
  %3259 = vmatprep.subr.bf16.mxu0 0
  %3260 = vmatpush1.bf16.msra.mxu0 %v1923
  %3261 = vmatprep.subr.bf16.mxu0 0
  %3262 = vmatpush1.bf16.msra.mxu0 %v1926
  %3263 = vmatprep.subr.bf16.mxu0 0
  %3264 = vmatpush1.bf16.msra.mxu0 %v1929
  %3265 = vmatprep.subr.bf16.mxu0 0
  %3266 = vmatpush1.bf16.msra.mxu0 %v1932
  %3267 = vmatprep.subr.bf16.mxu0 0
  %3268 = vmatpush1.bf16.msra.mxu0 %v1935
  %3269 = vmatprep.subr.bf16.mxu0 0
  %3270 = vmatpush1.bf16.msra.mxu0 %v1938
  %3271 = vmatprep.subr.bf16.mxu0 0
  %3272 = vmatpush1.bf16.msra.mxu0 %v1941
  %3273 = vmatprep.mubr.bf16.mxu0 %v1031
  %3274 = vmatmul.mubr.bf16.gmra.mrb[0].mxu0 %v1030
  %v3275 = vpop.f32.mrb[0].mxu0
  %v3276 = vadd.f32 %v450, %v3275
  %v3277 = vpop.f32.mrb[0].mxu0
  %v3278 = vpop.f32.mrb[0].mxu0
  %v3279 = vadd.f32 %v450, %v3278
  %v3280 = vpop.f32.mrb[0].mxu0
  %3281 = vmatprep.mubr.bf16.mxu0 %v1037
  %3282 = vmatmul.mubr.bf16.gmra.mrb[0].mxu0 %v1036
  %v3283 = vpop.f32.mrb[0].mxu0
  %v3284 = vadd.f32 %v450, %v3283
  %v3285 = vpop.f32.mrb[0].mxu0
  %v3286 = vpop.f32.mrb[0].mxu0
  %v3287 = vadd.f32 %v450, %v3286
  %v3288 = vpop.f32.mrb[0].mxu0
  %3289 = vmatprep.mubr.bf16.mxu0 %v1043
  %3290 = vmatmul.mubr.bf16.gmra.mrb[0].mxu0 %v1042
  %v3291 = vpop.f32.mrb[0].mxu0
  %v3292 = vadd.f32 %v450, %v3291
  %v3293 = vpop.f32.mrb[0].mxu0
  %v3294 = vpop.f32.mrb[0].mxu0
  %v3295 = vadd.f32 %v450, %v3294
  %v3296 = vpop.f32.mrb[0].mxu0
  %3297 = vmatprep.mubr.bf16.mxu0 %v1049
  %3298 = vmatmul.mubr.bf16.gmra.mrb[0].mxu0 %v1048
  %v3299 = vpop.f32.mrb[0].mxu0
  %v3300 = vadd.f32 %v450, %v3299
  %v3301 = vpop.f32.mrb[0].mxu0
  %v3302 = vpop.f32.mrb[0].mxu0
  %v3303 = vadd.f32 %v450, %v3302
  %v3304 = vpop.f32.mrb[0].mxu0
  %3305 = vmatprep.mubr.bf16.mxu0 %v1055
  %3306 = vmatmul.mubr.bf16.gmra.mrb[0].mxu0 %v1054
  %v3307 = vpop.f32.mrb[0].mxu0
  %v3308 = vadd.f32 %v450, %v3307
  %v3309 = vpop.f32.mrb[0].mxu0
  %v3310 = vpop.f32.mrb[0].mxu0
  %v3311 = vadd.f32 %v450, %v3310
  %v3312 = vpop.f32.mrb[0].mxu0
  %3313 = vmatprep.mubr.bf16.mxu0 %v1061
  %3314 = vmatmul.mubr.bf16.gmra.mrb[0].mxu0 %v1060
  %v3315 = vpop.f32.mrb[0].mxu0
  %v3316 = vadd.f32 %v450, %v3315
  %v3317 = vpop.f32.mrb[0].mxu0
  %v3318 = vpop.f32.mrb[0].mxu0
  %v3319 = vadd.f32 %v450, %v3318
  %v3320 = vpop.f32.mrb[0].mxu0
  %3321 = vmatprep.mubr.bf16.mxu0 %v1067
  %3322 = vmatmul.mubr.bf16.gmra.mrb[0].mxu0 %v1066
  %v3323 = vpop.f32.mrb[0].mxu0
  %v3324 = vadd.f32 %v450, %v3323
  %v3325 = vpop.f32.mrb[0].mxu0
  %v3326 = vpop.f32.mrb[0].mxu0
  %v3327 = vadd.f32 %v450, %v3326
  %v3328 = vpop.f32.mrb[0].mxu0
  %3329 = vmatprep.mubr.bf16.mxu0 %v1073
  %3330 = vmatmul.mubr.bf16.gmra.mrb[0].mxu0 %v1072
  %v3331 = vpop.f32.mrb[0].mxu0
  %v3332 = vadd.f32 %v450, %v3331
  %v3333 = vpop.f32.mrb[0].mxu0
  %v3334 = vpop.f32.mrb[0].mxu0
  %v3335 = vadd.f32 %v450, %v3334
  %v3336 = vpop.f32.mrb[0].mxu0
  %3337 = vmatprep.mubr.bf16.mxu0 %v1079
  %3338 = vmatmul.mubr.bf16.gmra.mrb[0].mxu0 %v1078
  %v3339 = vpop.f32.mrb[0].mxu0
  %v3340 = vadd.f32 %v450, %v3339
  %v3341 = vpop.f32.mrb[0].mxu0
  %v3342 = vpop.f32.mrb[0].mxu0
  %v3343 = vadd.f32 %v450, %v3342
  %v3344 = vpop.f32.mrb[0].mxu0
  %3345 = vmatprep.mubr.bf16.mxu0 %v1085
  %3346 = vmatmul.mubr.bf16.gmra.mrb[0].mxu0 %v1084
  %v3347 = vpop.f32.mrb[0].mxu0
  %v3348 = vadd.f32 %v450, %v3347
  %v3349 = vpop.f32.mrb[0].mxu0
  %v3350 = vpop.f32.mrb[0].mxu0
  %v3351 = vadd.f32 %v450, %v3350
  %v3352 = vpop.f32.mrb[0].mxu0
  %3353 = vmatprep.mubr.bf16.mxu0 %v1091
  %3354 = vmatmul.mubr.bf16.gmra.mrb[0].mxu0 %v1090
  %v3355 = vpop.f32.mrb[0].mxu0
  %v3356 = vadd.f32 %v450, %v3355
  %v3357 = vpop.f32.mrb[0].mxu0
  %v3358 = vpop.f32.mrb[0].mxu0
  %v3359 = vadd.f32 %v450, %v3358
  %v3360 = vpop.f32.mrb[0].mxu0
  %3361 = vmatprep.mubr.bf16.mxu0 %v1097
  %3362 = vmatmul.mubr.bf16.gmra.mrb[0].mxu0 %v1096
  %v3363 = vpop.f32.mrb[0].mxu0
  %v3364 = vadd.f32 %v450, %v3363
  %v3365 = vpop.f32.mrb[0].mxu0
  %v3366 = vpop.f32.mrb[0].mxu0
  %v3367 = vadd.f32 %v450, %v3366
  %v3368 = vpop.f32.mrb[0].mxu0
  %3369 = vmatprep.mubr.bf16.mxu0 %v1103
  %3370 = vmatmul.mubr.bf16.gmra.mrb[0].mxu0 %v1102
  %v3371 = vpop.f32.mrb[0].mxu0
  %v3372 = vadd.f32 %v450, %v3371
  %v3373 = vpop.f32.mrb[0].mxu0
  %v3374 = vpop.f32.mrb[0].mxu0
  %v3375 = vadd.f32 %v450, %v3374
  %v3376 = vpop.f32.mrb[0].mxu0
  %3377 = vmatprep.mubr.bf16.mxu0 %v1109
  %3378 = vmatmul.mubr.bf16.gmra.mrb[0].mxu0 %v1108
  %v3379 = vpop.f32.mrb[0].mxu0
  %v3380 = vadd.f32 %v450, %v3379
  %v3381 = vpop.f32.mrb[0].mxu0
  %v3382 = vpop.f32.mrb[0].mxu0
  %v3383 = vadd.f32 %v450, %v3382
  %v3384 = vpop.f32.mrb[0].mxu0
  %3385 = vmatprep.mubr.bf16.mxu0 %v1115
  %3386 = vmatmul.mubr.bf16.gmra.mrb[0].mxu0 %v1114
  %v3387 = vpop.f32.mrb[0].mxu0
  %v3388 = vadd.f32 %v450, %v3387
  %v3389 = vpop.f32.mrb[0].mxu0
  %v3390 = vpop.f32.mrb[0].mxu0
  %v3391 = vadd.f32 %v450, %v3390
  %v3392 = vpop.f32.mrb[0].mxu0
  %3393 = vmatprep.mubr.bf16.mxu0 %v1121
  %3394 = vmatmul.mubr.bf16.gmra.mrb[0].mxu0 %v1120
  %v3395 = vpop.f32.mrb[0].mxu0
  %v3396 = vadd.f32 %v450, %v3395
  %v3397 = vpop.f32.mrb[0].mxu0
  %v3398 = vpop.f32.mrb[0].mxu0
  %v3399 = vadd.f32 %v450, %v3398
  %v3400 = vpop.f32.mrb[0].mxu0
  %3401 = vmatprep.mubr.bf16.mxu0 %v1127
  %3402 = vmatmul.mubr.bf16.gmra.mrb[0].mxu0 %v1126
  %v3403 = vpop.f32.mrb[0].mxu0
  %v3404 = vadd.f32 %v450, %v3403
  %v3405 = vpop.f32.mrb[0].mxu0
  %v3406 = vpop.f32.mrb[0].mxu0
  %v3407 = vadd.f32 %v450, %v3406
  %v3408 = vpop.f32.mrb[0].mxu0
  %3409 = vmatprep.mubr.bf16.mxu0 %v1133
  %3410 = vmatmul.mubr.bf16.gmra.mrb[0].mxu0 %v1132
  %v3411 = vpop.f32.mrb[0].mxu0
  %v3412 = vadd.f32 %v450, %v3411
  %v3413 = vpop.f32.mrb[0].mxu0
  %v3414 = vpop.f32.mrb[0].mxu0
  %v3415 = vadd.f32 %v450, %v3414
  %v3416 = vpop.f32.mrb[0].mxu0
  %3417 = vmatprep.mubr.bf16.mxu0 %v1139
  %3418 = vmatmul.mubr.bf16.gmra.mrb[0].mxu0 %v1138
  %v3419 = vpop.f32.mrb[0].mxu0
  %v3420 = vadd.f32 %v450, %v3419
  %v3421 = vpop.f32.mrb[0].mxu0
  %v3422 = vpop.f32.mrb[0].mxu0
  %v3423 = vadd.f32 %v450, %v3422
  %v3424 = vpop.f32.mrb[0].mxu0
  %3425 = vmatprep.mubr.bf16.mxu0 %v1145
  %3426 = vmatmul.mubr.bf16.gmra.mrb[0].mxu0 %v1144
  %v3427 = vpop.f32.mrb[0].mxu0
  %v3428 = vadd.f32 %v450, %v3427
  %v3429 = vpop.f32.mrb[0].mxu0
  %v3430 = vpop.f32.mrb[0].mxu0
  %v3431 = vadd.f32 %v450, %v3430
  %v3432 = vpop.f32.mrb[0].mxu0
  %3433 = vmatprep.mubr.bf16.mxu0 %v1151
  %3434 = vmatmul.mubr.bf16.gmra.mrb[0].mxu0 %v1150
  %v3435 = vpop.f32.mrb[0].mxu0
  %v3436 = vadd.f32 %v450, %v3435
  %v3437 = vpop.f32.mrb[0].mxu0
  %v3438 = vpop.f32.mrb[0].mxu0
  %v3439 = vadd.f32 %v450, %v3438
  %v3440 = vpop.f32.mrb[0].mxu0
  %3441 = vmatprep.mubr.bf16.mxu0 %v1157
  %3442 = vmatmul.mubr.bf16.gmra.mrb[0].mxu0 %v1156
  %v3443 = vpop.f32.mrb[0].mxu0
  %v3444 = vadd.f32 %v450, %v3443
  %v3445 = vpop.f32.mrb[0].mxu0
  %v3446 = vpop.f32.mrb[0].mxu0
  %v3447 = vadd.f32 %v450, %v3446
  %v3448 = vpop.f32.mrb[0].mxu0
  %3449 = vmatprep.mubr.bf16.mxu0 %v1163
  %3450 = vmatmul.mubr.bf16.gmra.mrb[0].mxu0 %v1162
  %v3451 = vpop.f32.mrb[0].mxu0
  %v3452 = vadd.f32 %v450, %v3451
  %v3453 = vpop.f32.mrb[0].mxu0
  %v3454 = vpop.f32.mrb[0].mxu0
  %v3455 = vadd.f32 %v450, %v3454
  %v3456 = vpop.f32.mrb[0].mxu0
  %3457 = vmatprep.mubr.bf16.mxu0 %v1169
  %3458 = vmatmul.mubr.bf16.gmra.mrb[0].mxu0 %v1168
  %v3459 = vpop.f32.mrb[0].mxu0
  %v3460 = vadd.f32 %v450, %v3459
  %v3461 = vpop.f32.mrb[0].mxu0
  %v3462 = vpop.f32.mrb[0].mxu0
  %v3463 = vadd.f32 %v450, %v3462
  %v3464 = vpop.f32.mrb[0].mxu0
  %3465 = vmatprep.mubr.bf16.mxu0 %v1175
  %3466 = vmatmul.mubr.bf16.gmra.mrb[0].mxu0 %v1174
  %v3467 = vpop.f32.mrb[0].mxu0
  %v3468 = vadd.f32 %v450, %v3467
  %v3469 = vpop.f32.mrb[0].mxu0
  %v3470 = vpop.f32.mrb[0].mxu0
  %v3471 = vadd.f32 %v450, %v3470
  %v3472 = vpop.f32.mrb[0].mxu0
  %3473 = vmatprep.mubr.bf16.mxu0 %v1181
  %3474 = vmatmul.mubr.bf16.gmra.mrb[0].mxu0 %v1180
  %v3475 = vpop.f32.mrb[0].mxu0
  %v3476 = vadd.f32 %v450, %v3475
  %v3477 = vpop.f32.mrb[0].mxu0
  %v3478 = vpop.f32.mrb[0].mxu0
  %v3479 = vadd.f32 %v450, %v3478
  %v3480 = vpop.f32.mrb[0].mxu0
  %3481 = vmatprep.mubr.bf16.mxu0 %v1187
  %3482 = vmatmul.mubr.bf16.gmra.mrb[0].mxu0 %v1186
  %v3483 = vpop.f32.mrb[0].mxu0
  %v3484 = vadd.f32 %v450, %v3483
  %v3485 = vpop.f32.mrb[0].mxu0
  %v3486 = vpop.f32.mrb[0].mxu0
  %v3487 = vadd.f32 %v450, %v3486
  %v3488 = vpop.f32.mrb[0].mxu0
  %3489 = vmatprep.mubr.bf16.mxu0 %v1193
  %3490 = vmatmul.mubr.bf16.gmra.mrb[0].mxu0 %v1192
  %v3491 = vpop.f32.mrb[0].mxu0
  %v3492 = vadd.f32 %v450, %v3491
  %v3493 = vpop.f32.mrb[0].mxu0
  %v3494 = vpop.f32.mrb[0].mxu0
  %v3495 = vadd.f32 %v450, %v3494
  %v3496 = vpop.f32.mrb[0].mxu0
  %3497 = vmatprep.mubr.bf16.mxu0 %v1199
  %3498 = vmatmul.mubr.bf16.gmra.mrb[0].mxu0 %v1198
  %v3499 = vpop.f32.mrb[0].mxu0
  %v3500 = vadd.f32 %v450, %v3499
  %v3501 = vpop.f32.mrb[0].mxu0
  %v3502 = vpop.f32.mrb[0].mxu0
  %v3503 = vadd.f32 %v450, %v3502
  %v3504 = vpop.f32.mrb[0].mxu0
  %3505 = vmatprep.mubr.bf16.mxu0 %v1205
  %3506 = vmatmul.mubr.bf16.gmra.mrb[0].mxu0 %v1204
  %v3507 = vpop.f32.mrb[0].mxu0
  %v3508 = vadd.f32 %v450, %v3507
  %v3509 = vpop.f32.mrb[0].mxu0
  %v3510 = vpop.f32.mrb[0].mxu0
  %v3511 = vadd.f32 %v450, %v3510
  %v3512 = vpop.f32.mrb[0].mxu0
  %3513 = vmatprep.mubr.bf16.mxu0 %v1211
  %3514 = vmatmul.mubr.bf16.gmra.mrb[0].mxu0 %v1210
  %v3515 = vpop.f32.mrb[0].mxu0
  %v3516 = vadd.f32 %v450, %v3515
  %v3517 = vpop.f32.mrb[0].mxu0
  %v3518 = vpop.f32.mrb[0].mxu0
  %v3519 = vadd.f32 %v450, %v3518
  %v3520 = vpop.f32.mrb[0].mxu0
  %3521 = vmatprep.mubr.bf16.mxu0 %v1217
  %3522 = vmatmul.mubr.bf16.gmra.mrb[0].mxu0 %v1216
  %v3523 = vpop.f32.mrb[0].mxu0
  %v3524 = vadd.f32 %v450, %v3523
  %v3525 = vpop.f32.mrb[0].mxu0
  %v3526 = vpop.f32.mrb[0].mxu0
  %v3527 = vadd.f32 %v450, %v3526
  %v3528 = vpop.f32.mrb[0].mxu0
  %3529 = vdwg.mxu0
  %3530 = vmatprep.subr.bf16.mxu0 0
  %3531 = vmatpush1.bf16.msra.mxu0 %v1944
  %3532 = vmatprep.subr.bf16.mxu0 0
  %3533 = vmatpush1.bf16.msra.mxu0 %v1947
  %3534 = vmatprep.subr.bf16.mxu0 0
  %3535 = vmatpush1.bf16.msra.mxu0 %v1950
  %3536 = vmatprep.subr.bf16.mxu0 0
  %3537 = vmatpush1.bf16.msra.mxu0 %v1953
  %3538 = vmatprep.subr.bf16.mxu0 0
  %3539 = vmatpush1.bf16.msra.mxu0 %v1956
  %3540 = vmatprep.subr.bf16.mxu0 0
  %3541 = vmatpush1.bf16.msra.mxu0 %v1959
  %3542 = vmatprep.subr.bf16.mxu0 0
  %3543 = vmatpush1.bf16.msra.mxu0 %v1962
  %3544 = vmatprep.subr.bf16.mxu0 0
  %3545 = vmatpush1.bf16.msra.mxu0 %v1965
  %3546 = vmatprep.subr.bf16.mxu0 0
  %3547 = vmatpush1.bf16.msra.mxu0 %v1968
  %3548 = vmatprep.subr.bf16.mxu0 0
  %3549 = vmatpush1.bf16.msra.mxu0 %v1971
  %3550 = vmatprep.subr.bf16.mxu0 0
  %3551 = vmatpush1.bf16.msra.mxu0 %v1974
  %3552 = vmatprep.subr.bf16.mxu0 0
  %3553 = vmatpush1.bf16.msra.mxu0 %v1977
  %3554 = vmatprep.subr.bf16.mxu0 0
  %3555 = vmatpush1.bf16.msra.mxu0 %v1980
  %3556 = vmatprep.subr.bf16.mxu0 0
  %3557 = vmatpush1.bf16.msra.mxu0 %v1983
  %3558 = vmatprep.subr.bf16.mxu0 0
  %3559 = vmatpush1.bf16.msra.mxu0 %v1986
  %3560 = vmatprep.subr.bf16.mxu0 0
  %3561 = vmatpush1.bf16.msra.mxu0 %v1989
  %3562 = vmatprep.mubr.bf16.mxu0 %v1033
  %3563 = vmatmul.mubr.bf16.gmra.mrb[0].mxu0 %v1032
  %v3564 = vpop.f32.mrb[0].mxu0
  %v3565 = vadd.f32 %v3276, %v3564
  %v3566 = vpop.f32.mrb[0].mxu0
  %v3567 = vpop.f32.mrb[0].mxu0
  %v3568 = vadd.f32 %v3279, %v3567
  %v3569 = vpop.f32.mrb[0].mxu0
  %3570 = vmatprep.mubr.bf16.mxu0 %v1039
  %3571 = vmatmul.mubr.bf16.gmra.mrb[0].mxu0 %v1038
  %v3572 = vpop.f32.mrb[0].mxu0
  %v3573 = vadd.f32 %v3284, %v3572
  %v3574 = vpop.f32.mrb[0].mxu0
  %v3575 = vpop.f32.mrb[0].mxu0
  %v3576 = vadd.f32 %v3287, %v3575
  %v3577 = vpop.f32.mrb[0].mxu0
  %3578 = vmatprep.mubr.bf16.mxu0 %v1045
  %3579 = vmatmul.mubr.bf16.gmra.mrb[0].mxu0 %v1044
  %v3580 = vpop.f32.mrb[0].mxu0
  %v3581 = vadd.f32 %v3292, %v3580
  %v3582 = vpop.f32.mrb[0].mxu0
  %v3583 = vpop.f32.mrb[0].mxu0
  %v3584 = vadd.f32 %v3295, %v3583
  %v3585 = vpop.f32.mrb[0].mxu0
  %3586 = vmatprep.mubr.bf16.mxu0 %v1051
  %3587 = vmatmul.mubr.bf16.gmra.mrb[0].mxu0 %v1050
  %v3588 = vpop.f32.mrb[0].mxu0
  %v3589 = vadd.f32 %v3300, %v3588
  %v3590 = vpop.f32.mrb[0].mxu0
  %v3591 = vpop.f32.mrb[0].mxu0
  %v3592 = vadd.f32 %v3303, %v3591
  %v3593 = vpop.f32.mrb[0].mxu0
  %3594 = vmatprep.mubr.bf16.mxu0 %v1057
  %3595 = vmatmul.mubr.bf16.gmra.mrb[0].mxu0 %v1056
  %v3596 = vpop.f32.mrb[0].mxu0
  %v3597 = vadd.f32 %v3308, %v3596
  %v3598 = vpop.f32.mrb[0].mxu0
  %v3599 = vpop.f32.mrb[0].mxu0
  %v3600 = vadd.f32 %v3311, %v3599
  %v3601 = vpop.f32.mrb[0].mxu0
  %3602 = vmatprep.mubr.bf16.mxu0 %v1063
  %3603 = vmatmul.mubr.bf16.gmra.mrb[0].mxu0 %v1062
  %v3604 = vpop.f32.mrb[0].mxu0
  %v3605 = vadd.f32 %v3316, %v3604
  %v3606 = vpop.f32.mrb[0].mxu0
  %v3607 = vpop.f32.mrb[0].mxu0
  %v3608 = vadd.f32 %v3319, %v3607
  %v3609 = vpop.f32.mrb[0].mxu0
  %3610 = vmatprep.mubr.bf16.mxu0 %v1069
  %3611 = vmatmul.mubr.bf16.gmra.mrb[0].mxu0 %v1068
  %v3612 = vpop.f32.mrb[0].mxu0
  %v3613 = vadd.f32 %v3324, %v3612
  %v3614 = vpop.f32.mrb[0].mxu0
  %v3615 = vpop.f32.mrb[0].mxu0
  %v3616 = vadd.f32 %v3327, %v3615
  %v3617 = vpop.f32.mrb[0].mxu0
  %3618 = vmatprep.mubr.bf16.mxu0 %v1075
  %3619 = vmatmul.mubr.bf16.gmra.mrb[0].mxu0 %v1074
  %v3620 = vpop.f32.mrb[0].mxu0
  %v3621 = vadd.f32 %v3332, %v3620
  %v3622 = vpop.f32.mrb[0].mxu0
  %v3623 = vpop.f32.mrb[0].mxu0
  %v3624 = vadd.f32 %v3335, %v3623
  %v3625 = vpop.f32.mrb[0].mxu0
  %3626 = vmatprep.mubr.bf16.mxu0 %v1081
  %3627 = vmatmul.mubr.bf16.gmra.mrb[0].mxu0 %v1080
  %v3628 = vpop.f32.mrb[0].mxu0
  %v3629 = vadd.f32 %v3340, %v3628
  %v3630 = vpop.f32.mrb[0].mxu0
  %v3631 = vpop.f32.mrb[0].mxu0
  %v3632 = vadd.f32 %v3343, %v3631
  %v3633 = vpop.f32.mrb[0].mxu0
  %3634 = vmatprep.mubr.bf16.mxu0 %v1087
  %3635 = vmatmul.mubr.bf16.gmra.mrb[0].mxu0 %v1086
  %v3636 = vpop.f32.mrb[0].mxu0
  %v3637 = vadd.f32 %v3348, %v3636
  %v3638 = vpop.f32.mrb[0].mxu0
  %v3639 = vpop.f32.mrb[0].mxu0
  %v3640 = vadd.f32 %v3351, %v3639
  %v3641 = vpop.f32.mrb[0].mxu0
  %3642 = vmatprep.mubr.bf16.mxu0 %v1093
  %3643 = vmatmul.mubr.bf16.gmra.mrb[0].mxu0 %v1092
  %v3644 = vpop.f32.mrb[0].mxu0
  %v3645 = vadd.f32 %v3356, %v3644
  %v3646 = vpop.f32.mrb[0].mxu0
  %v3647 = vpop.f32.mrb[0].mxu0
  %v3648 = vadd.f32 %v3359, %v3647
  %v3649 = vpop.f32.mrb[0].mxu0
  %3650 = vmatprep.mubr.bf16.mxu0 %v1099
  %3651 = vmatmul.mubr.bf16.gmra.mrb[0].mxu0 %v1098
  %v3652 = vpop.f32.mrb[0].mxu0
  %v3653 = vadd.f32 %v3364, %v3652
  %v3654 = vpop.f32.mrb[0].mxu0
  %v3655 = vpop.f32.mrb[0].mxu0
  %v3656 = vadd.f32 %v3367, %v3655
  %v3657 = vpop.f32.mrb[0].mxu0
  %3658 = vmatprep.mubr.bf16.mxu0 %v1105
  %3659 = vmatmul.mubr.bf16.gmra.mrb[0].mxu0 %v1104
  %v3660 = vpop.f32.mrb[0].mxu0
  %v3661 = vadd.f32 %v3372, %v3660
  %v3662 = vpop.f32.mrb[0].mxu0
  %v3663 = vpop.f32.mrb[0].mxu0
  %v3664 = vadd.f32 %v3375, %v3663
  %v3665 = vpop.f32.mrb[0].mxu0
  %3666 = vmatprep.mubr.bf16.mxu0 %v1111
  %3667 = vmatmul.mubr.bf16.gmra.mrb[0].mxu0 %v1110
  %v3668 = vpop.f32.mrb[0].mxu0
  %v3669 = vadd.f32 %v3380, %v3668
  %v3670 = vpop.f32.mrb[0].mxu0
  %v3671 = vpop.f32.mrb[0].mxu0
  %v3672 = vadd.f32 %v3383, %v3671
  %v3673 = vpop.f32.mrb[0].mxu0
  %3674 = vmatprep.mubr.bf16.mxu0 %v1117
  %3675 = vmatmul.mubr.bf16.gmra.mrb[0].mxu0 %v1116
  %v3676 = vpop.f32.mrb[0].mxu0
  %v3677 = vadd.f32 %v3388, %v3676
  %v3678 = vpop.f32.mrb[0].mxu0
  %v3679 = vpop.f32.mrb[0].mxu0
  %v3680 = vadd.f32 %v3391, %v3679
  %v3681 = vpop.f32.mrb[0].mxu0
  %3682 = vmatprep.mubr.bf16.mxu0 %v1123
  %3683 = vmatmul.mubr.bf16.gmra.mrb[0].mxu0 %v1122
  %v3684 = vpop.f32.mrb[0].mxu0
  %v3685 = vadd.f32 %v3396, %v3684
  %v3686 = vpop.f32.mrb[0].mxu0
  %v3687 = vpop.f32.mrb[0].mxu0
  %v3688 = vadd.f32 %v3399, %v3687
  %v3689 = vpop.f32.mrb[0].mxu0
  %3690 = vmatprep.mubr.bf16.mxu0 %v1129
  %3691 = vmatmul.mubr.bf16.gmra.mrb[0].mxu0 %v1128
  %v3692 = vpop.f32.mrb[0].mxu0
  %v3693 = vadd.f32 %v3404, %v3692
  %v3694 = vpop.f32.mrb[0].mxu0
  %v3695 = vpop.f32.mrb[0].mxu0
  %v3696 = vadd.f32 %v3407, %v3695
  %v3697 = vpop.f32.mrb[0].mxu0
  %3698 = vmatprep.mubr.bf16.mxu0 %v1135
  %3699 = vmatmul.mubr.bf16.gmra.mrb[0].mxu0 %v1134
  %v3700 = vpop.f32.mrb[0].mxu0
  %v3701 = vadd.f32 %v3412, %v3700
  %v3702 = vpop.f32.mrb[0].mxu0
  %v3703 = vpop.f32.mrb[0].mxu0
  %v3704 = vadd.f32 %v3415, %v3703
  %v3705 = vpop.f32.mrb[0].mxu0
  %3706 = vmatprep.mubr.bf16.mxu0 %v1141
  %3707 = vmatmul.mubr.bf16.gmra.mrb[0].mxu0 %v1140
  %v3708 = vpop.f32.mrb[0].mxu0
  %v3709 = vadd.f32 %v3420, %v3708
  %v3710 = vpop.f32.mrb[0].mxu0
  %v3711 = vpop.f32.mrb[0].mxu0
  %v3712 = vadd.f32 %v3423, %v3711
  %v3713 = vpop.f32.mrb[0].mxu0
  %3714 = vmatprep.mubr.bf16.mxu0 %v1147
  %3715 = vmatmul.mubr.bf16.gmra.mrb[0].mxu0 %v1146
  %v3716 = vpop.f32.mrb[0].mxu0
  %v3717 = vadd.f32 %v3428, %v3716
  %v3718 = vpop.f32.mrb[0].mxu0
  %v3719 = vpop.f32.mrb[0].mxu0
  %v3720 = vadd.f32 %v3431, %v3719
  %v3721 = vpop.f32.mrb[0].mxu0
  %3722 = vmatprep.mubr.bf16.mxu0 %v1153
  %3723 = vmatmul.mubr.bf16.gmra.mrb[0].mxu0 %v1152
  %v3724 = vpop.f32.mrb[0].mxu0
  %v3725 = vadd.f32 %v3436, %v3724
  %v3726 = vpop.f32.mrb[0].mxu0
  %v3727 = vpop.f32.mrb[0].mxu0
  %v3728 = vadd.f32 %v3439, %v3727
  %v3729 = vpop.f32.mrb[0].mxu0
  %3730 = vmatprep.mubr.bf16.mxu0 %v1159
  %3731 = vmatmul.mubr.bf16.gmra.mrb[0].mxu0 %v1158
  %v3732 = vpop.f32.mrb[0].mxu0
  %v3733 = vadd.f32 %v3444, %v3732
  %v3734 = vpop.f32.mrb[0].mxu0
  %v3735 = vpop.f32.mrb[0].mxu0
  %v3736 = vadd.f32 %v3447, %v3735
  %v3737 = vpop.f32.mrb[0].mxu0
  %3738 = vmatprep.mubr.bf16.mxu0 %v1165
  %3739 = vmatmul.mubr.bf16.gmra.mrb[0].mxu0 %v1164
  %v3740 = vpop.f32.mrb[0].mxu0
  %v3741 = vadd.f32 %v3452, %v3740
  %v3742 = vpop.f32.mrb[0].mxu0
  %v3743 = vpop.f32.mrb[0].mxu0
  %v3744 = vadd.f32 %v3455, %v3743
  %v3745 = vpop.f32.mrb[0].mxu0
  %3746 = vmatprep.mubr.bf16.mxu0 %v1171
  %3747 = vmatmul.mubr.bf16.gmra.mrb[0].mxu0 %v1170
  %v3748 = vpop.f32.mrb[0].mxu0
  %v3749 = vadd.f32 %v3460, %v3748
  %v3750 = vpop.f32.mrb[0].mxu0
  %v3751 = vpop.f32.mrb[0].mxu0
  %v3752 = vadd.f32 %v3463, %v3751
  %v3753 = vpop.f32.mrb[0].mxu0
  %3754 = vmatprep.mubr.bf16.mxu0 %v1177
  %3755 = vmatmul.mubr.bf16.gmra.mrb[0].mxu0 %v1176
  %v3756 = vpop.f32.mrb[0].mxu0
  %v3757 = vadd.f32 %v3468, %v3756
  %v3758 = vpop.f32.mrb[0].mxu0
  %v3759 = vpop.f32.mrb[0].mxu0
  %v3760 = vadd.f32 %v3471, %v3759
  %v3761 = vpop.f32.mrb[0].mxu0
  %3762 = vmatprep.mubr.bf16.mxu0 %v1183
  %3763 = vmatmul.mubr.bf16.gmra.mrb[0].mxu0 %v1182
  %v3764 = vpop.f32.mrb[0].mxu0
  %v3765 = vadd.f32 %v3476, %v3764
  %v3766 = vpop.f32.mrb[0].mxu0
  %v3767 = vpop.f32.mrb[0].mxu0
  %v3768 = vadd.f32 %v3479, %v3767
  %v3769 = vpop.f32.mrb[0].mxu0
  %3770 = vmatprep.mubr.bf16.mxu0 %v1189
  %3771 = vmatmul.mubr.bf16.gmra.mrb[0].mxu0 %v1188
  %v3772 = vpop.f32.mrb[0].mxu0
  %v3773 = vadd.f32 %v3484, %v3772
  %v3774 = vpop.f32.mrb[0].mxu0
  %v3775 = vpop.f32.mrb[0].mxu0
  %v3776 = vadd.f32 %v3487, %v3775
  %v3777 = vpop.f32.mrb[0].mxu0
  %3778 = vmatprep.mubr.bf16.mxu0 %v1195
  %3779 = vmatmul.mubr.bf16.gmra.mrb[0].mxu0 %v1194
  %v3780 = vpop.f32.mrb[0].mxu0
  %v3781 = vadd.f32 %v3492, %v3780
  %v3782 = vpop.f32.mrb[0].mxu0
  %v3783 = vpop.f32.mrb[0].mxu0
  %v3784 = vadd.f32 %v3495, %v3783
  %v3785 = vpop.f32.mrb[0].mxu0
  %3786 = vmatprep.mubr.bf16.mxu0 %v1201
  %3787 = vmatmul.mubr.bf16.gmra.mrb[0].mxu0 %v1200
  %v3788 = vpop.f32.mrb[0].mxu0
  %v3789 = vadd.f32 %v3500, %v3788
  %v3790 = vpop.f32.mrb[0].mxu0
  %v3791 = vpop.f32.mrb[0].mxu0
  %v3792 = vadd.f32 %v3503, %v3791
  %v3793 = vpop.f32.mrb[0].mxu0
  %3794 = vmatprep.mubr.bf16.mxu0 %v1207
  %3795 = vmatmul.mubr.bf16.gmra.mrb[0].mxu0 %v1206
  %v3796 = vpop.f32.mrb[0].mxu0
  %v3797 = vadd.f32 %v3508, %v3796
  %v3798 = vpop.f32.mrb[0].mxu0
  %v3799 = vpop.f32.mrb[0].mxu0
  %v3800 = vadd.f32 %v3511, %v3799
  %v3801 = vpop.f32.mrb[0].mxu0
  %3802 = vmatprep.mubr.bf16.mxu0 %v1213
  %3803 = vmatmul.mubr.bf16.gmra.mrb[0].mxu0 %v1212
  %v3804 = vpop.f32.mrb[0].mxu0
  %v3805 = vadd.f32 %v3516, %v3804
  %v3806 = vpop.f32.mrb[0].mxu0
  %v3807 = vpop.f32.mrb[0].mxu0
  %v3808 = vadd.f32 %v3519, %v3807
  %v3809 = vpop.f32.mrb[0].mxu0
  %3810 = vmatprep.mubr.bf16.mxu0 %v1219
  %3811 = vmatmul.mubr.bf16.gmra.mrb[0].mxu0 %v1218
  %v3812 = vpop.f32.mrb[0].mxu0
  %v3813 = vadd.f32 %v3524, %v3812
  %v3814 = vpop.f32.mrb[0].mxu0
  %v3815 = vpop.f32.mrb[0].mxu0
  %v3816 = vadd.f32 %v3527, %v3815
  %v3817 = vpop.f32.mrb[0].mxu0
  %3818 = vdwg.mxu0
  %3819 = vmatprep.subr.bf16.mxu0 0
  %3820 = vmatpush1.bf16.msra.mxu0 %v1992
  %3821 = vmatprep.subr.bf16.mxu0 0
  %3822 = vmatpush1.bf16.msra.mxu0 %v1995
  %3823 = vmatprep.subr.bf16.mxu0 0
  %3824 = vmatpush1.bf16.msra.mxu0 %v1998
  %3825 = vmatprep.subr.bf16.mxu0 0
  %3826 = vmatpush1.bf16.msra.mxu0 %v2001
  %3827 = vmatprep.subr.bf16.mxu0 0
  %3828 = vmatpush1.bf16.msra.mxu0 %v2004
  %3829 = vmatprep.subr.bf16.mxu0 0
  %3830 = vmatpush1.bf16.msra.mxu0 %v2007
  %3831 = vmatprep.subr.bf16.mxu0 0
  %3832 = vmatpush1.bf16.msra.mxu0 %v2010
  %3833 = vmatprep.subr.bf16.mxu0 0
  %3834 = vmatpush1.bf16.msra.mxu0 %v2013
  %3835 = vmatprep.subr.bf16.mxu0 0
  %3836 = vmatpush1.bf16.msra.mxu0 %v2016
  %3837 = vmatprep.subr.bf16.mxu0 0
  %3838 = vmatpush1.bf16.msra.mxu0 %v2019
  %3839 = vmatprep.subr.bf16.mxu0 0
  %3840 = vmatpush1.bf16.msra.mxu0 %v2022
  %3841 = vmatprep.subr.bf16.mxu0 0
  %3842 = vmatpush1.bf16.msra.mxu0 %v2025
  %3843 = vmatprep.subr.bf16.mxu0 0
  %3844 = vmatpush1.bf16.msra.mxu0 %v2028
  %3845 = vmatprep.subr.bf16.mxu0 0
  %3846 = vmatpush1.bf16.msra.mxu0 %v2031
  %3847 = vmatprep.subr.bf16.mxu0 0
  %3848 = vmatpush1.bf16.msra.mxu0 %v2034
  %3849 = vmatprep.subr.bf16.mxu0 0
  %3850 = vmatpush1.bf16.msra.mxu0 %v2037
  %3851 = vmatprep.mubr.bf16.mxu0 %v1035
  %3852 = vmatmul.mubr.bf16.gmra.mrb[0].mxu0 %v1034
  %v3853 = vpop.f32.mrb[0].mxu0
  %v3854 = vadd.f32 %v3565, %v3853
  %v3855 = vpop.f32.mrb[0].mxu0
  %v3856 = vpop.f32.mrb[0].mxu0
  %v3857 = vadd.f32 %v3568, %v3856
  %v3858 = vpop.f32.mrb[0].mxu0
  %3859 = vmatprep.mubr.bf16.mxu0 %v1041
  %3860 = vmatmul.mubr.bf16.gmra.mrb[0].mxu0 %v1040
  %v3861 = vpop.f32.mrb[0].mxu0
  %v3862 = vadd.f32 %v3573, %v3861
  %v3863 = vpop.f32.mrb[0].mxu0
  %v3864 = vpop.f32.mrb[0].mxu0
  %v3865 = vadd.f32 %v3576, %v3864
  %v3866 = vpop.f32.mrb[0].mxu0
  %3867 = vmatprep.mubr.bf16.mxu0 %v1047
  %3868 = vmatmul.mubr.bf16.gmra.mrb[0].mxu0 %v1046
  %v3869 = vpop.f32.mrb[0].mxu0
  %v3870 = vadd.f32 %v3581, %v3869
  %v3871 = vpop.f32.mrb[0].mxu0
  %v3872 = vpop.f32.mrb[0].mxu0
  %v3873 = vadd.f32 %v3584, %v3872
  %v3874 = vpop.f32.mrb[0].mxu0
  %3875 = vmatprep.mubr.bf16.mxu0 %v1053
  %3876 = vmatmul.mubr.bf16.gmra.mrb[0].mxu0 %v1052
  %v3877 = vpop.f32.mrb[0].mxu0
  %v3878 = vadd.f32 %v3589, %v3877
  %v3879 = vpop.f32.mrb[0].mxu0
  %v3880 = vpop.f32.mrb[0].mxu0
  %v3881 = vadd.f32 %v3592, %v3880
  %v3882 = vpop.f32.mrb[0].mxu0
  %3883 = vmatprep.mubr.bf16.mxu0 %v1059
  %3884 = vmatmul.mubr.bf16.gmra.mrb[0].mxu0 %v1058
  %v3885 = vpop.f32.mrb[0].mxu0
  %v3886 = vadd.f32 %v3597, %v3885
  %v3887 = vpop.f32.mrb[0].mxu0
  %v3888 = vpop.f32.mrb[0].mxu0
  %v3889 = vadd.f32 %v3600, %v3888
  %v3890 = vpop.f32.mrb[0].mxu0
  %3891 = vmatprep.mubr.bf16.mxu0 %v1065
  %3892 = vmatmul.mubr.bf16.gmra.mrb[0].mxu0 %v1064
  %v3893 = vpop.f32.mrb[0].mxu0
  %v3894 = vadd.f32 %v3605, %v3893
  %v3895 = vpop.f32.mrb[0].mxu0
  %v3896 = vpop.f32.mrb[0].mxu0
  %v3897 = vadd.f32 %v3608, %v3896
  %v3898 = vpop.f32.mrb[0].mxu0
  %3899 = vmatprep.mubr.bf16.mxu0 %v1071
  %3900 = vmatmul.mubr.bf16.gmra.mrb[0].mxu0 %v1070
  %v3901 = vpop.f32.mrb[0].mxu0
  %v3902 = vadd.f32 %v3613, %v3901
  %v3903 = vpop.f32.mrb[0].mxu0
  %v3904 = vpop.f32.mrb[0].mxu0
  %v3905 = vadd.f32 %v3616, %v3904
  %v3906 = vpop.f32.mrb[0].mxu0
  %3907 = vmatprep.mubr.bf16.mxu0 %v1077
  %3908 = vmatmul.mubr.bf16.gmra.mrb[0].mxu0 %v1076
  %v3909 = vpop.f32.mrb[0].mxu0
  %v3910 = vadd.f32 %v3621, %v3909
  %v3911 = vpop.f32.mrb[0].mxu0
  %v3912 = vpop.f32.mrb[0].mxu0
  %v3913 = vadd.f32 %v3624, %v3912
  %v3914 = vpop.f32.mrb[0].mxu0
  %3915 = vmatprep.mubr.bf16.mxu0 %v1083
  %3916 = vmatmul.mubr.bf16.gmra.mrb[0].mxu0 %v1082
  %v3917 = vpop.f32.mrb[0].mxu0
  %v3918 = vadd.f32 %v3629, %v3917
  %v3919 = vpop.f32.mrb[0].mxu0
  %v3920 = vpop.f32.mrb[0].mxu0
  %v3921 = vadd.f32 %v3632, %v3920
  %v3922 = vpop.f32.mrb[0].mxu0
  %3923 = vmatprep.mubr.bf16.mxu0 %v1089
  %3924 = vmatmul.mubr.bf16.gmra.mrb[0].mxu0 %v1088
  %v3925 = vpop.f32.mrb[0].mxu0
  %v3926 = vadd.f32 %v3637, %v3925
  %v3927 = vpop.f32.mrb[0].mxu0
  %v3928 = vpop.f32.mrb[0].mxu0
  %v3929 = vadd.f32 %v3640, %v3928
  %v3930 = vpop.f32.mrb[0].mxu0
  %3931 = vmatprep.mubr.bf16.mxu0 %v1095
  %3932 = vmatmul.mubr.bf16.gmra.mrb[0].mxu0 %v1094
  %v3933 = vpop.f32.mrb[0].mxu0
  %v3934 = vadd.f32 %v3645, %v3933
  %v3935 = vpop.f32.mrb[0].mxu0
  %v3936 = vpop.f32.mrb[0].mxu0
  %v3937 = vadd.f32 %v3648, %v3936
  %v3938 = vpop.f32.mrb[0].mxu0
  %3939 = vmatprep.mubr.bf16.mxu0 %v1101
  %3940 = vmatmul.mubr.bf16.gmra.mrb[0].mxu0 %v1100
  %v3941 = vpop.f32.mrb[0].mxu0
  %v3942 = vadd.f32 %v3653, %v3941
  %v3943 = vpop.f32.mrb[0].mxu0
  %v3944 = vpop.f32.mrb[0].mxu0
  %v3945 = vadd.f32 %v3656, %v3944
  %v3946 = vpop.f32.mrb[0].mxu0
  %3947 = vmatprep.mubr.bf16.mxu0 %v1107
  %3948 = vmatmul.mubr.bf16.gmra.mrb[0].mxu0 %v1106
  %v3949 = vpop.f32.mrb[0].mxu0
  %v3950 = vadd.f32 %v3661, %v3949
  %v3951 = vpop.f32.mrb[0].mxu0
  %v3952 = vpop.f32.mrb[0].mxu0
  %v3953 = vadd.f32 %v3664, %v3952
  %v3954 = vpop.f32.mrb[0].mxu0
  %3955 = vmatprep.mubr.bf16.mxu0 %v1113
  %3956 = vmatmul.mubr.bf16.gmra.mrb[0].mxu0 %v1112
  %v3957 = vpop.f32.mrb[0].mxu0
  %v3958 = vadd.f32 %v3669, %v3957
  %v3959 = vpop.f32.mrb[0].mxu0
  %v3960 = vpop.f32.mrb[0].mxu0
  %v3961 = vadd.f32 %v3672, %v3960
  %v3962 = vpop.f32.mrb[0].mxu0
  %3963 = vmatprep.mubr.bf16.mxu0 %v1119
  %3964 = vmatmul.mubr.bf16.gmra.mrb[0].mxu0 %v1118
  %v3965 = vpop.f32.mrb[0].mxu0
  %v3966 = vadd.f32 %v3677, %v3965
  %v3967 = vpop.f32.mrb[0].mxu0
  %v3968 = vpop.f32.mrb[0].mxu0
  %v3969 = vadd.f32 %v3680, %v3968
  %v3970 = vpop.f32.mrb[0].mxu0
  %3971 = vmatprep.mubr.bf16.mxu0 %v1125
  %3972 = vmatmul.mubr.bf16.gmra.mrb[0].mxu0 %v1124
  %v3973 = vpop.f32.mrb[0].mxu0
  %v3974 = vadd.f32 %v3685, %v3973
  %v3975 = vpop.f32.mrb[0].mxu0
  %v3976 = vpop.f32.mrb[0].mxu0
  %v3977 = vadd.f32 %v3688, %v3976
  %v3978 = vpop.f32.mrb[0].mxu0
  %3979 = vmatprep.mubr.bf16.mxu0 %v1131
  %3980 = vmatmul.mubr.bf16.gmra.mrb[0].mxu0 %v1130
  %v3981 = vpop.f32.mrb[0].mxu0
  %v3982 = vadd.f32 %v3693, %v3981
  %v3983 = vpop.f32.mrb[0].mxu0
  %v3984 = vpop.f32.mrb[0].mxu0
  %v3985 = vadd.f32 %v3696, %v3984
  %v3986 = vpop.f32.mrb[0].mxu0
  %3987 = vmatprep.mubr.bf16.mxu0 %v1137
  %3988 = vmatmul.mubr.bf16.gmra.mrb[0].mxu0 %v1136
  %v3989 = vpop.f32.mrb[0].mxu0
  %v3990 = vadd.f32 %v3701, %v3989
  %v3991 = vpop.f32.mrb[0].mxu0
  %v3992 = vpop.f32.mrb[0].mxu0
  %v3993 = vadd.f32 %v3704, %v3992
  %v3994 = vpop.f32.mrb[0].mxu0
  %3995 = vmatprep.mubr.bf16.mxu0 %v1143
  %3996 = vmatmul.mubr.bf16.gmra.mrb[0].mxu0 %v1142
  %v3997 = vpop.f32.mrb[0].mxu0
  %v3998 = vadd.f32 %v3709, %v3997
  %v3999 = vpop.f32.mrb[0].mxu0
  %v4000 = vpop.f32.mrb[0].mxu0
  %v4001 = vadd.f32 %v3712, %v4000
  %v4002 = vpop.f32.mrb[0].mxu0
  %4003 = vmatprep.mubr.bf16.mxu0 %v1149
  %4004 = vmatmul.mubr.bf16.gmra.mrb[0].mxu0 %v1148
  %v4005 = vpop.f32.mrb[0].mxu0
  %v4006 = vadd.f32 %v3717, %v4005
  %v4007 = vpop.f32.mrb[0].mxu0
  %v4008 = vpop.f32.mrb[0].mxu0
  %v4009 = vadd.f32 %v3720, %v4008
  %v4010 = vpop.f32.mrb[0].mxu0
  %4011 = vmatprep.mubr.bf16.mxu0 %v1155
  %4012 = vmatmul.mubr.bf16.gmra.mrb[0].mxu0 %v1154
  %v4013 = vpop.f32.mrb[0].mxu0
  %v4014 = vadd.f32 %v3725, %v4013
  %v4015 = vpop.f32.mrb[0].mxu0
  %v4016 = vpop.f32.mrb[0].mxu0
  %v4017 = vadd.f32 %v3728, %v4016
  %v4018 = vpop.f32.mrb[0].mxu0
  %4019 = vmatprep.mubr.bf16.mxu0 %v1161
  %4020 = vmatmul.mubr.bf16.gmra.mrb[0].mxu0 %v1160
  %v4021 = vpop.f32.mrb[0].mxu0
  %v4022 = vadd.f32 %v3733, %v4021
  %v4023 = vpop.f32.mrb[0].mxu0
  %v4024 = vpop.f32.mrb[0].mxu0
  %v4025 = vadd.f32 %v3736, %v4024
  %v4026 = vpop.f32.mrb[0].mxu0
  %4027 = vmatprep.mubr.bf16.mxu0 %v1167
  %4028 = vmatmul.mubr.bf16.gmra.mrb[0].mxu0 %v1166
  %v4029 = vpop.f32.mrb[0].mxu0
  %v4030 = vadd.f32 %v3741, %v4029
  %v4031 = vpop.f32.mrb[0].mxu0
  %v4032 = vpop.f32.mrb[0].mxu0
  %v4033 = vadd.f32 %v3744, %v4032
  %v4034 = vpop.f32.mrb[0].mxu0
  %4035 = vmatprep.mubr.bf16.mxu0 %v1173
  %4036 = vmatmul.mubr.bf16.gmra.mrb[0].mxu0 %v1172
  %v4037 = vpop.f32.mrb[0].mxu0
  %v4038 = vadd.f32 %v3749, %v4037
  %v4039 = vpop.f32.mrb[0].mxu0
  %v4040 = vpop.f32.mrb[0].mxu0
  %v4041 = vadd.f32 %v3752, %v4040
  %v4042 = vpop.f32.mrb[0].mxu0
  %4043 = vmatprep.mubr.bf16.mxu0 %v1179
  %4044 = vmatmul.mubr.bf16.gmra.mrb[0].mxu0 %v1178
  %v4045 = vpop.f32.mrb[0].mxu0
  %v4046 = vadd.f32 %v3757, %v4045
  %v4047 = vpop.f32.mrb[0].mxu0
  %v4048 = vpop.f32.mrb[0].mxu0
  %v4049 = vadd.f32 %v3760, %v4048
  %v4050 = vpop.f32.mrb[0].mxu0
  %4051 = vmatprep.mubr.bf16.mxu0 %v1185
  %4052 = vmatmul.mubr.bf16.gmra.mrb[0].mxu0 %v1184
  %v4053 = vpop.f32.mrb[0].mxu0
  %v4054 = vadd.f32 %v3765, %v4053
  %v4055 = vpop.f32.mrb[0].mxu0
  %v4056 = vpop.f32.mrb[0].mxu0
  %v4057 = vadd.f32 %v3768, %v4056
  %v4058 = vpop.f32.mrb[0].mxu0
  %4059 = vmatprep.mubr.bf16.mxu0 %v1191
  %4060 = vmatmul.mubr.bf16.gmra.mrb[0].mxu0 %v1190
  %v4061 = vpop.f32.mrb[0].mxu0
  %v4062 = vadd.f32 %v3773, %v4061
  %v4063 = vpop.f32.mrb[0].mxu0
  %v4064 = vpop.f32.mrb[0].mxu0
  %v4065 = vadd.f32 %v3776, %v4064
  %v4066 = vpop.f32.mrb[0].mxu0
  %4067 = vmatprep.mubr.bf16.mxu0 %v1197
  %4068 = vmatmul.mubr.bf16.gmra.mrb[0].mxu0 %v1196
  %v4069 = vpop.f32.mrb[0].mxu0
  %v4070 = vadd.f32 %v3781, %v4069
  %v4071 = vpop.f32.mrb[0].mxu0
  %v4072 = vpop.f32.mrb[0].mxu0
  %v4073 = vadd.f32 %v3784, %v4072
  %v4074 = vpop.f32.mrb[0].mxu0
  %4075 = vmatprep.mubr.bf16.mxu0 %v1203
  %4076 = vmatmul.mubr.bf16.gmra.mrb[0].mxu0 %v1202
  %v4077 = vpop.f32.mrb[0].mxu0
  %v4078 = vadd.f32 %v3789, %v4077
  %v4079 = vpop.f32.mrb[0].mxu0
  %v4080 = vpop.f32.mrb[0].mxu0
  %v4081 = vadd.f32 %v3792, %v4080
  %v4082 = vpop.f32.mrb[0].mxu0
  %4083 = vmatprep.mubr.bf16.mxu0 %v1209
  %4084 = vmatmul.mubr.bf16.gmra.mrb[0].mxu0 %v1208
  %v4085 = vpop.f32.mrb[0].mxu0
  %v4086 = vadd.f32 %v3797, %v4085
  %v4087 = vpop.f32.mrb[0].mxu0
  %v4088 = vpop.f32.mrb[0].mxu0
  %v4089 = vadd.f32 %v3800, %v4088
  %v4090 = vpop.f32.mrb[0].mxu0
  %4091 = vmatprep.mubr.bf16.mxu0 %v1215
  %4092 = vmatmul.mubr.bf16.gmra.mrb[0].mxu0 %v1214
  %v4093 = vpop.f32.mrb[0].mxu0
  %v4094 = vadd.f32 %v3805, %v4093
  %v4095 = vpop.f32.mrb[0].mxu0
  %v4096 = vpop.f32.mrb[0].mxu0
  %v4097 = vadd.f32 %v3808, %v4096
  %v4098 = vpop.f32.mrb[0].mxu0
  %4099 = vmatprep.mubr.bf16.mxu0 %v1221
  %4100 = vmatmul.mubr.bf16.gmra.mrb[0].mxu0 %v1220
  %v4101 = vpop.f32.mrb[0].mxu0
  %v4102 = vadd.f32 %v3813, %v4101
  %v4103 = vpop.f32.mrb[0].mxu0
  %v4104 = vpop.f32.mrb[0].mxu0
  %v4105 = vadd.f32 %v3816, %v4104
  %v4106 = vpop.f32.mrb[0].mxu0
  %4107 = vdwg.mxu0
  %v4108 = vmax.f32 %v2923, 0.0
  %v4109 = vmax.f32 %v2925, 0.0
  %v4110 = vmax.f32 %v3854, 0.0
  %v4111 = vmax.f32 %v2927, 0.0
  %v4112 = vmax.f32 %v2929, 0.0
  %v4113 = vmax.f32 %v3857, 0.0
  %v4114 = vmax.f32 %v2933, 0.0
  %v4115 = vmax.f32 %v2935, 0.0
  %v4116 = vmax.f32 %v3862, 0.0
  %v4117 = vmax.f32 %v2937, 0.0
  %v4118 = vmax.f32 %v2939, 0.0
  %v4119 = vmax.f32 %v3865, 0.0
  %v4120 = vmax.f32 %v2943, 0.0
  %v4121 = vmax.f32 %v2945, 0.0
  %v4122 = vmax.f32 %v3870, 0.0
  %v4123 = vmax.f32 %v2947, 0.0
  %v4124 = vmax.f32 %v2949, 0.0
  %v4125 = vmax.f32 %v3873, 0.0
  %v4126 = vmax.f32 %v2953, 0.0
  %v4127 = vmax.f32 %v2955, 0.0
  %v4128 = vmax.f32 %v3878, 0.0
  %v4129 = vmax.f32 %v2957, 0.0
  %v4130 = vmax.f32 %v2959, 0.0
  %v4131 = vmax.f32 %v3881, 0.0
  %v4132 = vmax.f32 %v2963, 0.0
  %v4133 = vmax.f32 %v2965, 0.0
  %v4134 = vmax.f32 %v3886, 0.0
  %v4135 = vmax.f32 %v2967, 0.0
  %v4136 = vmax.f32 %v2969, 0.0
  %v4137 = vmax.f32 %v3889, 0.0
  %v4138 = vmax.f32 %v2973, 0.0
  %v4139 = vmax.f32 %v2975, 0.0
  %v4140 = vmax.f32 %v3894, 0.0
  %v4141 = vmax.f32 %v2977, 0.0
  %v4142 = vmax.f32 %v2979, 0.0
  %v4143 = vmax.f32 %v3897, 0.0
  %v4144 = vmax.f32 %v2983, 0.0
  %v4145 = vmax.f32 %v2985, 0.0
  %v4146 = vmax.f32 %v3902, 0.0
  %v4147 = vmax.f32 %v2987, 0.0
  %v4148 = vmax.f32 %v2989, 0.0
  %v4149 = vmax.f32 %v3905, 0.0
  %v4150 = vmax.f32 %v2993, 0.0
  %v4151 = vmax.f32 %v2995, 0.0
  %v4152 = vmax.f32 %v3910, 0.0
  %v4153 = vmax.f32 %v2997, 0.0
  %v4154 = vmax.f32 %v2999, 0.0
  %v4155 = vmax.f32 %v3913, 0.0
  %v4156 = vmax.f32 %v3003, 0.0
  %v4157 = vmax.f32 %v3005, 0.0
  %v4158 = vmax.f32 %v3918, 0.0
  %v4159 = vmax.f32 %v3007, 0.0
  %v4160 = vmax.f32 %v3009, 0.0
  %v4161 = vmax.f32 %v3921, 0.0
  %v4162 = vmax.f32 %v3013, 0.0
  %v4163 = vmax.f32 %v3015, 0.0
  %v4164 = vmax.f32 %v3926, 0.0
  %v4165 = vmax.f32 %v3017, 0.0
  %v4166 = vmax.f32 %v3019, 0.0
  %v4167 = vmax.f32 %v3929, 0.0
  %v4168 = vmax.f32 %v3023, 0.0
  %v4169 = vmax.f32 %v3025, 0.0
  %v4170 = vmax.f32 %v3934, 0.0
  %v4171 = vmax.f32 %v3027, 0.0
  %v4172 = vmax.f32 %v3029, 0.0
  %v4173 = vmax.f32 %v3937, 0.0
  %v4174 = vmax.f32 %v3033, 0.0
  %v4175 = vmax.f32 %v3035, 0.0
  %v4176 = vmax.f32 %v3942, 0.0
  %v4177 = vmax.f32 %v3037, 0.0
  %v4178 = vmax.f32 %v3039, 0.0
  %v4179 = vmax.f32 %v3945, 0.0
  %v4180 = vmax.f32 %v3043, 0.0
  %v4181 = vmax.f32 %v3045, 0.0
  %v4182 = vmax.f32 %v3950, 0.0
  %v4183 = vmax.f32 %v3047, 0.0
  %v4184 = vmax.f32 %v3049, 0.0
  %v4185 = vmax.f32 %v3953, 0.0
  %v4186 = vmax.f32 %v3053, 0.0
  %v4187 = vmax.f32 %v3055, 0.0
  %v4188 = vmax.f32 %v3958, 0.0
  %v4189 = vmax.f32 %v3057, 0.0
  %v4190 = vmax.f32 %v3059, 0.0
  %v4191 = vmax.f32 %v3961, 0.0
  %v4192 = vmax.f32 %v3063, 0.0
  %v4193 = vmax.f32 %v3065, 0.0
  %v4194 = vmax.f32 %v3966, 0.0
  %v4195 = vmax.f32 %v3067, 0.0
  %v4196 = vmax.f32 %v3069, 0.0
  %v4197 = vmax.f32 %v3969, 0.0
  %v4198 = vmax.f32 %v3073, 0.0
  %v4199 = vmax.f32 %v3075, 0.0
  %v4200 = vmax.f32 %v3974, 0.0
  %v4201 = vmax.f32 %v3077, 0.0
  %v4202 = vmax.f32 %v3079, 0.0
  %v4203 = vmax.f32 %v3977, 0.0
  %v4204 = vmax.f32 %v3083, 0.0
  %v4205 = vmax.f32 %v3085, 0.0
  %v4206 = vmax.f32 %v3982, 0.0
  %v4207 = vmax.f32 %v3087, 0.0
  %v4208 = vmax.f32 %v3089, 0.0
  %v4209 = vmax.f32 %v3985, 0.0
  %v4210 = vmax.f32 %v3093, 0.0
  %v4211 = vmax.f32 %v3095, 0.0
  %v4212 = vmax.f32 %v3990, 0.0
  %v4213 = vmax.f32 %v3097, 0.0
  %v4214 = vmax.f32 %v3099, 0.0
  %v4215 = vmax.f32 %v3993, 0.0
  %v4216 = vmax.f32 %v3103, 0.0
  %v4217 = vmax.f32 %v3105, 0.0
  %v4218 = vmax.f32 %v3998, 0.0
  %v4219 = vmax.f32 %v3107, 0.0
  %v4220 = vmax.f32 %v3109, 0.0
  %v4221 = vmax.f32 %v4001, 0.0
  %v4222 = vmax.f32 %v3113, 0.0
  %v4223 = vmax.f32 %v3115, 0.0
  %v4224 = vmax.f32 %v4006, 0.0
  %v4225 = vmax.f32 %v3117, 0.0
  %v4226 = vmax.f32 %v3119, 0.0
  %v4227 = vmax.f32 %v4009, 0.0
  %v4228 = vmax.f32 %v3123, 0.0
  %v4229 = vmax.f32 %v3125, 0.0
  %v4230 = vmax.f32 %v4014, 0.0
  %v4231 = vmax.f32 %v3127, 0.0
  %v4232 = vmax.f32 %v3129, 0.0
  %v4233 = vmax.f32 %v4017, 0.0
  %v4234 = vmax.f32 %v3133, 0.0
  %v4235 = vmax.f32 %v3135, 0.0
  %v4236 = vmax.f32 %v4022, 0.0
  %v4237 = vmax.f32 %v3137, 0.0
  %v4238 = vmax.f32 %v3139, 0.0
  %v4239 = vmax.f32 %v4025, 0.0
  %v4240 = vmax.f32 %v3143, 0.0
  %v4241 = vmax.f32 %v3145, 0.0
  %v4242 = vmax.f32 %v4030, 0.0
  %v4243 = vmax.f32 %v3147, 0.0
  %v4244 = vmax.f32 %v3149, 0.0
  %v4245 = vmax.f32 %v4033, 0.0
  %v4246 = vmax.f32 %v3153, 0.0
  %v4247 = vmax.f32 %v3155, 0.0
  %v4248 = vmax.f32 %v4038, 0.0
  %v4249 = vmax.f32 %v3157, 0.0
  %v4250 = vmax.f32 %v3159, 0.0
  %v4251 = vmax.f32 %v4041, 0.0
  %v4252 = vmax.f32 %v3163, 0.0
  %v4253 = vmax.f32 %v3165, 0.0
  %v4254 = vmax.f32 %v4046, 0.0
  %v4255 = vmax.f32 %v3167, 0.0
  %v4256 = vmax.f32 %v3169, 0.0
  %v4257 = vmax.f32 %v4049, 0.0
  %v4258 = vmax.f32 %v3173, 0.0
  %v4259 = vmax.f32 %v3175, 0.0
  %v4260 = vmax.f32 %v4054, 0.0
  %v4261 = vmax.f32 %v3177, 0.0
  %v4262 = vmax.f32 %v3179, 0.0
  %v4263 = vmax.f32 %v4057, 0.0
  %v4264 = vmax.f32 %v3183, 0.0
  %v4265 = vmax.f32 %v3185, 0.0
  %v4266 = vmax.f32 %v4062, 0.0
  %v4267 = vmax.f32 %v3187, 0.0
  %v4268 = vmax.f32 %v3189, 0.0
  %v4269 = vmax.f32 %v4065, 0.0
  %v4270 = vmax.f32 %v3193, 0.0
  %v4271 = vmax.f32 %v3195, 0.0
  %v4272 = vmax.f32 %v4070, 0.0
  %v4273 = vmax.f32 %v3197, 0.0
  %v4274 = vmax.f32 %v3199, 0.0
  %v4275 = vmax.f32 %v4073, 0.0
  %v4276 = vmax.f32 %v3203, 0.0
  %v4277 = vmax.f32 %v3205, 0.0
  %v4278 = vmax.f32 %v4078, 0.0
  %v4279 = vmax.f32 %v3207, 0.0
  %v4280 = vmax.f32 %v3209, 0.0
  %v4281 = vmax.f32 %v4081, 0.0
  %v4282 = vmax.f32 %v3213, 0.0
  %v4283 = vmax.f32 %v3215, 0.0
  %v4284 = vmax.f32 %v4086, 0.0
  %v4285 = vmax.f32 %v3217, 0.0
  %v4286 = vmax.f32 %v3219, 0.0
  %v4287 = vmax.f32 %v4089, 0.0
  %v4288 = vmax.f32 %v3223, 0.0
  %v4289 = vmax.f32 %v3225, 0.0
  %v4290 = vmax.f32 %v4094, 0.0
  %v4291 = vmax.f32 %v3227, 0.0
  %v4292 = vmax.f32 %v3229, 0.0
  %v4293 = vmax.f32 %v4097, 0.0
  %v4294 = vmax.f32 %v3233, 0.0
  %v4295 = vmax.f32 %v3235, 0.0
  %v4296 = vmax.f32 %v4102, 0.0
  %v4297 = vmax.f32 %v3237, 0.0
  %v4298 = vmax.f32 %v3239, 0.0
  %v4299 = vmax.f32 %v4105, 0.0
  %v4300 = vpack.c.bf16 %v4111, %v4108
  %v4301 = vpack.c.bf16 %v4112, %v4109
  %v4302 = vpack.c.bf16 %v4113, %v4110
  %v4303 = vpack.c.bf16 %v4117, %v4114
  %v4304 = vpack.c.bf16 %v4118, %v4115
  %v4305 = vpack.c.bf16 %v4119, %v4116
  %v4306 = vpack.c.bf16 %v4123, %v4120
  %v4307 = vpack.c.bf16 %v4124, %v4121
  %v4308 = vpack.c.bf16 %v4125, %v4122
  %v4309 = vpack.c.bf16 %v4129, %v4126
  %v4310 = vpack.c.bf16 %v4130, %v4127
  %v4311 = vpack.c.bf16 %v4131, %v4128
  %v4312 = vpack.c.bf16 %v4135, %v4132
  %v4313 = vpack.c.bf16 %v4136, %v4133
  %v4314 = vpack.c.bf16 %v4137, %v4134
  %v4315 = vpack.c.bf16 %v4141, %v4138
  %v4316 = vpack.c.bf16 %v4142, %v4139
  %v4317 = vpack.c.bf16 %v4143, %v4140
  %v4318 = vpack.c.bf16 %v4147, %v4144
  %v4319 = vpack.c.bf16 %v4148, %v4145
  %v4320 = vpack.c.bf16 %v4149, %v4146
  %v4321 = vpack.c.bf16 %v4153, %v4150
  %v4322 = vpack.c.bf16 %v4154, %v4151
  %v4323 = vpack.c.bf16 %v4155, %v4152
  %v4324 = vpack.c.bf16 %v4159, %v4156
  %v4325 = vpack.c.bf16 %v4160, %v4157
  %v4326 = vpack.c.bf16 %v4161, %v4158
  %v4327 = vpack.c.bf16 %v4165, %v4162
  %v4328 = vpack.c.bf16 %v4166, %v4163
  %v4329 = vpack.c.bf16 %v4167, %v4164
  %v4330 = vpack.c.bf16 %v4171, %v4168
  %v4331 = vpack.c.bf16 %v4172, %v4169
  %v4332 = vpack.c.bf16 %v4173, %v4170
  %v4333 = vpack.c.bf16 %v4177, %v4174
  %v4334 = vpack.c.bf16 %v4178, %v4175
  %v4335 = vpack.c.bf16 %v4179, %v4176
  %v4336 = vpack.c.bf16 %v4183, %v4180
  %v4337 = vpack.c.bf16 %v4184, %v4181
  %v4338 = vpack.c.bf16 %v4185, %v4182
  %v4339 = vpack.c.bf16 %v4189, %v4186
  %v4340 = vpack.c.bf16 %v4190, %v4187
  %v4341 = vpack.c.bf16 %v4191, %v4188
  %v4342 = vpack.c.bf16 %v4195, %v4192
  %v4343 = vpack.c.bf16 %v4196, %v4193
  %v4344 = vpack.c.bf16 %v4197, %v4194
  %v4345 = vpack.c.bf16 %v4201, %v4198
  %v4346 = vpack.c.bf16 %v4202, %v4199
  %v4347 = vpack.c.bf16 %v4203, %v4200
  %v4348 = vpack.c.bf16 %v4207, %v4204
  %v4349 = vpack.c.bf16 %v4208, %v4205
  %v4350 = vpack.c.bf16 %v4209, %v4206
  %v4351 = vpack.c.bf16 %v4213, %v4210
  %v4352 = vpack.c.bf16 %v4214, %v4211
  %v4353 = vpack.c.bf16 %v4215, %v4212
  %v4354 = vpack.c.bf16 %v4219, %v4216
  %v4355 = vpack.c.bf16 %v4220, %v4217
  %v4356 = vpack.c.bf16 %v4221, %v4218
  %v4357 = vpack.c.bf16 %v4225, %v4222
  %v4358 = vpack.c.bf16 %v4226, %v4223
  %v4359 = vpack.c.bf16 %v4227, %v4224
  %v4360 = vpack.c.bf16 %v4231, %v4228
  %v4361 = vpack.c.bf16 %v4232, %v4229
  %v4362 = vpack.c.bf16 %v4233, %v4230
  %v4363 = vpack.c.bf16 %v4237, %v4234
  %v4364 = vpack.c.bf16 %v4238, %v4235
  %v4365 = vpack.c.bf16 %v4239, %v4236
  %v4366 = vpack.c.bf16 %v4243, %v4240
  %v4367 = vpack.c.bf16 %v4244, %v4241
  %v4368 = vpack.c.bf16 %v4245, %v4242
  %v4369 = vpack.c.bf16 %v4249, %v4246
  %v4370 = vpack.c.bf16 %v4250, %v4247
  %v4371 = vpack.c.bf16 %v4251, %v4248
  %v4372 = vpack.c.bf16 %v4255, %v4252
  %v4373 = vpack.c.bf16 %v4256, %v4253
  %v4374 = vpack.c.bf16 %v4257, %v4254
  %v4375 = vpack.c.bf16 %v4261, %v4258
  %v4376 = vpack.c.bf16 %v4262, %v4259
  %v4377 = vpack.c.bf16 %v4263, %v4260
  %v4378 = vpack.c.bf16 %v4267, %v4264
  %v4379 = vpack.c.bf16 %v4268, %v4265
  %v4380 = vpack.c.bf16 %v4269, %v4266
  %v4381 = vpack.c.bf16 %v4273, %v4270
  %v4382 = vpack.c.bf16 %v4274, %v4271
  %v4383 = vpack.c.bf16 %v4275, %v4272
  %v4384 = vpack.c.bf16 %v4279, %v4276
  %v4385 = vpack.c.bf16 %v4280, %v4277
  %v4386 = vpack.c.bf16 %v4281, %v4278
  %v4387 = vpack.c.bf16 %v4285, %v4282
  %v4388 = vpack.c.bf16 %v4286, %v4283
  %v4389 = vpack.c.bf16 %v4287, %v4284
  %v4390 = vpack.c.bf16 %v4291, %v4288
  %v4391 = vpack.c.bf16 %v4292, %v4289
  %v4392 = vpack.c.bf16 %v4293, %v4290
  %v4393 = vpack.c.bf16 %v4297, %v4294
  %v4394 = vpack.c.bf16 %v4298, %v4295
  %v4395 = vpack.c.bf16 %v4299, %v4296
  %v4396 = vld [vmem:[%s3] sm:$0xff]
  %v4397 = vld [vmem:[%s3 + $0x8] sm:$0xff]
  %v4398 = vld [vmem:[%s3 + $0x10] sm:$0xff]
  %v4399 = vld [vmem:[%s3 + $0x18] sm:$0xff]
  %v4400 = vld [vmem:[%s3 + $0x20] sm:$0xff]
  %v4401 = vld [vmem:[%s3 + $0x28] sm:$0xff]
  %v4402 = vld [vmem:[%s3 + $0x30] sm:$0xff]
  %v4403 = vld [vmem:[%s3 + $0x38] sm:$0xff]
  %v4404 = vld [vmem:[%s3 + $0x40] sm:$0xff]
  %v4405 = vld [vmem:[%s3 + $0x48] sm:$0xff]
  %v4406 = vld [vmem:[%s3 + $0x50] sm:$0xff]
  %v4407 = vld [vmem:[%s3 + $0x58] sm:$0xff]
  %v4408 = vld [vmem:[%s3 + $0x60] sm:$0xff]
  %v4409 = vld [vmem:[%s3 + $0x68] sm:$0xff]
  %v4410 = vld [vmem:[%s3 + $0x70] sm:$0xff]
  %v4411 = vld [vmem:[%s3 + $0x78] sm:$0xff]
  %v4412 = vld [vmem:[%s3 + $0x80] sm:$0xff]
  %v4413 = vld [vmem:[%s3 + $0x88] sm:$0xff]
  %v4414 = vld [vmem:[%s3 + $0x90] sm:$0xff]
  %v4415 = vld [vmem:[%s3 + $0x98] sm:$0xff]
  %v4416 = vld [vmem:[%s3 + $0xa0] sm:$0xff]
  %v4417 = vld [vmem:[%s3 + $0xa8] sm:$0xff]
  %v4418 = vld [vmem:[%s3 + $0xb0] sm:$0xff]
  %v4419 = vld [vmem:[%s3 + $0xb8] sm:$0xff]
  %v4420 = vld [vmem:[%s3 + $0xc0] sm:$0xff]
  %v4421 = vld [vmem:[%s3 + $0xc8] sm:$0xff]
  %v4422 = vld [vmem:[%s3 + $0xd0] sm:$0xff]
  %v4423 = vld [vmem:[%s3 + $0xd8] sm:$0xff]
  %v4424 = vld [vmem:[%s3 + $0xe0] sm:$0xff]
  %v4425 = vld [vmem:[%s3 + $0xe8] sm:$0xff]
  %v4426 = vld [vmem:[%s3 + $0xf0] sm:$0xff]
  %v4427 = vld [vmem:[%s3 + $0xf8] sm:$0xff]
  %v4428 = vld [vmem:[%s3 + $0x100] sm:$0xff]
  %v4429 = vld [vmem:[%s3 + $0x108] sm:$0xff]
  %v4430 = vld [vmem:[%s3 + $0x110] sm:$0xff]
  %v4431 = vld [vmem:[%s3 + $0x118] sm:$0xff]
  %v4432 = vld [vmem:[%s3 + $0x120] sm:$0xff]
  %v4433 = vld [vmem:[%s3 + $0x128] sm:$0xff]
  %v4434 = vld [vmem:[%s3 + $0x130] sm:$0xff]
  %v4435 = vld [vmem:[%s3 + $0x138] sm:$0xff]
  %v4436 = vld [vmem:[%s3 + $0x140] sm:$0xff]
  %v4437 = vld [vmem:[%s3 + $0x148] sm:$0xff]
  %v4438 = vld [vmem:[%s3 + $0x150] sm:$0xff]
  %v4439 = vld [vmem:[%s3 + $0x158] sm:$0xff]
  %v4440 = vld [vmem:[%s3 + $0x160] sm:$0xff]
  %v4441 = vld [vmem:[%s3 + $0x168] sm:$0xff]
  %v4442 = vld [vmem:[%s3 + $0x170] sm:$0xff]
  %v4443 = vld [vmem:[%s3 + $0x178] sm:$0xff]
  %v4444 = vld [vmem:[%s4] sm:$0x3]
  %v4446 = vlaneseq
  %v4447 = vshrl.u32 %v4446, 7
  %v4448 = vsub.s32 0, %v4447
  %v4449 = vrot.slane %v4444, %v4448
  %v4450 = vlaneseq
  %v4451 = vshrl.u32 %v4450, 7
  %v4452 = vsub.s32 1, %v4451
  %v4453 = vrot.slane %v4444, %v4452
  %v4504 = vunpack.c.l.b16 %v4396
  %v4505 = vunpack.c.h.b16 %v4396
  %v4506 = vunpack.c.l.b16 %v4397
  %v4507 = vunpack.c.h.b16 %v4397
  %v4508 = vunpack.c.l.b16 %v4398
  %v4509 = vunpack.c.h.b16 %v4398
  %v4510 = vunpack.c.l.b16 %v4399
  %v4511 = vunpack.c.h.b16 %v4399
  %v4512 = vunpack.c.l.b16 %v4400
  %v4513 = vunpack.c.h.b16 %v4400
  %v4514 = vunpack.c.l.b16 %v4401
  %v4515 = vunpack.c.h.b16 %v4401
  %v4516 = vunpack.c.l.b16 %v4402
  %v4517 = vunpack.c.h.b16 %v4402
  %v4518 = vunpack.c.l.b16 %v4403
  %v4519 = vunpack.c.h.b16 %v4403
  %v4520 = vunpack.c.l.b16 %v4404
  %v4521 = vunpack.c.h.b16 %v4404
  %v4522 = vunpack.c.l.b16 %v4405
  %v4523 = vunpack.c.h.b16 %v4405
  %v4524 = vunpack.c.l.b16 %v4406
  %v4525 = vunpack.c.h.b16 %v4406
  %v4526 = vunpack.c.l.b16 %v4407
  %v4527 = vunpack.c.h.b16 %v4407
  %v4528 = vunpack.c.l.b16 %v4408
  %v4529 = vunpack.c.h.b16 %v4408
  %v4530 = vunpack.c.l.b16 %v4409
  %v4531 = vunpack.c.h.b16 %v4409
  %v4532 = vunpack.c.l.b16 %v4410
  %v4533 = vunpack.c.h.b16 %v4410
  %v4534 = vunpack.c.l.b16 %v4411
  %v4535 = vunpack.c.h.b16 %v4411
  %v4536 = vunpack.c.l.b16 %v4412
  %v4537 = vunpack.c.h.b16 %v4412
  %v4538 = vunpack.c.l.b16 %v4413
  %v4539 = vunpack.c.h.b16 %v4413
  %v4540 = vunpack.c.l.b16 %v4414
  %v4541 = vunpack.c.h.b16 %v4414
  %v4542 = vunpack.c.l.b16 %v4415
  %v4543 = vunpack.c.h.b16 %v4415
  %v4544 = vunpack.c.l.b16 %v4416
  %v4545 = vunpack.c.h.b16 %v4416
  %v4546 = vunpack.c.l.b16 %v4417
  %v4547 = vunpack.c.h.b16 %v4417
  %v4548 = vunpack.c.l.b16 %v4418
  %v4549 = vunpack.c.h.b16 %v4418
  %v4550 = vunpack.c.l.b16 %v4419
  %v4551 = vunpack.c.h.b16 %v4419
  %v4552 = vunpack.c.l.b16 %v4420
  %v4553 = vunpack.c.h.b16 %v4420
  %v4554 = vunpack.c.l.b16 %v4421
  %v4555 = vunpack.c.h.b16 %v4421
  %v4556 = vunpack.c.l.b16 %v4422
  %v4557 = vunpack.c.h.b16 %v4422
  %v4558 = vunpack.c.l.b16 %v4423
  %v4559 = vunpack.c.h.b16 %v4423
  %v4560 = vunpack.c.l.b16 %v4424
  %v4561 = vunpack.c.h.b16 %v4424
  %v4562 = vunpack.c.l.b16 %v4425
  %v4563 = vunpack.c.h.b16 %v4425
  %v4564 = vunpack.c.l.b16 %v4426
  %v4565 = vunpack.c.h.b16 %v4426
  %v4566 = vunpack.c.l.b16 %v4427
  %v4567 = vunpack.c.h.b16 %v4427
  %v4568 = vunpack.c.l.b16 %v4428
  %v4569 = vunpack.c.h.b16 %v4428
  %v4570 = vunpack.c.l.b16 %v4429
  %v4571 = vunpack.c.h.b16 %v4429
  %v4572 = vunpack.c.l.b16 %v4430
  %v4573 = vunpack.c.h.b16 %v4430
  %v4574 = vunpack.c.l.b16 %v4431
  %v4575 = vunpack.c.h.b16 %v4431
  %v4576 = vunpack.c.l.b16 %v4432
  %v4577 = vunpack.c.h.b16 %v4432
  %v4578 = vunpack.c.l.b16 %v4433
  %v4579 = vunpack.c.h.b16 %v4433
  %v4580 = vunpack.c.l.b16 %v4434
  %v4581 = vunpack.c.h.b16 %v4434
  %v4582 = vunpack.c.l.b16 %v4435
  %v4583 = vunpack.c.h.b16 %v4435
  %v4584 = vunpack.c.l.b16 %v4436
  %v4585 = vunpack.c.h.b16 %v4436
  %v4586 = vunpack.c.l.b16 %v4437
  %v4587 = vunpack.c.h.b16 %v4437
  %v4588 = vunpack.c.l.b16 %v4438
  %v4589 = vunpack.c.h.b16 %v4438
  %v4590 = vunpack.c.l.b16 %v4439
  %v4591 = vunpack.c.h.b16 %v4439
  %v4592 = vunpack.c.l.b16 %v4440
  %v4593 = vunpack.c.h.b16 %v4440
  %v4594 = vunpack.c.l.b16 %v4441
  %v4595 = vunpack.c.h.b16 %v4441
  %v4596 = vunpack.c.l.b16 %v4442
  %v4597 = vunpack.c.h.b16 %v4442
  %v4598 = vunpack.c.l.b16 %v4443
  %v4599 = vunpack.c.h.b16 %v4443
  %v4600 = vpack.c.b16 %v4506, %v4504
  %v4601 = vpack.c.b16 %v4507, %v4505
  %v4602 = vpack.c.b16 %v4510, %v4508
  %v4603 = vpack.c.b16 %v4511, %v4509
  %v4604 = vpack.c.b16 %v4514, %v4512
  %v4605 = vpack.c.b16 %v4515, %v4513
  %v4606 = vpack.c.b16 %v4518, %v4516
  %v4607 = vpack.c.b16 %v4519, %v4517
  %v4608 = vpack.c.b16 %v4522, %v4520
  %v4609 = vpack.c.b16 %v4523, %v4521
  %v4610 = vpack.c.b16 %v4526, %v4524
  %v4611 = vpack.c.b16 %v4527, %v4525
  %v4612 = vpack.c.b16 %v4530, %v4528
  %v4613 = vpack.c.b16 %v4531, %v4529
  %v4614 = vpack.c.b16 %v4534, %v4532
  %v4615 = vpack.c.b16 %v4535, %v4533
  %v4616 = vpack.c.b16 %v4538, %v4536
  %v4617 = vpack.c.b16 %v4539, %v4537
  %v4618 = vpack.c.b16 %v4542, %v4540
  %v4619 = vpack.c.b16 %v4543, %v4541
  %v4620 = vpack.c.b16 %v4546, %v4544
  %v4621 = vpack.c.b16 %v4547, %v4545
  %v4622 = vpack.c.b16 %v4550, %v4548
  %v4623 = vpack.c.b16 %v4551, %v4549
  %v4624 = vpack.c.b16 %v4554, %v4552
  %v4625 = vpack.c.b16 %v4555, %v4553
  %v4626 = vpack.c.b16 %v4558, %v4556
  %v4627 = vpack.c.b16 %v4559, %v4557
  %v4628 = vpack.c.b16 %v4562, %v4560
  %v4629 = vpack.c.b16 %v4563, %v4561
  %v4630 = vpack.c.b16 %v4566, %v4564
  %v4631 = vpack.c.b16 %v4567, %v4565
  %v4632 = vpack.c.b16 %v4570, %v4568
  %v4633 = vpack.c.b16 %v4571, %v4569
  %v4634 = vpack.c.b16 %v4574, %v4572
  %v4635 = vpack.c.b16 %v4575, %v4573
  %v4636 = vpack.c.b16 %v4578, %v4576
  %v4637 = vpack.c.b16 %v4579, %v4577
  %v4638 = vpack.c.b16 %v4582, %v4580
  %v4639 = vpack.c.b16 %v4583, %v4581
  %v4640 = vpack.c.b16 %v4586, %v4584
  %v4641 = vpack.c.b16 %v4587, %v4585
  %v4642 = vpack.c.b16 %v4590, %v4588
  %v4643 = vpack.c.b16 %v4591, %v4589
  %v4644 = vpack.c.b16 %v4594, %v4592
  %v4645 = vpack.c.b16 %v4595, %v4593
  %v4646 = vpack.c.b16 %v4598, %v4596
  %v4647 = vpack.c.b16 %v4599, %v4597
  %4696 = vmatprep.subr.bf16.mxu0 %v4601
  %4697 = vmatpush1.bf16.msra.mxu0 %v4600
  %4698 = vmatprep.subr.bf16.mxu0 %v4603
  %4699 = vmatpush1.bf16.msra.mxu0 %v4602
  %4700 = vmatprep.subr.bf16.mxu0 %v4605
  %4701 = vmatpush1.bf16.msra.mxu0 %v4604
  %4702 = vmatprep.subr.bf16.mxu0 %v4607
  %4703 = vmatpush1.bf16.msra.mxu0 %v4606
  %4704 = vmatprep.subr.bf16.mxu0 %v4609
  %4705 = vmatpush1.bf16.msra.mxu0 %v4608
  %4706 = vmatprep.subr.bf16.mxu0 %v4611
  %4707 = vmatpush1.bf16.msra.mxu0 %v4610
  %4708 = vmatprep.subr.bf16.mxu0 %v4613
  %4709 = vmatpush1.bf16.msra.mxu0 %v4612
  %4710 = vmatprep.subr.bf16.mxu0 %v4615
  %4711 = vmatpush1.bf16.msra.mxu0 %v4614
  %4712 = vmatprep.subr.bf16.mxu0 %v4617
  %4713 = vmatpush1.bf16.msra.mxu0 %v4616
  %4714 = vmatprep.subr.bf16.mxu0 %v4619
  %4715 = vmatpush1.bf16.msra.mxu0 %v4618
  %4716 = vmatprep.subr.bf16.mxu0 %v4621
  %4717 = vmatpush1.bf16.msra.mxu0 %v4620
  %4718 = vmatprep.subr.bf16.mxu0 %v4623
  %4719 = vmatpush1.bf16.msra.mxu0 %v4622
  %4720 = vmatprep.subr.bf16.mxu0 %v4625
  %4721 = vmatpush1.bf16.msra.mxu0 %v4624
  %4722 = vmatprep.subr.bf16.mxu0 %v4627
  %4723 = vmatpush1.bf16.msra.mxu0 %v4626
  %4724 = vmatprep.subr.bf16.mxu0 %v4629
  %4725 = vmatpush1.bf16.msra.mxu0 %v4628
  %4726 = vmatprep.subr.bf16.mxu0 %v4631
  %4727 = vmatpush1.bf16.msra.mxu0 %v4630
  %4728 = vmatprep.mubr.bf16.mxu0 %v4301
  %4729 = vmatmul.mubr.bf16.gmra.mrb[0].mxu0 %v4300
  %v4730 = vpop.f32.mrb[0].mxu0
  %v4731 = vadd.f32 %v4449, %v4730
  %v4732 = vpop.f32.mrb[0].mxu0
  %v4733 = vadd.f32 %v4453, %v4732
  %v4734 = vpop.f32.mrb[0].mxu0
  %v4735 = vadd.f32 %v4449, %v4734
  %v4736 = vpop.f32.mrb[0].mxu0
  %v4737 = vadd.f32 %v4453, %v4736
  %4738 = vmatprep.mubr.bf16.mxu0 %v4304
  %4739 = vmatmul.mubr.bf16.gmra.mrb[0].mxu0 %v4303
  %v4740 = vpop.f32.mrb[0].mxu0
  %v4741 = vadd.f32 %v4449, %v4740
  %v4742 = vpop.f32.mrb[0].mxu0
  %v4743 = vadd.f32 %v4453, %v4742
  %v4744 = vpop.f32.mrb[0].mxu0
  %v4745 = vadd.f32 %v4449, %v4744
  %v4746 = vpop.f32.mrb[0].mxu0
  %v4747 = vadd.f32 %v4453, %v4746
  %4748 = vmatprep.mubr.bf16.mxu0 %v4307
  %4749 = vmatmul.mubr.bf16.gmra.mrb[0].mxu0 %v4306
  %v4750 = vpop.f32.mrb[0].mxu0
  %v4751 = vadd.f32 %v4449, %v4750
  %v4752 = vpop.f32.mrb[0].mxu0
  %v4753 = vadd.f32 %v4453, %v4752
  %v4754 = vpop.f32.mrb[0].mxu0
  %v4755 = vadd.f32 %v4449, %v4754
  %v4756 = vpop.f32.mrb[0].mxu0
  %v4757 = vadd.f32 %v4453, %v4756
  %4758 = vmatprep.mubr.bf16.mxu0 %v4310
  %4759 = vmatmul.mubr.bf16.gmra.mrb[0].mxu0 %v4309
  %v4760 = vpop.f32.mrb[0].mxu0
  %v4761 = vadd.f32 %v4449, %v4760
  %v4762 = vpop.f32.mrb[0].mxu0
  %v4763 = vadd.f32 %v4453, %v4762
  %v4764 = vpop.f32.mrb[0].mxu0
  %v4765 = vadd.f32 %v4449, %v4764
  %v4766 = vpop.f32.mrb[0].mxu0
  %v4767 = vadd.f32 %v4453, %v4766
  %4768 = vmatprep.mubr.bf16.mxu0 %v4313
  %4769 = vmatmul.mubr.bf16.gmra.mrb[0].mxu0 %v4312
  %v4770 = vpop.f32.mrb[0].mxu0
  %v4771 = vadd.f32 %v4449, %v4770
  %v4772 = vpop.f32.mrb[0].mxu0
  %v4773 = vadd.f32 %v4453, %v4772
  %v4774 = vpop.f32.mrb[0].mxu0
  %v4775 = vadd.f32 %v4449, %v4774
  %v4776 = vpop.f32.mrb[0].mxu0
  %v4777 = vadd.f32 %v4453, %v4776
  %4778 = vmatprep.mubr.bf16.mxu0 %v4316
  %4779 = vmatmul.mubr.bf16.gmra.mrb[0].mxu0 %v4315
  %v4780 = vpop.f32.mrb[0].mxu0
  %v4781 = vadd.f32 %v4449, %v4780
  %v4782 = vpop.f32.mrb[0].mxu0
  %v4783 = vadd.f32 %v4453, %v4782
  %v4784 = vpop.f32.mrb[0].mxu0
  %v4785 = vadd.f32 %v4449, %v4784
  %v4786 = vpop.f32.mrb[0].mxu0
  %v4787 = vadd.f32 %v4453, %v4786
  %4788 = vmatprep.mubr.bf16.mxu0 %v4319
  %4789 = vmatmul.mubr.bf16.gmra.mrb[0].mxu0 %v4318
  %v4790 = vpop.f32.mrb[0].mxu0
  %v4791 = vadd.f32 %v4449, %v4790
  %v4792 = vpop.f32.mrb[0].mxu0
  %v4793 = vadd.f32 %v4453, %v4792
  %v4794 = vpop.f32.mrb[0].mxu0
  %v4795 = vadd.f32 %v4449, %v4794
  %v4796 = vpop.f32.mrb[0].mxu0
  %v4797 = vadd.f32 %v4453, %v4796
  %4798 = vmatprep.mubr.bf16.mxu0 %v4322
  %4799 = vmatmul.mubr.bf16.gmra.mrb[0].mxu0 %v4321
  %v4800 = vpop.f32.mrb[0].mxu0
  %v4801 = vadd.f32 %v4449, %v4800
  %v4802 = vpop.f32.mrb[0].mxu0
  %v4803 = vadd.f32 %v4453, %v4802
  %v4804 = vpop.f32.mrb[0].mxu0
  %v4805 = vadd.f32 %v4449, %v4804
  %v4806 = vpop.f32.mrb[0].mxu0
  %v4807 = vadd.f32 %v4453, %v4806
  %4808 = vmatprep.mubr.bf16.mxu0 %v4325
  %4809 = vmatmul.mubr.bf16.gmra.mrb[0].mxu0 %v4324
  %v4810 = vpop.f32.mrb[0].mxu0
  %v4811 = vadd.f32 %v4449, %v4810
  %v4812 = vpop.f32.mrb[0].mxu0
  %v4813 = vadd.f32 %v4453, %v4812
  %v4814 = vpop.f32.mrb[0].mxu0
  %v4815 = vadd.f32 %v4449, %v4814
  %v4816 = vpop.f32.mrb[0].mxu0
  %v4817 = vadd.f32 %v4453, %v4816
  %4818 = vmatprep.mubr.bf16.mxu0 %v4328
  %4819 = vmatmul.mubr.bf16.gmra.mrb[0].mxu0 %v4327
  %v4820 = vpop.f32.mrb[0].mxu0
  %v4821 = vadd.f32 %v4449, %v4820
  %v4822 = vpop.f32.mrb[0].mxu0
  %v4823 = vadd.f32 %v4453, %v4822
  %v4824 = vpop.f32.mrb[0].mxu0
  %v4825 = vadd.f32 %v4449, %v4824
  %v4826 = vpop.f32.mrb[0].mxu0
  %v4827 = vadd.f32 %v4453, %v4826
  %4828 = vmatprep.mubr.bf16.mxu0 %v4331
  %4829 = vmatmul.mubr.bf16.gmra.mrb[0].mxu0 %v4330
  %v4830 = vpop.f32.mrb[0].mxu0
  %v4831 = vadd.f32 %v4449, %v4830
  %v4832 = vpop.f32.mrb[0].mxu0
  %v4833 = vadd.f32 %v4453, %v4832
  %v4834 = vpop.f32.mrb[0].mxu0
  %v4835 = vadd.f32 %v4449, %v4834
  %v4836 = vpop.f32.mrb[0].mxu0
  %v4837 = vadd.f32 %v4453, %v4836
  %4838 = vmatprep.mubr.bf16.mxu0 %v4334
  %4839 = vmatmul.mubr.bf16.gmra.mrb[0].mxu0 %v4333
  %v4840 = vpop.f32.mrb[0].mxu0
  %v4841 = vadd.f32 %v4449, %v4840
  %v4842 = vpop.f32.mrb[0].mxu0
  %v4843 = vadd.f32 %v4453, %v4842
  %v4844 = vpop.f32.mrb[0].mxu0
  %v4845 = vadd.f32 %v4449, %v4844
  %v4846 = vpop.f32.mrb[0].mxu0
  %v4847 = vadd.f32 %v4453, %v4846
  %4848 = vmatprep.mubr.bf16.mxu0 %v4337
  %4849 = vmatmul.mubr.bf16.gmra.mrb[0].mxu0 %v4336
  %v4850 = vpop.f32.mrb[0].mxu0
  %v4851 = vadd.f32 %v4449, %v4850
  %v4852 = vpop.f32.mrb[0].mxu0
  %v4853 = vadd.f32 %v4453, %v4852
  %v4854 = vpop.f32.mrb[0].mxu0
  %v4855 = vadd.f32 %v4449, %v4854
  %v4856 = vpop.f32.mrb[0].mxu0
  %v4857 = vadd.f32 %v4453, %v4856
  %4858 = vmatprep.mubr.bf16.mxu0 %v4340
  %4859 = vmatmul.mubr.bf16.gmra.mrb[0].mxu0 %v4339
  %v4860 = vpop.f32.mrb[0].mxu0
  %v4861 = vadd.f32 %v4449, %v4860
  %v4862 = vpop.f32.mrb[0].mxu0
  %v4863 = vadd.f32 %v4453, %v4862
  %v4864 = vpop.f32.mrb[0].mxu0
  %v4865 = vadd.f32 %v4449, %v4864
  %v4866 = vpop.f32.mrb[0].mxu0
  %v4867 = vadd.f32 %v4453, %v4866
  %4868 = vmatprep.mubr.bf16.mxu0 %v4343
  %4869 = vmatmul.mubr.bf16.gmra.mrb[0].mxu0 %v4342
  %v4870 = vpop.f32.mrb[0].mxu0
  %v4871 = vadd.f32 %v4449, %v4870
  %v4872 = vpop.f32.mrb[0].mxu0
  %v4873 = vadd.f32 %v4453, %v4872
  %v4874 = vpop.f32.mrb[0].mxu0
  %v4875 = vadd.f32 %v4449, %v4874
  %v4876 = vpop.f32.mrb[0].mxu0
  %v4877 = vadd.f32 %v4453, %v4876
  %4878 = vmatprep.mubr.bf16.mxu0 %v4346
  %4879 = vmatmul.mubr.bf16.gmra.mrb[0].mxu0 %v4345
  %v4880 = vpop.f32.mrb[0].mxu0
  %v4881 = vadd.f32 %v4449, %v4880
  %v4882 = vpop.f32.mrb[0].mxu0
  %v4883 = vadd.f32 %v4453, %v4882
  %v4884 = vpop.f32.mrb[0].mxu0
  %v4885 = vadd.f32 %v4449, %v4884
  %v4886 = vpop.f32.mrb[0].mxu0
  %v4887 = vadd.f32 %v4453, %v4886
  %4888 = vmatprep.mubr.bf16.mxu0 %v4349
  %4889 = vmatmul.mubr.bf16.gmra.mrb[0].mxu0 %v4348
  %v4890 = vpop.f32.mrb[0].mxu0
  %v4891 = vadd.f32 %v4449, %v4890
  %v4892 = vpop.f32.mrb[0].mxu0
  %v4893 = vadd.f32 %v4453, %v4892
  %v4894 = vpop.f32.mrb[0].mxu0
  %v4895 = vadd.f32 %v4449, %v4894
  %v4896 = vpop.f32.mrb[0].mxu0
  %v4897 = vadd.f32 %v4453, %v4896
  %4898 = vmatprep.mubr.bf16.mxu0 %v4352
  %4899 = vmatmul.mubr.bf16.gmra.mrb[0].mxu0 %v4351
  %v4900 = vpop.f32.mrb[0].mxu0
  %v4901 = vadd.f32 %v4449, %v4900
  %v4902 = vpop.f32.mrb[0].mxu0
  %v4903 = vadd.f32 %v4453, %v4902
  %v4904 = vpop.f32.mrb[0].mxu0
  %v4905 = vadd.f32 %v4449, %v4904
  %v4906 = vpop.f32.mrb[0].mxu0
  %v4907 = vadd.f32 %v4453, %v4906
  %4908 = vmatprep.mubr.bf16.mxu0 %v4355
  %4909 = vmatmul.mubr.bf16.gmra.mrb[0].mxu0 %v4354
  %v4910 = vpop.f32.mrb[0].mxu0
  %v4911 = vadd.f32 %v4449, %v4910
  %v4912 = vpop.f32.mrb[0].mxu0
  %v4913 = vadd.f32 %v4453, %v4912
  %v4914 = vpop.f32.mrb[0].mxu0
  %v4915 = vadd.f32 %v4449, %v4914
  %v4916 = vpop.f32.mrb[0].mxu0
  %v4917 = vadd.f32 %v4453, %v4916
  %4918 = vmatprep.mubr.bf16.mxu0 %v4358
  %4919 = vmatmul.mubr.bf16.gmra.mrb[0].mxu0 %v4357
  %v4920 = vpop.f32.mrb[0].mxu0
  %v4921 = vadd.f32 %v4449, %v4920
  %v4922 = vpop.f32.mrb[0].mxu0
  %v4923 = vadd.f32 %v4453, %v4922
  %v4924 = vpop.f32.mrb[0].mxu0
  %v4925 = vadd.f32 %v4449, %v4924
  %v4926 = vpop.f32.mrb[0].mxu0
  %v4927 = vadd.f32 %v4453, %v4926
  %4928 = vmatprep.mubr.bf16.mxu0 %v4361
  %4929 = vmatmul.mubr.bf16.gmra.mrb[0].mxu0 %v4360
  %v4930 = vpop.f32.mrb[0].mxu0
  %v4931 = vadd.f32 %v4449, %v4930
  %v4932 = vpop.f32.mrb[0].mxu0
  %v4933 = vadd.f32 %v4453, %v4932
  %v4934 = vpop.f32.mrb[0].mxu0
  %v4935 = vadd.f32 %v4449, %v4934
  %v4936 = vpop.f32.mrb[0].mxu0
  %v4937 = vadd.f32 %v4453, %v4936
  %4938 = vmatprep.mubr.bf16.mxu0 %v4364
  %4939 = vmatmul.mubr.bf16.gmra.mrb[0].mxu0 %v4363
  %v4940 = vpop.f32.mrb[0].mxu0
  %v4941 = vadd.f32 %v4449, %v4940
  %v4942 = vpop.f32.mrb[0].mxu0
  %v4943 = vadd.f32 %v4453, %v4942
  %v4944 = vpop.f32.mrb[0].mxu0
  %v4945 = vadd.f32 %v4449, %v4944
  %v4946 = vpop.f32.mrb[0].mxu0
  %v4947 = vadd.f32 %v4453, %v4946
  %4948 = vmatprep.mubr.bf16.mxu0 %v4367
  %4949 = vmatmul.mubr.bf16.gmra.mrb[0].mxu0 %v4366
  %v4950 = vpop.f32.mrb[0].mxu0
  %v4951 = vadd.f32 %v4449, %v4950
  %v4952 = vpop.f32.mrb[0].mxu0
  %v4953 = vadd.f32 %v4453, %v4952
  %v4954 = vpop.f32.mrb[0].mxu0
  %v4955 = vadd.f32 %v4449, %v4954
  %v4956 = vpop.f32.mrb[0].mxu0
  %v4957 = vadd.f32 %v4453, %v4956
  %4958 = vmatprep.mubr.bf16.mxu0 %v4370
  %4959 = vmatmul.mubr.bf16.gmra.mrb[0].mxu0 %v4369
  %v4960 = vpop.f32.mrb[0].mxu0
  %v4961 = vadd.f32 %v4449, %v4960
  %v4962 = vpop.f32.mrb[0].mxu0
  %v4963 = vadd.f32 %v4453, %v4962
  %v4964 = vpop.f32.mrb[0].mxu0
  %v4965 = vadd.f32 %v4449, %v4964
  %v4966 = vpop.f32.mrb[0].mxu0
  %v4967 = vadd.f32 %v4453, %v4966
  %4968 = vmatprep.mubr.bf16.mxu0 %v4373
  %4969 = vmatmul.mubr.bf16.gmra.mrb[0].mxu0 %v4372
  %v4970 = vpop.f32.mrb[0].mxu0
  %v4971 = vadd.f32 %v4449, %v4970
  %v4972 = vpop.f32.mrb[0].mxu0
  %v4973 = vadd.f32 %v4453, %v4972
  %v4974 = vpop.f32.mrb[0].mxu0
  %v4975 = vadd.f32 %v4449, %v4974
  %v4976 = vpop.f32.mrb[0].mxu0
  %v4977 = vadd.f32 %v4453, %v4976
  %4978 = vmatprep.mubr.bf16.mxu0 %v4376
  %4979 = vmatmul.mubr.bf16.gmra.mrb[0].mxu0 %v4375
  %v4980 = vpop.f32.mrb[0].mxu0
  %v4981 = vadd.f32 %v4449, %v4980
  %v4982 = vpop.f32.mrb[0].mxu0
  %v4983 = vadd.f32 %v4453, %v4982
  %v4984 = vpop.f32.mrb[0].mxu0
  %v4985 = vadd.f32 %v4449, %v4984
  %v4986 = vpop.f32.mrb[0].mxu0
  %v4987 = vadd.f32 %v4453, %v4986
  %4988 = vmatprep.mubr.bf16.mxu0 %v4379
  %4989 = vmatmul.mubr.bf16.gmra.mrb[0].mxu0 %v4378
  %v4990 = vpop.f32.mrb[0].mxu0
  %v4991 = vadd.f32 %v4449, %v4990
  %v4992 = vpop.f32.mrb[0].mxu0
  %v4993 = vadd.f32 %v4453, %v4992
  %v4994 = vpop.f32.mrb[0].mxu0
  %v4995 = vadd.f32 %v4449, %v4994
  %v4996 = vpop.f32.mrb[0].mxu0
  %v4997 = vadd.f32 %v4453, %v4996
  %4998 = vmatprep.mubr.bf16.mxu0 %v4382
  %4999 = vmatmul.mubr.bf16.gmra.mrb[0].mxu0 %v4381
  %v5000 = vpop.f32.mrb[0].mxu0
  %v5001 = vadd.f32 %v4449, %v5000
  %v5002 = vpop.f32.mrb[0].mxu0
  %v5003 = vadd.f32 %v4453, %v5002
  %v5004 = vpop.f32.mrb[0].mxu0
  %v5005 = vadd.f32 %v4449, %v5004
  %v5006 = vpop.f32.mrb[0].mxu0
  %v5007 = vadd.f32 %v4453, %v5006
  %5008 = vmatprep.mubr.bf16.mxu0 %v4385
  %5009 = vmatmul.mubr.bf16.gmra.mrb[0].mxu0 %v4384
  %v5010 = vpop.f32.mrb[0].mxu0
  %v5011 = vadd.f32 %v4449, %v5010
  %v5012 = vpop.f32.mrb[0].mxu0
  %v5013 = vadd.f32 %v4453, %v5012
  %v5014 = vpop.f32.mrb[0].mxu0
  %v5015 = vadd.f32 %v4449, %v5014
  %v5016 = vpop.f32.mrb[0].mxu0
  %v5017 = vadd.f32 %v4453, %v5016
  %5018 = vmatprep.mubr.bf16.mxu0 %v4388
  %5019 = vmatmul.mubr.bf16.gmra.mrb[0].mxu0 %v4387
  %v5020 = vpop.f32.mrb[0].mxu0
  %v5021 = vadd.f32 %v4449, %v5020
  %v5022 = vpop.f32.mrb[0].mxu0
  %v5023 = vadd.f32 %v4453, %v5022
  %v5024 = vpop.f32.mrb[0].mxu0
  %v5025 = vadd.f32 %v4449, %v5024
  %v5026 = vpop.f32.mrb[0].mxu0
  %v5027 = vadd.f32 %v4453, %v5026
  %5028 = vmatprep.mubr.bf16.mxu0 %v4391
  %5029 = vmatmul.mubr.bf16.gmra.mrb[0].mxu0 %v4390
  %v5030 = vpop.f32.mrb[0].mxu0
  %v5031 = vadd.f32 %v4449, %v5030
  %v5032 = vpop.f32.mrb[0].mxu0
  %v5033 = vadd.f32 %v4453, %v5032
  %v5034 = vpop.f32.mrb[0].mxu0
  %v5035 = vadd.f32 %v4449, %v5034
  %v5036 = vpop.f32.mrb[0].mxu0
  %v5037 = vadd.f32 %v4453, %v5036
  %5038 = vmatprep.mubr.bf16.mxu0 %v4394
  %5039 = vmatmul.mubr.bf16.gmra.mrb[0].mxu0 %v4393
  %v5040 = vpop.f32.mrb[0].mxu0
  %v5041 = vadd.f32 %v4449, %v5040
  %v5042 = vpop.f32.mrb[0].mxu0
  %v5043 = vadd.f32 %v4453, %v5042
  %v5044 = vpop.f32.mrb[0].mxu0
  %v5045 = vadd.f32 %v4449, %v5044
  %v5046 = vpop.f32.mrb[0].mxu0
  %v5047 = vadd.f32 %v4453, %v5046
  %5048 = vdwg.mxu0
  %5049 = vmatprep.subr.bf16.mxu0 %v4633
  %5050 = vmatpush1.bf16.msra.mxu0 %v4632
  %5051 = vmatprep.subr.bf16.mxu0 %v4635
  %5052 = vmatpush1.bf16.msra.mxu0 %v4634
  %5053 = vmatprep.subr.bf16.mxu0 %v4637
  %5054 = vmatpush1.bf16.msra.mxu0 %v4636
  %5055 = vmatprep.subr.bf16.mxu0 %v4639
  %5056 = vmatpush1.bf16.msra.mxu0 %v4638
  %5057 = vmatprep.subr.bf16.mxu0 %v4641
  %5058 = vmatpush1.bf16.msra.mxu0 %v4640
  %5059 = vmatprep.subr.bf16.mxu0 %v4643
  %5060 = vmatpush1.bf16.msra.mxu0 %v4642
  %5061 = vmatprep.subr.bf16.mxu0 %v4645
  %5062 = vmatpush1.bf16.msra.mxu0 %v4644
  %5063 = vmatprep.subr.bf16.mxu0 %v4647
  %5064 = vmatpush1.bf16.msra.mxu0 %v4646
  %5065 = vmatprep.subr.bf16.mxu0 0
  %5066 = vmatpush1.bf16.msra.mxu0 0
  %5067 = vmatprep.subr.bf16.mxu0 0
  %5068 = vmatpush1.bf16.msra.mxu0 0
  %5069 = vmatprep.subr.bf16.mxu0 0
  %5070 = vmatpush1.bf16.msra.mxu0 0
  %5071 = vmatprep.subr.bf16.mxu0 0
  %5072 = vmatpush1.bf16.msra.mxu0 0
  %5073 = vmatprep.subr.bf16.mxu0 0
  %5074 = vmatpush1.bf16.msra.mxu0 0
  %5075 = vmatprep.subr.bf16.mxu0 0
  %5076 = vmatpush1.bf16.msra.mxu0 0
  %5077 = vmatprep.subr.bf16.mxu0 0
  %5078 = vmatpush1.bf16.msra.mxu0 0
  %5079 = vmatprep.subr.bf16.mxu0 0
  %5080 = vmatpush1.bf16.msra.mxu0 0
  %5081 = vmatprep.mubr.bf16.mxu0 0
  %5082 = vmatmul.mubr.bf16.gmra.mrb[0].mxu0 %v4302
  %v5083 = vpop.f32.mrb[0].mxu0
  %v5084 = vadd.f32 %v4731, %v5083
  %v5085 = vpop.f32.mrb[0].mxu0
  %v5086 = vadd.f32 %v4733, %v5085
  %v5087 = vpop.f32.mrb[0].mxu0
  %v5088 = vadd.f32 %v4735, %v5087
  %v5089 = vpop.f32.mrb[0].mxu0
  %v5090 = vadd.f32 %v4737, %v5089
  %5091 = vmatprep.mubr.bf16.mxu0 0
  %5092 = vmatmul.mubr.bf16.gmra.mrb[0].mxu0 %v4305
  %v5093 = vpop.f32.mrb[0].mxu0
  %v5094 = vadd.f32 %v4741, %v5093
  %v5095 = vpop.f32.mrb[0].mxu0
  %v5096 = vadd.f32 %v4743, %v5095
  %v5097 = vpop.f32.mrb[0].mxu0
  %v5098 = vadd.f32 %v4745, %v5097
  %v5099 = vpop.f32.mrb[0].mxu0
  %v5100 = vadd.f32 %v4747, %v5099
  %5101 = vmatprep.mubr.bf16.mxu0 0
  %5102 = vmatmul.mubr.bf16.gmra.mrb[0].mxu0 %v4308
  %v5103 = vpop.f32.mrb[0].mxu0
  %v5104 = vadd.f32 %v4751, %v5103
  %v5105 = vpop.f32.mrb[0].mxu0
  %v5106 = vadd.f32 %v4753, %v5105
  %v5107 = vpop.f32.mrb[0].mxu0
  %v5108 = vadd.f32 %v4755, %v5107
  %v5109 = vpop.f32.mrb[0].mxu0
  %v5110 = vadd.f32 %v4757, %v5109
  %5111 = vmatprep.mubr.bf16.mxu0 0
  %5112 = vmatmul.mubr.bf16.gmra.mrb[0].mxu0 %v4311
  %v5113 = vpop.f32.mrb[0].mxu0
  %v5114 = vadd.f32 %v4761, %v5113
  %v5115 = vpop.f32.mrb[0].mxu0
  %v5116 = vadd.f32 %v4763, %v5115
  %v5117 = vpop.f32.mrb[0].mxu0
  %v5118 = vadd.f32 %v4765, %v5117
  %v5119 = vpop.f32.mrb[0].mxu0
  %v5120 = vadd.f32 %v4767, %v5119
  %5121 = vmatprep.mubr.bf16.mxu0 0
  %5122 = vmatmul.mubr.bf16.gmra.mrb[0].mxu0 %v4314
  %v5123 = vpop.f32.mrb[0].mxu0
  %v5124 = vadd.f32 %v4771, %v5123
  %v5125 = vpop.f32.mrb[0].mxu0
  %v5126 = vadd.f32 %v4773, %v5125
  %v5127 = vpop.f32.mrb[0].mxu0
  %v5128 = vadd.f32 %v4775, %v5127
  %v5129 = vpop.f32.mrb[0].mxu0
  %v5130 = vadd.f32 %v4777, %v5129
  %5131 = vmatprep.mubr.bf16.mxu0 0
  %5132 = vmatmul.mubr.bf16.gmra.mrb[0].mxu0 %v4317
  %v5133 = vpop.f32.mrb[0].mxu0
  %v5134 = vadd.f32 %v4781, %v5133
  %v5135 = vpop.f32.mrb[0].mxu0
  %v5136 = vadd.f32 %v4783, %v5135
  %v5137 = vpop.f32.mrb[0].mxu0
  %v5138 = vadd.f32 %v4785, %v5137
  %v5139 = vpop.f32.mrb[0].mxu0
  %v5140 = vadd.f32 %v4787, %v5139
  %5141 = vmatprep.mubr.bf16.mxu0 0
  %5142 = vmatmul.mubr.bf16.gmra.mrb[0].mxu0 %v4320
  %v5143 = vpop.f32.mrb[0].mxu0
  %v5144 = vadd.f32 %v4791, %v5143
  %v5145 = vpop.f32.mrb[0].mxu0
  %v5146 = vadd.f32 %v4793, %v5145
  %v5147 = vpop.f32.mrb[0].mxu0
  %v5148 = vadd.f32 %v4795, %v5147
  %v5149 = vpop.f32.mrb[0].mxu0
  %v5150 = vadd.f32 %v4797, %v5149
  %5151 = vmatprep.mubr.bf16.mxu0 0
  %5152 = vmatmul.mubr.bf16.gmra.mrb[0].mxu0 %v4323
  %v5153 = vpop.f32.mrb[0].mxu0
  %v5154 = vadd.f32 %v4801, %v5153
  %v5155 = vpop.f32.mrb[0].mxu0
  %v5156 = vadd.f32 %v4803, %v5155
  %v5157 = vpop.f32.mrb[0].mxu0
  %v5158 = vadd.f32 %v4805, %v5157
  %v5159 = vpop.f32.mrb[0].mxu0
  %v5160 = vadd.f32 %v4807, %v5159
  %5161 = vmatprep.mubr.bf16.mxu0 0
  %5162 = vmatmul.mubr.bf16.gmra.mrb[0].mxu0 %v4326
  %v5163 = vpop.f32.mrb[0].mxu0
  %v5164 = vadd.f32 %v4811, %v5163
  %v5165 = vpop.f32.mrb[0].mxu0
  %v5166 = vadd.f32 %v4813, %v5165
  %v5167 = vpop.f32.mrb[0].mxu0
  %v5168 = vadd.f32 %v4815, %v5167
  %v5169 = vpop.f32.mrb[0].mxu0
  %v5170 = vadd.f32 %v4817, %v5169
  %5171 = vmatprep.mubr.bf16.mxu0 0
  %5172 = vmatmul.mubr.bf16.gmra.mrb[0].mxu0 %v4329
  %v5173 = vpop.f32.mrb[0].mxu0
  %v5174 = vadd.f32 %v4821, %v5173
  %v5175 = vpop.f32.mrb[0].mxu0
  %v5176 = vadd.f32 %v4823, %v5175
  %v5177 = vpop.f32.mrb[0].mxu0
  %v5178 = vadd.f32 %v4825, %v5177
  %v5179 = vpop.f32.mrb[0].mxu0
  %v5180 = vadd.f32 %v4827, %v5179
  %5181 = vmatprep.mubr.bf16.mxu0 0
  %5182 = vmatmul.mubr.bf16.gmra.mrb[0].mxu0 %v4332
  %v5183 = vpop.f32.mrb[0].mxu0
  %v5184 = vadd.f32 %v4831, %v5183
  %v5185 = vpop.f32.mrb[0].mxu0
  %v5186 = vadd.f32 %v4833, %v5185
  %v5187 = vpop.f32.mrb[0].mxu0
  %v5188 = vadd.f32 %v4835, %v5187
  %v5189 = vpop.f32.mrb[0].mxu0
  %v5190 = vadd.f32 %v4837, %v5189
  %5191 = vmatprep.mubr.bf16.mxu0 0
  %5192 = vmatmul.mubr.bf16.gmra.mrb[0].mxu0 %v4335
  %v5193 = vpop.f32.mrb[0].mxu0
  %v5194 = vadd.f32 %v4841, %v5193
  %v5195 = vpop.f32.mrb[0].mxu0
  %v5196 = vadd.f32 %v4843, %v5195
  %v5197 = vpop.f32.mrb[0].mxu0
  %v5198 = vadd.f32 %v4845, %v5197
  %v5199 = vpop.f32.mrb[0].mxu0
  %v5200 = vadd.f32 %v4847, %v5199
  %5201 = vmatprep.mubr.bf16.mxu0 0
  %5202 = vmatmul.mubr.bf16.gmra.mrb[0].mxu0 %v4338
  %v5203 = vpop.f32.mrb[0].mxu0
  %v5204 = vadd.f32 %v4851, %v5203
  %v5205 = vpop.f32.mrb[0].mxu0
  %v5206 = vadd.f32 %v4853, %v5205
  %v5207 = vpop.f32.mrb[0].mxu0
  %v5208 = vadd.f32 %v4855, %v5207
  %v5209 = vpop.f32.mrb[0].mxu0
  %v5210 = vadd.f32 %v4857, %v5209
  %5211 = vmatprep.mubr.bf16.mxu0 0
  %5212 = vmatmul.mubr.bf16.gmra.mrb[0].mxu0 %v4341
  %v5213 = vpop.f32.mrb[0].mxu0
  %v5214 = vadd.f32 %v4861, %v5213
  %v5215 = vpop.f32.mrb[0].mxu0
  %v5216 = vadd.f32 %v4863, %v5215
  %v5217 = vpop.f32.mrb[0].mxu0
  %v5218 = vadd.f32 %v4865, %v5217
  %v5219 = vpop.f32.mrb[0].mxu0
  %v5220 = vadd.f32 %v4867, %v5219
  %5221 = vmatprep.mubr.bf16.mxu0 0
  %5222 = vmatmul.mubr.bf16.gmra.mrb[0].mxu0 %v4344
  %v5223 = vpop.f32.mrb[0].mxu0
  %v5224 = vadd.f32 %v4871, %v5223
  %v5225 = vpop.f32.mrb[0].mxu0
  %v5226 = vadd.f32 %v4873, %v5225
  %v5227 = vpop.f32.mrb[0].mxu0
  %v5228 = vadd.f32 %v4875, %v5227
  %v5229 = vpop.f32.mrb[0].mxu0
  %v5230 = vadd.f32 %v4877, %v5229
  %5231 = vmatprep.mubr.bf16.mxu0 0
  %5232 = vmatmul.mubr.bf16.gmra.mrb[0].mxu0 %v4347
  %v5233 = vpop.f32.mrb[0].mxu0
  %v5234 = vadd.f32 %v4881, %v5233
  %v5235 = vpop.f32.mrb[0].mxu0
  %v5236 = vadd.f32 %v4883, %v5235
  %v5237 = vpop.f32.mrb[0].mxu0
  %v5238 = vadd.f32 %v4885, %v5237
  %v5239 = vpop.f32.mrb[0].mxu0
  %v5240 = vadd.f32 %v4887, %v5239
  %5241 = vmatprep.mubr.bf16.mxu0 0
  %5242 = vmatmul.mubr.bf16.gmra.mrb[0].mxu0 %v4350
  %v5243 = vpop.f32.mrb[0].mxu0
  %v5244 = vadd.f32 %v4891, %v5243
  %v5245 = vpop.f32.mrb[0].mxu0
  %v5246 = vadd.f32 %v4893, %v5245
  %v5247 = vpop.f32.mrb[0].mxu0
  %v5248 = vadd.f32 %v4895, %v5247
  %v5249 = vpop.f32.mrb[0].mxu0
  %v5250 = vadd.f32 %v4897, %v5249
  %5251 = vmatprep.mubr.bf16.mxu0 0
  %5252 = vmatmul.mubr.bf16.gmra.mrb[0].mxu0 %v4353
  %v5253 = vpop.f32.mrb[0].mxu0
  %v5254 = vadd.f32 %v4901, %v5253
  %v5255 = vpop.f32.mrb[0].mxu0
  %v5256 = vadd.f32 %v4903, %v5255
  %v5257 = vpop.f32.mrb[0].mxu0
  %v5258 = vadd.f32 %v4905, %v5257
  %v5259 = vpop.f32.mrb[0].mxu0
  %v5260 = vadd.f32 %v4907, %v5259
  %5261 = vmatprep.mubr.bf16.mxu0 0
  %5262 = vmatmul.mubr.bf16.gmra.mrb[0].mxu0 %v4356
  %v5263 = vpop.f32.mrb[0].mxu0
  %v5264 = vadd.f32 %v4911, %v5263
  %v5265 = vpop.f32.mrb[0].mxu0
  %v5266 = vadd.f32 %v4913, %v5265
  %v5267 = vpop.f32.mrb[0].mxu0
  %v5268 = vadd.f32 %v4915, %v5267
  %v5269 = vpop.f32.mrb[0].mxu0
  %v5270 = vadd.f32 %v4917, %v5269
  %5271 = vmatprep.mubr.bf16.mxu0 0
  %5272 = vmatmul.mubr.bf16.gmra.mrb[0].mxu0 %v4359
  %v5273 = vpop.f32.mrb[0].mxu0
  %v5274 = vadd.f32 %v4921, %v5273
  %v5275 = vpop.f32.mrb[0].mxu0
  %v5276 = vadd.f32 %v4923, %v5275
  %v5277 = vpop.f32.mrb[0].mxu0
  %v5278 = vadd.f32 %v4925, %v5277
  %v5279 = vpop.f32.mrb[0].mxu0
  %v5280 = vadd.f32 %v4927, %v5279
  %5281 = vmatprep.mubr.bf16.mxu0 0
  %5282 = vmatmul.mubr.bf16.gmra.mrb[0].mxu0 %v4362
  %v5283 = vpop.f32.mrb[0].mxu0
  %v5284 = vadd.f32 %v4931, %v5283
  %v5285 = vpop.f32.mrb[0].mxu0
  %v5286 = vadd.f32 %v4933, %v5285
  %v5287 = vpop.f32.mrb[0].mxu0
  %v5288 = vadd.f32 %v4935, %v5287
  %v5289 = vpop.f32.mrb[0].mxu0
  %v5290 = vadd.f32 %v4937, %v5289
  %5291 = vmatprep.mubr.bf16.mxu0 0
  %5292 = vmatmul.mubr.bf16.gmra.mrb[0].mxu0 %v4365
  %v5293 = vpop.f32.mrb[0].mxu0
  %v5294 = vadd.f32 %v4941, %v5293
  %v5295 = vpop.f32.mrb[0].mxu0
  %v5296 = vadd.f32 %v4943, %v5295
  %v5297 = vpop.f32.mrb[0].mxu0
  %v5298 = vadd.f32 %v4945, %v5297
  %v5299 = vpop.f32.mrb[0].mxu0
  %v5300 = vadd.f32 %v4947, %v5299
  %5301 = vmatprep.mubr.bf16.mxu0 0
  %5302 = vmatmul.mubr.bf16.gmra.mrb[0].mxu0 %v4368
  %v5303 = vpop.f32.mrb[0].mxu0
  %v5304 = vadd.f32 %v4951, %v5303
  %v5305 = vpop.f32.mrb[0].mxu0
  %v5306 = vadd.f32 %v4953, %v5305
  %v5307 = vpop.f32.mrb[0].mxu0
  %v5308 = vadd.f32 %v4955, %v5307
  %v5309 = vpop.f32.mrb[0].mxu0
  %v5310 = vadd.f32 %v4957, %v5309
  %5311 = vmatprep.mubr.bf16.mxu0 0
  %5312 = vmatmul.mubr.bf16.gmra.mrb[0].mxu0 %v4371
  %v5313 = vpop.f32.mrb[0].mxu0
  %v5314 = vadd.f32 %v4961, %v5313
  %v5315 = vpop.f32.mrb[0].mxu0
  %v5316 = vadd.f32 %v4963, %v5315
  %v5317 = vpop.f32.mrb[0].mxu0
  %v5318 = vadd.f32 %v4965, %v5317
  %v5319 = vpop.f32.mrb[0].mxu0
  %v5320 = vadd.f32 %v4967, %v5319
  %5321 = vmatprep.mubr.bf16.mxu0 0
  %5322 = vmatmul.mubr.bf16.gmra.mrb[0].mxu0 %v4374
  %v5323 = vpop.f32.mrb[0].mxu0
  %v5324 = vadd.f32 %v4971, %v5323
  %v5325 = vpop.f32.mrb[0].mxu0
  %v5326 = vadd.f32 %v4973, %v5325
  %v5327 = vpop.f32.mrb[0].mxu0
  %v5328 = vadd.f32 %v4975, %v5327
  %v5329 = vpop.f32.mrb[0].mxu0
  %v5330 = vadd.f32 %v4977, %v5329
  %5331 = vmatprep.mubr.bf16.mxu0 0
  %5332 = vmatmul.mubr.bf16.gmra.mrb[0].mxu0 %v4377
  %v5333 = vpop.f32.mrb[0].mxu0
  %v5334 = vadd.f32 %v4981, %v5333
  %v5335 = vpop.f32.mrb[0].mxu0
  %v5336 = vadd.f32 %v4983, %v5335
  %v5337 = vpop.f32.mrb[0].mxu0
  %v5338 = vadd.f32 %v4985, %v5337
  %v5339 = vpop.f32.mrb[0].mxu0
  %v5340 = vadd.f32 %v4987, %v5339
  %5341 = vmatprep.mubr.bf16.mxu0 0
  %5342 = vmatmul.mubr.bf16.gmra.mrb[0].mxu0 %v4380
  %v5343 = vpop.f32.mrb[0].mxu0
  %v5344 = vadd.f32 %v4991, %v5343
  %v5345 = vpop.f32.mrb[0].mxu0
  %v5346 = vadd.f32 %v4993, %v5345
  %v5347 = vpop.f32.mrb[0].mxu0
  %v5348 = vadd.f32 %v4995, %v5347
  %v5349 = vpop.f32.mrb[0].mxu0
  %v5350 = vadd.f32 %v4997, %v5349
  %5351 = vmatprep.mubr.bf16.mxu0 0
  %5352 = vmatmul.mubr.bf16.gmra.mrb[0].mxu0 %v4383
  %v5353 = vpop.f32.mrb[0].mxu0
  %v5354 = vadd.f32 %v5001, %v5353
  %v5355 = vpop.f32.mrb[0].mxu0
  %v5356 = vadd.f32 %v5003, %v5355
  %v5357 = vpop.f32.mrb[0].mxu0
  %v5358 = vadd.f32 %v5005, %v5357
  %v5359 = vpop.f32.mrb[0].mxu0
  %v5360 = vadd.f32 %v5007, %v5359
  %5361 = vmatprep.mubr.bf16.mxu0 0
  %5362 = vmatmul.mubr.bf16.gmra.mrb[0].mxu0 %v4386
  %v5363 = vpop.f32.mrb[0].mxu0
  %v5364 = vadd.f32 %v5011, %v5363
  %v5365 = vpop.f32.mrb[0].mxu0
  %v5366 = vadd.f32 %v5013, %v5365
  %v5367 = vpop.f32.mrb[0].mxu0
  %v5368 = vadd.f32 %v5015, %v5367
  %v5369 = vpop.f32.mrb[0].mxu0
  %v5370 = vadd.f32 %v5017, %v5369
  %5371 = vmatprep.mubr.bf16.mxu0 0
  %5372 = vmatmul.mubr.bf16.gmra.mrb[0].mxu0 %v4389
  %v5373 = vpop.f32.mrb[0].mxu0
  %v5374 = vadd.f32 %v5021, %v5373
  %v5375 = vpop.f32.mrb[0].mxu0
  %v5376 = vadd.f32 %v5023, %v5375
  %v5377 = vpop.f32.mrb[0].mxu0
  %v5378 = vadd.f32 %v5025, %v5377
  %v5379 = vpop.f32.mrb[0].mxu0
  %v5380 = vadd.f32 %v5027, %v5379
  %5381 = vmatprep.mubr.bf16.mxu0 0
  %5382 = vmatmul.mubr.bf16.gmra.mrb[0].mxu0 %v4392
  %v5383 = vpop.f32.mrb[0].mxu0
  %v5384 = vadd.f32 %v5031, %v5383
  %v5385 = vpop.f32.mrb[0].mxu0
  %v5386 = vadd.f32 %v5033, %v5385
  %v5387 = vpop.f32.mrb[0].mxu0
  %v5388 = vadd.f32 %v5035, %v5387
  %v5389 = vpop.f32.mrb[0].mxu0
  %v5390 = vadd.f32 %v5037, %v5389
  %5391 = vmatprep.mubr.bf16.mxu0 0
  %5392 = vmatmul.mubr.bf16.gmra.mrb[0].mxu0 %v4395
  %v5393 = vpop.f32.mrb[0].mxu0
  %v5394 = vadd.f32 %v5041, %v5393
  %v5395 = vpop.f32.mrb[0].mxu0
  %v5396 = vadd.f32 %v5043, %v5395
  %v5397 = vpop.f32.mrb[0].mxu0
  %v5398 = vadd.f32 %v5045, %v5397
  %v5399 = vpop.f32.mrb[0].mxu0
  %v5400 = vadd.f32 %v5047, %v5399
  %5401 = vdwg.mxu0
  %v5402 = vmax.f32 %v5084, 0.0
  %v5403 = vmax.f32 %v5086, 0.0
  %v5404 = vmax.f32 %v5088, 0.0
  %v5405 = vmax.f32 %v5090, 0.0
  %v5406 = vmax.f32 %v5094, 0.0
  %v5407 = vmax.f32 %v5096, 0.0
  %v5408 = vmax.f32 %v5098, 0.0
  %v5409 = vmax.f32 %v5100, 0.0
  %v5410 = vmax.f32 %v5104, 0.0
  %v5411 = vmax.f32 %v5106, 0.0
  %v5412 = vmax.f32 %v5108, 0.0
  %v5413 = vmax.f32 %v5110, 0.0
  %v5414 = vmax.f32 %v5114, 0.0
  %v5415 = vmax.f32 %v5116, 0.0
  %v5416 = vmax.f32 %v5118, 0.0
  %v5417 = vmax.f32 %v5120, 0.0
  %v5418 = vmax.f32 %v5124, 0.0
  %v5419 = vmax.f32 %v5126, 0.0
  %v5420 = vmax.f32 %v5128, 0.0
  %v5421 = vmax.f32 %v5130, 0.0
  %v5422 = vmax.f32 %v5134, 0.0
  %v5423 = vmax.f32 %v5136, 0.0
  %v5424 = vmax.f32 %v5138, 0.0
  %v5425 = vmax.f32 %v5140, 0.0
  %v5426 = vmax.f32 %v5144, 0.0
  %v5427 = vmax.f32 %v5146, 0.0
  %v5428 = vmax.f32 %v5148, 0.0
  %v5429 = vmax.f32 %v5150, 0.0
  %v5430 = vmax.f32 %v5154, 0.0
  %v5431 = vmax.f32 %v5156, 0.0
  %v5432 = vmax.f32 %v5158, 0.0
  %v5433 = vmax.f32 %v5160, 0.0
  %v5434 = vmax.f32 %v5164, 0.0
  %v5435 = vmax.f32 %v5166, 0.0
  %v5436 = vmax.f32 %v5168, 0.0
  %v5437 = vmax.f32 %v5170, 0.0
  %v5438 = vmax.f32 %v5174, 0.0
  %v5439 = vmax.f32 %v5176, 0.0
  %v5440 = vmax.f32 %v5178, 0.0
  %v5441 = vmax.f32 %v5180, 0.0
  %v5442 = vmax.f32 %v5184, 0.0
  %v5443 = vmax.f32 %v5186, 0.0
  %v5444 = vmax.f32 %v5188, 0.0
  %v5445 = vmax.f32 %v5190, 0.0
  %v5446 = vmax.f32 %v5194, 0.0
  %v5447 = vmax.f32 %v5196, 0.0
  %v5448 = vmax.f32 %v5198, 0.0
  %v5449 = vmax.f32 %v5200, 0.0
  %v5450 = vmax.f32 %v5204, 0.0
  %v5451 = vmax.f32 %v5206, 0.0
  %v5452 = vmax.f32 %v5208, 0.0
  %v5453 = vmax.f32 %v5210, 0.0
  %v5454 = vmax.f32 %v5214, 0.0
  %v5455 = vmax.f32 %v5216, 0.0
  %v5456 = vmax.f32 %v5218, 0.0
  %v5457 = vmax.f32 %v5220, 0.0
  %v5458 = vmax.f32 %v5224, 0.0
  %v5459 = vmax.f32 %v5226, 0.0
  %v5460 = vmax.f32 %v5228, 0.0
  %v5461 = vmax.f32 %v5230, 0.0
  %v5462 = vmax.f32 %v5234, 0.0
  %v5463 = vmax.f32 %v5236, 0.0
  %v5464 = vmax.f32 %v5238, 0.0
  %v5465 = vmax.f32 %v5240, 0.0
  %v5466 = vmax.f32 %v5244, 0.0
  %v5467 = vmax.f32 %v5246, 0.0
  %v5468 = vmax.f32 %v5248, 0.0
  %v5469 = vmax.f32 %v5250, 0.0
  %v5470 = vmax.f32 %v5254, 0.0
  %v5471 = vmax.f32 %v5256, 0.0
  %v5472 = vmax.f32 %v5258, 0.0
  %v5473 = vmax.f32 %v5260, 0.0
  %v5474 = vmax.f32 %v5264, 0.0
  %v5475 = vmax.f32 %v5266, 0.0
  %v5476 = vmax.f32 %v5268, 0.0
  %v5477 = vmax.f32 %v5270, 0.0
  %v5478 = vmax.f32 %v5274, 0.0
  %v5479 = vmax.f32 %v5276, 0.0
  %v5480 = vmax.f32 %v5278, 0.0
  %v5481 = vmax.f32 %v5280, 0.0
  %v5482 = vmax.f32 %v5284, 0.0
  %v5483 = vmax.f32 %v5286, 0.0
  %v5484 = vmax.f32 %v5288, 0.0
  %v5485 = vmax.f32 %v5290, 0.0
  %v5486 = vmax.f32 %v5294, 0.0
  %v5487 = vmax.f32 %v5296, 0.0
  %v5488 = vmax.f32 %v5298, 0.0
  %v5489 = vmax.f32 %v5300, 0.0
  %v5490 = vmax.f32 %v5304, 0.0
  %v5491 = vmax.f32 %v5306, 0.0
  %v5492 = vmax.f32 %v5308, 0.0
  %v5493 = vmax.f32 %v5310, 0.0
  %v5494 = vmax.f32 %v5314, 0.0
  %v5495 = vmax.f32 %v5316, 0.0
  %v5496 = vmax.f32 %v5318, 0.0
  %v5497 = vmax.f32 %v5320, 0.0
  %v5498 = vmax.f32 %v5324, 0.0
  %v5499 = vmax.f32 %v5326, 0.0
  %v5500 = vmax.f32 %v5328, 0.0
  %v5501 = vmax.f32 %v5330, 0.0
  %v5502 = vmax.f32 %v5334, 0.0
  %v5503 = vmax.f32 %v5336, 0.0
  %v5504 = vmax.f32 %v5338, 0.0
  %v5505 = vmax.f32 %v5340, 0.0
  %v5506 = vmax.f32 %v5344, 0.0
  %v5507 = vmax.f32 %v5346, 0.0
  %v5508 = vmax.f32 %v5348, 0.0
  %v5509 = vmax.f32 %v5350, 0.0
  %v5510 = vmax.f32 %v5354, 0.0
  %v5511 = vmax.f32 %v5356, 0.0
  %v5512 = vmax.f32 %v5358, 0.0
  %v5513 = vmax.f32 %v5360, 0.0
  %v5514 = vmax.f32 %v5364, 0.0
  %v5515 = vmax.f32 %v5366, 0.0
  %v5516 = vmax.f32 %v5368, 0.0
  %v5517 = vmax.f32 %v5370, 0.0
  %v5518 = vmax.f32 %v5374, 0.0
  %v5519 = vmax.f32 %v5376, 0.0
  %v5520 = vmax.f32 %v5378, 0.0
  %v5521 = vmax.f32 %v5380, 0.0
  %v5522 = vmax.f32 %v5384, 0.0
  %v5523 = vmax.f32 %v5386, 0.0
  %v5524 = vmax.f32 %v5388, 0.0
  %v5525 = vmax.f32 %v5390, 0.0
  %v5526 = vmax.f32 %v5394, 0.0
  %v5527 = vmax.f32 %v5396, 0.0
  %v5528 = vmax.f32 %v5398, 0.0
  %v5529 = vmax.f32 %v5400, 0.0
  %v5530 = vld [vmem:[%s5] sm:$0xff]
  %v5531 = vld [vmem:[%s5 + $0x8] sm:$0xff]
  %v5532 = vld [vmem:[%s5 + $0x10] sm:$0xff]
  %v5533 = vld [vmem:[%s5 + $0x18] sm:$0xff]
  %v5534 = vld [vmem:[%s5 + $0x20] sm:$0xff]
  %v5535 = vld [vmem:[%s5 + $0x28] sm:$0xff]
  %v5536 = vld [vmem:[%s5 + $0x30] sm:$0xff]
  %v5537 = vld [vmem:[%s5 + $0x38] sm:$0xff]
  %v5538 = vld [vmem:[%s5 + $0x40] sm:$0xff]
  %v5539 = vld [vmem:[%s5 + $0x48] sm:$0xff]
  %v5540 = vld [vmem:[%s5 + $0x50] sm:$0xff]
  %v5541 = vld [vmem:[%s5 + $0x58] sm:$0xff]
  %v5542 = vld [vmem:[%s5 + $0x60] sm:$0xff]
  %v5543 = vld [vmem:[%s5 + $0x68] sm:$0xff]
  %v5544 = vld [vmem:[%s5 + $0x70] sm:$0xff]
  %v5545 = vld [vmem:[%s5 + $0x78] sm:$0xff]
  %v5546 = vld [vmem:[%s5 + $0x80] sm:$0xff]
  %v5547 = vld [vmem:[%s5 + $0x88] sm:$0xff]
  %v5548 = vld [vmem:[%s5 + $0x90] sm:$0xff]
  %v5549 = vld [vmem:[%s5 + $0x98] sm:$0xff]
  %v5550 = vld [vmem:[%s5 + $0xa0] sm:$0xff]
  %v5551 = vld [vmem:[%s5 + $0xa8] sm:$0xff]
  %v5552 = vld [vmem:[%s5 + $0xb0] sm:$0xff]
  %v5553 = vld [vmem:[%s5 + $0xb8] sm:$0xff]
  %v5554 = vld [vmem:[%s6] sm:$0x1]
  %v5556 = vlaneseq
  %v5557 = vshrl.u32 %v5556, 7
  %v5558 = vsub.s32 0, %v5557
  %v5559 = vrot.slane %v5554, %v5558
  %vm5561 = vcmask 523264
  %v5563 = vsel %vm5561, %v5403, 0
  %v5566 = vsel %vm5561, %v5405, 0
  %v5569 = vsel %vm5561, %v5407, 0
  %v5572 = vsel %vm5561, %v5409, 0
  %v5575 = vsel %vm5561, %v5411, 0
  %v5578 = vsel %vm5561, %v5413, 0
  %v5581 = vsel %vm5561, %v5415, 0
  %v5584 = vsel %vm5561, %v5417, 0
  %v5587 = vsel %vm5561, %v5419, 0
  %v5590 = vsel %vm5561, %v5421, 0
  %v5593 = vsel %vm5561, %v5423, 0
  %v5596 = vsel %vm5561, %v5425, 0
  %v5599 = vsel %vm5561, %v5427, 0
  %v5602 = vsel %vm5561, %v5429, 0
  %v5605 = vsel %vm5561, %v5431, 0
  %v5608 = vsel %vm5561, %v5433, 0
  %v5611 = vsel %vm5561, %v5435, 0
  %v5614 = vsel %vm5561, %v5437, 0
  %v5617 = vsel %vm5561, %v5439, 0
  %v5620 = vsel %vm5561, %v5441, 0
  %v5623 = vsel %vm5561, %v5443, 0
  %v5626 = vsel %vm5561, %v5445, 0
  %v5629 = vsel %vm5561, %v5447, 0
  %v5632 = vsel %vm5561, %v5449, 0
  %v5635 = vsel %vm5561, %v5451, 0
  %v5638 = vsel %vm5561, %v5453, 0
  %v5641 = vsel %vm5561, %v5455, 0
  %v5644 = vsel %vm5561, %v5457, 0
  %v5647 = vsel %vm5561, %v5459, 0
  %v5650 = vsel %vm5561, %v5461, 0
  %v5653 = vsel %vm5561, %v5463, 0
  %v5656 = vsel %vm5561, %v5465, 0
  %v5659 = vsel %vm5561, %v5467, 0
  %v5662 = vsel %vm5561, %v5469, 0
  %v5665 = vsel %vm5561, %v5471, 0
  %v5668 = vsel %vm5561, %v5473, 0
  %v5671 = vsel %vm5561, %v5475, 0
  %v5674 = vsel %vm5561, %v5477, 0
  %v5677 = vsel %vm5561, %v5479, 0
  %v5680 = vsel %vm5561, %v5481, 0
  %v5683 = vsel %vm5561, %v5483, 0
  %v5686 = vsel %vm5561, %v5485, 0
  %v5689 = vsel %vm5561, %v5487, 0
  %v5692 = vsel %vm5561, %v5489, 0
  %v5695 = vsel %vm5561, %v5491, 0
  %v5698 = vsel %vm5561, %v5493, 0
  %v5701 = vsel %vm5561, %v5495, 0
  %v5704 = vsel %vm5561, %v5497, 0
  %v5707 = vsel %vm5561, %v5499, 0
  %v5710 = vsel %vm5561, %v5501, 0
  %v5713 = vsel %vm5561, %v5503, 0
  %v5716 = vsel %vm5561, %v5505, 0
  %v5719 = vsel %vm5561, %v5507, 0
  %v5722 = vsel %vm5561, %v5509, 0
  %v5725 = vsel %vm5561, %v5511, 0
  %v5728 = vsel %vm5561, %v5513, 0
  %v5731 = vsel %vm5561, %v5515, 0
  %v5734 = vsel %vm5561, %v5517, 0
  %v5737 = vsel %vm5561, %v5519, 0
  %v5740 = vsel %vm5561, %v5521, 0
  %v5743 = vsel %vm5561, %v5523, 0
  %v5746 = vsel %vm5561, %v5525, 0
  %v5749 = vsel %vm5561, %v5527, 0
  %v5752 = vsel %vm5561, %v5529, 0
  %5754 = vmatprep.subr.mxu0 0.0
  %5755 = vmatpush1.msra.mxu0 %v5530
  %5756 = vmatprep.subr.mxu0 0.0
  %5757 = vmatpush1.msra.mxu0 %v5531
  %5758 = vmatprep.subr.mxu0 0.0
  %5759 = vmatpush1.msra.mxu0 %v5532
  %5760 = vmatprep.subr.mxu0 0.0
  %5761 = vmatpush1.msra.mxu0 %v5533
  %5762 = vmatprep.subr.mxu0 0.0
  %5763 = vmatpush1.msra.mxu0 %v5534
  %5764 = vmatprep.subr.mxu0 0.0
  %5765 = vmatpush1.msra.mxu0 %v5535
  %5766 = vmatprep.subr.mxu0 0.0
  %5767 = vmatpush1.msra.mxu0 %v5536
  %5768 = vmatprep.subr.mxu0 0.0
  %5769 = vmatpush1.msra.mxu0 %v5537
  %5770 = vmatprep.subr.mxu0 0.0
  %5771 = vmatpush1.msra.mxu0 %v5538
  %5772 = vmatprep.subr.mxu0 0.0
  %5773 = vmatpush1.msra.mxu0 %v5539
  %5774 = vmatprep.subr.mxu0 0.0
  %5775 = vmatpush1.msra.mxu0 %v5540
  %5776 = vmatprep.subr.mxu0 0.0
  %5777 = vmatpush1.msra.mxu0 %v5541
  %5778 = vmatprep.subr.mxu0 0.0
  %5779 = vmatpush1.msra.mxu0 %v5542
  %5780 = vmatprep.subr.mxu0 0.0
  %5781 = vmatpush1.msra.mxu0 %v5543
  %5782 = vmatprep.subr.mxu0 0.0
  %5783 = vmatpush1.msra.mxu0 %v5544
  %5784 = vmatprep.subr.mxu0 0.0
  %5785 = vmatpush1.msra.mxu0 %v5545
  %5786 = vmatprep.subr.mxu0 0.0
  %5787 = vmatpush1.msra.mxu0 %v5546
  %5788 = vmatprep.subr.mxu0 0.0
  %5789 = vmatpush1.msra.mxu0 %v5547
  %5790 = vmatprep.subr.mxu0 0.0
  %5791 = vmatpush1.msra.mxu0 %v5548
  %5792 = vmatprep.subr.mxu0 0.0
  %5793 = vmatpush1.msra.mxu0 %v5549
  %5794 = vmatprep.subr.mxu0 0.0
  %5795 = vmatpush1.msra.mxu0 %v5550
  %5796 = vmatprep.subr.mxu0 0.0
  %5797 = vmatpush1.msra.mxu0 %v5551
  %5798 = vmatprep.subr.mxu0 0.0
  %5799 = vmatpush1.msra.mxu0 %v5552
  %5800 = vmatprep.subr.mxu0 0.0
  %5801 = vmatpush1.msra.mxu0 %v5553
  %5802 = vmatprep.subr.mxu0 0.0
  %5803 = vmatpush1.msra.mxu0 0.0
  %5804 = vmatprep.subr.mxu0 0.0
  %5805 = vmatpush1.msra.mxu0 0.0
  %5806 = vmatprep.subr.mxu0 0.0
  %5807 = vmatpush1.msra.mxu0 0.0
  %5808 = vmatprep.subr.mxu0 0.0
  %5809 = vmatpush1.msra.mxu0 0.0
  %5810 = vmatprep.subr.mxu0 0.0
  %5811 = vmatpush1.msra.mxu0 0.0
  %5812 = vmatprep.subr.mxu0 0.0
  %5813 = vmatpush1.msra.mxu0 0.0
  %5814 = vmatprep.subr.mxu0 0.0
  %5815 = vmatpush1.msra.mxu0 0.0
  %5816 = vmatprep.subr.mxu0 0.0
  %5817 = vmatpush1.msra.mxu0 0.0
  %5818 = vmatprep.mubr.f32.mxu0 %v5563
  %5819 = vmatmul.mubr.f32.gmra.mrb[0].mxu0 %v5402
  %v5820 = vpop.f32.mrb[0].mxu0
  %v5821 = vadd.f32 %v5559, %v5820
  %v5822 = vpop.f32.mrb[0].mxu0
  %5823 = vmatprep.mubr.f32.mxu0 %v5566
  %5824 = vmatmul.mubr.f32.gmra.mrb[0].mxu0 %v5404
  %v5825 = vpop.f32.mrb[0].mxu0
  %v5826 = vadd.f32 %v5559, %v5825
  %v5827 = vpop.f32.mrb[0].mxu0
  %5828 = vmatprep.mubr.f32.mxu0 %v5569
  %5829 = vmatmul.mubr.f32.gmra.mrb[0].mxu0 %v5406
  %v5830 = vpop.f32.mrb[0].mxu0
  %v5831 = vadd.f32 %v5559, %v5830
  %v5832 = vpop.f32.mrb[0].mxu0
  %5833 = vmatprep.mubr.f32.mxu0 %v5572
  %5834 = vmatmul.mubr.f32.gmra.mrb[0].mxu0 %v5408
  %v5835 = vpop.f32.mrb[0].mxu0
  %v5836 = vadd.f32 %v5559, %v5835
  %v5837 = vpop.f32.mrb[0].mxu0
  %5838 = vmatprep.mubr.f32.mxu0 %v5575
  %5839 = vmatmul.mubr.f32.gmra.mrb[0].mxu0 %v5410
  %v5840 = vpop.f32.mrb[0].mxu0
  %v5841 = vadd.f32 %v5559, %v5840
  %v5842 = vpop.f32.mrb[0].mxu0
  %5843 = vmatprep.mubr.f32.mxu0 %v5578
  %5844 = vmatmul.mubr.f32.gmra.mrb[0].mxu0 %v5412
  %v5845 = vpop.f32.mrb[0].mxu0
  %v5846 = vadd.f32 %v5559, %v5845
  %v5847 = vpop.f32.mrb[0].mxu0
  %5848 = vmatprep.mubr.f32.mxu0 %v5581
  %5849 = vmatmul.mubr.f32.gmra.mrb[0].mxu0 %v5414
  %v5850 = vpop.f32.mrb[0].mxu0
  %v5851 = vadd.f32 %v5559, %v5850
  %v5852 = vpop.f32.mrb[0].mxu0
  %5853 = vmatprep.mubr.f32.mxu0 %v5584
  %5854 = vmatmul.mubr.f32.gmra.mrb[0].mxu0 %v5416
  %v5855 = vpop.f32.mrb[0].mxu0
  %v5856 = vadd.f32 %v5559, %v5855
  %v5857 = vpop.f32.mrb[0].mxu0
  %5858 = vmatprep.mubr.f32.mxu0 %v5587
  %5859 = vmatmul.mubr.f32.gmra.mrb[0].mxu0 %v5418
  %v5860 = vpop.f32.mrb[0].mxu0
  %v5861 = vadd.f32 %v5559, %v5860
  %v5862 = vpop.f32.mrb[0].mxu0
  %5863 = vmatprep.mubr.f32.mxu0 %v5590
  %5864 = vmatmul.mubr.f32.gmra.mrb[0].mxu0 %v5420
  %v5865 = vpop.f32.mrb[0].mxu0
  %v5866 = vadd.f32 %v5559, %v5865
  %v5867 = vpop.f32.mrb[0].mxu0
  %5868 = vmatprep.mubr.f32.mxu0 %v5593
  %5869 = vmatmul.mubr.f32.gmra.mrb[0].mxu0 %v5422
  %v5870 = vpop.f32.mrb[0].mxu0
  %v5871 = vadd.f32 %v5559, %v5870
  %v5872 = vpop.f32.mrb[0].mxu0
  %5873 = vmatprep.mubr.f32.mxu0 %v5596
  %5874 = vmatmul.mubr.f32.gmra.mrb[0].mxu0 %v5424
  %v5875 = vpop.f32.mrb[0].mxu0
  %v5876 = vadd.f32 %v5559, %v5875
  %v5877 = vpop.f32.mrb[0].mxu0
  %5878 = vmatprep.mubr.f32.mxu0 %v5599
  %5879 = vmatmul.mubr.f32.gmra.mrb[0].mxu0 %v5426
  %v5880 = vpop.f32.mrb[0].mxu0
  %v5881 = vadd.f32 %v5559, %v5880
  %v5882 = vpop.f32.mrb[0].mxu0
  %5883 = vmatprep.mubr.f32.mxu0 %v5602
  %5884 = vmatmul.mubr.f32.gmra.mrb[0].mxu0 %v5428
  %v5885 = vpop.f32.mrb[0].mxu0
  %v5886 = vadd.f32 %v5559, %v5885
  %v5887 = vpop.f32.mrb[0].mxu0
  %5888 = vmatprep.mubr.f32.mxu0 %v5605
  %5889 = vmatmul.mubr.f32.gmra.mrb[0].mxu0 %v5430
  %v5890 = vpop.f32.mrb[0].mxu0
  %v5891 = vadd.f32 %v5559, %v5890
  %v5892 = vpop.f32.mrb[0].mxu0
  %5893 = vmatprep.mubr.f32.mxu0 %v5608
  %5894 = vmatmul.mubr.f32.gmra.mrb[0].mxu0 %v5432
  %v5895 = vpop.f32.mrb[0].mxu0
  %v5896 = vadd.f32 %v5559, %v5895
  %v5897 = vpop.f32.mrb[0].mxu0
  %5898 = vmatprep.mubr.f32.mxu0 %v5611
  %5899 = vmatmul.mubr.f32.gmra.mrb[0].mxu0 %v5434
  %v5900 = vpop.f32.mrb[0].mxu0
  %v5901 = vadd.f32 %v5559, %v5900
  %v5902 = vpop.f32.mrb[0].mxu0
  %5903 = vmatprep.mubr.f32.mxu0 %v5614
  %5904 = vmatmul.mubr.f32.gmra.mrb[0].mxu0 %v5436
  %v5905 = vpop.f32.mrb[0].mxu0
  %v5906 = vadd.f32 %v5559, %v5905
  %v5907 = vpop.f32.mrb[0].mxu0
  %5908 = vmatprep.mubr.f32.mxu0 %v5617
  %5909 = vmatmul.mubr.f32.gmra.mrb[0].mxu0 %v5438
  %v5910 = vpop.f32.mrb[0].mxu0
  %v5911 = vadd.f32 %v5559, %v5910
  %v5912 = vpop.f32.mrb[0].mxu0
  %5913 = vmatprep.mubr.f32.mxu0 %v5620
  %5914 = vmatmul.mubr.f32.gmra.mrb[0].mxu0 %v5440
  %v5915 = vpop.f32.mrb[0].mxu0
  %v5916 = vadd.f32 %v5559, %v5915
  %v5917 = vpop.f32.mrb[0].mxu0
  %5918 = vmatprep.mubr.f32.mxu0 %v5623
  %5919 = vmatmul.mubr.f32.gmra.mrb[0].mxu0 %v5442
  %v5920 = vpop.f32.mrb[0].mxu0
  %v5921 = vadd.f32 %v5559, %v5920
  %v5922 = vpop.f32.mrb[0].mxu0
  %5923 = vmatprep.mubr.f32.mxu0 %v5626
  %5924 = vmatmul.mubr.f32.gmra.mrb[0].mxu0 %v5444
  %v5925 = vpop.f32.mrb[0].mxu0
  %v5926 = vadd.f32 %v5559, %v5925
  %v5927 = vpop.f32.mrb[0].mxu0
  %5928 = vmatprep.mubr.f32.mxu0 %v5629
  %5929 = vmatmul.mubr.f32.gmra.mrb[0].mxu0 %v5446
  %v5930 = vpop.f32.mrb[0].mxu0
  %v5931 = vadd.f32 %v5559, %v5930
  %v5932 = vpop.f32.mrb[0].mxu0
  %5933 = vmatprep.mubr.f32.mxu0 %v5632
  %5934 = vmatmul.mubr.f32.gmra.mrb[0].mxu0 %v5448
  %v5935 = vpop.f32.mrb[0].mxu0
  %v5936 = vadd.f32 %v5559, %v5935
  %v5937 = vpop.f32.mrb[0].mxu0
  %5938 = vmatprep.mubr.f32.mxu0 %v5635
  %5939 = vmatmul.mubr.f32.gmra.mrb[0].mxu0 %v5450
  %v5940 = vpop.f32.mrb[0].mxu0
  %v5941 = vadd.f32 %v5559, %v5940
  %v5942 = vpop.f32.mrb[0].mxu0
  %5943 = vmatprep.mubr.f32.mxu0 %v5638
  %5944 = vmatmul.mubr.f32.gmra.mrb[0].mxu0 %v5452
  %v5945 = vpop.f32.mrb[0].mxu0
  %v5946 = vadd.f32 %v5559, %v5945
  %v5947 = vpop.f32.mrb[0].mxu0
  %5948 = vmatprep.mubr.f32.mxu0 %v5641
  %5949 = vmatmul.mubr.f32.gmra.mrb[0].mxu0 %v5454
  %v5950 = vpop.f32.mrb[0].mxu0
  %v5951 = vadd.f32 %v5559, %v5950
  %v5952 = vpop.f32.mrb[0].mxu0
  %5953 = vmatprep.mubr.f32.mxu0 %v5644
  %5954 = vmatmul.mubr.f32.gmra.mrb[0].mxu0 %v5456
  %v5955 = vpop.f32.mrb[0].mxu0
  %v5956 = vadd.f32 %v5559, %v5955
  %v5957 = vpop.f32.mrb[0].mxu0
  %5958 = vmatprep.mubr.f32.mxu0 %v5647
  %5959 = vmatmul.mubr.f32.gmra.mrb[0].mxu0 %v5458
  %v5960 = vpop.f32.mrb[0].mxu0
  %v5961 = vadd.f32 %v5559, %v5960
  %v5962 = vpop.f32.mrb[0].mxu0
  %5963 = vmatprep.mubr.f32.mxu0 %v5650
  %5964 = vmatmul.mubr.f32.gmra.mrb[0].mxu0 %v5460
  %v5965 = vpop.f32.mrb[0].mxu0
  %v5966 = vadd.f32 %v5559, %v5965
  %v5967 = vpop.f32.mrb[0].mxu0
  %5968 = vmatprep.mubr.f32.mxu0 %v5653
  %5969 = vmatmul.mubr.f32.gmra.mrb[0].mxu0 %v5462
  %v5970 = vpop.f32.mrb[0].mxu0
  %v5971 = vadd.f32 %v5559, %v5970
  %v5972 = vpop.f32.mrb[0].mxu0
  %5973 = vmatprep.mubr.f32.mxu0 %v5656
  %5974 = vmatmul.mubr.f32.gmra.mrb[0].mxu0 %v5464
  %v5975 = vpop.f32.mrb[0].mxu0
  %v5976 = vadd.f32 %v5559, %v5975
  %v5977 = vpop.f32.mrb[0].mxu0
  %5978 = vmatprep.mubr.f32.mxu0 %v5659
  %5979 = vmatmul.mubr.f32.gmra.mrb[0].mxu0 %v5466
  %v5980 = vpop.f32.mrb[0].mxu0
  %v5981 = vadd.f32 %v5559, %v5980
  %v5982 = vpop.f32.mrb[0].mxu0
  %5983 = vmatprep.mubr.f32.mxu0 %v5662
  %5984 = vmatmul.mubr.f32.gmra.mrb[0].mxu0 %v5468
  %v5985 = vpop.f32.mrb[0].mxu0
  %v5986 = vadd.f32 %v5559, %v5985
  %v5987 = vpop.f32.mrb[0].mxu0
  %5988 = vmatprep.mubr.f32.mxu0 %v5665
  %5989 = vmatmul.mubr.f32.gmra.mrb[0].mxu0 %v5470
  %v5990 = vpop.f32.mrb[0].mxu0
  %v5991 = vadd.f32 %v5559, %v5990
  %v5992 = vpop.f32.mrb[0].mxu0
  %5993 = vmatprep.mubr.f32.mxu0 %v5668
  %5994 = vmatmul.mubr.f32.gmra.mrb[0].mxu0 %v5472
  %v5995 = vpop.f32.mrb[0].mxu0
  %v5996 = vadd.f32 %v5559, %v5995
  %v5997 = vpop.f32.mrb[0].mxu0
  %5998 = vmatprep.mubr.f32.mxu0 %v5671
  %5999 = vmatmul.mubr.f32.gmra.mrb[0].mxu0 %v5474
  %v6000 = vpop.f32.mrb[0].mxu0
  %v6001 = vadd.f32 %v5559, %v6000
  %v6002 = vpop.f32.mrb[0].mxu0
  %6003 = vmatprep.mubr.f32.mxu0 %v5674
  %6004 = vmatmul.mubr.f32.gmra.mrb[0].mxu0 %v5476
  %v6005 = vpop.f32.mrb[0].mxu0
  %v6006 = vadd.f32 %v5559, %v6005
  %v6007 = vpop.f32.mrb[0].mxu0
  %6008 = vmatprep.mubr.f32.mxu0 %v5677
  %6009 = vmatmul.mubr.f32.gmra.mrb[0].mxu0 %v5478
  %v6010 = vpop.f32.mrb[0].mxu0
  %v6011 = vadd.f32 %v5559, %v6010
  %v6012 = vpop.f32.mrb[0].mxu0
  %6013 = vmatprep.mubr.f32.mxu0 %v5680
  %6014 = vmatmul.mubr.f32.gmra.mrb[0].mxu0 %v5480
  %v6015 = vpop.f32.mrb[0].mxu0
  %v6016 = vadd.f32 %v5559, %v6015
  %v6017 = vpop.f32.mrb[0].mxu0
  %6018 = vmatprep.mubr.f32.mxu0 %v5683
  %6019 = vmatmul.mubr.f32.gmra.mrb[0].mxu0 %v5482
  %v6020 = vpop.f32.mrb[0].mxu0
  %v6021 = vadd.f32 %v5559, %v6020
  %v6022 = vpop.f32.mrb[0].mxu0
  %6023 = vmatprep.mubr.f32.mxu0 %v5686
  %6024 = vmatmul.mubr.f32.gmra.mrb[0].mxu0 %v5484
  %v6025 = vpop.f32.mrb[0].mxu0
  %v6026 = vadd.f32 %v5559, %v6025
  %v6027 = vpop.f32.mrb[0].mxu0
  %6028 = vmatprep.mubr.f32.mxu0 %v5689
  %6029 = vmatmul.mubr.f32.gmra.mrb[0].mxu0 %v5486
  %v6030 = vpop.f32.mrb[0].mxu0
  %v6031 = vadd.f32 %v5559, %v6030
  %v6032 = vpop.f32.mrb[0].mxu0
  %6033 = vmatprep.mubr.f32.mxu0 %v5692
  %6034 = vmatmul.mubr.f32.gmra.mrb[0].mxu0 %v5488
  %v6035 = vpop.f32.mrb[0].mxu0
  %v6036 = vadd.f32 %v5559, %v6035
  %v6037 = vpop.f32.mrb[0].mxu0
  %6038 = vmatprep.mubr.f32.mxu0 %v5695
  %6039 = vmatmul.mubr.f32.gmra.mrb[0].mxu0 %v5490
  %v6040 = vpop.f32.mrb[0].mxu0
  %v6041 = vadd.f32 %v5559, %v6040
  %v6042 = vpop.f32.mrb[0].mxu0
  %6043 = vmatprep.mubr.f32.mxu0 %v5698
  %6044 = vmatmul.mubr.f32.gmra.mrb[0].mxu0 %v5492
  %v6045 = vpop.f32.mrb[0].mxu0
  %v6046 = vadd.f32 %v5559, %v6045
  %v6047 = vpop.f32.mrb[0].mxu0
  %6048 = vmatprep.mubr.f32.mxu0 %v5701
  %6049 = vmatmul.mubr.f32.gmra.mrb[0].mxu0 %v5494
  %v6050 = vpop.f32.mrb[0].mxu0
  %v6051 = vadd.f32 %v5559, %v6050
  %v6052 = vpop.f32.mrb[0].mxu0
  %6053 = vmatprep.mubr.f32.mxu0 %v5704
  %6054 = vmatmul.mubr.f32.gmra.mrb[0].mxu0 %v5496
  %v6055 = vpop.f32.mrb[0].mxu0
  %v6056 = vadd.f32 %v5559, %v6055
  %v6057 = vpop.f32.mrb[0].mxu0
  %6058 = vmatprep.mubr.f32.mxu0 %v5707
  %6059 = vmatmul.mubr.f32.gmra.mrb[0].mxu0 %v5498
  %v6060 = vpop.f32.mrb[0].mxu0
  %v6061 = vadd.f32 %v5559, %v6060
  %v6062 = vpop.f32.mrb[0].mxu0
  %6063 = vmatprep.mubr.f32.mxu0 %v5710
  %6064 = vmatmul.mubr.f32.gmra.mrb[0].mxu0 %v5500
  %v6065 = vpop.f32.mrb[0].mxu0
  %v6066 = vadd.f32 %v5559, %v6065
  %v6067 = vpop.f32.mrb[0].mxu0
  %6068 = vmatprep.mubr.f32.mxu0 %v5713
  %6069 = vmatmul.mubr.f32.gmra.mrb[0].mxu0 %v5502
  %v6070 = vpop.f32.mrb[0].mxu0
  %v6071 = vadd.f32 %v5559, %v6070
  %v6072 = vpop.f32.mrb[0].mxu0
  %6073 = vmatprep.mubr.f32.mxu0 %v5716
  %6074 = vmatmul.mubr.f32.gmra.mrb[0].mxu0 %v5504
  %v6075 = vpop.f32.mrb[0].mxu0
  %v6076 = vadd.f32 %v5559, %v6075
  %v6077 = vpop.f32.mrb[0].mxu0
  %6078 = vmatprep.mubr.f32.mxu0 %v5719
  %6079 = vmatmul.mubr.f32.gmra.mrb[0].mxu0 %v5506
  %v6080 = vpop.f32.mrb[0].mxu0
  %v6081 = vadd.f32 %v5559, %v6080
  %v6082 = vpop.f32.mrb[0].mxu0
  %6083 = vmatprep.mubr.f32.mxu0 %v5722
  %6084 = vmatmul.mubr.f32.gmra.mrb[0].mxu0 %v5508
  %v6085 = vpop.f32.mrb[0].mxu0
  %v6086 = vadd.f32 %v5559, %v6085
  %v6087 = vpop.f32.mrb[0].mxu0
  %6088 = vmatprep.mubr.f32.mxu0 %v5725
  %6089 = vmatmul.mubr.f32.gmra.mrb[0].mxu0 %v5510
  %v6090 = vpop.f32.mrb[0].mxu0
  %v6091 = vadd.f32 %v5559, %v6090
  %v6092 = vpop.f32.mrb[0].mxu0
  %6093 = vmatprep.mubr.f32.mxu0 %v5728
  %6094 = vmatmul.mubr.f32.gmra.mrb[0].mxu0 %v5512
  %v6095 = vpop.f32.mrb[0].mxu0
  %v6096 = vadd.f32 %v5559, %v6095
  %v6097 = vpop.f32.mrb[0].mxu0
  %6098 = vmatprep.mubr.f32.mxu0 %v5731
  %6099 = vmatmul.mubr.f32.gmra.mrb[0].mxu0 %v5514
  %v6100 = vpop.f32.mrb[0].mxu0
  %v6101 = vadd.f32 %v5559, %v6100
  %v6102 = vpop.f32.mrb[0].mxu0
  %6103 = vmatprep.mubr.f32.mxu0 %v5734
  %6104 = vmatmul.mubr.f32.gmra.mrb[0].mxu0 %v5516
  %v6105 = vpop.f32.mrb[0].mxu0
  %v6106 = vadd.f32 %v5559, %v6105
  %v6107 = vpop.f32.mrb[0].mxu0
  %6108 = vmatprep.mubr.f32.mxu0 %v5737
  %6109 = vmatmul.mubr.f32.gmra.mrb[0].mxu0 %v5518
  %v6110 = vpop.f32.mrb[0].mxu0
  %v6111 = vadd.f32 %v5559, %v6110
  %v6112 = vpop.f32.mrb[0].mxu0
  %6113 = vmatprep.mubr.f32.mxu0 %v5740
  %6114 = vmatmul.mubr.f32.gmra.mrb[0].mxu0 %v5520
  %v6115 = vpop.f32.mrb[0].mxu0
  %v6116 = vadd.f32 %v5559, %v6115
  %v6117 = vpop.f32.mrb[0].mxu0
  %6118 = vmatprep.mubr.f32.mxu0 %v5743
  %6119 = vmatmul.mubr.f32.gmra.mrb[0].mxu0 %v5522
  %v6120 = vpop.f32.mrb[0].mxu0
  %v6121 = vadd.f32 %v5559, %v6120
  %v6122 = vpop.f32.mrb[0].mxu0
  %6123 = vmatprep.mubr.f32.mxu0 %v5746
  %6124 = vmatmul.mubr.f32.gmra.mrb[0].mxu0 %v5524
  %v6125 = vpop.f32.mrb[0].mxu0
  %v6126 = vadd.f32 %v5559, %v6125
  %v6127 = vpop.f32.mrb[0].mxu0
  %6128 = vmatprep.mubr.f32.mxu0 %v5749
  %6129 = vmatmul.mubr.f32.gmra.mrb[0].mxu0 %v5526
  %v6130 = vpop.f32.mrb[0].mxu0
  %v6131 = vadd.f32 %v5559, %v6130
  %v6132 = vpop.f32.mrb[0].mxu0
  %6133 = vmatprep.mubr.f32.mxu0 %v5752
  %6134 = vmatmul.mubr.f32.gmra.mrb[0].mxu0 %v5528
  %v6135 = vpop.f32.mrb[0].mxu0
  %v6136 = vadd.f32 %v5559, %v6135
  %v6137 = vpop.f32.mrb[0].mxu0
  %6138 = vdwg.mxu0
  %v6139 = vmax.f32 %v5821, 0.0
  %v6140 = vmax.f32 %v5826, 0.0
  %v6141 = vmax.f32 %v5831, 0.0
  %v6142 = vmax.f32 %v5836, 0.0
  %v6143 = vmax.f32 %v5841, 0.0
  %v6144 = vmax.f32 %v5846, 0.0
  %v6145 = vmax.f32 %v5851, 0.0
  %v6146 = vmax.f32 %v5856, 0.0
  %v6147 = vmax.f32 %v5861, 0.0
  %v6148 = vmax.f32 %v5866, 0.0
  %v6149 = vmax.f32 %v5871, 0.0
  %v6150 = vmax.f32 %v5876, 0.0
  %v6151 = vmax.f32 %v5881, 0.0
  %v6152 = vmax.f32 %v5886, 0.0
  %v6153 = vmax.f32 %v5891, 0.0
  %v6154 = vmax.f32 %v5896, 0.0
  %v6155 = vmax.f32 %v5901, 0.0
  %v6156 = vmax.f32 %v5906, 0.0
  %v6157 = vmax.f32 %v5911, 0.0
  %v6158 = vmax.f32 %v5916, 0.0
  %v6159 = vmax.f32 %v5921, 0.0
  %v6160 = vmax.f32 %v5926, 0.0
  %v6161 = vmax.f32 %v5931, 0.0
  %v6162 = vmax.f32 %v5936, 0.0
  %v6163 = vmax.f32 %v5941, 0.0
  %v6164 = vmax.f32 %v5946, 0.0
  %v6165 = vmax.f32 %v5951, 0.0
  %v6166 = vmax.f32 %v5956, 0.0
  %v6167 = vmax.f32 %v5961, 0.0
  %v6168 = vmax.f32 %v5966, 0.0
  %v6169 = vmax.f32 %v5971, 0.0
  %v6170 = vmax.f32 %v5976, 0.0
  %v6171 = vmax.f32 %v5981, 0.0
  %v6172 = vmax.f32 %v5986, 0.0
  %v6173 = vmax.f32 %v5991, 0.0
  %v6174 = vmax.f32 %v5996, 0.0
  %v6175 = vmax.f32 %v6001, 0.0
  %v6176 = vmax.f32 %v6006, 0.0
  %v6177 = vmax.f32 %v6011, 0.0
  %v6178 = vmax.f32 %v6016, 0.0
  %v6179 = vmax.f32 %v6021, 0.0
  %v6180 = vmax.f32 %v6026, 0.0
  %v6181 = vmax.f32 %v6031, 0.0
  %v6182 = vmax.f32 %v6036, 0.0
  %v6183 = vmax.f32 %v6041, 0.0
  %v6184 = vmax.f32 %v6046, 0.0
  %v6185 = vmax.f32 %v6051, 0.0
  %v6186 = vmax.f32 %v6056, 0.0
  %v6187 = vmax.f32 %v6061, 0.0
  %v6188 = vmax.f32 %v6066, 0.0
  %v6189 = vmax.f32 %v6071, 0.0
  %v6190 = vmax.f32 %v6076, 0.0
  %v6191 = vmax.f32 %v6081, 0.0
  %v6192 = vmax.f32 %v6086, 0.0
  %v6193 = vmax.f32 %v6091, 0.0
  %v6194 = vmax.f32 %v6096, 0.0
  %v6195 = vmax.f32 %v6101, 0.0
  %v6196 = vmax.f32 %v6106, 0.0
  %v6197 = vmax.f32 %v6111, 0.0
  %v6198 = vmax.f32 %v6116, 0.0
  %v6199 = vmax.f32 %v6121, 0.0
  %v6200 = vmax.f32 %v6126, 0.0
  %v6201 = vmax.f32 %v6131, 0.0
  %v6202 = vmax.f32 %v6136, 0.0
  %v6203 = vld [vmem:[%s7] sm:$0xff]
  %v6204 = vld [vmem:[%s7 + $0x8] sm:$0xff]
  %v6205 = vld [vmem:[%s7 + $0x10] sm:$0xff]
  %v6206 = vld [vmem:[%s8] sm:$0xff]
  %v6207 = vld [vmem:[%s8 + $0x8] sm:$0xff]
  %v6208 = vld [vmem:[%s8 + $0x10] sm:$0xff]
  %6210 = vset.pattern.permute.xlu0 0
  %6211 = vperm.xlu0 %6210, %v6206
  %v6212 = vpop.permute.xlu0 %6211
  %6215 = vset.pattern.permute.xlu0 0
  %6216 = vperm.xlu0 %6215, %v6207
  %v6217 = vpop.permute.xlu0 %6216
  %6220 = vset.pattern.permute.xlu0 0
  %6221 = vperm.xlu0 %6220, %v6208
  %v6222 = vpop.permute.xlu0 %6221
  %vm6224 = vcmask 392192
  %v6226 = vsel %vm6224, %v6203, 0
  %v6229 = vsel %vm6224, %v6204, 0
  %v6232 = vsel %vm6224, %v6205, 0
  %v6235 = vsel %vm6224, %v6139, 0
  %v6238 = vsel %vm6224, %v6140, 0
  %v6241 = vsel %vm6224, %v6141, 0
  %v6244 = vsel %vm6224, %v6142, 0
  %v6247 = vsel %vm6224, %v6143, 0
  %v6250 = vsel %vm6224, %v6144, 0
  %v6253 = vsel %vm6224, %v6145, 0
  %v6256 = vsel %vm6224, %v6146, 0
  %v6259 = vsel %vm6224, %v6147, 0
  %v6262 = vsel %vm6224, %v6148, 0
  %v6265 = vsel %vm6224, %v6149, 0
  %v6268 = vsel %vm6224, %v6150, 0
  %v6271 = vsel %vm6224, %v6151, 0
  %v6274 = vsel %vm6224, %v6152, 0
  %v6277 = vsel %vm6224, %v6153, 0
  %v6280 = vsel %vm6224, %v6154, 0
  %v6283 = vsel %vm6224, %v6155, 0
  %v6286 = vsel %vm6224, %v6156, 0
  %v6289 = vsel %vm6224, %v6157, 0
  %v6292 = vsel %vm6224, %v6158, 0
  %v6295 = vsel %vm6224, %v6159, 0
  %v6298 = vsel %vm6224, %v6160, 0
  %v6301 = vsel %vm6224, %v6161, 0
  %v6304 = vsel %vm6224, %v6162, 0
  %v6307 = vsel %vm6224, %v6163, 0
  %v6310 = vsel %vm6224, %v6164, 0
  %v6313 = vsel %vm6224, %v6165, 0
  %v6316 = vsel %vm6224, %v6166, 0
  %v6319 = vsel %vm6224, %v6167, 0
  %v6322 = vsel %vm6224, %v6168, 0
  %v6325 = vsel %vm6224, %v6169, 0
  %v6328 = vsel %vm6224, %v6170, 0
  %v6331 = vsel %vm6224, %v6171, 0
  %v6334 = vsel %vm6224, %v6172, 0
  %v6337 = vsel %vm6224, %v6173, 0
  %v6340 = vsel %vm6224, %v6174, 0
  %v6343 = vsel %vm6224, %v6175, 0
  %v6346 = vsel %vm6224, %v6176, 0
  %v6349 = vsel %vm6224, %v6177, 0
  %v6352 = vsel %vm6224, %v6178, 0
  %v6355 = vsel %vm6224, %v6179, 0
  %v6358 = vsel %vm6224, %v6180, 0
  %v6361 = vsel %vm6224, %v6181, 0
  %v6364 = vsel %vm6224, %v6182, 0
  %v6367 = vsel %vm6224, %v6183, 0
  %v6370 = vsel %vm6224, %v6184, 0
  %v6373 = vsel %vm6224, %v6185, 0
  %v6376 = vsel %vm6224, %v6186, 0
  %v6379 = vsel %vm6224, %v6187, 0
  %v6382 = vsel %vm6224, %v6188, 0
  %v6385 = vsel %vm6224, %v6189, 0
  %v6388 = vsel %vm6224, %v6190, 0
  %v6391 = vsel %vm6224, %v6191, 0
  %v6394 = vsel %vm6224, %v6192, 0
  %v6397 = vsel %vm6224, %v6193, 0
  %v6400 = vsel %vm6224, %v6194, 0
  %v6403 = vsel %vm6224, %v6195, 0
  %v6406 = vsel %vm6224, %v6196, 0
  %v6409 = vsel %vm6224, %v6197, 0
  %v6412 = vsel %vm6224, %v6198, 0
  %v6415 = vsel %vm6224, %v6199, 0
  %v6418 = vsel %vm6224, %v6200, 0
  %v6421 = vsel %vm6224, %v6201, 0
  %v6424 = vsel %vm6224, %v6202, 0
  %6426 = vmatprep.subr.mxu0 0.0
  %6427 = vmatpush1.xpose.msra.mxu0 %v6235
  %6428 = vmatprep.subr.mxu0 0.0
  %6429 = vmatpush1.xpose.msra.mxu0 %v6238
  %6430 = vmatprep.subr.mxu0 0.0
  %6431 = vmatpush1.xpose.msra.mxu0 %v6241
  %6432 = vmatprep.subr.mxu0 0.0
  %6433 = vmatpush1.xpose.msra.mxu0 %v6244
  %6434 = vmatprep.subr.mxu0 0.0
  %6435 = vmatpush1.xpose.msra.mxu0 %v6247
  %6436 = vmatprep.subr.mxu0 0.0
  %6437 = vmatpush1.xpose.msra.mxu0 %v6250
  %6438 = vmatprep.subr.mxu0 0.0
  %6439 = vmatpush1.xpose.msra.mxu0 %v6253
  %6440 = vmatprep.subr.mxu0 0.0
  %6441 = vmatpush1.xpose.msra.mxu0 %v6256
  %6442 = vmatprep.subr.mxu0 0.0
  %6443 = vmatpush1.xpose.msra.mxu0 %v6259
  %6444 = vmatprep.subr.mxu0 0.0
  %6445 = vmatpush1.xpose.msra.mxu0 %v6262
  %6446 = vmatprep.subr.mxu0 0.0
  %6447 = vmatpush1.xpose.msra.mxu0 %v6265
  %6448 = vmatprep.subr.mxu0 0.0
  %6449 = vmatpush1.xpose.msra.mxu0 %v6268
  %6450 = vmatprep.subr.mxu0 0.0
  %6451 = vmatpush1.xpose.msra.mxu0 %v6271
  %6452 = vmatprep.subr.mxu0 0.0
  %6453 = vmatpush1.xpose.msra.mxu0 %v6274
  %6454 = vmatprep.subr.mxu0 0.0
  %6455 = vmatpush1.xpose.msra.mxu0 %v6277
  %6456 = vmatprep.subr.mxu0 0.0
  %6457 = vmatpush1.xpose.msra.mxu0 %v6280
  %6458 = vmatprep.subr.mxu0 0.0
  %6459 = vmatpush1.xpose.msra.mxu0 %v6283
  %6460 = vmatprep.subr.mxu0 0.0
  %6461 = vmatpush1.xpose.msra.mxu0 %v6286
  %6462 = vmatprep.subr.mxu0 0.0
  %6463 = vmatpush1.xpose.msra.mxu0 %v6289
  %6464 = vmatprep.subr.mxu0 0.0
  %6465 = vmatpush1.xpose.msra.mxu0 %v6292
  %6466 = vmatprep.subr.mxu0 0.0
  %6467 = vmatpush1.xpose.msra.mxu0 %v6295
  %6468 = vmatprep.subr.mxu0 0.0
  %6469 = vmatpush1.xpose.msra.mxu0 %v6298
  %6470 = vmatprep.subr.mxu0 0.0
  %6471 = vmatpush1.xpose.msra.mxu0 %v6301
  %6472 = vmatprep.subr.mxu0 0.0
  %6473 = vmatpush1.xpose.msra.mxu0 %v6304
  %6474 = vmatprep.subr.mxu0 0.0
  %6475 = vmatpush1.xpose.msra.mxu0 %v6307
  %6476 = vmatprep.subr.mxu0 0.0
  %6477 = vmatpush1.xpose.msra.mxu0 %v6310
  %6478 = vmatprep.subr.mxu0 0.0
  %6479 = vmatpush1.xpose.msra.mxu0 %v6313
  %6480 = vmatprep.subr.mxu0 0.0
  %6481 = vmatpush1.xpose.msra.mxu0 %v6316
  %6482 = vmatprep.subr.mxu0 0.0
  %6483 = vmatpush1.xpose.msra.mxu0 %v6319
  %6484 = vmatprep.subr.mxu0 0.0
  %6485 = vmatpush1.xpose.msra.mxu0 %v6322
  %6486 = vmatprep.subr.mxu0 0.0
  %6487 = vmatpush1.xpose.msra.mxu0 %v6325
  %6488 = vmatprep.subr.mxu0 0.0
  %6489 = vmatpush1.xpose.msra.mxu0 %v6328
  %6490 = vmatprep.mubr.f32.mxu0 0.0
  %6491 = vmatmul.mubr.f32.gmra.mrb[0].mxu0 %v6226
  %v6492 = vpop.f32.mrb[0].mxu0
  %v6493 = vadd.f32 %v6212, %v6492
  %v6494 = vpop.f32.mrb[0].mxu0
  %v6495 = vadd.f32 %v6212, %v6494
  %6496 = vmatprep.mubr.f32.mxu0 0.0
  %6497 = vmatmul.mubr.f32.gmra.mrb[0].mxu0 %v6229
  %v6498 = vpop.f32.mrb[0].mxu0
  %v6499 = vadd.f32 %v6217, %v6498
  %v6500 = vpop.f32.mrb[0].mxu0
  %v6501 = vadd.f32 %v6217, %v6500
  %6502 = vmatprep.mubr.f32.mxu0 0.0
  %6503 = vmatmul.mubr.f32.gmra.mrb[0].mxu0 %v6232
  %v6504 = vpop.f32.mrb[0].mxu0
  %v6505 = vadd.f32 %v6222, %v6504
  %v6506 = vpop.f32.mrb[0].mxu0
  %v6507 = vadd.f32 %v6222, %v6506
  %6508 = vdwg.mxu0
  %6509 = vmatprep.subr.mxu0 0.0
  %6510 = vmatpush1.xpose.msra.mxu0 %v6331
  %6511 = vmatprep.subr.mxu0 0.0
  %6512 = vmatpush1.xpose.msra.mxu0 %v6334
  %6513 = vmatprep.subr.mxu0 0.0
  %6514 = vmatpush1.xpose.msra.mxu0 %v6337
  %6515 = vmatprep.subr.mxu0 0.0
  %6516 = vmatpush1.xpose.msra.mxu0 %v6340
  %6517 = vmatprep.subr.mxu0 0.0
  %6518 = vmatpush1.xpose.msra.mxu0 %v6343
  %6519 = vmatprep.subr.mxu0 0.0
  %6520 = vmatpush1.xpose.msra.mxu0 %v6346
  %6521 = vmatprep.subr.mxu0 0.0
  %6522 = vmatpush1.xpose.msra.mxu0 %v6349
  %6523 = vmatprep.subr.mxu0 0.0
  %6524 = vmatpush1.xpose.msra.mxu0 %v6352
  %6525 = vmatprep.subr.mxu0 0.0
  %6526 = vmatpush1.xpose.msra.mxu0 %v6355
  %6527 = vmatprep.subr.mxu0 0.0
  %6528 = vmatpush1.xpose.msra.mxu0 %v6358
  %6529 = vmatprep.subr.mxu0 0.0
  %6530 = vmatpush1.xpose.msra.mxu0 %v6361
  %6531 = vmatprep.subr.mxu0 0.0
  %6532 = vmatpush1.xpose.msra.mxu0 %v6364
  %6533 = vmatprep.subr.mxu0 0.0
  %6534 = vmatpush1.xpose.msra.mxu0 %v6367
  %6535 = vmatprep.subr.mxu0 0.0
  %6536 = vmatpush1.xpose.msra.mxu0 %v6370
  %6537 = vmatprep.subr.mxu0 0.0
  %6538 = vmatpush1.xpose.msra.mxu0 %v6373
  %6539 = vmatprep.subr.mxu0 0.0
  %6540 = vmatpush1.xpose.msra.mxu0 %v6376
  %6541 = vmatprep.subr.mxu0 0.0
  %6542 = vmatpush1.xpose.msra.mxu0 %v6379
  %6543 = vmatprep.subr.mxu0 0.0
  %6544 = vmatpush1.xpose.msra.mxu0 %v6382
  %6545 = vmatprep.subr.mxu0 0.0
  %6546 = vmatpush1.xpose.msra.mxu0 %v6385
  %6547 = vmatprep.subr.mxu0 0.0
  %6548 = vmatpush1.xpose.msra.mxu0 %v6388
  %6549 = vmatprep.subr.mxu0 0.0
  %6550 = vmatpush1.xpose.msra.mxu0 %v6391
  %6551 = vmatprep.subr.mxu0 0.0
  %6552 = vmatpush1.xpose.msra.mxu0 %v6394
  %6553 = vmatprep.subr.mxu0 0.0
  %6554 = vmatpush1.xpose.msra.mxu0 %v6397
  %6555 = vmatprep.subr.mxu0 0.0
  %6556 = vmatpush1.xpose.msra.mxu0 %v6400
  %6557 = vmatprep.subr.mxu0 0.0
  %6558 = vmatpush1.xpose.msra.mxu0 %v6403
  %6559 = vmatprep.subr.mxu0 0.0
  %6560 = vmatpush1.xpose.msra.mxu0 %v6406
  %6561 = vmatprep.subr.mxu0 0.0
  %6562 = vmatpush1.xpose.msra.mxu0 %v6409
  %6563 = vmatprep.subr.mxu0 0.0
  %6564 = vmatpush1.xpose.msra.mxu0 %v6412
  %6565 = vmatprep.subr.mxu0 0.0
  %6566 = vmatpush1.xpose.msra.mxu0 %v6415
  %6567 = vmatprep.subr.mxu0 0.0
  %6568 = vmatpush1.xpose.msra.mxu0 %v6418
  %6569 = vmatprep.subr.mxu0 0.0
  %6570 = vmatpush1.xpose.msra.mxu0 %v6421
  %6571 = vmatprep.subr.mxu0 0.0
  %6572 = vmatpush1.xpose.msra.mxu0 %v6424
  %6573 = vmatprep.mubr.f32.mxu0 0.0
  %6574 = vmatmul.mubr.f32.gmra.mrb[0].mxu0 %v6226
  %v6575 = vpop.f32.mrb[0].mxu0
  %v6576 = vadd.f32 %v6212, %v6575
  %v6577 = vpop.f32.mrb[0].mxu0
  %v6578 = vadd.f32 %v6212, %v6577
  %6579 = vmatprep.mubr.f32.mxu0 0.0
  %6580 = vmatmul.mubr.f32.gmra.mrb[0].mxu0 %v6229
  %v6581 = vpop.f32.mrb[0].mxu0
  %v6582 = vadd.f32 %v6217, %v6581
  %v6583 = vpop.f32.mrb[0].mxu0
  %v6584 = vadd.f32 %v6217, %v6583
  %6585 = vmatprep.mubr.f32.mxu0 0.0
  %6586 = vmatmul.mubr.f32.gmra.mrb[0].mxu0 %v6232
  %v6587 = vpop.f32.mrb[0].mxu0
  %v6588 = vadd.f32 %v6222, %v6587
  %v6589 = vpop.f32.mrb[0].mxu0
  %v6590 = vadd.f32 %v6222, %v6589
  %6591 = vdwg.mxu0
  %v6592 = vmax.f32 %v6493, 0.0
  %v6593 = vmax.f32 %v6495, 0.0
  %v6594 = vmax.f32 %v6576, 0.0
  %v6595 = vmax.f32 %v6578, 0.0
  %v6596 = vmax.f32 %v6499, 0.0
  %v6597 = vmax.f32 %v6501, 0.0
  %v6598 = vmax.f32 %v6582, 0.0
  %v6599 = vmax.f32 %v6584, 0.0
  %v6600 = vmax.f32 %v6505, 0.0
  %v6601 = vmax.f32 %v6507, 0.0
  %v6602 = vmax.f32 %v6588, 0.0
  %v6603 = vmax.f32 %v6590, 0.0
  %v6604 = vld [vmem:[%s9] sm:$0xff]
  %v6605 = vld [vmem:[%s9 + $0x8] sm:$0xff]
  %v6606 = vld [vmem:[%s9 + $0x10] sm:$0xff]
  %6608 = vset.pattern.permute.xlu0 0
  %6609 = vperm.xlu0 %6608, %v6604
  %v6610 = vpop.permute.xlu0 %6609
  %6613 = vset.pattern.permute.xlu0 0
  %6614 = vperm.xlu0 %6613, %v6605
  %v6615 = vpop.permute.xlu0 %6614
  %6618 = vset.pattern.permute.xlu0 0
  %6619 = vperm.xlu0 %6618, %v6606
  %v6620 = vpop.permute.xlu0 %6619
  %v6622 = vmul.f32 %v6592, %v6610
  %v6623 = vmul.f32 %v6593, %v6610
  %v6624 = vmul.f32 %v6594, %v6610
  %v6625 = vmul.f32 %v6595, %v6610
  %v6626 = vmul.f32 %v6596, %v6615
  %v6627 = vmul.f32 %v6597, %v6615
  %v6628 = vmul.f32 %v6598, %v6615
  %v6629 = vmul.f32 %v6599, %v6615
  %v6630 = vmul.f32 %v6600, %v6620
  %v6631 = vmul.f32 %v6601, %v6620
  %v6632 = vmul.f32 %v6602, %v6620
  %v6633 = vmul.f32 %v6603, %v6620
  %v6634 = vadd.f32 %v6622, %v6626
  %v6635 = vadd.f32 %v6634, %v6630
  %v6636 = vrot.slane %v6635, 4
  %v6637 = vadd.f32 %v6635, %v6636
  %v6638 = vrot.slane %v6637, 2
  %v6639 = vadd.f32 %v6637, %v6638
  %v6640 = vrot.slane %v6639, 1
  %v6641 = vadd.f32 %v6639, %v6640
  %v6642 = vadd.f32 %v6623, %v6627
  %v6643 = vadd.f32 %v6642, %v6631
  %v6644 = vrot.slane %v6643, 4
  %v6645 = vadd.f32 %v6643, %v6644
  %v6646 = vrot.slane %v6645, 2
  %v6647 = vadd.f32 %v6645, %v6646
  %v6648 = vrot.slane %v6647, 1
  %v6649 = vadd.f32 %v6647, %v6648
  %v6650 = vadd.f32 %v6624, %v6628
  %v6651 = vadd.f32 %v6650, %v6632
  %v6652 = vrot.slane %v6651, 4
  %v6653 = vadd.f32 %v6651, %v6652
  %v6654 = vrot.slane %v6653, 2
  %v6655 = vadd.f32 %v6653, %v6654
  %v6656 = vrot.slane %v6655, 1
  %v6657 = vadd.f32 %v6655, %v6656
  %v6658 = vadd.f32 %v6625, %v6629
  %v6659 = vadd.f32 %v6658, %v6633
  %v6660 = vrot.slane %v6659, 4
  %v6661 = vadd.f32 %v6659, %v6660
  %v6662 = vrot.slane %v6661, 2
  %v6663 = vadd.f32 %v6661, %v6662
  %v6664 = vrot.slane %v6663, 1
  %v6665 = vadd.f32 %v6663, %v6664
  %6666 = vset.pattern.permute.xlu0 1
  %6667 = vperm.xlu0 %6666, %v6604
  %v6668 = vpop.permute.xlu0 %6667
  %6670 = vset.pattern.permute.xlu0 1
  %6671 = vperm.xlu0 %6670, %v6605
  %v6672 = vpop.permute.xlu0 %6671
  %6674 = vset.pattern.permute.xlu0 1
  %6675 = vperm.xlu0 %6674, %v6606
  %v6676 = vpop.permute.xlu0 %6675
  %v6678 = vmul.f32 %v6592, %v6668
  %v6679 = vmul.f32 %v6593, %v6668
  %v6680 = vmul.f32 %v6594, %v6668
  %v6681 = vmul.f32 %v6595, %v6668
  %v6682 = vmul.f32 %v6596, %v6672
  %v6683 = vmul.f32 %v6597, %v6672
  %v6684 = vmul.f32 %v6598, %v6672
  %v6685 = vmul.f32 %v6599, %v6672
  %v6686 = vmul.f32 %v6600, %v6676
  %v6687 = vmul.f32 %v6601, %v6676
  %v6688 = vmul.f32 %v6602, %v6676
  %v6689 = vmul.f32 %v6603, %v6676
  %v6690 = vadd.f32 %v6678, %v6682
  %v6691 = vadd.f32 %v6690, %v6686
  %v6692 = vrot.slane %v6691, 4
  %v6693 = vadd.f32 %v6691, %v6692
  %v6694 = vrot.slane %v6693, 2
  %v6695 = vadd.f32 %v6693, %v6694
  %v6696 = vrot.slane %v6695, 1
  %v6697 = vadd.f32 %v6695, %v6696
  %v6698 = vadd.f32 %v6679, %v6683
  %v6699 = vadd.f32 %v6698, %v6687
  %v6700 = vrot.slane %v6699, 4
  %v6701 = vadd.f32 %v6699, %v6700
  %v6702 = vrot.slane %v6701, 2
  %v6703 = vadd.f32 %v6701, %v6702
  %v6704 = vrot.slane %v6703, 1
  %v6705 = vadd.f32 %v6703, %v6704
  %v6706 = vadd.f32 %v6680, %v6684
  %v6707 = vadd.f32 %v6706, %v6688
  %v6708 = vrot.slane %v6707, 4
  %v6709 = vadd.f32 %v6707, %v6708
  %v6710 = vrot.slane %v6709, 2
  %v6711 = vadd.f32 %v6709, %v6710
  %v6712 = vrot.slane %v6711, 1
  %v6713 = vadd.f32 %v6711, %v6712
  %v6714 = vadd.f32 %v6681, %v6685
  %v6715 = vadd.f32 %v6714, %v6689
  %v6716 = vrot.slane %v6715, 4
  %v6717 = vadd.f32 %v6715, %v6716
  %v6718 = vrot.slane %v6717, 2
  %v6719 = vadd.f32 %v6717, %v6718
  %v6720 = vrot.slane %v6719, 1
  %v6721 = vadd.f32 %v6719, %v6720
  %6722 = vset.pattern.permute.xlu0 2
  %6723 = vperm.xlu0 %6722, %v6604
  %v6724 = vpop.permute.xlu0 %6723
  %6726 = vset.pattern.permute.xlu0 2
  %6727 = vperm.xlu0 %6726, %v6605
  %v6728 = vpop.permute.xlu0 %6727
  %6730 = vset.pattern.permute.xlu0 2
  %6731 = vperm.xlu0 %6730, %v6606
  %v6732 = vpop.permute.xlu0 %6731
  %v6734 = vmul.f32 %v6592, %v6724
  %v6735 = vmul.f32 %v6593, %v6724
  %v6736 = vmul.f32 %v6594, %v6724
  %v6737 = vmul.f32 %v6595, %v6724
  %v6738 = vmul.f32 %v6596, %v6728
  %v6739 = vmul.f32 %v6597, %v6728
  %v6740 = vmul.f32 %v6598, %v6728
  %v6741 = vmul.f32 %v6599, %v6728
  %v6742 = vmul.f32 %v6600, %v6732
  %v6743 = vmul.f32 %v6601, %v6732
  %v6744 = vmul.f32 %v6602, %v6732
  %v6745 = vmul.f32 %v6603, %v6732
  %v6746 = vadd.f32 %v6734, %v6738
  %v6747 = vadd.f32 %v6746, %v6742
  %v6748 = vrot.slane %v6747, 4
  %v6749 = vadd.f32 %v6747, %v6748
  %v6750 = vrot.slane %v6749, 2
  %v6751 = vadd.f32 %v6749, %v6750
  %v6752 = vrot.slane %v6751, 1
  %v6753 = vadd.f32 %v6751, %v6752
  %v6754 = vadd.f32 %v6735, %v6739
  %v6755 = vadd.f32 %v6754, %v6743
  %v6756 = vrot.slane %v6755, 4
  %v6757 = vadd.f32 %v6755, %v6756
  %v6758 = vrot.slane %v6757, 2
  %v6759 = vadd.f32 %v6757, %v6758
  %v6760 = vrot.slane %v6759, 1
  %v6761 = vadd.f32 %v6759, %v6760
  %v6762 = vadd.f32 %v6736, %v6740
  %v6763 = vadd.f32 %v6762, %v6744
  %v6764 = vrot.slane %v6763, 4
  %v6765 = vadd.f32 %v6763, %v6764
  %v6766 = vrot.slane %v6765, 2
  %v6767 = vadd.f32 %v6765, %v6766
  %v6768 = vrot.slane %v6767, 1
  %v6769 = vadd.f32 %v6767, %v6768
  %v6770 = vadd.f32 %v6737, %v6741
  %v6771 = vadd.f32 %v6770, %v6745
  %v6772 = vrot.slane %v6771, 4
  %v6773 = vadd.f32 %v6771, %v6772
  %v6774 = vrot.slane %v6773, 2
  %v6775 = vadd.f32 %v6773, %v6774
  %v6776 = vrot.slane %v6775, 1
  %v6777 = vadd.f32 %v6775, %v6776
  %6778 = vset.pattern.permute.xlu0 3
  %6779 = vperm.xlu0 %6778, %v6604
  %v6780 = vpop.permute.xlu0 %6779
  %6782 = vset.pattern.permute.xlu0 3
  %6783 = vperm.xlu0 %6782, %v6605
  %v6784 = vpop.permute.xlu0 %6783
  %6786 = vset.pattern.permute.xlu0 3
  %6787 = vperm.xlu0 %6786, %v6606
  %v6788 = vpop.permute.xlu0 %6787
  %v6790 = vmul.f32 %v6592, %v6780
  %v6791 = vmul.f32 %v6593, %v6780
  %v6792 = vmul.f32 %v6594, %v6780
  %v6793 = vmul.f32 %v6595, %v6780
  %v6794 = vmul.f32 %v6596, %v6784
  %v6795 = vmul.f32 %v6597, %v6784
  %v6796 = vmul.f32 %v6598, %v6784
  %v6797 = vmul.f32 %v6599, %v6784
  %v6798 = vmul.f32 %v6600, %v6788
  %v6799 = vmul.f32 %v6601, %v6788
  %v6800 = vmul.f32 %v6602, %v6788
  %v6801 = vmul.f32 %v6603, %v6788
  %v6802 = vadd.f32 %v6790, %v6794
  %v6803 = vadd.f32 %v6802, %v6798
  %v6804 = vrot.slane %v6803, 4
  %v6805 = vadd.f32 %v6803, %v6804
  %v6806 = vrot.slane %v6805, 2
  %v6807 = vadd.f32 %v6805, %v6806
  %v6808 = vrot.slane %v6807, 1
  %v6809 = vadd.f32 %v6807, %v6808
  %v6810 = vadd.f32 %v6791, %v6795
  %v6811 = vadd.f32 %v6810, %v6799
  %v6812 = vrot.slane %v6811, 4
  %v6813 = vadd.f32 %v6811, %v6812
  %v6814 = vrot.slane %v6813, 2
  %v6815 = vadd.f32 %v6813, %v6814
  %v6816 = vrot.slane %v6815, 1
  %v6817 = vadd.f32 %v6815, %v6816
  %v6818 = vadd.f32 %v6792, %v6796
  %v6819 = vadd.f32 %v6818, %v6800
  %v6820 = vrot.slane %v6819, 4
  %v6821 = vadd.f32 %v6819, %v6820
  %v6822 = vrot.slane %v6821, 2
  %v6823 = vadd.f32 %v6821, %v6822
  %v6824 = vrot.slane %v6823, 1
  %v6825 = vadd.f32 %v6823, %v6824
  %v6826 = vadd.f32 %v6793, %v6797
  %v6827 = vadd.f32 %v6826, %v6801
  %v6828 = vrot.slane %v6827, 4
  %v6829 = vadd.f32 %v6827, %v6828
  %v6830 = vrot.slane %v6829, 2
  %v6831 = vadd.f32 %v6829, %v6830
  %v6832 = vrot.slane %v6831, 1
  %v6833 = vadd.f32 %v6831, %v6832
  %6834 = vset.pattern.permute.xlu0 4
  %6835 = vperm.xlu0 %6834, %v6604
  %v6836 = vpop.permute.xlu0 %6835
  %6838 = vset.pattern.permute.xlu0 4
  %6839 = vperm.xlu0 %6838, %v6605
  %v6840 = vpop.permute.xlu0 %6839
  %6842 = vset.pattern.permute.xlu0 4
  %6843 = vperm.xlu0 %6842, %v6606
  %v6844 = vpop.permute.xlu0 %6843
  %v6846 = vmul.f32 %v6592, %v6836
  %v6847 = vmul.f32 %v6593, %v6836
  %v6848 = vmul.f32 %v6594, %v6836
  %v6849 = vmul.f32 %v6595, %v6836
  %v6850 = vmul.f32 %v6596, %v6840
  %v6851 = vmul.f32 %v6597, %v6840
  %v6852 = vmul.f32 %v6598, %v6840
  %v6853 = vmul.f32 %v6599, %v6840
  %v6854 = vmul.f32 %v6600, %v6844
  %v6855 = vmul.f32 %v6601, %v6844
  %v6856 = vmul.f32 %v6602, %v6844
  %v6857 = vmul.f32 %v6603, %v6844
  %v6858 = vadd.f32 %v6846, %v6850
  %v6859 = vadd.f32 %v6858, %v6854
  %v6860 = vrot.slane %v6859, 4
  %v6861 = vadd.f32 %v6859, %v6860
  %v6862 = vrot.slane %v6861, 2
  %v6863 = vadd.f32 %v6861, %v6862
  %v6864 = vrot.slane %v6863, 1
  %v6865 = vadd.f32 %v6863, %v6864
  %v6866 = vadd.f32 %v6847, %v6851
  %v6867 = vadd.f32 %v6866, %v6855
  %v6868 = vrot.slane %v6867, 4
  %v6869 = vadd.f32 %v6867, %v6868
  %v6870 = vrot.slane %v6869, 2
  %v6871 = vadd.f32 %v6869, %v6870
  %v6872 = vrot.slane %v6871, 1
  %v6873 = vadd.f32 %v6871, %v6872
  %v6874 = vadd.f32 %v6848, %v6852
  %v6875 = vadd.f32 %v6874, %v6856
  %v6876 = vrot.slane %v6875, 4
  %v6877 = vadd.f32 %v6875, %v6876
  %v6878 = vrot.slane %v6877, 2
  %v6879 = vadd.f32 %v6877, %v6878
  %v6880 = vrot.slane %v6879, 1
  %v6881 = vadd.f32 %v6879, %v6880
  %v6882 = vadd.f32 %v6849, %v6853
  %v6883 = vadd.f32 %v6882, %v6857
  %v6884 = vrot.slane %v6883, 4
  %v6885 = vadd.f32 %v6883, %v6884
  %v6886 = vrot.slane %v6885, 2
  %v6887 = vadd.f32 %v6885, %v6886
  %v6888 = vrot.slane %v6887, 1
  %v6889 = vadd.f32 %v6887, %v6888
  %6890 = vset.pattern.permute.xlu0 5
  %6891 = vperm.xlu0 %6890, %v6604
  %v6892 = vpop.permute.xlu0 %6891
  %6894 = vset.pattern.permute.xlu0 5
  %6895 = vperm.xlu0 %6894, %v6605
  %v6896 = vpop.permute.xlu0 %6895
  %6898 = vset.pattern.permute.xlu0 5
  %6899 = vperm.xlu0 %6898, %v6606
  %v6900 = vpop.permute.xlu0 %6899
  %v6902 = vmul.f32 %v6592, %v6892
  %v6903 = vmul.f32 %v6593, %v6892
  %v6904 = vmul.f32 %v6594, %v6892
  %v6905 = vmul.f32 %v6595, %v6892
  %v6906 = vmul.f32 %v6596, %v6896
  %v6907 = vmul.f32 %v6597, %v6896
  %v6908 = vmul.f32 %v6598, %v6896
  %v6909 = vmul.f32 %v6599, %v6896
  %v6910 = vmul.f32 %v6600, %v6900
  %v6911 = vmul.f32 %v6601, %v6900
  %v6912 = vmul.f32 %v6602, %v6900
  %v6913 = vmul.f32 %v6603, %v6900
  %v6914 = vadd.f32 %v6902, %v6906
  %v6915 = vadd.f32 %v6914, %v6910
  %v6916 = vrot.slane %v6915, 4
  %v6917 = vadd.f32 %v6915, %v6916
  %v6918 = vrot.slane %v6917, 2
  %v6919 = vadd.f32 %v6917, %v6918
  %v6920 = vrot.slane %v6919, 1
  %v6921 = vadd.f32 %v6919, %v6920
  %v6922 = vadd.f32 %v6903, %v6907
  %v6923 = vadd.f32 %v6922, %v6911
  %v6924 = vrot.slane %v6923, 4
  %v6925 = vadd.f32 %v6923, %v6924
  %v6926 = vrot.slane %v6925, 2
  %v6927 = vadd.f32 %v6925, %v6926
  %v6928 = vrot.slane %v6927, 1
  %v6929 = vadd.f32 %v6927, %v6928
  %v6930 = vadd.f32 %v6904, %v6908
  %v6931 = vadd.f32 %v6930, %v6912
  %v6932 = vrot.slane %v6931, 4
  %v6933 = vadd.f32 %v6931, %v6932
  %v6934 = vrot.slane %v6933, 2
  %v6935 = vadd.f32 %v6933, %v6934
  %v6936 = vrot.slane %v6935, 1
  %v6937 = vadd.f32 %v6935, %v6936
  %v6938 = vadd.f32 %v6905, %v6909
  %v6939 = vadd.f32 %v6938, %v6913
  %v6940 = vrot.slane %v6939, 4
  %v6941 = vadd.f32 %v6939, %v6940
  %v6942 = vrot.slane %v6941, 2
  %v6943 = vadd.f32 %v6941, %v6942
  %v6944 = vrot.slane %v6943, 1
  %v6945 = vadd.f32 %v6943, %v6944
  %vm6946 = vcmask 1040384
  %v6947 = vsel %vm6946, %v6641, %v6697
  %v6948 = vsel %vm6946, %v6649, %v6705
  %v6949 = vsel %vm6946, %v6657, %v6713
  %v6950 = vsel %vm6946, %v6665, %v6721
  %vm6951 = vcmask 1041408
  %v6952 = vsel %vm6951, %v6947, %v6753
  %v6953 = vsel %vm6951, %v6948, %v6761
  %v6954 = vsel %vm6951, %v6949, %v6769
  %v6955 = vsel %vm6951, %v6950, %v6777
  %vm6956 = vcmask 1042432
  %v6957 = vsel %vm6956, %v6952, %v6809
  %v6958 = vsel %vm6956, %v6953, %v6817
  %v6959 = vsel %vm6956, %v6954, %v6825
  %v6960 = vsel %vm6956, %v6955, %v6833
  %vm6961 = vcmask 1043456
  %v6962 = vsel %vm6961, %v6957, %v6865
  %v6963 = vsel %vm6961, %v6958, %v6873
  %v6964 = vsel %vm6961, %v6959, %v6881
  %v6965 = vsel %vm6961, %v6960, %v6889
  %vm6966 = vcmask 1044480
  %v6967 = vsel %vm6966, %v6962, %v6921
  %v6968 = vsel %vm6966, %v6963, %v6929
  %v6969 = vsel %vm6966, %v6964, %v6937
  %v6970 = vsel %vm6966, %v6965, %v6945
  %v6971 = vld [vmem:[%s10] sm:$0x3f]
  %6973 = vset.pattern.permute.xlu0 0
  %6974 = vperm.xlu0 %6973, %v6971
  %v6975 = vpop.permute.xlu0 %6974
  %v6977 = vadd.f32 %v6967, %v6975
  %v6978 = vadd.f32 %v6968, %v6975
  %v6979 = vadd.f32 %v6969, %v6975
  %v6980 = vadd.f32 %v6970, %v6975
  %v6981 = vmax.f32 %v6977, 0.0
  %v6982 = vmax.f32 %v6978, 0.0
  %v6983 = vmax.f32 %v6979, 0.0
  %v6984 = vmax.f32 %v6980, 0.0
  %v6985 = vld [vmem:[%s11] sm:$0x3f]
  %6987 = vset.pattern.permute.xlu0 0
  %6988 = vperm.xlu0 %6987, %v6985
  %v6989 = vpop.permute.xlu0 %6988
  %v6991 = vmul.f32 %v6981, %v6989
  %v6992 = vmul.f32 %v6982, %v6989
  %v6993 = vmul.f32 %v6983, %v6989
  %v6994 = vmul.f32 %v6984, %v6989
  %vm6995 = vcmask 1045504
  %v6996 = vsel %vm6995, %v6991, 0.0
  %v6997 = vrot.slane %v6996, 4
  %v6998 = vadd.f32 %v6996, %v6997
  %v6999 = vrot.slane %v6998, 2
  %v7000 = vadd.f32 %v6998, %v6999
  %v7001 = vrot.slane %v7000, 1
  %v7002 = vadd.f32 %v7000, %v7001
  %v7003 = vsel %vm6995, %v6992, 0.0
  %v7004 = vrot.slane %v7003, 4
  %v7005 = vadd.f32 %v7003, %v7004
  %v7006 = vrot.slane %v7005, 2
  %v7007 = vadd.f32 %v7005, %v7006
  %v7008 = vrot.slane %v7007, 1
  %v7009 = vadd.f32 %v7007, %v7008
  %v7010 = vsel %vm6995, %v6993, 0.0
  %v7011 = vrot.slane %v7010, 4
  %v7012 = vadd.f32 %v7010, %v7011
  %v7013 = vrot.slane %v7012, 2
  %v7014 = vadd.f32 %v7012, %v7013
  %v7015 = vrot.slane %v7014, 1
  %v7016 = vadd.f32 %v7014, %v7015
  %v7017 = vsel %vm6995, %v6994, 0.0
  %v7018 = vrot.slane %v7017, 4
  %v7019 = vadd.f32 %v7017, %v7018
  %v7020 = vrot.slane %v7019, 2
  %v7021 = vadd.f32 %v7019, %v7020
  %v7022 = vrot.slane %v7021, 1
  %v7023 = vadd.f32 %v7021, %v7022
  %7024 = vset.pattern.permute.xlu0 1
  %7025 = vperm.xlu0 %7024, %v6985
  %v7026 = vpop.permute.xlu0 %7025
  %v7028 = vmul.f32 %v6981, %v7026
  %v7029 = vmul.f32 %v6982, %v7026
  %v7030 = vmul.f32 %v6983, %v7026
  %v7031 = vmul.f32 %v6984, %v7026
  %v7032 = vsel %vm6995, %v7028, 0.0
  %v7033 = vrot.slane %v7032, 4
  %v7034 = vadd.f32 %v7032, %v7033
  %v7035 = vrot.slane %v7034, 2
  %v7036 = vadd.f32 %v7034, %v7035
  %v7037 = vrot.slane %v7036, 1
  %v7038 = vadd.f32 %v7036, %v7037
  %v7039 = vsel %vm6995, %v7029, 0.0
  %v7040 = vrot.slane %v7039, 4
  %v7041 = vadd.f32 %v7039, %v7040
  %v7042 = vrot.slane %v7041, 2
  %v7043 = vadd.f32 %v7041, %v7042
  %v7044 = vrot.slane %v7043, 1
  %v7045 = vadd.f32 %v7043, %v7044
  %v7046 = vsel %vm6995, %v7030, 0.0
  %v7047 = vrot.slane %v7046, 4
  %v7048 = vadd.f32 %v7046, %v7047
  %v7049 = vrot.slane %v7048, 2
  %v7050 = vadd.f32 %v7048, %v7049
  %v7051 = vrot.slane %v7050, 1
  %v7052 = vadd.f32 %v7050, %v7051
  %v7053 = vsel %vm6995, %v7031, 0.0
  %v7054 = vrot.slane %v7053, 4
  %v7055 = vadd.f32 %v7053, %v7054
  %v7056 = vrot.slane %v7055, 2
  %v7057 = vadd.f32 %v7055, %v7056
  %v7058 = vrot.slane %v7057, 1
  %v7059 = vadd.f32 %v7057, %v7058
  %v7060 = vsel %vm6946, %v7002, %v7038
  %v7061 = vsel %vm6946, %v7009, %v7045
  %v7062 = vsel %vm6946, %v7016, %v7052
  %v7063 = vsel %vm6946, %v7023, %v7059
  %v7064 = vld [vmem:[%s12] sm:$0x3]
  %7066 = vset.pattern.permute.xlu0 0
  %7067 = vperm.xlu0 %7066, %v7064
  %v7068 = vpop.permute.xlu0 %7067
  %v7070 = vadd.f32 %v7060, %v7068
  %v7071 = vadd.f32 %v7061, %v7068
  %v7072 = vadd.f32 %v7062, %v7068
  %v7073 = vadd.f32 %v7063, %v7068
  %v7074 = vmax.f32 %v7070, 0.0
  %v7075 = vmax.f32 %v7071, 0.0
  %v7076 = vmax.f32 %v7072, 0.0
  %v7077 = vmax.f32 %v7073, 0.0
  %v7078 = vld [vmem:[%s13] sm:$0x3]
  %7080 = vset.pattern.permute.xlu0 0
  %7081 = vperm.xlu0 %7080, %v7078
  %v7082 = vpop.permute.xlu0 %7081
  %v7084 = vmul.f32 %v7074, %v7082
  %v7085 = vmul.f32 %v7075, %v7082
  %v7086 = vmul.f32 %v7076, %v7082
  %v7087 = vmul.f32 %v7077, %v7082
  %v7088 = vsel %vm6951, %v7084, 0.0
  %v7089 = vrot.slane %v7088, 4
  %v7090 = vadd.f32 %v7088, %v7089
  %v7091 = vrot.slane %v7090, 2
  %v7092 = vadd.f32 %v7090, %v7091
  %v7093 = vrot.slane %v7092, 1
  %v7094 = vadd.f32 %v7092, %v7093
  %v7095 = vsel %vm6951, %v7085, 0.0
  %v7096 = vrot.slane %v7095, 4
  %v7097 = vadd.f32 %v7095, %v7096
  %v7098 = vrot.slane %v7097, 2
  %v7099 = vadd.f32 %v7097, %v7098
  %v7100 = vrot.slane %v7099, 1
  %v7101 = vadd.f32 %v7099, %v7100
  %v7102 = vsel %vm6951, %v7086, 0.0
  %v7103 = vrot.slane %v7102, 4
  %v7104 = vadd.f32 %v7102, %v7103
  %v7105 = vrot.slane %v7104, 2
  %v7106 = vadd.f32 %v7104, %v7105
  %v7107 = vrot.slane %v7106, 1
  %v7108 = vadd.f32 %v7106, %v7107
  %v7109 = vsel %vm6951, %v7087, 0.0
  %v7110 = vrot.slane %v7109, 4
  %v7111 = vadd.f32 %v7109, %v7110
  %v7112 = vrot.slane %v7111, 2
  %v7113 = vadd.f32 %v7111, %v7112
  %v7114 = vrot.slane %v7113, 1
  %v7115 = vadd.f32 %v7113, %v7114
  %v7116 = vld [vmem:[#allocation2] sm:$0x1]
  %7118 = vset.pattern.permute.xlu0 0
  %7119 = vperm.xlu0 %7118, %v7116
  %v7120 = vpop.permute.xlu0 %7119
  %v7122 = vlaneseq
  %v7123 = vshrl.u32 %v7122, 7
  %v7124 = vsub.s32 0, %v7123
  %v7125 = vrot.slane %v7120, %v7124
  %v7126 = vadd.f32 %v7094, %v7125
  %v7127 = vadd.f32 %v7101, %v7125
  %v7128 = vadd.f32 %v7108, %v7125
  %v7129 = vadd.f32 %v7115, %v7125
  %v7130 = vsub.f32 0.0, %v7126
  %v7131 = vsub.f32 0.0, %v7127
  %v7132 = vsub.f32 0.0, %v7128
  %v7133 = vsub.f32 0.0, %v7129
  %v7134 = vmul.f32 %v7130, 1.442695
  %v7135 = vpow.pop %v7134
  %v7136 = vmul.f32 %v7131, 1.442695
  %v7137 = vpow.pop %v7136
  %v7138 = vmul.f32 %v7132, 1.442695
  %v7139 = vpow.pop %v7138
  %v7140 = vmul.f32 %v7133, 1.442695
  %v7141 = vpow.pop %v7140
  %v7142 = vadd.f32 %v7135, 1.0
  %v7143 = vadd.f32 %v7137, 1.0
  %v7144 = vadd.f32 %v7139, 1.0
  %v7145 = vadd.f32 %v7141, 1.0
  %v7146 = vrcp.pop %v7142
  %v7147 = vrcp.pop %v7143
  %v7148 = vrcp.pop %v7144
  %v7149 = vrcp.pop %v7145
  %v7154 = vcombine.low %v7146, %v7147
  %v7155 = vcombine.low %v7148, %v7149
  %v7157 = vunpack.c.l.s4 1966171168
  %v7158 = vunpack.c.0.s8 %v7157
  %v7159 = vlaneseq
  %v7160 = vshrl.u32 %v7159, 7
  %v7161 = vsub.s32 %v7158, %v7160
  %v7162 = vrot.slane %v7154, %v7161
  %v7164 = vunpack.c.l.s4 1966171168
  %v7165 = vunpack.c.0.s8 %v7164
  %v7166 = vlaneseq
  %v7167 = vshrl.u32 %v7166, 7
  %v7168 = vsub.s32 %v7165, %v7167
  %v7169 = vrot.slane %v7155, %v7168
  %v7170 = vcombine.low %v7162, %v7169
  %v7172 = vunpack.c.l.s4 1966171168
  %v7173 = vunpack.c.0.s8 %v7172
  %v7174 = vlaneseq
  %v7175 = vshrl.u32 %v7174, 7
  %v7176 = vsub.s32 %v7173, %v7175
  %v7177 = vrot.slane %v7170, %v7176
  %v7179 = vlaneseq
  %vm7180 = vcmp.ge.s32.totalorder %v7179, 0
  %vm7181 = vcmp.lt.s32.totalorder %v7179, 512
  %vm7182 = vmand %vm7180, %vm7181
  %7183 = vst.msk [vmem:[%s15] sm:$0xf] %vm7182, %v7177
  // Predicated region
  $region62: #{neural_network2_forward.1} parent=0 // pred_check
    _
  $region63: #{neural_network2_forward.1} parent=0 // pred_check_branch
    %7185 = sbr.rel (0) target = $region65
  $region64: #{neural_network2_forward.1} parent=0 // pred_region
    _
  $region65: #{neural_network2_forward.1} parent=0 // pred_fallthru
    _
  // Predicated region
  $region66: #{neural_network2_forward.1} parent=0 // pred_check
    _
  $region67: #{neural_network2_forward.1} parent=0 // pred_check_branch
    %7187 = sbr.rel (0) target = $region69
  $region68: #{neural_network2_forward.1} parent=0 // pred_region
    _
  $region69: #{neural_network2_forward.1} parent=0 // pred_fallthru
    _

</llo_original>
